<compile_context>
chip_gen: v6e
topology: v6e:2x2x1
jax: 0.10.0
libtpu: 0.0.40
codegen_flags: <defaults>
</compile_context>

<pallas_src>
import jax
import jax.numpy as jnp
from jax import lax
from jax.experimental import pallas as pl
from jax.experimental.pallas import tpu as pltpu

# ---- module hyperparameters (from model.py) ----
n_embd = 384
num_heads = 6
head_size = n_embd // num_heads      # 64
block_size = 256                     # max sequence length (causal-mask buffer size)
Q_TILE = 128                         # query-row chunk size (keeps score blocks small)


def _q_tile(T):
    """Largest query tile <= Q_TILE that divides T (multiple of 8 sublanes)."""
    if T <= Q_TILE:
        return T
    for t in range(Q_TILE, 7, -8):
        if T % t == 0:
            return t
    return 8


def _rows_per_step(B, T):
    """Batch rows per grid step: fill the 256-row MXU (v6e/v7x) while preferring an
    even 'parallel' grid axis so v7x can shard it evenly over its two TensorCores."""
    cap = max(1, 256 // T)
    divisors = [d for d in range(1, min(B, cap) + 1) if B % d == 0]
    even_grid = [d for d in divisors if (B // d) % 2 == 0]
    return max(even_grid) if even_grid else max(divisors)


# ---------------- Pallas kernel ----------------
def mha_fused_kernel(x_ref, wqkv_ref, wproj_ref, bproj_ref, o_ref):
    """x_ref    : (Bb, T, C) f32
       wqkv_ref : (C, 3C)    bf16  columns = [Q_h0..Q_h5 | K_h0..K_h5 | V_h0..V_h5]
       wproj_ref: (C, C)     bf16
       bproj_ref: (1, C)     f32
       o_ref    : (Bb, T, C) f32   (lane-dense stores: C = 384 = 3 * 128)
    """
    Bb, T, C = x_ref.shape
    H = num_heads
    hs = C // H
    scale = C ** (-0.5)      # NOTE: module scales by n_embd**-0.5 (x.shape[-1]), not head_size**-0.5

    # One fused QKV projection over all Bb rows at once: bf16 MXU operands with f32
    # accumulation, then a single cast of the whole result to bf16 (the q/k/v
    # operands of the attention matmuls).  Softmax numerics below stay in f32.
    x2 = x_ref[...].reshape(Bb * T, C).astype(jnp.bfloat16)
    qkv = jnp.dot(x2, wqkv_ref[...],
                  preferred_element_type=jnp.float32).astype(jnp.bfloat16)   # (Bb*T, 3C)

    wproj = wproj_ref[...]        # (C, C) bf16, resident across grid steps
    bias = bproj_ref[...]         # (1, C) f32

    tq = _q_tile(T)
    n_chunks = T // tq
    neg_big = jnp.float32(-1e30)

    for b in range(Bb):                       # static: Bb is 1-2
        row0 = b * T
        for qc in range(n_chunks):            # static: <= 2 chunks
            r0 = qc * tq
            kv_len = r0 + tq                  # causal truncation: later keys are never used
            q_blk = qkv[row0 + r0: row0 + r0 + tq]         # (tq, 3C)     bf16
            kv_blk = qkv[row0: row0 + kv_len]              # (kv_len, 3C) bf16

            # Diagonal tq x tq tril mask, recomputed per chunk (cheap VPU filler off
            # the MXU critical path; avoids pinning vregs across the unrolled loops).
            ri = lax.broadcasted_iota(jnp.int32, (tq, tq), 0)
            ci = lax.broadcasted_iota(jnp.int32, (tq, tq), 1)
            diag_mask = ri >= ci

            head_outs = []
            for h in range(H):                # static: 6 heads
                c0 = h * hs
                q_h = q_blk[:, c0: c0 + hs]                      # (tq, hs)
                k_h = kv_blk[:, C + c0: C + c0 + hs]             # (kv_len, hs)
                v_h = kv_blk[:, 2 * C + c0: 2 * C + c0 + hs]     # (kv_len, hs)

                # Contract K on its last dim: no explicit (hs, kv_len) transpose (XLU-free).
                s = lax.dot_general(q_h, k_h, (((1,), (1,)), ((), ())),
                                    preferred_element_type=jnp.float32) * scale
                # Only the diagonal block needs the causal mask; history columns (< r0)
                # are fully visible, so no where/mask work there.
                if r0 == 0:
                    s = jnp.where(diag_mask, s, neg_big)
                else:
                    s = jnp.concatenate(
                        [s[:, :r0], jnp.where(diag_mask, s[:, r0:], neg_big)], axis=-1)

                s = s - jnp.max(s, axis=-1, keepdims=True)        # stable softmax (f32)
                p = jnp.exp(s)
                p = p * pl.reciprocal(jnp.sum(p, axis=-1, keepdims=True), approx=True)
                # dropout(p): inference-mode identity.

                head_outs.append(
                    jnp.dot(p.astype(jnp.bfloat16), v_h,
                            preferred_element_type=jnp.float32).astype(jnp.bfloat16))

            # Per-chunk fused output projection: the concatenated heads never touch a
            # VMEM scratch, and the store below is an unmasked lane-dense 384-wide vst.
            cat = jnp.concatenate(head_outs, axis=-1)             # (tq, C) bf16
            y = jnp.dot(cat, wproj, preferred_element_type=jnp.float32) + bias
            # dropout(y): inference-mode identity.
            o_ref[b, r0:r0 + tq, :] = y.astype(o_ref.dtype)


# ---------------- wrapper ----------------
def multi_head_attention(x, wq, wk, wv, w_proj, b_proj):
    """x: (B,T,C) f32;  wq/wk/wv: (H, C, hs);  w_proj: (C, C);  b_proj: (1, C)."""
    B, T, C = x.shape
    H, _, hs = wq.shape
    assert C == H * hs
    assert T <= block_size and T % 8 == 0

    bb = _rows_per_step(B, T)

    # Pack per-head weights into one (C, 3C) slab -> a single wide QKV matmul, and
    # pre-cast the weight operands to bf16 host-side (halves their DMA footprint).
    wq_flat = jnp.transpose(wq, (1, 0, 2)).reshape(C, H * hs)
    wk_flat = jnp.transpose(wk, (1, 0, 2)).reshape(C, H * hs)
    wv_flat = jnp.transpose(wv, (1, 0, 2)).reshape(C, H * hs)
    w_qkv = jnp.concatenate([wq_flat, wk_flat, wv_flat], axis=1).astype(jnp.bfloat16)
    w_proj_bf = w_proj.astype(jnp.bfloat16)

    # TODO(synk): on v7x with deeper grids, pipeline_mode=pl.Buffered(3) on the x input
    # would hide more DMA latency; omitted because the demo grid is only 2 steps.
    return pl.pallas_call(
        mha_fused_kernel,
        out_shape=jax.ShapeDtypeStruct((B, T, C), x.dtype),
        grid=(B // bb,),
        in_specs=[
            pl.BlockSpec((bb, T, C), lambda i: (i, 0, 0)),
            # Constant-index weight blocks: DMA'd once, resident across grid steps.
            pl.BlockSpec((C, 3 * C), lambda i: (0, 0)),
            pl.BlockSpec((C, C), lambda i: (0, 0)),
            pl.BlockSpec((1, C), lambda i: (0, 0)),
        ],
        out_specs=pl.BlockSpec((bb, T, C), lambda i: (i, 0, 0)),
        compiler_params=pltpu.CompilerParams(
            dimension_semantics=("parallel",)),
    )(x, w_qkv, w_proj_bf, b_proj)


# ---------------- pure-JAX reference (for correctness check) ----------------
def reference(x, wq, wk, wv, w_proj, b_proj):
    B, T, C = x.shape
    mask = jnp.tril(jnp.ones((T, T), dtype=bool))
    outs = []
    for h in range(wq.shape[0]):
        q = x @ wq[h]
        k = x @ wk[h]
        v = x @ wv[h]
        wei = (q @ jnp.swapaxes(k, -2, -1)) * (C ** -0.5)
        wei = jnp.where(mask, wei, -jnp.inf)
        wei = jax.nn.softmax(wei, axis=-1)
        outs.append(wei @ v)
    cat = jnp.concatenate(outs, axis=-1)
    return cat @ w_proj + b_proj[0]


if __name__ == "__main__":
    key = jax.random.PRNGKey(0)
    kq, kk, kv, kw, kb, kx1, kx2 = jax.random.split(key, 7)

    # deterministic synthetic parameters (PyTorch Linear stores (out,in); we store (in,out))
    wq = jax.random.normal(kq, (num_heads, n_embd, head_size), dtype=jnp.float32) * 0.02
    wk = jax.random.normal(kk, (num_heads, n_embd, head_size), dtype=jnp.float32) * 0.02
    wv = jax.random.normal(kv, (num_heads, n_embd, head_size), dtype=jnp.float32) * 0.02
    w_proj = jax.random.normal(kw, (n_embd, n_embd), dtype=jnp.float32) * 0.02
    b_proj = jax.random.normal(kb, (1, n_embd), dtype=jnp.float32) * 0.02

    # case 1: Bb=2 rows per grid step (M=256 QKV matmul), single query chunk
    # case 2: full block_size sequence -> two query chunks + causal K/V truncation
    cases = [((4, 128), kx1), ((2, block_size), kx2)]
    for (B, T), kx in cases:
        x = jax.random.normal(kx, (B, T, n_embd), dtype=jnp.float32)
        out = jax.block_until_ready(multi_head_attention(x, wq, wk, wv, w_proj, b_proj))
        ref = reference(x, wq, wk, wv, w_proj, b_proj)
        assert out.shape == (B, T, n_embd)
        # tolerance covers bf16 MXU operand rounding (all accumulation is f32,
        # softmax/mask/exp/reciprocal are f32); f32-operand path passes 1e-3
        max_err = float(jnp.max(jnp.abs(out - ref)))
        assert jnp.allclose(out, ref, atol=2e-3, rtol=2e-3), f"max abs err {max_err}"

    print("KERNEL_OK")
</pallas_src>

<mosaic_0001>
module attributes {stable_mosaic.version = 11 : i64} {
  func.func @mha_fused_kernel(%arg0: i32, %arg1: memref<2x128x384xf32, #tpu.memory_space<vmem>>, %arg2: memref<384x1152xbf16, #tpu.memory_space<vmem>>, %arg3: memref<384x384xbf16, #tpu.memory_space<vmem>>, %arg4: memref<1x384xf32, #tpu.memory_space<vmem>>, %arg5: memref<2x128x384xf32, #tpu.memory_space<vmem>>) attributes {dimension_semantics = [#tpu.dimension_semantics<parallel>], iteration_bounds = array<i64: 2>, scalar_prefetch = 0 : i64, scratch_operands = 0 : i64, tpu.core_type = #tpu.core_type<tc>, window_params = [{transform_indices = @transform_0, window_bounds = array<i64: 2, 128, 384>}, {pipeline_mode = #tpu.pipeline_mode<synchronous>, transform_indices = @transform_1, window_bounds = array<i64: 384, 1152>}, {pipeline_mode = #tpu.pipeline_mode<synchronous>, transform_indices = @transform_2, window_bounds = array<i64: 384, 384>}, {pipeline_mode = #tpu.pipeline_mode<synchronous>, transform_indices = @transform_3, window_bounds = array<i64: 1, 384>}, {transform_indices = @transform_4, window_bounds = array<i64: 2, 128, 384>}]} {
    %c0 = arith.constant 0 : index
    %c0_0 = arith.constant 0 : index
    %c0_1 = arith.constant 0 : index
    %0 = vector.load %arg1[%c0, %c0_0, %c0_1] : memref<2x128x384xf32, #tpu.memory_space<vmem>>, vector<2x128x384xf32>
    %1 = vector.shape_cast %0 : vector<2x128x384xf32> to vector<256x384xf32>
    %2 = arith.truncf %1 : vector<256x384xf32> to vector<256x384xbf16>
    %c0_2 = arith.constant 0 : index
    %c0_3 = arith.constant 0 : index
    %3 = vector.load %arg2[%c0_2, %c0_3] : memref<384x1152xbf16, #tpu.memory_space<vmem>>, vector<384x1152xbf16>
    %cst = arith.constant dense<0.000000e+00> : vector<256x1152xf32>
    %4 = tpu.matmul %2, %3, %cst {dimension_numbers = #tpu.dot_dimension_numbers<[1], [0], [0], [1], [0, 0, 1, 1], [], []>} : vector<256x384xbf16>, vector<384x1152xbf16>, vector<256x1152xf32> -> vector<256x1152xf32>
    %5 = arith.truncf %4 : vector<256x1152xf32> to vector<256x1152xbf16>
    %c0_4 = arith.constant 0 : index
    %c0_5 = arith.constant 0 : index
    %6 = vector.load %arg3[%c0_4, %c0_5] : memref<384x384xbf16, #tpu.memory_space<vmem>>, vector<384x384xbf16>
    %c0_6 = arith.constant 0 : index
    %c0_7 = arith.constant 0 : index
    %7 = vector.load %arg4[%c0_6, %c0_7] : memref<1x384xf32, #tpu.memory_space<vmem>>, vector<1x384xf32>
    %8 = vector.extract_strided_slice %5 {offsets = [0, 0], sizes = [128, 1152], strides = [1, 1]} : vector<256x1152xbf16> to vector<128x1152xbf16>
    %9 = vector.extract_strided_slice %5 {offsets = [0, 0], sizes = [128, 1152], strides = [1, 1]} : vector<256x1152xbf16> to vector<128x1152xbf16>
    %10 = tpu.iota {dimensions = array<i32: 0>} : vector<128x128xi32>
    %11 = tpu.iota {dimensions = array<i32: 1>} : vector<128x128xi32>
    %12 = arith.cmpi sge, %10, %11 : vector<128x128xi32>
    %13 = vector.extract_strided_slice %8 {offsets = [0, 0], sizes = [128, 64], strides = [1, 1]} : vector<128x1152xbf16> to vector<128x64xbf16>
    %14 = vector.extract_strided_slice %9 {offsets = [0, 384], sizes = [128, 64], strides = [1, 1]} : vector<128x1152xbf16> to vector<128x64xbf16>
    %15 = vector.extract_strided_slice %9 {offsets = [0, 768], sizes = [128, 64], strides = [1, 1]} : vector<128x1152xbf16> to vector<128x64xbf16>
    %cst_8 = arith.constant dense<0.000000e+00> : vector<128x128xf32>
    %16 = tpu.matmul %13, %14, %cst_8 {dimension_numbers = #tpu.dot_dimension_numbers<[1], [1], [0], [0], [0, 0, 1, 0], [], []>} : vector<128x64xbf16>, vector<128x64xbf16>, vector<128x128xf32> -> vector<128x128xf32>
    %cst_9 = arith.constant 0.0510310382 : f32
    %17 = vector.broadcast %cst_9 : f32 to vector<128x128xf32>
    %18 = arith.mulf %16, %17 : vector<128x128xf32>
    %cst_10 = arith.constant -1.000000e+30 : f32
    %19 = vector.broadcast %cst_10 : f32 to vector<128x128xf32>
    %20 = arith.select %12, %18, %19 : vector<128x128xi1>, vector<128x128xf32>
    %cst_11 = arith.constant dense<0xFF800000> : vector<128xf32>
    %21 = vector.multi_reduction <maximumf>, %20, %cst_11 [1] : vector<128x128xf32> to vector<128xf32>
    %22 = vector.shape_cast %21 : vector<128xf32> to vector<128x1xf32>
    %23 = vector.broadcast %22 : vector<128x1xf32> to vector<128x128xf32>
    %24 = arith.subf %20, %23 : vector<128x128xf32>
    %25 = math.exp %24 : vector<128x128xf32>
    %cst_12 = arith.constant dense<0.000000e+00> : vector<128xf32>
    %26 = vector.multi_reduction <add>, %25, %cst_12 [1] : vector<128x128xf32> to vector<128xf32>
    %27 = vector.shape_cast %26 : vector<128xf32> to vector<128x1xf32>
    %28 = tpu.reciprocal %27 {approx = true} : vector<128x1xf32> -> vector<128x1xf32>
    %29 = vector.broadcast %28 : vector<128x1xf32> to vector<128x128xf32>
    %30 = arith.mulf %25, %29 : vector<128x128xf32>
    %31 = arith.truncf %30 : vector<128x128xf32> to vector<128x128xbf16>
    %cst_13 = arith.constant dense<0.000000e+00> : vector<128x64xf32>
    %32 = tpu.matmul %31, %15, %cst_13 {dimension_numbers = #tpu.dot_dimension_numbers<[1], [0], [0], [1], [0, 0, 1, 1], [], []>} : vector<128x128xbf16>, vector<128x64xbf16>, vector<128x64xf32> -> vector<128x64xf32>
    %33 = arith.truncf %32 : vector<128x64xf32> to vector<128x64xbf16>
    %34 = vector.extract_strided_slice %8 {offsets = [0, 64], sizes = [128, 64], strides = [1, 1]} : vector<128x1152xbf16> to vector<128x64xbf16>
    %35 = vector.extract_strided_slice %9 {offsets = [0, 448], sizes = [128, 64], strides = [1, 1]} : vector<128x1152xbf16> to vector<128x64xbf16>
    %36 = vector.extract_strided_slice %9 {offsets = [0, 832], sizes = [128, 64], strides = [1, 1]} : vector<128x1152xbf16> to vector<128x64xbf16>
    %cst_14 = arith.constant dense<0.000000e+00> : vector<128x128xf32>
    %37 = tpu.matmul %34, %35, %cst_14 {dimension_numbers = #tpu.dot_dimension_numbers<[1], [1], [0], [0], [0, 0, 1, 0], [], []>} : vector<128x64xbf16>, vector<128x64xbf16>, vector<128x128xf32> -> vector<128x128xf32>
    %cst_15 = arith.constant 0.0510310382 : f32
    %38 = vector.broadcast %cst_15 : f32 to vector<128x128xf32>
    %39 = arith.mulf %37, %38 : vector<128x128xf32>
    %cst_16 = arith.constant -1.000000e+30 : f32
    %40 = vector.broadcast %cst_16 : f32 to vector<128x128xf32>
    %41 = arith.select %12, %39, %40 : vector<128x128xi1>, vector<128x128xf32>
    %cst_17 = arith.constant dense<0xFF800000> : vector<128xf32>
    %42 = vector.multi_reduction <maximumf>, %41, %cst_17 [1] : vector<128x128xf32> to vector<128xf32>
    %43 = vector.shape_cast %42 : vector<128xf32> to vector<128x1xf32>
    %44 = vector.broadcast %43 : vector<128x1xf32> to vector<128x128xf32>
    %45 = arith.subf %41, %44 : vector<128x128xf32>
    %46 = math.exp %45 : vector<128x128xf32>
    %cst_18 = arith.constant dense<0.000000e+00> : vector<128xf32>
    %47 = vector.multi_reduction <add>, %46, %cst_18 [1] : vector<128x128xf32> to vector<128xf32>
    %48 = vector.shape_cast %47 : vector<128xf32> to vector<128x1xf32>
    %49 = tpu.reciprocal %48 {approx = true} : vector<128x1xf32> -> vector<128x1xf32>
    %50 = vector.broadcast %49 : vector<128x1xf32> to vector<128x128xf32>
    %51 = arith.mulf %46, %50 : vector<128x128xf32>
    %52 = arith.truncf %51 : vector<128x128xf32> to vector<128x128xbf16>
    %cst_19 = arith.constant dense<0.000000e+00> : vector<128x64xf32>
    %53 = tpu.matmul %52, %36, %cst_19 {dimension_numbers = #tpu.dot_dimension_numbers<[1], [0], [0], [1], [0, 0, 1, 1], [], []>} : vector<128x128xbf16>, vector<128x64xbf16>, vector<128x64xf32> -> vector<128x64xf32>
    %54 = arith.truncf %53 : vector<128x64xf32> to vector<128x64xbf16>
    %55 = vector.extract_strided_slice %8 {offsets = [0, 128], sizes = [128, 64], strides = [1, 1]} : vector<128x1152xbf16> to vector<128x64xbf16>
    %56 = vector.extract_strided_slice %9 {offsets = [0, 512], sizes = [128, 64], strides = [1, 1]} : vector<128x1152xbf16> to vector<128x64xbf16>
    %57 = vector.extract_strided_slice %9 {offsets = [0, 896], sizes = [128, 64], strides = [1, 1]} : vector<128x1152xbf16> to vector<128x64xbf16>
    %cst_20 = arith.constant dense<0.000000e+00> : vector<128x128xf32>
    %58 = tpu.matmul %55, %56, %cst_20 {dimension_numbers = #tpu.dot_dimension_numbers<[1], [1], [0], [0], [0, 0, 1, 0], [], []>} : vector<128x64xbf16>, vector<128x64xbf16>, vector<128x128xf32> -> vector<128x128xf32>
    %cst_21 = arith.constant 0.0510310382 : f32
    %59 = vector.broadcast %cst_21 : f32 to vector<128x128xf32>
    %60 = arith.mulf %58, %59 : vector<128x128xf32>
    %cst_22 = arith.constant -1.000000e+30 : f32
    %61 = vector.broadcast %cst_22 : f32 to vector<128x128xf32>
    %62 = arith.select %12, %60, %61 : vector<128x128xi1>, vector<128x128xf32>
    %cst_23 = arith.constant dense<0xFF800000> : vector<128xf32>
    %63 = vector.multi_reduction <maximumf>, %62, %cst_23 [1] : vector<128x128xf32> to vector<128xf32>
    %64 = vector.shape_cast %63 : vector<128xf32> to vector<128x1xf32>
    %65 = vector.broadcast %64 : vector<128x1xf32> to vector<128x128xf32>
    %66 = arith.subf %62, %65 : vector<128x128xf32>
    %67 = math.exp %66 : vector<128x128xf32>
    %cst_24 = arith.constant dense<0.000000e+00> : vector<128xf32>
    %68 = vector.multi_reduction <add>, %67, %cst_24 [1] : vector<128x128xf32> to vector<128xf32>
    %69 = vector.shape_cast %68 : vector<128xf32> to vector<128x1xf32>
    %70 = tpu.reciprocal %69 {approx = true} : vector<128x1xf32> -> vector<128x1xf32>
    %71 = vector.broadcast %70 : vector<128x1xf32> to vector<128x128xf32>
    %72 = arith.mulf %67, %71 : vector<128x128xf32>
    %73 = arith.truncf %72 : vector<128x128xf32> to vector<128x128xbf16>
    %cst_25 = arith.constant dense<0.000000e+00> : vector<128x64xf32>
    %74 = tpu.matmul %73, %57, %cst_25 {dimension_numbers = #tpu.dot_dimension_numbers<[1], [0], [0], [1], [0, 0, 1, 1], [], []>} : vector<128x128xbf16>, vector<128x64xbf16>, vector<128x64xf32> -> vector<128x64xf32>
    %75 = arith.truncf %74 : vector<128x64xf32> to vector<128x64xbf16>
    %76 = vector.extract_strided_slice %8 {offsets = [0, 192], sizes = [128, 64], strides = [1, 1]} : vector<128x1152xbf16> to vector<128x64xbf16>
    %77 = vector.extract_strided_slice %9 {offsets = [0, 576], sizes = [128, 64], strides = [1, 1]} : vector<128x1152xbf16> to vector<128x64xbf16>
    %78 = vector.extract_strided_slice %9 {offsets = [0, 960], sizes = [128, 64], strides = [1, 1]} : vector<128x1152xbf16> to vector<128x64xbf16>
    %cst_26 = arith.constant dense<0.000000e+00> : vector<128x128xf32>
    %79 = tpu.matmul %76, %77, %cst_26 {dimension_numbers = #tpu.dot_dimension_numbers<[1], [1], [0], [0], [0, 0, 1, 0], [], []>} : vector<128x64xbf16>, vector<128x64xbf16>, vector<128x128xf32> -> vector<128x128xf32>
    %cst_27 = arith.constant 0.0510310382 : f32
    %80 = vector.broadcast %cst_27 : f32 to vector<128x128xf32>
    %81 = arith.mulf %79, %80 : vector<128x128xf32>
    %cst_28 = arith.constant -1.000000e+30 : f32
    %82 = vector.broadcast %cst_28 : f32 to vector<128x128xf32>
    %83 = arith.select %12, %81, %82 : vector<128x128xi1>, vector<128x128xf32>
    %cst_29 = arith.constant dense<0xFF800000> : vector<128xf32>
    %84 = vector.multi_reduction <maximumf>, %83, %cst_29 [1] : vector<128x128xf32> to vector<128xf32>
    %85 = vector.shape_cast %84 : vector<128xf32> to vector<128x1xf32>
    %86 = vector.broadcast %85 : vector<128x1xf32> to vector<128x128xf32>
    %87 = arith.subf %83, %86 : vector<128x128xf32>
    %88 = math.exp %87 : vector<128x128xf32>
    %cst_30 = arith.constant dense<0.000000e+00> : vector<128xf32>
    %89 = vector.multi_reduction <add>, %88, %cst_30 [1] : vector<128x128xf32> to vector<128xf32>
    %90 = vector.shape_cast %89 : vector<128xf32> to vector<128x1xf32>
    %91 = tpu.reciprocal %90 {approx = true} : vector<128x1xf32> -> vector<128x1xf32>
    %92 = vector.broadcast %91 : vector<128x1xf32> to vector<128x128xf32>
    %93 = arith.mulf %88, %92 : vector<128x128xf32>
    %94 = arith.truncf %93 : vector<128x128xf32> to vector<128x128xbf16>
    %cst_31 = arith.constant dense<0.000000e+00> : vector<128x64xf32>
    %95 = tpu.matmul %94, %78, %cst_31 {dimension_numbers = #tpu.dot_dimension_numbers<[1], [0], [0], [1], [0, 0, 1, 1], [], []>} : vector<128x128xbf16>, vector<128x64xbf16>, vector<128x64xf32> -> vector<128x64xf32>
    %96 = arith.truncf %95 : vector<128x64xf32> to vector<128x64xbf16>
    %97 = vector.extract_strided_slice %8 {offsets = [0, 256], sizes = [128, 64], strides = [1, 1]} : vector<128x1152xbf16> to vector<128x64xbf16>
    %98 = vector.extract_strided_slice %9 {offsets = [0, 640], sizes = [128, 64], strides = [1, 1]} : vector<128x1152xbf16> to vector<128x64xbf16>
    %99 = vector.extract_strided_slice %9 {offsets = [0, 1024], sizes = [128, 64], strides = [1, 1]} : vector<128x1152xbf16> to vector<128x64xbf16>
    %cst_32 = arith.constant dense<0.000000e+00> : vector<128x128xf32>
    %100 = tpu.matmul %97, %98, %cst_32 {dimension_numbers = #tpu.dot_dimension_numbers<[1], [1], [0], [0], [0, 0, 1, 0], [], []>} : vector<128x64xbf16>, vector<128x64xbf16>, vector<128x128xf32> -> vector<128x128xf32>
    %cst_33 = arith.constant 0.0510310382 : f32
    %101 = vector.broadcast %cst_33 : f32 to vector<128x128xf32>
    %102 = arith.mulf %100, %101 : vector<128x128xf32>
    %cst_34 = arith.constant -1.000000e+30 : f32
    %103 = vector.broadcast %cst_34 : f32 to vector<128x128xf32>
    %104 = arith.select %12, %102, %103 : vector<128x128xi1>, vector<128x128xf32>
    %cst_35 = arith.constant dense<0xFF800000> : vector<128xf32>
    %105 = vector.multi_reduction <maximumf>, %104, %cst_35 [1] : vector<128x128xf32> to vector<128xf32>
    %106 = vector.shape_cast %105 : vector<128xf32> to vector<128x1xf32>
    %107 = vector.broadcast %106 : vector<128x1xf32> to vector<128x128xf32>
    %108 = arith.subf %104, %107 : vector<128x128xf32>
    %109 = math.exp %108 : vector<128x128xf32>
    %cst_36 = arith.constant dense<0.000000e+00> : vector<128xf32>
    %110 = vector.multi_reduction <add>, %109, %cst_36 [1] : vector<128x128xf32> to vector<128xf32>
    %111 = vector.shape_cast %110 : vector<128xf32> to vector<128x1xf32>
    %112 = tpu.reciprocal %111 {approx = true} : vector<128x1xf32> -> vector<128x1xf32>
    %113 = vector.broadcast %112 : vector<128x1xf32> to vector<128x128xf32>
    %114 = arith.mulf %109, %113 : vector<128x128xf32>
    %115 = arith.truncf %114 : vector<128x128xf32> to vector<128x128xbf16>
    %cst_37 = arith.constant dense<0.000000e+00> : vector<128x64xf32>
    %116 = tpu.matmul %115, %99, %cst_37 {dimension_numbers = #tpu.dot_dimension_numbers<[1], [0], [0], [1], [0, 0, 1, 1], [], []>} : vector<128x128xbf16>, vector<128x64xbf16>, vector<128x64xf32> -> vector<128x64xf32>
    %117 = arith.truncf %116 : vector<128x64xf32> to vector<128x64xbf16>
    %118 = vector.extract_strided_slice %8 {offsets = [0, 320], sizes = [128, 64], strides = [1, 1]} : vector<128x1152xbf16> to vector<128x64xbf16>
    %119 = vector.extract_strided_slice %9 {offsets = [0, 704], sizes = [128, 64], strides = [1, 1]} : vector<128x1152xbf16> to vector<128x64xbf16>
    %120 = vector.extract_strided_slice %9 {offsets = [0, 1088], sizes = [128, 64], strides = [1, 1]} : vector<128x1152xbf16> to vector<128x64xbf16>
    %cst_38 = arith.constant dense<0.000000e+00> : vector<128x128xf32>
    %121 = tpu.matmul %118, %119, %cst_38 {dimension_numbers = #tpu.dot_dimension_numbers<[1], [1], [0], [0], [0, 0, 1, 0], [], []>} : vector<128x64xbf16>, vector<128x64xbf16>, vector<128x128xf32> -> vector<128x128xf32>
    %cst_39 = arith.constant 0.0510310382 : f32
    %122 = vector.broadcast %cst_39 : f32 to vector<128x128xf32>
    %123 = arith.mulf %121, %122 : vector<128x128xf32>
    %cst_40 = arith.constant -1.000000e+30 : f32
    %124 = vector.broadcast %cst_40 : f32 to vector<128x128xf32>
    %125 = arith.select %12, %123, %124 : vector<128x128xi1>, vector<128x128xf32>
    %cst_41 = arith.constant dense<0xFF800000> : vector<128xf32>
    %126 = vector.multi_reduction <maximumf>, %125, %cst_41 [1] : vector<128x128xf32> to vector<128xf32>
    %127 = vector.shape_cast %126 : vector<128xf32> to vector<128x1xf32>
    %128 = vector.broadcast %127 : vector<128x1xf32> to vector<128x128xf32>
    %129 = arith.subf %125, %128 : vector<128x128xf32>
    %130 = math.exp %129 : vector<128x128xf32>
    %cst_42 = arith.constant dense<0.000000e+00> : vector<128xf32>
    %131 = vector.multi_reduction <add>, %130, %cst_42 [1] : vector<128x128xf32> to vector<128xf32>
    %132 = vector.shape_cast %131 : vector<128xf32> to vector<128x1xf32>
    %133 = tpu.reciprocal %132 {approx = true} : vector<128x1xf32> -> vector<128x1xf32>
    %134 = vector.broadcast %133 : vector<128x1xf32> to vector<128x128xf32>
    %135 = arith.mulf %130, %134 : vector<128x128xf32>
    %136 = arith.truncf %135 : vector<128x128xf32> to vector<128x128xbf16>
    %cst_43 = arith.constant dense<0.000000e+00> : vector<128x64xf32>
    %137 = tpu.matmul %136, %120, %cst_43 {dimension_numbers = #tpu.dot_dimension_numbers<[1], [0], [0], [1], [0, 0, 1, 1], [], []>} : vector<128x128xbf16>, vector<128x64xbf16>, vector<128x64xf32> -> vector<128x64xf32>
    %138 = arith.truncf %137 : vector<128x64xf32> to vector<128x64xbf16>
    %139 = tpu.concatenate %33, %54, %75, %96, %117, %138 in 1 : vector<128x64xbf16>, vector<128x64xbf16>, vector<128x64xbf16>, vector<128x64xbf16>, vector<128x64xbf16>, vector<128x64xbf16> -> vector<128x384xbf16>
    %cst_44 = arith.constant dense<0.000000e+00> : vector<128x384xf32>
    %140 = tpu.matmul %139, %6, %cst_44 {dimension_numbers = #tpu.dot_dimension_numbers<[1], [0], [0], [1], [0, 0, 1, 1], [], []>} : vector<128x384xbf16>, vector<384x384xbf16>, vector<128x384xf32> -> vector<128x384xf32>
    %141 = vector.broadcast %7 : vector<1x384xf32> to vector<128x384xf32>
    %142 = arith.addf %140, %141 : vector<128x384xf32>
    %c0_45 = arith.constant 0 : index
    %c0_46 = arith.constant 0 : index
    %c0_47 = arith.constant 0 : index
    %143 = vector.load %arg5[%c0_45, %c0_46, %c0_47] : memref<2x128x384xf32, #tpu.memory_space<vmem>>, vector<1x128x384xf32>
    %144 = vector.shape_cast %143 : vector<1x128x384xf32> to vector<128x384xf32>
    %145 = vector.shape_cast %142 : vector<128x384xf32> to vector<1x128x384xf32>
    tpu.vector_store %arg5[%c0_45, %c0_46, %c0_47], %145 {strides = array<i32>} : memref<2x128x384xf32, #tpu.memory_space<vmem>>, vector<1x128x384xf32>,
    %146 = vector.extract_strided_slice %5 {offsets = [128, 0], sizes = [128, 1152], strides = [1, 1]} : vector<256x1152xbf16> to vector<128x1152xbf16>
    %147 = vector.extract_strided_slice %5 {offsets = [128, 0], sizes = [128, 1152], strides = [1, 1]} : vector<256x1152xbf16> to vector<128x1152xbf16>
    %148 = tpu.iota {dimensions = array<i32: 0>} : vector<128x128xi32>
    %149 = tpu.iota {dimensions = array<i32: 1>} : vector<128x128xi32>
    %150 = arith.cmpi sge, %148, %149 : vector<128x128xi32>
    %151 = vector.extract_strided_slice %146 {offsets = [0, 0], sizes = [128, 64], strides = [1, 1]} : vector<128x1152xbf16> to vector<128x64xbf16>
    %152 = vector.extract_strided_slice %147 {offsets = [0, 384], sizes = [128, 64], strides = [1, 1]} : vector<128x1152xbf16> to vector<128x64xbf16>
    %153 = vector.extract_strided_slice %147 {offsets = [0, 768], sizes = [128, 64], strides = [1, 1]} : vector<128x1152xbf16> to vector<128x64xbf16>
    %cst_48 = arith.constant dense<0.000000e+00> : vector<128x128xf32>
    %154 = tpu.matmul %151, %152, %cst_48 {dimension_numbers = #tpu.dot_dimension_numbers<[1], [1], [0], [0], [0, 0, 1, 0], [], []>} : vector<128x64xbf16>, vector<128x64xbf16>, vector<128x128xf32> -> vector<128x128xf32>
    %cst_49 = arith.constant 0.0510310382 : f32
    %155 = vector.broadcast %cst_49 : f32 to vector<128x128xf32>
    %156 = arith.mulf %154, %155 : vector<128x128xf32>
    %cst_50 = arith.constant -1.000000e+30 : f32
    %157 = vector.broadcast %cst_50 : f32 to vector<128x128xf32>
    %158 = arith.select %150, %156, %157 : vector<128x128xi1>, vector<128x128xf32>
    %cst_51 = arith.constant dense<0xFF800000> : vector<128xf32>
    %159 = vector.multi_reduction <maximumf>, %158, %cst_51 [1] : vector<128x128xf32> to vector<128xf32>
    %160 = vector.shape_cast %159 : vector<128xf32> to vector<128x1xf32>
    %161 = vector.broadcast %160 : vector<128x1xf32> to vector<128x128xf32>
    %162 = arith.subf %158, %161 : vector<128x128xf32>
    %163 = math.exp %162 : vector<128x128xf32>
    %cst_52 = arith.constant dense<0.000000e+00> : vector<128xf32>
    %164 = vector.multi_reduction <add>, %163, %cst_52 [1] : vector<128x128xf32> to vector<128xf32>
    %165 = vector.shape_cast %164 : vector<128xf32> to vector<128x1xf32>
    %166 = tpu.reciprocal %165 {approx = true} : vector<128x1xf32> -> vector<128x1xf32>
    %167 = vector.broadcast %166 : vector<128x1xf32> to vector<128x128xf32>
    %168 = arith.mulf %163, %167 : vector<128x128xf32>
    %169 = arith.truncf %168 : vector<128x128xf32> to vector<128x128xbf16>
    %cst_53 = arith.constant dense<0.000000e+00> : vector<128x64xf32>
    %170 = tpu.matmul %169, %153, %cst_53 {dimension_numbers = #tpu.dot_dimension_numbers<[1], [0], [0], [1], [0, 0, 1, 1], [], []>} : vector<128x128xbf16>, vector<128x64xbf16>, vector<128x64xf32> -> vector<128x64xf32>
    %171 = arith.truncf %170 : vector<128x64xf32> to vector<128x64xbf16>
    %172 = vector.extract_strided_slice %146 {offsets = [0, 64], sizes = [128, 64], strides = [1, 1]} : vector<128x1152xbf16> to vector<128x64xbf16>
    %173 = vector.extract_strided_slice %147 {offsets = [0, 448], sizes = [128, 64], strides = [1, 1]} : vector<128x1152xbf16> to vector<128x64xbf16>
    %174 = vector.extract_strided_slice %147 {offsets = [0, 832], sizes = [128, 64], strides = [1, 1]} : vector<128x1152xbf16> to vector<128x64xbf16>
    %cst_54 = arith.constant dense<0.000000e+00> : vector<128x128xf32>
    %175 = tpu.matmul %172, %173, %cst_54 {dimension_numbers = #tpu.dot_dimension_numbers<[1], [1], [0], [0], [0, 0, 1, 0], [], []>} : vector<128x64xbf16>, vector<128x64xbf16>, vector<128x128xf32> -> vector<128x128xf32>
    %cst_55 = arith.constant 0.0510310382 : f32
    %176 = vector.broadcast %cst_55 : f32 to vector<128x128xf32>
    %177 = arith.mulf %175, %176 : vector<128x128xf32>
    %cst_56 = arith.constant -1.000000e+30 : f32
    %178 = vector.broadcast %cst_56 : f32 to vector<128x128xf32>
    %179 = arith.select %150, %177, %178 : vector<128x128xi1>, vector<128x128xf32>
    %cst_57 = arith.constant dense<0xFF800000> : vector<128xf32>
    %180 = vector.multi_reduction <maximumf>, %179, %cst_57 [1] : vector<128x128xf32> to vector<128xf32>
    %181 = vector.shape_cast %180 : vector<128xf32> to vector<128x1xf32>
    %182 = vector.broadcast %181 : vector<128x1xf32> to vector<128x128xf32>
    %183 = arith.subf %179, %182 : vector<128x128xf32>
    %184 = math.exp %183 : vector<128x128xf32>
    %cst_58 = arith.constant dense<0.000000e+00> : vector<128xf32>
    %185 = vector.multi_reduction <add>, %184, %cst_58 [1] : vector<128x128xf32> to vector<128xf32>
    %186 = vector.shape_cast %185 : vector<128xf32> to vector<128x1xf32>
    %187 = tpu.reciprocal %186 {approx = true} : vector<128x1xf32> -> vector<128x1xf32>
    %188 = vector.broadcast %187 : vector<128x1xf32> to vector<128x128xf32>
    %189 = arith.mulf %184, %188 : vector<128x128xf32>
    %190 = arith.truncf %189 : vector<128x128xf32> to vector<128x128xbf16>
    %cst_59 = arith.constant dense<0.000000e+00> : vector<128x64xf32>
    %191 = tpu.matmul %190, %174, %cst_59 {dimension_numbers = #tpu.dot_dimension_numbers<[1], [0], [0], [1], [0, 0, 1, 1], [], []>} : vector<128x128xbf16>, vector<128x64xbf16>, vector<128x64xf32> -> vector<128x64xf32>
    %192 = arith.truncf %191 : vector<128x64xf32> to vector<128x64xbf16>
    %193 = vector.extract_strided_slice %146 {offsets = [0, 128], sizes = [128, 64], strides = [1, 1]} : vector<128x1152xbf16> to vector<128x64xbf16>
    %194 = vector.extract_strided_slice %147 {offsets = [0, 512], sizes = [128, 64], strides = [1, 1]} : vector<128x1152xbf16> to vector<128x64xbf16>
    %195 = vector.extract_strided_slice %147 {offsets = [0, 896], sizes = [128, 64], strides = [1, 1]} : vector<128x1152xbf16> to vector<128x64xbf16>
    %cst_60 = arith.constant dense<0.000000e+00> : vector<128x128xf32>
    %196 = tpu.matmul %193, %194, %cst_60 {dimension_numbers = #tpu.dot_dimension_numbers<[1], [1], [0], [0], [0, 0, 1, 0], [], []>} : vector<128x64xbf16>, vector<128x64xbf16>, vector<128x128xf32> -> vector<128x128xf32>
    %cst_61 = arith.constant 0.0510310382 : f32
    %197 = vector.broadcast %cst_61 : f32 to vector<128x128xf32>
    %198 = arith.mulf %196, %197 : vector<128x128xf32>
    %cst_62 = arith.constant -1.000000e+30 : f32
    %199 = vector.broadcast %cst_62 : f32 to vector<128x128xf32>
    %200 = arith.select %150, %198, %199 : vector<128x128xi1>, vector<128x128xf32>
    %cst_63 = arith.constant dense<0xFF800000> : vector<128xf32>
    %201 = vector.multi_reduction <maximumf>, %200, %cst_63 [1] : vector<128x128xf32> to vector<128xf32>
    %202 = vector.shape_cast %201 : vector<128xf32> to vector<128x1xf32>
    %203 = vector.broadcast %202 : vector<128x1xf32> to vector<128x128xf32>
    %204 = arith.subf %200, %203 : vector<128x128xf32>
    %205 = math.exp %204 : vector<128x128xf32>
    %cst_64 = arith.constant dense<0.000000e+00> : vector<128xf32>
    %206 = vector.multi_reduction <add>, %205, %cst_64 [1] : vector<128x128xf32> to vector<128xf32>
    %207 = vector.shape_cast %206 : vector<128xf32> to vector<128x1xf32>
    %208 = tpu.reciprocal %207 {approx = true} : vector<128x1xf32> -> vector<128x1xf32>
    %209 = vector.broadcast %208 : vector<128x1xf32> to vector<128x128xf32>
    %210 = arith.mulf %205, %209 : vector<128x128xf32>
    %211 = arith.truncf %210 : vector<128x128xf32> to vector<128x128xbf16>
    %cst_65 = arith.constant dense<0.000000e+00> : vector<128x64xf32>
    %212 = tpu.matmul %211, %195, %cst_65 {dimension_numbers = #tpu.dot_dimension_numbers<[1], [0], [0], [1], [0, 0, 1, 1], [], []>} : vector<128x128xbf16>, vector<128x64xbf16>, vector<128x64xf32> -> vector<128x64xf32>
    %213 = arith.truncf %212 : vector<128x64xf32> to vector<128x64xbf16>
    %214 = vector.extract_strided_slice %146 {offsets = [0, 192], sizes = [128, 64], strides = [1, 1]} : vector<128x1152xbf16> to vector<128x64xbf16>
    %215 = vector.extract_strided_slice %147 {offsets = [0, 576], sizes = [128, 64], strides = [1, 1]} : vector<128x1152xbf16> to vector<128x64xbf16>
    %216 = vector.extract_strided_slice %147 {offsets = [0, 960], sizes = [128, 64], strides = [1, 1]} : vector<128x1152xbf16> to vector<128x64xbf16>
    %cst_66 = arith.constant dense<0.000000e+00> : vector<128x128xf32>
    %217 = tpu.matmul %214, %215, %cst_66 {dimension_numbers = #tpu.dot_dimension_numbers<[1], [1], [0], [0], [0, 0, 1, 0], [], []>} : vector<128x64xbf16>, vector<128x64xbf16>, vector<128x128xf32> -> vector<128x128xf32>
    %cst_67 = arith.constant 0.0510310382 : f32
    %218 = vector.broadcast %cst_67 : f32 to vector<128x128xf32>
    %219 = arith.mulf %217, %218 : vector<128x128xf32>
    %cst_68 = arith.constant -1.000000e+30 : f32
    %220 = vector.broadcast %cst_68 : f32 to vector<128x128xf32>
    %221 = arith.select %150, %219, %220 : vector<128x128xi1>, vector<128x128xf32>
    %cst_69 = arith.constant dense<0xFF800000> : vector<128xf32>
    %222 = vector.multi_reduction <maximumf>, %221, %cst_69 [1] : vector<128x128xf32> to vector<128xf32>
    %223 = vector.shape_cast %222 : vector<128xf32> to vector<128x1xf32>
    %224 = vector.broadcast %223 : vector<128x1xf32> to vector<128x128xf32>
    %225 = arith.subf %221, %224 : vector<128x128xf32>
    %226 = math.exp %225 : vector<128x128xf32>
    %cst_70 = arith.constant dense<0.000000e+00> : vector<128xf32>
    %227 = vector.multi_reduction <add>, %226, %cst_70 [1] : vector<128x128xf32> to vector<128xf32>
    %228 = vector.shape_cast %227 : vector<128xf32> to vector<128x1xf32>
    %229 = tpu.reciprocal %228 {approx = true} : vector<128x1xf32> -> vector<128x1xf32>
    %230 = vector.broadcast %229 : vector<128x1xf32> to vector<128x128xf32>
    %231 = arith.mulf %226, %230 : vector<128x128xf32>
    %232 = arith.truncf %231 : vector<128x128xf32> to vector<128x128xbf16>
    %cst_71 = arith.constant dense<0.000000e+00> : vector<128x64xf32>
    %233 = tpu.matmul %232, %216, %cst_71 {dimension_numbers = #tpu.dot_dimension_numbers<[1], [0], [0], [1], [0, 0, 1, 1], [], []>} : vector<128x128xbf16>, vector<128x64xbf16>, vector<128x64xf32> -> vector<128x64xf32>
    %234 = arith.truncf %233 : vector<128x64xf32> to vector<128x64xbf16>
    %235 = vector.extract_strided_slice %146 {offsets = [0, 256], sizes = [128, 64], strides = [1, 1]} : vector<128x1152xbf16> to vector<128x64xbf16>
    %236 = vector.extract_strided_slice %147 {offsets = [0, 640], sizes = [128, 64], strides = [1, 1]} : vector<128x1152xbf16> to vector<128x64xbf16>
    %237 = vector.extract_strided_slice %147 {offsets = [0, 1024], sizes = [128, 64], strides = [1, 1]} : vector<128x1152xbf16> to vector<128x64xbf16>
    %cst_72 = arith.constant dense<0.000000e+00> : vector<128x128xf32>
    %238 = tpu.matmul %235, %236, %cst_72 {dimension_numbers = #tpu.dot_dimension_numbers<[1], [1], [0], [0], [0, 0, 1, 0], [], []>} : vector<128x64xbf16>, vector<128x64xbf16>, vector<128x128xf32> -> vector<128x128xf32>
    %cst_73 = arith.constant 0.0510310382 : f32
    %239 = vector.broadcast %cst_73 : f32 to vector<128x128xf32>
    %240 = arith.mulf %238, %239 : vector<128x128xf32>
    %cst_74 = arith.constant -1.000000e+30 : f32
    %241 = vector.broadcast %cst_74 : f32 to vector<128x128xf32>
    %242 = arith.select %150, %240, %241 : vector<128x128xi1>, vector<128x128xf32>
    %cst_75 = arith.constant dense<0xFF800000> : vector<128xf32>
    %243 = vector.multi_reduction <maximumf>, %242, %cst_75 [1] : vector<128x128xf32> to vector<128xf32>
    %244 = vector.shape_cast %243 : vector<128xf32> to vector<128x1xf32>
    %245 = vector.broadcast %244 : vector<128x1xf32> to vector<128x128xf32>
    %246 = arith.subf %242, %245 : vector<128x128xf32>
    %247 = math.exp %246 : vector<128x128xf32>
    %cst_76 = arith.constant dense<0.000000e+00> : vector<128xf32>
    %248 = vector.multi_reduction <add>, %247, %cst_76 [1] : vector<128x128xf32> to vector<128xf32>
    %249 = vector.shape_cast %248 : vector<128xf32> to vector<128x1xf32>
    %250 = tpu.reciprocal %249 {approx = true} : vector<128x1xf32> -> vector<128x1xf32>
    %251 = vector.broadcast %250 : vector<128x1xf32> to vector<128x128xf32>
    %252 = arith.mulf %247, %251 : vector<128x128xf32>
    %253 = arith.truncf %252 : vector<128x128xf32> to vector<128x128xbf16>
    %cst_77 = arith.constant dense<0.000000e+00> : vector<128x64xf32>
    %254 = tpu.matmul %253, %237, %cst_77 {dimension_numbers = #tpu.dot_dimension_numbers<[1], [0], [0], [1], [0, 0, 1, 1], [], []>} : vector<128x128xbf16>, vector<128x64xbf16>, vector<128x64xf32> -> vector<128x64xf32>
    %255 = arith.truncf %254 : vector<128x64xf32> to vector<128x64xbf16>
    %256 = vector.extract_strided_slice %146 {offsets = [0, 320], sizes = [128, 64], strides = [1, 1]} : vector<128x1152xbf16> to vector<128x64xbf16>
    %257 = vector.extract_strided_slice %147 {offsets = [0, 704], sizes = [128, 64], strides = [1, 1]} : vector<128x1152xbf16> to vector<128x64xbf16>
    %258 = vector.extract_strided_slice %147 {offsets = [0, 1088], sizes = [128, 64], strides = [1, 1]} : vector<128x1152xbf16> to vector<128x64xbf16>
    %cst_78 = arith.constant dense<0.000000e+00> : vector<128x128xf32>
    %259 = tpu.matmul %256, %257, %cst_78 {dimension_numbers = #tpu.dot_dimension_numbers<[1], [1], [0], [0], [0, 0, 1, 0], [], []>} : vector<128x64xbf16>, vector<128x64xbf16>, vector<128x128xf32> -> vector<128x128xf32>
    %cst_79 = arith.constant 0.0510310382 : f32
    %260 = vector.broadcast %cst_79 : f32 to vector<128x128xf32>
    %261 = arith.mulf %259, %260 : vector<128x128xf32>
    %cst_80 = arith.constant -1.000000e+30 : f32
    %262 = vector.broadcast %cst_80 : f32 to vector<128x128xf32>
    %263 = arith.select %150, %261, %262 : vector<128x128xi1>, vector<128x128xf32>
    %cst_81 = arith.constant dense<0xFF800000> : vector<128xf32>
    %264 = vector.multi_reduction <maximumf>, %263, %cst_81 [1] : vector<128x128xf32> to vector<128xf32>
    %265 = vector.shape_cast %264 : vector<128xf32> to vector<128x1xf32>
    %266 = vector.broadcast %265 : vector<128x1xf32> to vector<128x128xf32>
    %267 = arith.subf %263, %266 : vector<128x128xf32>
    %268 = math.exp %267 : vector<128x128xf32>
    %cst_82 = arith.constant dense<0.000000e+00> : vector<128xf32>
    %269 = vector.multi_reduction <add>, %268, %cst_82 [1] : vector<128x128xf32> to vector<128xf32>
    %270 = vector.shape_cast %269 : vector<128xf32> to vector<128x1xf32>
    %271 = tpu.reciprocal %270 {approx = true} : vector<128x1xf32> -> vector<128x1xf32>
    %272 = vector.broadcast %271 : vector<128x1xf32> to vector<128x128xf32>
    %273 = arith.mulf %268, %272 : vector<128x128xf32>
    %274 = arith.truncf %273 : vector<128x128xf32> to vector<128x128xbf16>
    %cst_83 = arith.constant dense<0.000000e+00> : vector<128x64xf32>
    %275 = tpu.matmul %274, %258, %cst_83 {dimension_numbers = #tpu.dot_dimension_numbers<[1], [0], [0], [1], [0, 0, 1, 1], [], []>} : vector<128x128xbf16>, vector<128x64xbf16>, vector<128x64xf32> -> vector<128x64xf32>
    %276 = arith.truncf %275 : vector<128x64xf32> to vector<128x64xbf16>
    %277 = tpu.concatenate %171, %192, %213, %234, %255, %276 in 1 : vector<128x64xbf16>, vector<128x64xbf16>, vector<128x64xbf16>, vector<128x64xbf16>, vector<128x64xbf16>, vector<128x64xbf16> -> vector<128x384xbf16>
    %cst_84 = arith.constant dense<0.000000e+00> : vector<128x384xf32>
    %278 = tpu.matmul %277, %6, %cst_84 {dimension_numbers = #tpu.dot_dimension_numbers<[1], [0], [0], [1], [0, 0, 1, 1], [], []>} : vector<128x384xbf16>, vector<384x384xbf16>, vector<128x384xf32> -> vector<128x384xf32>
    %279 = vector.broadcast %7 : vector<1x384xf32> to vector<128x384xf32>
    %280 = arith.addf %278, %279 : vector<128x384xf32>
    %c1 = arith.constant 1 : index
    %c0_85 = arith.constant 0 : index
    %c0_86 = arith.constant 0 : index
    %281 = vector.load %arg5[%c1, %c0_85, %c0_86] : memref<2x128x384xf32, #tpu.memory_space<vmem>>, vector<1x128x384xf32>
    %282 = vector.shape_cast %281 : vector<1x128x384xf32> to vector<128x384xf32>
    %283 = vector.shape_cast %280 : vector<128x384xf32> to vector<1x128x384xf32>
    tpu.vector_store %arg5[%c1, %c0_85, %c0_86], %283 {strides = array<i32>} : memref<2x128x384xf32, #tpu.memory_space<vmem>>, vector<1x128x384xf32>,
    return
  }
  func.func @transform_0(%arg0: i32) -> (i32, i32, i32) {
    %c0_i32 = arith.constant 0 : i32
    %c0_i32_0 = arith.constant 0 : i32
    %c0_i32_1 = arith.constant 0 : i32
    return %arg0, %c0_i32, %c0_i32_0 : i32, i32, i32
  }
  func.func @transform_1(%arg0: i32) -> (i32, i32) {
    %c0_i32 = arith.constant 0 : i32
    %c0_i32_0 = arith.constant 0 : i32
    %c0_i32_1 = arith.constant 0 : i32
    return %c0_i32, %c0_i32_0 : i32, i32
  }
  func.func @transform_2(%arg0: i32) -> (i32, i32) {
    %c0_i32 = arith.constant 0 : i32
    %c0_i32_0 = arith.constant 0 : i32
    %c0_i32_1 = arith.constant 0 : i32
    return %c0_i32, %c0_i32_0 : i32, i32
  }
  func.func @transform_3(%arg0: i32) -> (i32, i32) {
    %c0_i32 = arith.constant 0 : i32
    %c0_i32_0 = arith.constant 0 : i32
    %c0_i32_1 = arith.constant 0 : i32
    return %c0_i32, %c0_i32_0 : i32, i32
  }
  func.func @transform_4(%arg0: i32) -> (i32, i32, i32) {
    %c0_i32 = arith.constant 0 : i32
    %c0_i32_0 = arith.constant 0 : i32
    %c0_i32_1 = arith.constant 0 : i32
    return %arg0, %c0_i32, %c0_i32_0 : i32, i32, i32
  }
}

</mosaic_0001>

<llo_original>
// kernel: tpu_custom_call.1
$region0: #{tpu_custom_call.1}
  #allocation0 [shape = 'u32[]', space=smem, size = 0x4, offset = 0x4, fixed_abs, tag = 'smem constant byte address 0x4 - core index']
  #allocation1 [shape = 'u32[144,128]{1,0:T(1,128)}', space=vmem, size = 0x12000, scoped, tag = 'internal scratch']
  %s0 = inlined_call_operand.hbm [shape: f32[4,128,384], index: 0, kind: input, shape index: {}]
  %s1 = inlined_call_operand.hbm [shape: bf16[384,1152], index: 1, kind: input, shape index: {}]
  %s2 = inlined_call_operand.hbm [shape: bf16[384,384], index: 2, kind: input, shape index: {}]
  %s3 = inlined_call_operand.vmem [shape: f32[1,384], index: 3, kind: input, shape index: {}]
  %s4 = inlined_call_operand.hbm [shape: f32[4,128,384], index: 4, kind: output, shape index: {}]
  %s5 = sld [smem:[#allocation0]]
  $region61: #{tpu_custom_call.1} parent=0
    _
  %s7 = ssub.s32 1, %s5
  %s8 = scalar_select 0, %s7, %s5
  $region1: #{tpu_custom_call.1} parent=0
    #allocation2 [shape = 'u8[786432]{0}', space=vmem, size = 0xc0000, scoped, tag = 'input window, operand 0']
    #allocation3 [shape = 's32[2]{0}', space=sflag, size = 0x8, scoped, tag = 'scoped memory for tpu_custom_call.1']
    #allocation4 [shape = 's32[2]{0}', space=sflag, size = 0x8, scoped, tag = 'scoped memory for tpu_custom_call.1']
    #allocation5 [shape = 'u8[884736]{0}', space=vmem, size = 0xd8000, scoped, tag = 'input window, operand 1, single buffered']
    #allocation6 [shape = 's32[1]{0}', space=sflag, size = 0x4, scoped, tag = 'scoped memory for tpu_custom_call.1']
    #allocation7 [shape = 'u8[294912]{0}', space=vmem, size = 0x48000, scoped, tag = 'input window, operand 2, single buffered']
    #allocation8 [shape = 'u8[786432]{0}', space=vmem, size = 0xc0000, scoped, tag = 'output window, operand 0']
    %9 = vsyncpa [#allocation3], 0
    %s10 = scalar_lea.sflag [#allocation3], 1
    %11 = vsyncpa %s10, 0
    %12 = vsyncpa [#allocation6], 0
    %13 = vsyncpa [#allocation4], 0
    %s14 = scalar_lea.sflag [#allocation4], 1
    %15 = vsyncpa %s14, 0
    loop: start=0, step=1, limit=4
    $region2: #{tpu_custom_call.1} parent=1 // loop_pre_header
      _
    $region3: #{tpu_custom_call.1} parent=1 // loop_header
      %s17 = sphi 0, %s21
      %p18 = scmp.ge.s32.totalorder %s17, 4
      %s27 = sphi 0, %s29
      %s30 = sphi 0, %s27
      %s31 = sphi 0, %s30
      %s47 = sphi 0, %s31
      %s51 = sphi 0, %s51
      %s53 = sphi 0, %s51
      %s54 = sphi 0, %s53
      %s68 = sphi 0, %s54
      %s72 = sphi 0, %s72
      %s74 = sphi 0, %s72
      %s75 = sphi 0, %s74
      %s89 = sphi 0, %s75
      %s93 = sphi 0, %s93
      %s95 = sphi 0, %s93
      %s96 = sphi 0, %s95
      %s110 = sphi 0, %s96
      %s116 = sphi 0, %s118
      %s119 = sphi 0, %s116
      %s120 = sphi 0, %s119
      %s136 = sphi 0, %s120
    $region4: #{tpu_custom_call.1} parent=1 // loop_header_branch
      %20 = sbr.rel (%p18) target = $region8
    $region5: #{tpu_custom_call.1} parent=1 // loop_body
      %s22 = ssub.s32 %s17, 1
      %s23 = ssub.s32 %s17, 2
      %s24 = sadd.s32 %s17, 1
      %s25 = ssub.s32 %s17, %s24
      %p26 = scmp.eq.s32.totalorder %s25, 0
      %s28 = sadd.s32 %s27, 1
      %s29 = scalar_select %p26, %s27, %s28
      %p32 = pneg %p26
      %p33 = scmp.eq.s32.totalorder %s17, 1
      %p34 = por %p32, %p33
      %p35 = scmp.ne.s32.totalorder %s27, %s30
      %p36 = scmp.eq.s32.totalorder %s17, 0
      %p37 = por %p35, %p36
      %p38 = scmp.ne.s32.totalorder %s27, %s30
      %p39 = scmp.eq.s32.totalorder %s22, 1
      %p40 = por %p38, %p39
      %p41 = scmp.ne.s32.totalorder %s30, %s31
      %p42 = scmp.eq.s32.totalorder %s22, 0
      %p43 = por %p41, %p42
      %p44 = scmp.ne.s32.totalorder %s30, %s31
      %p45 = scmp.eq.s32.totalorder %s23, 1
      %p46 = por %p44, %p45
      %p48 = scmp.ne.s32.totalorder %s31, %s47
      %p49 = scmp.eq.s32.totalorder %s23, 0
      %p50 = por %p48, %p49
      %s52 = sadd.s32 %s51, 1
      %p55 = scmp.eq.s32.totalorder %s17, 1
      %p56 = scmp.ne.s32.totalorder %s51, %s53
      %p57 = scmp.eq.s32.totalorder %s17, 0
      %p58 = por %p56, %p57
      %p59 = scmp.ne.s32.totalorder %s51, %s53
      %p60 = scmp.eq.s32.totalorder %s22, 1
      %p61 = por %p59, %p60
      %p62 = scmp.ne.s32.totalorder %s53, %s54
      %p63 = scmp.eq.s32.totalorder %s22, 0
      %p64 = por %p62, %p63
      %p65 = scmp.ne.s32.totalorder %s53, %s54
      %p66 = scmp.eq.s32.totalorder %s23, 1
      %p67 = por %p65, %p66
      %p69 = scmp.ne.s32.totalorder %s54, %s68
      %p70 = scmp.eq.s32.totalorder %s23, 0
      %p71 = por %p69, %p70
      %s73 = sadd.s32 %s72, 1
      %p76 = scmp.eq.s32.totalorder %s17, 1
      %p77 = scmp.ne.s32.totalorder %s72, %s74
      %p78 = scmp.eq.s32.totalorder %s17, 0
      %p79 = por %p77, %p78
      %p80 = scmp.ne.s32.totalorder %s72, %s74
      %p81 = scmp.eq.s32.totalorder %s22, 1
      %p82 = por %p80, %p81
      %p83 = scmp.ne.s32.totalorder %s74, %s75
      %p84 = scmp.eq.s32.totalorder %s22, 0
      %p85 = por %p83, %p84
      %p86 = scmp.ne.s32.totalorder %s74, %s75
      %p87 = scmp.eq.s32.totalorder %s23, 1
      %p88 = por %p86, %p87
      %p90 = scmp.ne.s32.totalorder %s75, %s89
      %p91 = scmp.eq.s32.totalorder %s23, 0
      %p92 = por %p90, %p91
      %s94 = sadd.s32 %s93, 1
      %p97 = scmp.eq.s32.totalorder %s17, 1
      %p98 = scmp.ne.s32.totalorder %s93, %s95
      %p99 = scmp.eq.s32.totalorder %s17, 0
      %p100 = por %p98, %p99
      %p101 = scmp.ne.s32.totalorder %s93, %s95
      %p102 = scmp.eq.s32.totalorder %s22, 1
      %p103 = por %p101, %p102
      %p104 = scmp.ne.s32.totalorder %s95, %s96
      %p105 = scmp.eq.s32.totalorder %s22, 0
      %p106 = por %p104, %p105
      %p107 = scmp.ne.s32.totalorder %s95, %s96
      %p108 = scmp.eq.s32.totalorder %s23, 1
      %p109 = por %p107, %p108
      %p111 = scmp.ne.s32.totalorder %s96, %s110
      %p112 = scmp.eq.s32.totalorder %s23, 0
      %p113 = por %p111, %p112
      %s114 = ssub.s32 %s17, %s24
      %p115 = scmp.eq.s32.totalorder %s114, 0
      %s117 = sadd.s32 %s116, 1
      %s118 = scalar_select %p115, %s116, %s117
      %p121 = pneg %p115
      %p122 = scmp.eq.s32.totalorder %s17, 1
      %p123 = por %p121, %p122
      %p124 = scmp.ne.s32.totalorder %s116, %s119
      %p125 = scmp.eq.s32.totalorder %s17, 0
      %p126 = por %p124, %p125
      %p127 = scmp.ne.s32.totalorder %s116, %s119
      %p128 = scmp.eq.s32.totalorder %s22, 1
      %p129 = por %p127, %p128
      %p130 = scmp.ne.s32.totalorder %s119, %s120
      %p131 = scmp.eq.s32.totalorder %s22, 0
      %p132 = por %p130, %p131
      %p133 = scmp.ne.s32.totalorder %s119, %s120
      %p134 = scmp.eq.s32.totalorder %s23, 1
      %p135 = por %p133, %p134
      %p137 = scmp.ne.s32.totalorder %s120, %s136
      %p138 = scmp.eq.s32.totalorder %s23, 0
      %p139 = por %p137, %p138
      %p140 = scmp.le.s32.totalorder 1, %s17
      %p141 = scmp.lt.s32.totalorder %s17, 3
      %p142 = pnand %p140, %p141
      %p143 = pneg %p142
      // Predicated region
      $region9: #{tpu_custom_call.1} parent=5 // pred_check
        _
      $region10: #{tpu_custom_call.1} parent=5 // pred_check_branch
        %145 = sbr.rel (%p142) target = $region12
      $region11: #{tpu_custom_call.1} parent=5 // pred_region
        %s146 = ssub.s32 %s17, 1
        // Predicated region
        $region13: #{tpu_custom_call.1} parent=11 // pred_check
          %p147 = pneg %p64
        $region14: #{tpu_custom_call.1} parent=11 // pred_check_branch
          %149 = sbr.rel (%p147) target = $region16
        $region15: #{tpu_custom_call.1} parent=11 // pred_region
          %s151 = ssub.s32 27648, 27648
          %152 = vsyncadd [#allocation6], %s151
          %s153 = sshll.u32 [#allocation5], 4
          %s154 = int_to_ptr.vmem [resolvable:$true] %s153
          %159 = dma.hbm_to_vmem [thread:$0]  %s1, 27648, %s154, [#allocation6], 576, 576, 36
        $region16: #{tpu_custom_call.1} parent=11 // pred_fallthru
          _
        // Predicated region
        $region17: #{tpu_custom_call.1} parent=11 // pred_check
          %p160 = pneg %p85
        $region18: #{tpu_custom_call.1} parent=11 // pred_check_branch
          %162 = sbr.rel (%p160) target = $region20
        $region19: #{tpu_custom_call.1} parent=11 // pred_region
          %s164 = ssub.s32 9216, 9216
          %165 = vsyncadd [#allocation6], %s164
          %s166 = sshll.u32 [#allocation7], 4
          %s167 = int_to_ptr.vmem [resolvable:$true] %s166
          %172 = dma.hbm_to_vmem [thread:$0]  %s2, 9216, %s167, [#allocation6], 192, 192, 12
        $region20: #{tpu_custom_call.1} parent=11 // pred_fallthru
          _
        // Predicated region
        $region21: #{tpu_custom_call.1} parent=11 // pred_check
          %p173 = pneg %p106
        $region22: #{tpu_custom_call.1} parent=11 // pred_check_branch
          %175 = sbr.rel (%p173) target = $region24
        $region23: #{tpu_custom_call.1} parent=11 // pred_region
          _
        $region24: #{tpu_custom_call.1} parent=11 // pred_fallthru
          _
      $region12: #{tpu_custom_call.1} parent=5 // pred_fallthru
        _
      %p176 = scmp.lt.s32.totalorder %s17, 2
      // Predicated region
      $region25: #{tpu_custom_call.1} parent=5 // pred_check
        %p177 = pneg %p176
      $region26: #{tpu_custom_call.1} parent=5 // pred_check_branch
        %179 = sbr.rel (%p177) target = $region28
      $region27: #{tpu_custom_call.1} parent=5 // pred_region
        // Predicated region
        $region29: #{tpu_custom_call.1} parent=27 // pred_check
          %p180 = pneg %p37
        $region30: #{tpu_custom_call.1} parent=27 // pred_check_branch
          %182 = sbr.rel (%p180) target = $region32
        $region31: #{tpu_custom_call.1} parent=27 // pred_region
          %s183 = sand.u32 %s27, 1
          %s184 = scalar_lea.sflag [#allocation3], %s183
          %s185 = sand.u32 %s27, 1
          %s186 = smul.addr %s185, 768
          %s187 = scalar_lea.vmem [#allocation2], %s186
          %s188 = smul.u32 2, %s17
          %s190 = ssub.s32 12288, 12288
          %191 = vsyncadd %s184, %s190
          %s192 = smul.addr %s188, 48
          %s193 = smul.addr %s192, 128
          %s194 = scalar_lea.hbm %s0, %s193
          %s195 = sshll.u32 %s187, 4
          %s196 = int_to_ptr.vmem [resolvable:$true] %s195
          %201 = dma.hbm_to_vmem [thread:$0]  %s194, 12288, %s196, %s184, 384, 384, 24
        $region32: #{tpu_custom_call.1} parent=27 // pred_fallthru
          _
      $region28: #{tpu_custom_call.1} parent=5 // pred_fallthru
        _
      %p202 = scmp.le.s32.totalorder 1, %s17
      %p203 = scmp.lt.s32.totalorder %s17, 3
      %p204 = pnand %p202, %p203
      %p205 = pneg %p204
      // Predicated region
      $region33: #{tpu_custom_call.1} parent=5 // pred_check
        _
      $region34: #{tpu_custom_call.1} parent=5 // pred_check_branch
        %207 = sbr.rel (%p204) target = $region36
      $region35: #{tpu_custom_call.1} parent=5 // pred_region
        %s208 = ssub.s32 %s17, 1
        %s209 = sand.u32 %s30, 1
        %s210 = scalar_lea.sflag [#allocation3], %s209
        %s211 = sand.u32 %s30, 1
        %s212 = smul.addr %s211, 768
        %s213 = scalar_lea.vmem [#allocation2], %s212
        // Predicated region
        $region37: #{tpu_custom_call.1} parent=35 // pred_check
          %p214 = pneg %p43
        $region38: #{tpu_custom_call.1} parent=35 // pred_check_branch
          %216 = sbr.rel (%p214) target = $region40
        $region39: #{tpu_custom_call.1} parent=35 // pred_region
          %217 = dma.done %s210, 12288
        $region40: #{tpu_custom_call.1} parent=35 // pred_fallthru
          _
        // Predicated region
        $region41: #{tpu_custom_call.1} parent=35 // pred_check
          %p218 = pneg %p64
        $region42: #{tpu_custom_call.1} parent=35 // pred_check_branch
          %220 = sbr.rel (%p218) target = $region44
        $region43: #{tpu_custom_call.1} parent=35 // pred_region
          %221 = dma.done [#allocation6], 27648
        $region44: #{tpu_custom_call.1} parent=35 // pred_fallthru
          _
        // Predicated region
        $region45: #{tpu_custom_call.1} parent=35 // pred_check
          %p222 = pneg %p85
        $region46: #{tpu_custom_call.1} parent=35 // pred_check_branch
          %224 = sbr.rel (%p222) target = $region48
        $region47: #{tpu_custom_call.1} parent=35 // pred_region
          %225 = dma.done [#allocation6], 9216
        $region48: #{tpu_custom_call.1} parent=35 // pred_fallthru
          _
        %s226 = sand.u32 %s30, 1
        %s227 = scalar_lea.sflag [#allocation3], %s226
        %s228 = sand.u32 %s30, 1
        %s229 = smul.addr %s228, 768
        %s230 = scalar_lea.vmem [#allocation2], %s229
        %p231 = pneg %p43
        %p232 = pneg %p40
        %p233 = pneg %p64
        %p234 = pneg %p61
        %p235 = pneg %p85
        %p236 = pneg %p82
        %p237 = pneg %p106
        %p238 = pneg %p103
        %p239 = pneg %p132
        %p240 = pneg %p129
        %s241 = sand.u32 %s119, 1
        %s242 = scalar_lea.sflag [#allocation4], %s241
        %s243 = sand.u32 %s119, 1
        %s244 = smul.addr %s243, 768
        %s245 = scalar_lea.vmem [#allocation8], %s244
        %s246 = smul.u32 2, %s22
        %s247 = smul.u32 2, %s22
        %v249 = vld [vmem:[%s213] sm:$0xff]
        %v250 = vld [vmem:[%s213 + $0x8] sm:$0xff]
        %v251 = vld [vmem:[%s213 + $0x10] sm:$0xff]
        %v252 = vld [vmem:[%s213 + $0x18] sm:$0xff]
        %v253 = vld [vmem:[%s213 + $0x20] sm:$0xff]
        %v254 = vld [vmem:[%s213 + $0x28] sm:$0xff]
        %v255 = vld [vmem:[%s213 + $0x30] sm:$0xff]
        %v256 = vld [vmem:[%s213 + $0x38] sm:$0xff]
        %v257 = vld [vmem:[%s213 + $0x40] sm:$0xff]
        %v258 = vld [vmem:[%s213 + $0x48] sm:$0xff]
        %v259 = vld [vmem:[%s213 + $0x50] sm:$0xff]
        %v260 = vld [vmem:[%s213 + $0x58] sm:$0xff]
        %v261 = vld [vmem:[%s213 + $0x60] sm:$0xff]
        %v262 = vld [vmem:[%s213 + $0x68] sm:$0xff]
        %v263 = vld [vmem:[%s213 + $0x70] sm:$0xff]
        %v264 = vld [vmem:[%s213 + $0x78] sm:$0xff]
        %v265 = vld [vmem:[%s213 + $0x80] sm:$0xff]
        %v266 = vld [vmem:[%s213 + $0x88] sm:$0xff]
        %v267 = vld [vmem:[%s213 + $0x90] sm:$0xff]
        %v268 = vld [vmem:[%s213 + $0x98] sm:$0xff]
        %v269 = vld [vmem:[%s213 + $0xa0] sm:$0xff]
        %v270 = vld [vmem:[%s213 + $0xa8] sm:$0xff]
        %v271 = vld [vmem:[%s213 + $0xb0] sm:$0xff]
        %v272 = vld [vmem:[%s213 + $0xb8] sm:$0xff]
        %v273 = vld [vmem:[%s213 + $0xc0] sm:$0xff]
        %v274 = vld [vmem:[%s213 + $0xc8] sm:$0xff]
        %v275 = vld [vmem:[%s213 + $0xd0] sm:$0xff]
        %v276 = vld [vmem:[%s213 + $0xd8] sm:$0xff]
        %v277 = vld [vmem:[%s213 + $0xe0] sm:$0xff]
        %v278 = vld [vmem:[%s213 + $0xe8] sm:$0xff]
        %v279 = vld [vmem:[%s213 + $0xf0] sm:$0xff]
        %v280 = vld [vmem:[%s213 + $0xf8] sm:$0xff]
        %v281 = vld [vmem:[%s213 + $0x100] sm:$0xff]
        %v282 = vld [vmem:[%s213 + $0x108] sm:$0xff]
        %v283 = vld [vmem:[%s213 + $0x110] sm:$0xff]
        %v284 = vld [vmem:[%s213 + $0x118] sm:$0xff]
        %v285 = vld [vmem:[%s213 + $0x120] sm:$0xff]
        %v286 = vld [vmem:[%s213 + $0x128] sm:$0xff]
        %v287 = vld [vmem:[%s213 + $0x130] sm:$0xff]
        %v288 = vld [vmem:[%s213 + $0x138] sm:$0xff]
        %v289 = vld [vmem:[%s213 + $0x140] sm:$0xff]
        %v290 = vld [vmem:[%s213 + $0x148] sm:$0xff]
        %v291 = vld [vmem:[%s213 + $0x150] sm:$0xff]
        %v292 = vld [vmem:[%s213 + $0x158] sm:$0xff]
        %v293 = vld [vmem:[%s213 + $0x160] sm:$0xff]
        %v294 = vld [vmem:[%s213 + $0x168] sm:$0xff]
        %v295 = vld [vmem:[%s213 + $0x170] sm:$0xff]
        %v296 = vld [vmem:[%s213 + $0x178] sm:$0xff]
        %v297 = vld [vmem:[%s213 + $0x180] sm:$0xff]
        %v298 = vld [vmem:[%s213 + $0x188] sm:$0xff]
        %v299 = vld [vmem:[%s213 + $0x190] sm:$0xff]
        %v300 = vld [vmem:[%s213 + $0x198] sm:$0xff]
        %v301 = vld [vmem:[%s213 + $0x1a0] sm:$0xff]
        %v302 = vld [vmem:[%s213 + $0x1a8] sm:$0xff]
        %v303 = vld [vmem:[%s213 + $0x1b0] sm:$0xff]
        %v304 = vld [vmem:[%s213 + $0x1b8] sm:$0xff]
        %v305 = vld [vmem:[%s213 + $0x1c0] sm:$0xff]
        %v306 = vld [vmem:[%s213 + $0x1c8] sm:$0xff]
        %v307 = vld [vmem:[%s213 + $0x1d0] sm:$0xff]
        %v308 = vld [vmem:[%s213 + $0x1d8] sm:$0xff]
        %v309 = vld [vmem:[%s213 + $0x1e0] sm:$0xff]
        %v310 = vld [vmem:[%s213 + $0x1e8] sm:$0xff]
        %v311 = vld [vmem:[%s213 + $0x1f0] sm:$0xff]
        %v312 = vld [vmem:[%s213 + $0x1f8] sm:$0xff]
        %v313 = vld [vmem:[%s213 + $0x200] sm:$0xff]
        %v314 = vld [vmem:[%s213 + $0x208] sm:$0xff]
        %v315 = vld [vmem:[%s213 + $0x210] sm:$0xff]
        %v316 = vld [vmem:[%s213 + $0x218] sm:$0xff]
        %v317 = vld [vmem:[%s213 + $0x220] sm:$0xff]
        %v318 = vld [vmem:[%s213 + $0x228] sm:$0xff]
        %v319 = vld [vmem:[%s213 + $0x230] sm:$0xff]
        %v320 = vld [vmem:[%s213 + $0x238] sm:$0xff]
        %v321 = vld [vmem:[%s213 + $0x240] sm:$0xff]
        %v322 = vld [vmem:[%s213 + $0x248] sm:$0xff]
        %v323 = vld [vmem:[%s213 + $0x250] sm:$0xff]
        %v324 = vld [vmem:[%s213 + $0x258] sm:$0xff]
        %v325 = vld [vmem:[%s213 + $0x260] sm:$0xff]
        %v326 = vld [vmem:[%s213 + $0x268] sm:$0xff]
        %v327 = vld [vmem:[%s213 + $0x270] sm:$0xff]
        %v328 = vld [vmem:[%s213 + $0x278] sm:$0xff]
        %v329 = vld [vmem:[%s213 + $0x280] sm:$0xff]
        %v330 = vld [vmem:[%s213 + $0x288] sm:$0xff]
        %v331 = vld [vmem:[%s213 + $0x290] sm:$0xff]
        %v332 = vld [vmem:[%s213 + $0x298] sm:$0xff]
        %v333 = vld [vmem:[%s213 + $0x2a0] sm:$0xff]
        %v334 = vld [vmem:[%s213 + $0x2a8] sm:$0xff]
        %v335 = vld [vmem:[%s213 + $0x2b0] sm:$0xff]
        %v336 = vld [vmem:[%s213 + $0x2b8] sm:$0xff]
        %v337 = vld [vmem:[%s213 + $0x2c0] sm:$0xff]
        %v338 = vld [vmem:[%s213 + $0x2c8] sm:$0xff]
        %v339 = vld [vmem:[%s213 + $0x2d0] sm:$0xff]
        %v340 = vld [vmem:[%s213 + $0x2d8] sm:$0xff]
        %v341 = vld [vmem:[%s213 + $0x2e0] sm:$0xff]
        %v342 = vld [vmem:[%s213 + $0x2e8] sm:$0xff]
        %v343 = vld [vmem:[%s213 + $0x2f0] sm:$0xff]
        %v344 = vld [vmem:[%s213 + $0x2f8] sm:$0xff]
        %v345 = vpack.c.bf16 %v252, %v249
        %v346 = vpack.c.bf16 %v253, %v250
        %v347 = vpack.c.bf16 %v254, %v251
        %v348 = vpack.c.bf16 %v258, %v255
        %v349 = vpack.c.bf16 %v259, %v256
        %v350 = vpack.c.bf16 %v260, %v257
        %v351 = vpack.c.bf16 %v264, %v261
        %v352 = vpack.c.bf16 %v265, %v262
        %v353 = vpack.c.bf16 %v266, %v263
        %v354 = vpack.c.bf16 %v270, %v267
        %v355 = vpack.c.bf16 %v271, %v268
        %v356 = vpack.c.bf16 %v272, %v269
        %v357 = vpack.c.bf16 %v276, %v273
        %v358 = vpack.c.bf16 %v277, %v274
        %v359 = vpack.c.bf16 %v278, %v275
        %v360 = vpack.c.bf16 %v282, %v279
        %v361 = vpack.c.bf16 %v283, %v280
        %v362 = vpack.c.bf16 %v284, %v281
        %v363 = vpack.c.bf16 %v288, %v285
        %v364 = vpack.c.bf16 %v289, %v286
        %v365 = vpack.c.bf16 %v290, %v287
        %v366 = vpack.c.bf16 %v294, %v291
        %v367 = vpack.c.bf16 %v295, %v292
        %v368 = vpack.c.bf16 %v296, %v293
        %v369 = vpack.c.bf16 %v300, %v297
        %v370 = vpack.c.bf16 %v301, %v298
        %v371 = vpack.c.bf16 %v302, %v299
        %v372 = vpack.c.bf16 %v306, %v303
        %v373 = vpack.c.bf16 %v307, %v304
        %v374 = vpack.c.bf16 %v308, %v305
        %v375 = vpack.c.bf16 %v312, %v309
        %v376 = vpack.c.bf16 %v313, %v310
        %v377 = vpack.c.bf16 %v314, %v311
        %v378 = vpack.c.bf16 %v318, %v315
        %v379 = vpack.c.bf16 %v319, %v316
        %v380 = vpack.c.bf16 %v320, %v317
        %v381 = vpack.c.bf16 %v324, %v321
        %v382 = vpack.c.bf16 %v325, %v322
        %v383 = vpack.c.bf16 %v326, %v323
        %v384 = vpack.c.bf16 %v330, %v327
        %v385 = vpack.c.bf16 %v331, %v328
        %v386 = vpack.c.bf16 %v332, %v329
        %v387 = vpack.c.bf16 %v336, %v333
        %v388 = vpack.c.bf16 %v337, %v334
        %v389 = vpack.c.bf16 %v338, %v335
        %v390 = vpack.c.bf16 %v342, %v339
        %v391 = vpack.c.bf16 %v343, %v340
        %v392 = vpack.c.bf16 %v344, %v341
        %v393 = vld [vmem:[#allocation5] sm:$0xff]
        %v394 = vld [vmem:[#allocation5 + $0x8] sm:$0xff]
        %v395 = vld [vmem:[#allocation5 + $0x10] sm:$0xff]
        %v396 = vld [vmem:[#allocation5 + $0x18] sm:$0xff]
        %v397 = vld [vmem:[#allocation5 + $0x20] sm:$0xf]
        %v398 = vld [vmem:[#allocation5 + $0x24] sm:$0xff]
        %v399 = vld [vmem:[#allocation5 + $0x2c] sm:$0xff]
        %v400 = vld [vmem:[#allocation5 + $0x34] sm:$0xff]
        %v401 = vld [vmem:[#allocation5 + $0x3c] sm:$0xff]
        %v402 = vld [vmem:[#allocation5 + $0x44] sm:$0xf]
        %v403 = vld [vmem:[#allocation5 + $0x48] sm:$0xff]
        %v404 = vld [vmem:[#allocation5 + $0x50] sm:$0xff]
        %v405 = vld [vmem:[#allocation5 + $0x58] sm:$0xff]
        %v406 = vld [vmem:[#allocation5 + $0x60] sm:$0xff]
        %v407 = vld [vmem:[#allocation5 + $0x68] sm:$0xf]
        %v408 = vld [vmem:[#allocation5 + $0x6c] sm:$0xff]
        %v409 = vld [vmem:[#allocation5 + $0x74] sm:$0xff]
        %v410 = vld [vmem:[#allocation5 + $0x7c] sm:$0xff]
        %v411 = vld [vmem:[#allocation5 + $0x84] sm:$0xff]
        %v412 = vld [vmem:[#allocation5 + $0x8c] sm:$0xf]
        %v413 = vld [vmem:[#allocation5 + $0x90] sm:$0xff]
        %v414 = vld [vmem:[#allocation5 + $0x98] sm:$0xff]
        %v415 = vld [vmem:[#allocation5 + $0xa0] sm:$0xff]
        %v416 = vld [vmem:[#allocation5 + $0xa8] sm:$0xff]
        %v417 = vld [vmem:[#allocation5 + $0xb0] sm:$0xf]
        %v418 = vld [vmem:[#allocation5 + $0xb4] sm:$0xff]
        %v419 = vld [vmem:[#allocation5 + $0xbc] sm:$0xff]
        %v420 = vld [vmem:[#allocation5 + $0xc4] sm:$0xff]
        %v421 = vld [vmem:[#allocation5 + $0xcc] sm:$0xff]
        %v422 = vld [vmem:[#allocation5 + $0xd4] sm:$0xf]
        %v423 = vld [vmem:[#allocation5 + $0xd8] sm:$0xff]
        %v424 = vld [vmem:[#allocation5 + $0xe0] sm:$0xff]
        %v425 = vld [vmem:[#allocation5 + $0xe8] sm:$0xff]
        %v426 = vld [vmem:[#allocation5 + $0xf0] sm:$0xff]
        %v427 = vld [vmem:[#allocation5 + $0xf8] sm:$0xf]
        %v428 = vld [vmem:[#allocation5 + $0xfc] sm:$0xff]
        %v429 = vld [vmem:[#allocation5 + $0x104] sm:$0xff]
        %v430 = vld [vmem:[#allocation5 + $0x10c] sm:$0xff]
        %v431 = vld [vmem:[#allocation5 + $0x114] sm:$0xff]
        %v432 = vld [vmem:[#allocation5 + $0x11c] sm:$0xf]
        %v433 = vld [vmem:[#allocation5 + $0x120] sm:$0xff]
        %v434 = vld [vmem:[#allocation5 + $0x128] sm:$0xff]
        %v435 = vld [vmem:[#allocation5 + $0x130] sm:$0xff]
        %v436 = vld [vmem:[#allocation5 + $0x138] sm:$0xff]
        %v437 = vld [vmem:[#allocation5 + $0x140] sm:$0xf]
        %v438 = vld [vmem:[#allocation5 + $0x144] sm:$0xff]
        %v439 = vld [vmem:[#allocation5 + $0x14c] sm:$0xff]
        %v440 = vld [vmem:[#allocation5 + $0x154] sm:$0xff]
        %v441 = vld [vmem:[#allocation5 + $0x15c] sm:$0xff]
        %v442 = vld [vmem:[#allocation5 + $0x164] sm:$0xf]
        %v443 = vld [vmem:[#allocation5 + $0x168] sm:$0xff]
        %v444 = vld [vmem:[#allocation5 + $0x170] sm:$0xff]
        %v445 = vld [vmem:[#allocation5 + $0x178] sm:$0xff]
        %v446 = vld [vmem:[#allocation5 + $0x180] sm:$0xff]
        %v447 = vld [vmem:[#allocation5 + $0x188] sm:$0xf]
        %v448 = vld [vmem:[#allocation5 + $0x18c] sm:$0xff]
        %v449 = vld [vmem:[#allocation5 + $0x194] sm:$0xff]
        %v450 = vld [vmem:[#allocation5 + $0x19c] sm:$0xff]
        %v451 = vld [vmem:[#allocation5 + $0x1a4] sm:$0xff]
        %v452 = vld [vmem:[#allocation5 + $0x1ac] sm:$0xf]
        %v453 = vld [vmem:[#allocation5 + $0x1b0] sm:$0xff]
        %v454 = vld [vmem:[#allocation5 + $0x1b8] sm:$0xff]
        %v455 = vld [vmem:[#allocation5 + $0x1c0] sm:$0xff]
        %v456 = vld [vmem:[#allocation5 + $0x1c8] sm:$0xff]
        %v457 = vld [vmem:[#allocation5 + $0x1d0] sm:$0xf]
        %v458 = vld [vmem:[#allocation5 + $0x1d4] sm:$0xff]
        %v459 = vld [vmem:[#allocation5 + $0x1dc] sm:$0xff]
        %v460 = vld [vmem:[#allocation5 + $0x1e4] sm:$0xff]
        %v461 = vld [vmem:[#allocation5 + $0x1ec] sm:$0xff]
        %v462 = vld [vmem:[#allocation5 + $0x1f4] sm:$0xf]
        %v463 = vld [vmem:[#allocation5 + $0x1f8] sm:$0xff]
        %v464 = vld [vmem:[#allocation5 + $0x200] sm:$0xff]
        %v465 = vld [vmem:[#allocation5 + $0x208] sm:$0xff]
        %v466 = vld [vmem:[#allocation5 + $0x210] sm:$0xff]
        %v467 = vld [vmem:[#allocation5 + $0x218] sm:$0xf]
        %v468 = vld [vmem:[#allocation5 + $0x21c] sm:$0xff]
        %v469 = vld [vmem:[#allocation5 + $0x224] sm:$0xff]
        %v470 = vld [vmem:[#allocation5 + $0x22c] sm:$0xff]
        %v471 = vld [vmem:[#allocation5 + $0x234] sm:$0xff]
        %v472 = vld [vmem:[#allocation5 + $0x23c] sm:$0xf]
        %v473 = vld [vmem:[#allocation5 + $0x240] sm:$0xff]
        %v474 = vld [vmem:[#allocation5 + $0x248] sm:$0xff]
        %v475 = vld [vmem:[#allocation5 + $0x250] sm:$0xff]
        %v476 = vld [vmem:[#allocation5 + $0x258] sm:$0xff]
        %v477 = vld [vmem:[#allocation5 + $0x260] sm:$0xf]
        %v478 = vld [vmem:[#allocation5 + $0x264] sm:$0xff]
        %v479 = vld [vmem:[#allocation5 + $0x26c] sm:$0xff]
        %v480 = vld [vmem:[#allocation5 + $0x274] sm:$0xff]
        %v481 = vld [vmem:[#allocation5 + $0x27c] sm:$0xff]
        %v482 = vld [vmem:[#allocation5 + $0x284] sm:$0xf]
        %v483 = vld [vmem:[#allocation5 + $0x288] sm:$0xff]
        %v484 = vld [vmem:[#allocation5 + $0x290] sm:$0xff]
        %v485 = vld [vmem:[#allocation5 + $0x298] sm:$0xff]
        %v486 = vld [vmem:[#allocation5 + $0x2a0] sm:$0xff]
        %v487 = vld [vmem:[#allocation5 + $0x2a8] sm:$0xf]
        %v488 = vld [vmem:[#allocation5 + $0x2ac] sm:$0xff]
        %v489 = vld [vmem:[#allocation5 + $0x2b4] sm:$0xff]
        %v490 = vld [vmem:[#allocation5 + $0x2bc] sm:$0xff]
        %v491 = vld [vmem:[#allocation5 + $0x2c4] sm:$0xff]
        %v492 = vld [vmem:[#allocation5 + $0x2cc] sm:$0xf]
        %v493 = vld [vmem:[#allocation5 + $0x2d0] sm:$0xff]
        %v494 = vld [vmem:[#allocation5 + $0x2d8] sm:$0xff]
        %v495 = vld [vmem:[#allocation5 + $0x2e0] sm:$0xff]
        %v496 = vld [vmem:[#allocation5 + $0x2e8] sm:$0xff]
        %v497 = vld [vmem:[#allocation5 + $0x2f0] sm:$0xf]
        %v498 = vld [vmem:[#allocation5 + $0x2f4] sm:$0xff]
        %v499 = vld [vmem:[#allocation5 + $0x2fc] sm:$0xff]
        %v500 = vld [vmem:[#allocation5 + $0x304] sm:$0xff]
        %v501 = vld [vmem:[#allocation5 + $0x30c] sm:$0xff]
        %v502 = vld [vmem:[#allocation5 + $0x314] sm:$0xf]
        %v503 = vld [vmem:[#allocation5 + $0x318] sm:$0xff]
        %v504 = vld [vmem:[#allocation5 + $0x320] sm:$0xff]
        %v505 = vld [vmem:[#allocation5 + $0x328] sm:$0xff]
        %v506 = vld [vmem:[#allocation5 + $0x330] sm:$0xff]
        %v507 = vld [vmem:[#allocation5 + $0x338] sm:$0xf]
        %v508 = vld [vmem:[#allocation5 + $0x33c] sm:$0xff]
        %v509 = vld [vmem:[#allocation5 + $0x344] sm:$0xff]
        %v510 = vld [vmem:[#allocation5 + $0x34c] sm:$0xff]
        %v511 = vld [vmem:[#allocation5 + $0x354] sm:$0xff]
        %v512 = vld [vmem:[#allocation5 + $0x35c] sm:$0xf]
        %v513 = vld [vmem:[#allocation5 + $0x360] sm:$0xff]
        %v514 = vld [vmem:[#allocation5 + $0x368] sm:$0xff]
        %v515 = vld [vmem:[#allocation5 + $0x370] sm:$0xff]
        %v516 = vld [vmem:[#allocation5 + $0x378] sm:$0xff]
        %v517 = vld [vmem:[#allocation5 + $0x380] sm:$0xf]
        %v518 = vld [vmem:[#allocation5 + $0x384] sm:$0xff]
        %v519 = vld [vmem:[#allocation5 + $0x38c] sm:$0xff]
        %v520 = vld [vmem:[#allocation5 + $0x394] sm:$0xff]
        %v521 = vld [vmem:[#allocation5 + $0x39c] sm:$0xff]
        %v522 = vld [vmem:[#allocation5 + $0x3a4] sm:$0xf]
        %v523 = vld [vmem:[#allocation5 + $0x3a8] sm:$0xff]
        %v524 = vld [vmem:[#allocation5 + $0x3b0] sm:$0xff]
        %v525 = vld [vmem:[#allocation5 + $0x3b8] sm:$0xff]
        %v526 = vld [vmem:[#allocation5 + $0x3c0] sm:$0xff]
        %v527 = vld [vmem:[#allocation5 + $0x3c8] sm:$0xf]
        %v528 = vld [vmem:[#allocation5 + $0x3cc] sm:$0xff]
        %v529 = vld [vmem:[#allocation5 + $0x3d4] sm:$0xff]
        %v530 = vld [vmem:[#allocation5 + $0x3dc] sm:$0xff]
        %v531 = vld [vmem:[#allocation5 + $0x3e4] sm:$0xff]
        %v532 = vld [vmem:[#allocation5 + $0x3ec] sm:$0xf]
        %v533 = vld [vmem:[#allocation5 + $0x3f0] sm:$0xff]
        %v534 = vld [vmem:[#allocation5 + $0x3f8] sm:$0xff]
        %v535 = vld [vmem:[#allocation5 + $0x400] sm:$0xff]
        %v536 = vld [vmem:[#allocation5 + $0x408] sm:$0xff]
        %v537 = vld [vmem:[#allocation5 + $0x410] sm:$0xf]
        %v538 = vld [vmem:[#allocation5 + $0x414] sm:$0xff]
        %v539 = vld [vmem:[#allocation5 + $0x41c] sm:$0xff]
        %v540 = vld [vmem:[#allocation5 + $0x424] sm:$0xff]
        %v541 = vld [vmem:[#allocation5 + $0x42c] sm:$0xff]
        %v542 = vld [vmem:[#allocation5 + $0x434] sm:$0xf]
        %v543 = vld [vmem:[#allocation5 + $0x438] sm:$0xff]
        %v544 = vld [vmem:[#allocation5 + $0x440] sm:$0xff]
        %v545 = vld [vmem:[#allocation5 + $0x448] sm:$0xff]
        %v546 = vld [vmem:[#allocation5 + $0x450] sm:$0xff]
        %v547 = vld [vmem:[#allocation5 + $0x458] sm:$0xf]
        %v548 = vld [vmem:[#allocation5 + $0x45c] sm:$0xff]
        %v549 = vld [vmem:[#allocation5 + $0x464] sm:$0xff]
        %v550 = vld [vmem:[#allocation5 + $0x46c] sm:$0xff]
        %v551 = vld [vmem:[#allocation5 + $0x474] sm:$0xff]
        %v552 = vld [vmem:[#allocation5 + $0x47c] sm:$0xf]
        %v553 = vld [vmem:[#allocation5 + $0x480] sm:$0xff]
        %v554 = vld [vmem:[#allocation5 + $0x488] sm:$0xff]
        %v555 = vld [vmem:[#allocation5 + $0x490] sm:$0xff]
        %v556 = vld [vmem:[#allocation5 + $0x498] sm:$0xff]
        %v557 = vld [vmem:[#allocation5 + $0x4a0] sm:$0xf]
        %v558 = vld [vmem:[#allocation5 + $0x4a4] sm:$0xff]
        %v559 = vld [vmem:[#allocation5 + $0x4ac] sm:$0xff]
        %v560 = vld [vmem:[#allocation5 + $0x4b4] sm:$0xff]
        %v561 = vld [vmem:[#allocation5 + $0x4bc] sm:$0xff]
        %v562 = vld [vmem:[#allocation5 + $0x4c4] sm:$0xf]
        %v563 = vld [vmem:[#allocation5 + $0x4c8] sm:$0xff]
        %v564 = vld [vmem:[#allocation5 + $0x4d0] sm:$0xff]
        %v565 = vld [vmem:[#allocation5 + $0x4d8] sm:$0xff]
        %v566 = vld [vmem:[#allocation5 + $0x4e0] sm:$0xff]
        %v567 = vld [vmem:[#allocation5 + $0x4e8] sm:$0xf]
        %v568 = vld [vmem:[#allocation5 + $0x4ec] sm:$0xff]
        %v569 = vld [vmem:[#allocation5 + $0x4f4] sm:$0xff]
        %v570 = vld [vmem:[#allocation5 + $0x4fc] sm:$0xff]
        %v571 = vld [vmem:[#allocation5 + $0x504] sm:$0xff]
        %v572 = vld [vmem:[#allocation5 + $0x50c] sm:$0xf]
        %v573 = vld [vmem:[#allocation5 + $0x510] sm:$0xff]
        %v574 = vld [vmem:[#allocation5 + $0x518] sm:$0xff]
        %v575 = vld [vmem:[#allocation5 + $0x520] sm:$0xff]
        %v576 = vld [vmem:[#allocation5 + $0x528] sm:$0xff]
        %v577 = vld [vmem:[#allocation5 + $0x530] sm:$0xf]
        %v578 = vld [vmem:[#allocation5 + $0x534] sm:$0xff]
        %v579 = vld [vmem:[#allocation5 + $0x53c] sm:$0xff]
        %v580 = vld [vmem:[#allocation5 + $0x544] sm:$0xff]
        %v581 = vld [vmem:[#allocation5 + $0x54c] sm:$0xff]
        %v582 = vld [vmem:[#allocation5 + $0x554] sm:$0xf]
        %v583 = vld [vmem:[#allocation5 + $0x558] sm:$0xff]
        %v584 = vld [vmem:[#allocation5 + $0x560] sm:$0xff]
        %v585 = vld [vmem:[#allocation5 + $0x568] sm:$0xff]
        %v586 = vld [vmem:[#allocation5 + $0x570] sm:$0xff]
        %v587 = vld [vmem:[#allocation5 + $0x578] sm:$0xf]
        %v588 = vld [vmem:[#allocation5 + $0x57c] sm:$0xff]
        %v589 = vld [vmem:[#allocation5 + $0x584] sm:$0xff]
        %v590 = vld [vmem:[#allocation5 + $0x58c] sm:$0xff]
        %v591 = vld [vmem:[#allocation5 + $0x594] sm:$0xff]
        %v592 = vld [vmem:[#allocation5 + $0x59c] sm:$0xf]
        %v593 = vld [vmem:[#allocation5 + $0x5a0] sm:$0xff]
        %v594 = vld [vmem:[#allocation5 + $0x5a8] sm:$0xff]
        %v595 = vld [vmem:[#allocation5 + $0x5b0] sm:$0xff]
        %v596 = vld [vmem:[#allocation5 + $0x5b8] sm:$0xff]
        %v597 = vld [vmem:[#allocation5 + $0x5c0] sm:$0xf]
        %v598 = vld [vmem:[#allocation5 + $0x5c4] sm:$0xff]
        %v599 = vld [vmem:[#allocation5 + $0x5cc] sm:$0xff]
        %v600 = vld [vmem:[#allocation5 + $0x5d4] sm:$0xff]
        %v601 = vld [vmem:[#allocation5 + $0x5dc] sm:$0xff]
        %v602 = vld [vmem:[#allocation5 + $0x5e4] sm:$0xf]
        %v603 = vld [vmem:[#allocation5 + $0x5e8] sm:$0xff]
        %v604 = vld [vmem:[#allocation5 + $0x5f0] sm:$0xff]
        %v605 = vld [vmem:[#allocation5 + $0x5f8] sm:$0xff]
        %v606 = vld [vmem:[#allocation5 + $0x600] sm:$0xff]
        %v607 = vld [vmem:[#allocation5 + $0x608] sm:$0xf]
        %v608 = vld [vmem:[#allocation5 + $0x60c] sm:$0xff]
        %v609 = vld [vmem:[#allocation5 + $0x614] sm:$0xff]
        %v610 = vld [vmem:[#allocation5 + $0x61c] sm:$0xff]
        %v611 = vld [vmem:[#allocation5 + $0x624] sm:$0xff]
        %v612 = vld [vmem:[#allocation5 + $0x62c] sm:$0xf]
        %v613 = vld [vmem:[#allocation5 + $0x630] sm:$0xff]
        %v614 = vld [vmem:[#allocation5 + $0x638] sm:$0xff]
        %v615 = vld [vmem:[#allocation5 + $0x640] sm:$0xff]
        %v616 = vld [vmem:[#allocation5 + $0x648] sm:$0xff]
        %v617 = vld [vmem:[#allocation5 + $0x650] sm:$0xf]
        %v618 = vld [vmem:[#allocation5 + $0x654] sm:$0xff]
        %v619 = vld [vmem:[#allocation5 + $0x65c] sm:$0xff]
        %v620 = vld [vmem:[#allocation5 + $0x664] sm:$0xff]
        %v621 = vld [vmem:[#allocation5 + $0x66c] sm:$0xff]
        %v622 = vld [vmem:[#allocation5 + $0x674] sm:$0xf]
        %v623 = vld [vmem:[#allocation5 + $0x678] sm:$0xff]
        %v624 = vld [vmem:[#allocation5 + $0x680] sm:$0xff]
        %v625 = vld [vmem:[#allocation5 + $0x688] sm:$0xff]
        %v626 = vld [vmem:[#allocation5 + $0x690] sm:$0xff]
        %v627 = vld [vmem:[#allocation5 + $0x698] sm:$0xf]
        %v628 = vld [vmem:[#allocation5 + $0x69c] sm:$0xff]
        %v629 = vld [vmem:[#allocation5 + $0x6a4] sm:$0xff]
        %v630 = vld [vmem:[#allocation5 + $0x6ac] sm:$0xff]
        %v631 = vld [vmem:[#allocation5 + $0x6b4] sm:$0xff]
        %v632 = vld [vmem:[#allocation5 + $0x6bc] sm:$0xf]
        %v873 = vunpack.c.l.b16 %v393
        %v874 = vunpack.c.h.b16 %v393
        %v875 = vunpack.c.l.b16 %v394
        %v876 = vunpack.c.h.b16 %v394
        %v877 = vunpack.c.l.b16 %v395
        %v878 = vunpack.c.h.b16 %v395
        %v879 = vunpack.c.l.b16 %v396
        %v880 = vunpack.c.h.b16 %v396
        %v881 = vunpack.c.l.b16 %v397
        %v882 = vunpack.c.l.b16 %v398
        %v883 = vunpack.c.h.b16 %v398
        %v884 = vunpack.c.l.b16 %v399
        %v885 = vunpack.c.h.b16 %v399
        %v886 = vunpack.c.l.b16 %v400
        %v887 = vunpack.c.h.b16 %v400
        %v888 = vunpack.c.l.b16 %v401
        %v889 = vunpack.c.h.b16 %v401
        %v890 = vunpack.c.l.b16 %v402
        %v891 = vunpack.c.l.b16 %v403
        %v892 = vunpack.c.h.b16 %v403
        %v893 = vunpack.c.l.b16 %v404
        %v894 = vunpack.c.h.b16 %v404
        %v895 = vunpack.c.l.b16 %v405
        %v896 = vunpack.c.h.b16 %v405
        %v897 = vunpack.c.l.b16 %v406
        %v898 = vunpack.c.h.b16 %v406
        %v899 = vunpack.c.l.b16 %v407
        %v900 = vunpack.c.l.b16 %v408
        %v901 = vunpack.c.h.b16 %v408
        %v902 = vunpack.c.l.b16 %v409
        %v903 = vunpack.c.h.b16 %v409
        %v904 = vunpack.c.l.b16 %v410
        %v905 = vunpack.c.h.b16 %v410
        %v906 = vunpack.c.l.b16 %v411
        %v907 = vunpack.c.h.b16 %v411
        %v908 = vunpack.c.l.b16 %v412
        %v909 = vunpack.c.l.b16 %v413
        %v910 = vunpack.c.h.b16 %v413
        %v911 = vunpack.c.l.b16 %v414
        %v912 = vunpack.c.h.b16 %v414
        %v913 = vunpack.c.l.b16 %v415
        %v914 = vunpack.c.h.b16 %v415
        %v915 = vunpack.c.l.b16 %v416
        %v916 = vunpack.c.h.b16 %v416
        %v917 = vunpack.c.l.b16 %v417
        %v918 = vunpack.c.l.b16 %v418
        %v919 = vunpack.c.h.b16 %v418
        %v920 = vunpack.c.l.b16 %v419
        %v921 = vunpack.c.h.b16 %v419
        %v922 = vunpack.c.l.b16 %v420
        %v923 = vunpack.c.h.b16 %v420
        %v924 = vunpack.c.l.b16 %v421
        %v925 = vunpack.c.h.b16 %v421
        %v926 = vunpack.c.l.b16 %v422
        %v927 = vunpack.c.l.b16 %v423
        %v928 = vunpack.c.h.b16 %v423
        %v929 = vunpack.c.l.b16 %v424
        %v930 = vunpack.c.h.b16 %v424
        %v931 = vunpack.c.l.b16 %v425
        %v932 = vunpack.c.h.b16 %v425
        %v933 = vunpack.c.l.b16 %v426
        %v934 = vunpack.c.h.b16 %v426
        %v935 = vunpack.c.l.b16 %v427
        %v936 = vunpack.c.l.b16 %v428
        %v937 = vunpack.c.h.b16 %v428
        %v938 = vunpack.c.l.b16 %v429
        %v939 = vunpack.c.h.b16 %v429
        %v940 = vunpack.c.l.b16 %v430
        %v941 = vunpack.c.h.b16 %v430
        %v942 = vunpack.c.l.b16 %v431
        %v943 = vunpack.c.h.b16 %v431
        %v944 = vunpack.c.l.b16 %v432
        %v945 = vunpack.c.l.b16 %v433
        %v946 = vunpack.c.h.b16 %v433
        %v947 = vunpack.c.l.b16 %v434
        %v948 = vunpack.c.h.b16 %v434
        %v949 = vunpack.c.l.b16 %v435
        %v950 = vunpack.c.h.b16 %v435
        %v951 = vunpack.c.l.b16 %v436
        %v952 = vunpack.c.h.b16 %v436
        %v953 = vunpack.c.l.b16 %v437
        %v954 = vunpack.c.l.b16 %v438
        %v955 = vunpack.c.h.b16 %v438
        %v956 = vunpack.c.l.b16 %v439
        %v957 = vunpack.c.h.b16 %v439
        %v958 = vunpack.c.l.b16 %v440
        %v959 = vunpack.c.h.b16 %v440
        %v960 = vunpack.c.l.b16 %v441
        %v961 = vunpack.c.h.b16 %v441
        %v962 = vunpack.c.l.b16 %v442
        %v963 = vunpack.c.l.b16 %v443
        %v964 = vunpack.c.h.b16 %v443
        %v965 = vunpack.c.l.b16 %v444
        %v966 = vunpack.c.h.b16 %v444
        %v967 = vunpack.c.l.b16 %v445
        %v968 = vunpack.c.h.b16 %v445
        %v969 = vunpack.c.l.b16 %v446
        %v970 = vunpack.c.h.b16 %v446
        %v971 = vunpack.c.l.b16 %v447
        %v972 = vunpack.c.l.b16 %v448
        %v973 = vunpack.c.h.b16 %v448
        %v974 = vunpack.c.l.b16 %v449
        %v975 = vunpack.c.h.b16 %v449
        %v976 = vunpack.c.l.b16 %v450
        %v977 = vunpack.c.h.b16 %v450
        %v978 = vunpack.c.l.b16 %v451
        %v979 = vunpack.c.h.b16 %v451
        %v980 = vunpack.c.l.b16 %v452
        %v981 = vunpack.c.l.b16 %v453
        %v982 = vunpack.c.h.b16 %v453
        %v983 = vunpack.c.l.b16 %v454
        %v984 = vunpack.c.h.b16 %v454
        %v985 = vunpack.c.l.b16 %v455
        %v986 = vunpack.c.h.b16 %v455
        %v987 = vunpack.c.l.b16 %v456
        %v988 = vunpack.c.h.b16 %v456
        %v989 = vunpack.c.l.b16 %v457
        %v990 = vunpack.c.l.b16 %v458
        %v991 = vunpack.c.h.b16 %v458
        %v992 = vunpack.c.l.b16 %v459
        %v993 = vunpack.c.h.b16 %v459
        %v994 = vunpack.c.l.b16 %v460
        %v995 = vunpack.c.h.b16 %v460
        %v996 = vunpack.c.l.b16 %v461
        %v997 = vunpack.c.h.b16 %v461
        %v998 = vunpack.c.l.b16 %v462
        %v999 = vunpack.c.l.b16 %v463
        %v1000 = vunpack.c.h.b16 %v463
        %v1001 = vunpack.c.l.b16 %v464
        %v1002 = vunpack.c.h.b16 %v464
        %v1003 = vunpack.c.l.b16 %v465
        %v1004 = vunpack.c.h.b16 %v465
        %v1005 = vunpack.c.l.b16 %v466
        %v1006 = vunpack.c.h.b16 %v466
        %v1007 = vunpack.c.l.b16 %v467
        %v1008 = vunpack.c.l.b16 %v468
        %v1009 = vunpack.c.h.b16 %v468
        %v1010 = vunpack.c.l.b16 %v469
        %v1011 = vunpack.c.h.b16 %v469
        %v1012 = vunpack.c.l.b16 %v470
        %v1013 = vunpack.c.h.b16 %v470
        %v1014 = vunpack.c.l.b16 %v471
        %v1015 = vunpack.c.h.b16 %v471
        %v1016 = vunpack.c.l.b16 %v472
        %v1017 = vunpack.c.l.b16 %v473
        %v1018 = vunpack.c.h.b16 %v473
        %v1019 = vunpack.c.l.b16 %v474
        %v1020 = vunpack.c.h.b16 %v474
        %v1021 = vunpack.c.l.b16 %v475
        %v1022 = vunpack.c.h.b16 %v475
        %v1023 = vunpack.c.l.b16 %v476
        %v1024 = vunpack.c.h.b16 %v476
        %v1025 = vunpack.c.l.b16 %v477
        %v1026 = vunpack.c.l.b16 %v478
        %v1027 = vunpack.c.h.b16 %v478
        %v1028 = vunpack.c.l.b16 %v479
        %v1029 = vunpack.c.h.b16 %v479
        %v1030 = vunpack.c.l.b16 %v480
        %v1031 = vunpack.c.h.b16 %v480
        %v1032 = vunpack.c.l.b16 %v481
        %v1033 = vunpack.c.h.b16 %v481
        %v1034 = vunpack.c.l.b16 %v482
        %v1035 = vunpack.c.l.b16 %v483
        %v1036 = vunpack.c.h.b16 %v483
        %v1037 = vunpack.c.l.b16 %v484
        %v1038 = vunpack.c.h.b16 %v484
        %v1039 = vunpack.c.l.b16 %v485
        %v1040 = vunpack.c.h.b16 %v485
        %v1041 = vunpack.c.l.b16 %v486
        %v1042 = vunpack.c.h.b16 %v486
        %v1043 = vunpack.c.l.b16 %v487
        %v1044 = vunpack.c.l.b16 %v488
        %v1045 = vunpack.c.h.b16 %v488
        %v1046 = vunpack.c.l.b16 %v489
        %v1047 = vunpack.c.h.b16 %v489
        %v1048 = vunpack.c.l.b16 %v490
        %v1049 = vunpack.c.h.b16 %v490
        %v1050 = vunpack.c.l.b16 %v491
        %v1051 = vunpack.c.h.b16 %v491
        %v1052 = vunpack.c.l.b16 %v492
        %v1053 = vunpack.c.l.b16 %v493
        %v1054 = vunpack.c.h.b16 %v493
        %v1055 = vunpack.c.l.b16 %v494
        %v1056 = vunpack.c.h.b16 %v494
        %v1057 = vunpack.c.l.b16 %v495
        %v1058 = vunpack.c.h.b16 %v495
        %v1059 = vunpack.c.l.b16 %v496
        %v1060 = vunpack.c.h.b16 %v496
        %v1061 = vunpack.c.l.b16 %v497
        %v1062 = vunpack.c.l.b16 %v498
        %v1063 = vunpack.c.h.b16 %v498
        %v1064 = vunpack.c.l.b16 %v499
        %v1065 = vunpack.c.h.b16 %v499
        %v1066 = vunpack.c.l.b16 %v500
        %v1067 = vunpack.c.h.b16 %v500
        %v1068 = vunpack.c.l.b16 %v501
        %v1069 = vunpack.c.h.b16 %v501
        %v1070 = vunpack.c.l.b16 %v502
        %v1071 = vunpack.c.l.b16 %v503
        %v1072 = vunpack.c.h.b16 %v503
        %v1073 = vunpack.c.l.b16 %v504
        %v1074 = vunpack.c.h.b16 %v504
        %v1075 = vunpack.c.l.b16 %v505
        %v1076 = vunpack.c.h.b16 %v505
        %v1077 = vunpack.c.l.b16 %v506
        %v1078 = vunpack.c.h.b16 %v506
        %v1079 = vunpack.c.l.b16 %v507
        %v1080 = vunpack.c.l.b16 %v508
        %v1081 = vunpack.c.h.b16 %v508
        %v1082 = vunpack.c.l.b16 %v509
        %v1083 = vunpack.c.h.b16 %v509
        %v1084 = vunpack.c.l.b16 %v510
        %v1085 = vunpack.c.h.b16 %v510
        %v1086 = vunpack.c.l.b16 %v511
        %v1087 = vunpack.c.h.b16 %v511
        %v1088 = vunpack.c.l.b16 %v512
        %v1089 = vunpack.c.l.b16 %v513
        %v1090 = vunpack.c.h.b16 %v513
        %v1091 = vunpack.c.l.b16 %v514
        %v1092 = vunpack.c.h.b16 %v514
        %v1093 = vunpack.c.l.b16 %v515
        %v1094 = vunpack.c.h.b16 %v515
        %v1095 = vunpack.c.l.b16 %v516
        %v1096 = vunpack.c.h.b16 %v516
        %v1097 = vunpack.c.l.b16 %v517
        %v1098 = vunpack.c.l.b16 %v518
        %v1099 = vunpack.c.h.b16 %v518
        %v1100 = vunpack.c.l.b16 %v519
        %v1101 = vunpack.c.h.b16 %v519
        %v1102 = vunpack.c.l.b16 %v520
        %v1103 = vunpack.c.h.b16 %v520
        %v1104 = vunpack.c.l.b16 %v521
        %v1105 = vunpack.c.h.b16 %v521
        %v1106 = vunpack.c.l.b16 %v522
        %v1107 = vunpack.c.l.b16 %v523
        %v1108 = vunpack.c.h.b16 %v523
        %v1109 = vunpack.c.l.b16 %v524
        %v1110 = vunpack.c.h.b16 %v524
        %v1111 = vunpack.c.l.b16 %v525
        %v1112 = vunpack.c.h.b16 %v525
        %v1113 = vunpack.c.l.b16 %v526
        %v1114 = vunpack.c.h.b16 %v526
        %v1115 = vunpack.c.l.b16 %v527
        %v1116 = vunpack.c.l.b16 %v528
        %v1117 = vunpack.c.h.b16 %v528
        %v1118 = vunpack.c.l.b16 %v529
        %v1119 = vunpack.c.h.b16 %v529
        %v1120 = vunpack.c.l.b16 %v530
        %v1121 = vunpack.c.h.b16 %v530
        %v1122 = vunpack.c.l.b16 %v531
        %v1123 = vunpack.c.h.b16 %v531
        %v1124 = vunpack.c.l.b16 %v532
        %v1125 = vunpack.c.l.b16 %v533
        %v1126 = vunpack.c.h.b16 %v533
        %v1127 = vunpack.c.l.b16 %v534
        %v1128 = vunpack.c.h.b16 %v534
        %v1129 = vunpack.c.l.b16 %v535
        %v1130 = vunpack.c.h.b16 %v535
        %v1131 = vunpack.c.l.b16 %v536
        %v1132 = vunpack.c.h.b16 %v536
        %v1133 = vunpack.c.l.b16 %v537
        %v1134 = vunpack.c.l.b16 %v538
        %v1135 = vunpack.c.h.b16 %v538
        %v1136 = vunpack.c.l.b16 %v539
        %v1137 = vunpack.c.h.b16 %v539
        %v1138 = vunpack.c.l.b16 %v540
        %v1139 = vunpack.c.h.b16 %v540
        %v1140 = vunpack.c.l.b16 %v541
        %v1141 = vunpack.c.h.b16 %v541
        %v1142 = vunpack.c.l.b16 %v542
        %v1143 = vunpack.c.l.b16 %v543
        %v1144 = vunpack.c.h.b16 %v543
        %v1145 = vunpack.c.l.b16 %v544
        %v1146 = vunpack.c.h.b16 %v544
        %v1147 = vunpack.c.l.b16 %v545
        %v1148 = vunpack.c.h.b16 %v545
        %v1149 = vunpack.c.l.b16 %v546
        %v1150 = vunpack.c.h.b16 %v546
        %v1151 = vunpack.c.l.b16 %v547
        %v1152 = vunpack.c.l.b16 %v548
        %v1153 = vunpack.c.h.b16 %v548
        %v1154 = vunpack.c.l.b16 %v549
        %v1155 = vunpack.c.h.b16 %v549
        %v1156 = vunpack.c.l.b16 %v550
        %v1157 = vunpack.c.h.b16 %v550
        %v1158 = vunpack.c.l.b16 %v551
        %v1159 = vunpack.c.h.b16 %v551
        %v1160 = vunpack.c.l.b16 %v552
        %v1161 = vunpack.c.l.b16 %v553
        %v1162 = vunpack.c.h.b16 %v553
        %v1163 = vunpack.c.l.b16 %v554
        %v1164 = vunpack.c.h.b16 %v554
        %v1165 = vunpack.c.l.b16 %v555
        %v1166 = vunpack.c.h.b16 %v555
        %v1167 = vunpack.c.l.b16 %v556
        %v1168 = vunpack.c.h.b16 %v556
        %v1169 = vunpack.c.l.b16 %v557
        %v1170 = vunpack.c.l.b16 %v558
        %v1171 = vunpack.c.h.b16 %v558
        %v1172 = vunpack.c.l.b16 %v559
        %v1173 = vunpack.c.h.b16 %v559
        %v1174 = vunpack.c.l.b16 %v560
        %v1175 = vunpack.c.h.b16 %v560
        %v1176 = vunpack.c.l.b16 %v561
        %v1177 = vunpack.c.h.b16 %v561
        %v1178 = vunpack.c.l.b16 %v562
        %v1179 = vunpack.c.l.b16 %v563
        %v1180 = vunpack.c.h.b16 %v563
        %v1181 = vunpack.c.l.b16 %v564
        %v1182 = vunpack.c.h.b16 %v564
        %v1183 = vunpack.c.l.b16 %v565
        %v1184 = vunpack.c.h.b16 %v565
        %v1185 = vunpack.c.l.b16 %v566
        %v1186 = vunpack.c.h.b16 %v566
        %v1187 = vunpack.c.l.b16 %v567
        %v1188 = vunpack.c.l.b16 %v568
        %v1189 = vunpack.c.h.b16 %v568
        %v1190 = vunpack.c.l.b16 %v569
        %v1191 = vunpack.c.h.b16 %v569
        %v1192 = vunpack.c.l.b16 %v570
        %v1193 = vunpack.c.h.b16 %v570
        %v1194 = vunpack.c.l.b16 %v571
        %v1195 = vunpack.c.h.b16 %v571
        %v1196 = vunpack.c.l.b16 %v572
        %v1197 = vunpack.c.l.b16 %v573
        %v1198 = vunpack.c.h.b16 %v573
        %v1199 = vunpack.c.l.b16 %v574
        %v1200 = vunpack.c.h.b16 %v574
        %v1201 = vunpack.c.l.b16 %v575
        %v1202 = vunpack.c.h.b16 %v575
        %v1203 = vunpack.c.l.b16 %v576
        %v1204 = vunpack.c.h.b16 %v576
        %v1205 = vunpack.c.l.b16 %v577
        %v1206 = vunpack.c.l.b16 %v578
        %v1207 = vunpack.c.h.b16 %v578
        %v1208 = vunpack.c.l.b16 %v579
        %v1209 = vunpack.c.h.b16 %v579
        %v1210 = vunpack.c.l.b16 %v580
        %v1211 = vunpack.c.h.b16 %v580
        %v1212 = vunpack.c.l.b16 %v581
        %v1213 = vunpack.c.h.b16 %v581
        %v1214 = vunpack.c.l.b16 %v582
        %v1215 = vunpack.c.l.b16 %v583
        %v1216 = vunpack.c.h.b16 %v583
        %v1217 = vunpack.c.l.b16 %v584
        %v1218 = vunpack.c.h.b16 %v584
        %v1219 = vunpack.c.l.b16 %v585
        %v1220 = vunpack.c.h.b16 %v585
        %v1221 = vunpack.c.l.b16 %v586
        %v1222 = vunpack.c.h.b16 %v586
        %v1223 = vunpack.c.l.b16 %v587
        %v1224 = vunpack.c.l.b16 %v588
        %v1225 = vunpack.c.h.b16 %v588
        %v1226 = vunpack.c.l.b16 %v589
        %v1227 = vunpack.c.h.b16 %v589
        %v1228 = vunpack.c.l.b16 %v590
        %v1229 = vunpack.c.h.b16 %v590
        %v1230 = vunpack.c.l.b16 %v591
        %v1231 = vunpack.c.h.b16 %v591
        %v1232 = vunpack.c.l.b16 %v592
        %v1233 = vunpack.c.l.b16 %v593
        %v1234 = vunpack.c.h.b16 %v593
        %v1235 = vunpack.c.l.b16 %v594
        %v1236 = vunpack.c.h.b16 %v594
        %v1237 = vunpack.c.l.b16 %v595
        %v1238 = vunpack.c.h.b16 %v595
        %v1239 = vunpack.c.l.b16 %v596
        %v1240 = vunpack.c.h.b16 %v596
        %v1241 = vunpack.c.l.b16 %v597
        %v1242 = vunpack.c.l.b16 %v598
        %v1243 = vunpack.c.h.b16 %v598
        %v1244 = vunpack.c.l.b16 %v599
        %v1245 = vunpack.c.h.b16 %v599
        %v1246 = vunpack.c.l.b16 %v600
        %v1247 = vunpack.c.h.b16 %v600
        %v1248 = vunpack.c.l.b16 %v601
        %v1249 = vunpack.c.h.b16 %v601
        %v1250 = vunpack.c.l.b16 %v602
        %v1251 = vunpack.c.l.b16 %v603
        %v1252 = vunpack.c.h.b16 %v603
        %v1253 = vunpack.c.l.b16 %v604
        %v1254 = vunpack.c.h.b16 %v604
        %v1255 = vunpack.c.l.b16 %v605
        %v1256 = vunpack.c.h.b16 %v605
        %v1257 = vunpack.c.l.b16 %v606
        %v1258 = vunpack.c.h.b16 %v606
        %v1259 = vunpack.c.l.b16 %v607
        %v1260 = vunpack.c.l.b16 %v608
        %v1261 = vunpack.c.h.b16 %v608
        %v1262 = vunpack.c.l.b16 %v609
        %v1263 = vunpack.c.h.b16 %v609
        %v1264 = vunpack.c.l.b16 %v610
        %v1265 = vunpack.c.h.b16 %v610
        %v1266 = vunpack.c.l.b16 %v611
        %v1267 = vunpack.c.h.b16 %v611
        %v1268 = vunpack.c.l.b16 %v612
        %v1269 = vunpack.c.l.b16 %v613
        %v1270 = vunpack.c.h.b16 %v613
        %v1271 = vunpack.c.l.b16 %v614
        %v1272 = vunpack.c.h.b16 %v614
        %v1273 = vunpack.c.l.b16 %v615
        %v1274 = vunpack.c.h.b16 %v615
        %v1275 = vunpack.c.l.b16 %v616
        %v1276 = vunpack.c.h.b16 %v616
        %v1277 = vunpack.c.l.b16 %v617
        %v1278 = vunpack.c.l.b16 %v618
        %v1279 = vunpack.c.h.b16 %v618
        %v1280 = vunpack.c.l.b16 %v619
        %v1281 = vunpack.c.h.b16 %v619
        %v1282 = vunpack.c.l.b16 %v620
        %v1283 = vunpack.c.h.b16 %v620
        %v1284 = vunpack.c.l.b16 %v621
        %v1285 = vunpack.c.h.b16 %v621
        %v1286 = vunpack.c.l.b16 %v622
        %v1287 = vunpack.c.l.b16 %v623
        %v1288 = vunpack.c.h.b16 %v623
        %v1289 = vunpack.c.l.b16 %v624
        %v1290 = vunpack.c.h.b16 %v624
        %v1291 = vunpack.c.l.b16 %v625
        %v1292 = vunpack.c.h.b16 %v625
        %v1293 = vunpack.c.l.b16 %v626
        %v1294 = vunpack.c.h.b16 %v626
        %v1295 = vunpack.c.l.b16 %v627
        %v1296 = vunpack.c.l.b16 %v628
        %v1297 = vunpack.c.h.b16 %v628
        %v1298 = vunpack.c.l.b16 %v629
        %v1299 = vunpack.c.h.b16 %v629
        %v1300 = vunpack.c.l.b16 %v630
        %v1301 = vunpack.c.h.b16 %v630
        %v1302 = vunpack.c.l.b16 %v631
        %v1303 = vunpack.c.h.b16 %v631
        %v1304 = vunpack.c.l.b16 %v632
        %v1305 = vpack.c.b16 %v882, %v873
        %v1306 = vpack.c.b16 %v883, %v874
        %v1307 = vpack.c.b16 %v884, %v875
        %v1308 = vpack.c.b16 %v885, %v876
        %v1309 = vpack.c.b16 %v886, %v877
        %v1310 = vpack.c.b16 %v887, %v878
        %v1311 = vpack.c.b16 %v888, %v879
        %v1312 = vpack.c.b16 %v889, %v880
        %v1313 = vpack.c.b16 %v890, %v881
        %v1314 = vpack.c.b16 %v900, %v891
        %v1315 = vpack.c.b16 %v901, %v892
        %v1316 = vpack.c.b16 %v902, %v893
        %v1317 = vpack.c.b16 %v903, %v894
        %v1318 = vpack.c.b16 %v904, %v895
        %v1319 = vpack.c.b16 %v905, %v896
        %v1320 = vpack.c.b16 %v906, %v897
        %v1321 = vpack.c.b16 %v907, %v898
        %v1322 = vpack.c.b16 %v908, %v899
        %v1323 = vpack.c.b16 %v918, %v909
        %v1324 = vpack.c.b16 %v919, %v910
        %v1325 = vpack.c.b16 %v920, %v911
        %v1326 = vpack.c.b16 %v921, %v912
        %v1327 = vpack.c.b16 %v922, %v913
        %v1328 = vpack.c.b16 %v923, %v914
        %v1329 = vpack.c.b16 %v924, %v915
        %v1330 = vpack.c.b16 %v925, %v916
        %v1331 = vpack.c.b16 %v926, %v917
        %v1332 = vpack.c.b16 %v936, %v927
        %v1333 = vpack.c.b16 %v937, %v928
        %v1334 = vpack.c.b16 %v938, %v929
        %v1335 = vpack.c.b16 %v939, %v930
        %v1336 = vpack.c.b16 %v940, %v931
        %v1337 = vpack.c.b16 %v941, %v932
        %v1338 = vpack.c.b16 %v942, %v933
        %v1339 = vpack.c.b16 %v943, %v934
        %v1340 = vpack.c.b16 %v944, %v935
        %v1341 = vpack.c.b16 %v954, %v945
        %v1342 = vpack.c.b16 %v955, %v946
        %v1343 = vpack.c.b16 %v956, %v947
        %v1344 = vpack.c.b16 %v957, %v948
        %v1345 = vpack.c.b16 %v958, %v949
        %v1346 = vpack.c.b16 %v959, %v950
        %v1347 = vpack.c.b16 %v960, %v951
        %v1348 = vpack.c.b16 %v961, %v952
        %v1349 = vpack.c.b16 %v962, %v953
        %v1350 = vpack.c.b16 %v972, %v963
        %v1351 = vpack.c.b16 %v973, %v964
        %v1352 = vpack.c.b16 %v974, %v965
        %v1353 = vpack.c.b16 %v975, %v966
        %v1354 = vpack.c.b16 %v976, %v967
        %v1355 = vpack.c.b16 %v977, %v968
        %v1356 = vpack.c.b16 %v978, %v969
        %v1357 = vpack.c.b16 %v979, %v970
        %v1358 = vpack.c.b16 %v980, %v971
        %v1359 = vpack.c.b16 %v990, %v981
        %v1360 = vpack.c.b16 %v991, %v982
        %v1361 = vpack.c.b16 %v992, %v983
        %v1362 = vpack.c.b16 %v993, %v984
        %v1363 = vpack.c.b16 %v994, %v985
        %v1364 = vpack.c.b16 %v995, %v986
        %v1365 = vpack.c.b16 %v996, %v987
        %v1366 = vpack.c.b16 %v997, %v988
        %v1367 = vpack.c.b16 %v998, %v989
        %v1368 = vpack.c.b16 %v1008, %v999
        %v1369 = vpack.c.b16 %v1009, %v1000
        %v1370 = vpack.c.b16 %v1010, %v1001
        %v1371 = vpack.c.b16 %v1011, %v1002
        %v1372 = vpack.c.b16 %v1012, %v1003
        %v1373 = vpack.c.b16 %v1013, %v1004
        %v1374 = vpack.c.b16 %v1014, %v1005
        %v1375 = vpack.c.b16 %v1015, %v1006
        %v1376 = vpack.c.b16 %v1016, %v1007
        %v1377 = vpack.c.b16 %v1026, %v1017
        %v1378 = vpack.c.b16 %v1027, %v1018
        %v1379 = vpack.c.b16 %v1028, %v1019
        %v1380 = vpack.c.b16 %v1029, %v1020
        %v1381 = vpack.c.b16 %v1030, %v1021
        %v1382 = vpack.c.b16 %v1031, %v1022
        %v1383 = vpack.c.b16 %v1032, %v1023
        %v1384 = vpack.c.b16 %v1033, %v1024
        %v1385 = vpack.c.b16 %v1034, %v1025
        %v1386 = vpack.c.b16 %v1044, %v1035
        %v1387 = vpack.c.b16 %v1045, %v1036
        %v1388 = vpack.c.b16 %v1046, %v1037
        %v1389 = vpack.c.b16 %v1047, %v1038
        %v1390 = vpack.c.b16 %v1048, %v1039
        %v1391 = vpack.c.b16 %v1049, %v1040
        %v1392 = vpack.c.b16 %v1050, %v1041
        %v1393 = vpack.c.b16 %v1051, %v1042
        %v1394 = vpack.c.b16 %v1052, %v1043
        %v1395 = vpack.c.b16 %v1062, %v1053
        %v1396 = vpack.c.b16 %v1063, %v1054
        %v1397 = vpack.c.b16 %v1064, %v1055
        %v1398 = vpack.c.b16 %v1065, %v1056
        %v1399 = vpack.c.b16 %v1066, %v1057
        %v1400 = vpack.c.b16 %v1067, %v1058
        %v1401 = vpack.c.b16 %v1068, %v1059
        %v1402 = vpack.c.b16 %v1069, %v1060
        %v1403 = vpack.c.b16 %v1070, %v1061
        %v1404 = vpack.c.b16 %v1080, %v1071
        %v1405 = vpack.c.b16 %v1081, %v1072
        %v1406 = vpack.c.b16 %v1082, %v1073
        %v1407 = vpack.c.b16 %v1083, %v1074
        %v1408 = vpack.c.b16 %v1084, %v1075
        %v1409 = vpack.c.b16 %v1085, %v1076
        %v1410 = vpack.c.b16 %v1086, %v1077
        %v1411 = vpack.c.b16 %v1087, %v1078
        %v1412 = vpack.c.b16 %v1088, %v1079
        %v1413 = vpack.c.b16 %v1098, %v1089
        %v1414 = vpack.c.b16 %v1099, %v1090
        %v1415 = vpack.c.b16 %v1100, %v1091
        %v1416 = vpack.c.b16 %v1101, %v1092
        %v1417 = vpack.c.b16 %v1102, %v1093
        %v1418 = vpack.c.b16 %v1103, %v1094
        %v1419 = vpack.c.b16 %v1104, %v1095
        %v1420 = vpack.c.b16 %v1105, %v1096
        %v1421 = vpack.c.b16 %v1106, %v1097
        %v1422 = vpack.c.b16 %v1116, %v1107
        %v1423 = vpack.c.b16 %v1117, %v1108
        %v1424 = vpack.c.b16 %v1118, %v1109
        %v1425 = vpack.c.b16 %v1119, %v1110
        %v1426 = vpack.c.b16 %v1120, %v1111
        %v1427 = vpack.c.b16 %v1121, %v1112
        %v1428 = vpack.c.b16 %v1122, %v1113
        %v1429 = vpack.c.b16 %v1123, %v1114
        %v1430 = vpack.c.b16 %v1124, %v1115
        %v1431 = vpack.c.b16 %v1134, %v1125
        %v1432 = vpack.c.b16 %v1135, %v1126
        %v1433 = vpack.c.b16 %v1136, %v1127
        %v1434 = vpack.c.b16 %v1137, %v1128
        %v1435 = vpack.c.b16 %v1138, %v1129
        %v1436 = vpack.c.b16 %v1139, %v1130
        %v1437 = vpack.c.b16 %v1140, %v1131
        %v1438 = vpack.c.b16 %v1141, %v1132
        %v1439 = vpack.c.b16 %v1142, %v1133
        %v1440 = vpack.c.b16 %v1152, %v1143
        %v1441 = vpack.c.b16 %v1153, %v1144
        %v1442 = vpack.c.b16 %v1154, %v1145
        %v1443 = vpack.c.b16 %v1155, %v1146
        %v1444 = vpack.c.b16 %v1156, %v1147
        %v1445 = vpack.c.b16 %v1157, %v1148
        %v1446 = vpack.c.b16 %v1158, %v1149
        %v1447 = vpack.c.b16 %v1159, %v1150
        %v1448 = vpack.c.b16 %v1160, %v1151
        %v1449 = vpack.c.b16 %v1170, %v1161
        %v1450 = vpack.c.b16 %v1171, %v1162
        %v1451 = vpack.c.b16 %v1172, %v1163
        %v1452 = vpack.c.b16 %v1173, %v1164
        %v1453 = vpack.c.b16 %v1174, %v1165
        %v1454 = vpack.c.b16 %v1175, %v1166
        %v1455 = vpack.c.b16 %v1176, %v1167
        %v1456 = vpack.c.b16 %v1177, %v1168
        %v1457 = vpack.c.b16 %v1178, %v1169
        %v1458 = vpack.c.b16 %v1188, %v1179
        %v1459 = vpack.c.b16 %v1189, %v1180
        %v1460 = vpack.c.b16 %v1190, %v1181
        %v1461 = vpack.c.b16 %v1191, %v1182
        %v1462 = vpack.c.b16 %v1192, %v1183
        %v1463 = vpack.c.b16 %v1193, %v1184
        %v1464 = vpack.c.b16 %v1194, %v1185
        %v1465 = vpack.c.b16 %v1195, %v1186
        %v1466 = vpack.c.b16 %v1196, %v1187
        %v1467 = vpack.c.b16 %v1206, %v1197
        %v1468 = vpack.c.b16 %v1207, %v1198
        %v1469 = vpack.c.b16 %v1208, %v1199
        %v1470 = vpack.c.b16 %v1209, %v1200
        %v1471 = vpack.c.b16 %v1210, %v1201
        %v1472 = vpack.c.b16 %v1211, %v1202
        %v1473 = vpack.c.b16 %v1212, %v1203
        %v1474 = vpack.c.b16 %v1213, %v1204
        %v1475 = vpack.c.b16 %v1214, %v1205
        %v1476 = vpack.c.b16 %v1224, %v1215
        %v1477 = vpack.c.b16 %v1225, %v1216
        %v1478 = vpack.c.b16 %v1226, %v1217
        %v1479 = vpack.c.b16 %v1227, %v1218
        %v1480 = vpack.c.b16 %v1228, %v1219
        %v1481 = vpack.c.b16 %v1229, %v1220
        %v1482 = vpack.c.b16 %v1230, %v1221
        %v1483 = vpack.c.b16 %v1231, %v1222
        %v1484 = vpack.c.b16 %v1232, %v1223
        %v1485 = vpack.c.b16 %v1242, %v1233
        %v1486 = vpack.c.b16 %v1243, %v1234
        %v1487 = vpack.c.b16 %v1244, %v1235
        %v1488 = vpack.c.b16 %v1245, %v1236
        %v1489 = vpack.c.b16 %v1246, %v1237
        %v1490 = vpack.c.b16 %v1247, %v1238
        %v1491 = vpack.c.b16 %v1248, %v1239
        %v1492 = vpack.c.b16 %v1249, %v1240
        %v1493 = vpack.c.b16 %v1250, %v1241
        %v1494 = vpack.c.b16 %v1260, %v1251
        %v1495 = vpack.c.b16 %v1261, %v1252
        %v1496 = vpack.c.b16 %v1262, %v1253
        %v1497 = vpack.c.b16 %v1263, %v1254
        %v1498 = vpack.c.b16 %v1264, %v1255
        %v1499 = vpack.c.b16 %v1265, %v1256
        %v1500 = vpack.c.b16 %v1266, %v1257
        %v1501 = vpack.c.b16 %v1267, %v1258
        %v1502 = vpack.c.b16 %v1268, %v1259
        %v1503 = vpack.c.b16 %v1278, %v1269
        %v1504 = vpack.c.b16 %v1279, %v1270
        %v1505 = vpack.c.b16 %v1280, %v1271
        %v1506 = vpack.c.b16 %v1281, %v1272
        %v1507 = vpack.c.b16 %v1282, %v1273
        %v1508 = vpack.c.b16 %v1283, %v1274
        %v1509 = vpack.c.b16 %v1284, %v1275
        %v1510 = vpack.c.b16 %v1285, %v1276
        %v1511 = vpack.c.b16 %v1286, %v1277
        %v1512 = vpack.c.b16 %v1296, %v1287
        %v1513 = vpack.c.b16 %v1297, %v1288
        %v1514 = vpack.c.b16 %v1298, %v1289
        %v1515 = vpack.c.b16 %v1299, %v1290
        %v1516 = vpack.c.b16 %v1300, %v1291
        %v1517 = vpack.c.b16 %v1301, %v1292
        %v1518 = vpack.c.b16 %v1302, %v1293
        %v1519 = vpack.c.b16 %v1303, %v1294
        %v1520 = vpack.c.b16 %v1304, %v1295
        %1737 = vmatprep.subr.bf16.mxu0 %v1369
        %1738 = vmatpush1.bf16.msra.mxu0 %v1368
        %1739 = vmatprep.subr.bf16.mxu0 %v1360
        %1740 = vmatpush1.bf16.msra.mxu0 %v1359
        %1741 = vmatprep.subr.bf16.mxu0 %v1351
        %1742 = vmatpush1.bf16.msra.mxu0 %v1350
        %1743 = vmatprep.subr.bf16.mxu0 %v1342
        %1744 = vmatpush1.bf16.msra.mxu0 %v1341
        %1745 = vmatprep.subr.bf16.mxu0 %v1333
        %1746 = vmatpush1.bf16.msra.mxu0 %v1332
        %1747 = vmatprep.subr.bf16.mxu0 %v1324
        %1748 = vmatpush1.bf16.msra.mxu0 %v1323
        %1749 = vmatprep.subr.bf16.mxu0 %v1315
        %1750 = vmatpush1.bf16.msra.mxu0 %v1314
        %1751 = vmatprep.subr.bf16.mxu0 %v1306
        %1752 = vmatpush1.bf16.msra.mxu0 %v1305
        %1753 = vmatprep.subr.bf16.mxu0 %v1441
        %1754 = vmatpush2.bf16.msra.mxu0 %v1440
        %1755 = vmatprep.subr.bf16.mxu0 %v1432
        %1756 = vmatpush2.bf16.msra.mxu0 %v1431
        %1757 = vmatprep.subr.bf16.mxu0 %v1423
        %1758 = vmatpush2.bf16.msra.mxu0 %v1422
        %1759 = vmatprep.subr.bf16.mxu0 %v1414
        %1760 = vmatpush2.bf16.msra.mxu0 %v1413
        %1761 = vmatprep.subr.bf16.mxu0 %v1405
        %1762 = vmatpush2.bf16.msra.mxu0 %v1404
        %1763 = vmatprep.subr.bf16.mxu0 %v1396
        %1764 = vmatpush2.bf16.msra.mxu0 %v1395
        %1765 = vmatprep.subr.bf16.mxu0 %v1387
        %1766 = vmatpush2.bf16.msra.mxu0 %v1386
        %1767 = vmatprep.subr.bf16.mxu0 %v1378
        %1768 = vmatpush2.bf16.msra.mxu0 %v1377
        %1769 = vmatprep.mubr.bf16.mxu0 %v346
        %1770 = vmatmul.mubr.bf16.gmra.mxu0 %v345
        %v1771 = vpop.f32.mrf.mxu0
        %v1772 = vadd.f32 0.0, %v1771
        %v1773 = vpop.f32.mrf.mxu0
        %v1774 = vadd.f32 0.0, %v1773
        %v1775 = vpop.f32.mrf.mxu0
        %v1776 = vadd.f32 0.0, %v1775
        %v1777 = vpop.f32.mrf.mxu0
        %v1778 = vadd.f32 0.0, %v1777
        %1779 = vmatprep.mubr.bf16.mxu0 %v349
        %1780 = vmatmul.mubr.bf16.gmra.mxu0 %v348
        %v1781 = vpop.f32.mrf.mxu0
        %v1782 = vadd.f32 0.0, %v1781
        %v1783 = vpop.f32.mrf.mxu0
        %v1784 = vadd.f32 0.0, %v1783
        %v1785 = vpop.f32.mrf.mxu0
        %v1786 = vadd.f32 0.0, %v1785
        %v1787 = vpop.f32.mrf.mxu0
        %v1788 = vadd.f32 0.0, %v1787
        %1789 = vmatprep.mubr.bf16.mxu0 %v352
        %1790 = vmatmul.mubr.bf16.gmra.mxu0 %v351
        %v1791 = vpop.f32.mrf.mxu0
        %v1792 = vadd.f32 0.0, %v1791
        %v1793 = vpop.f32.mrf.mxu0
        %v1794 = vadd.f32 0.0, %v1793
        %v1795 = vpop.f32.mrf.mxu0
        %v1796 = vadd.f32 0.0, %v1795
        %v1797 = vpop.f32.mrf.mxu0
        %v1798 = vadd.f32 0.0, %v1797
        %1799 = vmatprep.mubr.bf16.mxu0 %v355
        %1800 = vmatmul.mubr.bf16.gmra.mxu0 %v354
        %v1801 = vpop.f32.mrf.mxu0
        %v1802 = vadd.f32 0.0, %v1801
        %v1803 = vpop.f32.mrf.mxu0
        %v1804 = vadd.f32 0.0, %v1803
        %v1805 = vpop.f32.mrf.mxu0
        %v1806 = vadd.f32 0.0, %v1805
        %v1807 = vpop.f32.mrf.mxu0
        %v1808 = vadd.f32 0.0, %v1807
        %1809 = vmatprep.mubr.bf16.mxu0 %v358
        %1810 = vmatmul.mubr.bf16.gmra.mxu0 %v357
        %v1811 = vpop.f32.mrf.mxu0
        %v1812 = vadd.f32 0.0, %v1811
        %v1813 = vpop.f32.mrf.mxu0
        %v1814 = vadd.f32 0.0, %v1813
        %v1815 = vpop.f32.mrf.mxu0
        %v1816 = vadd.f32 0.0, %v1815
        %v1817 = vpop.f32.mrf.mxu0
        %v1818 = vadd.f32 0.0, %v1817
        %1819 = vmatprep.mubr.bf16.mxu0 %v361
        %1820 = vmatmul.mubr.bf16.gmra.mxu0 %v360
        %v1821 = vpop.f32.mrf.mxu0
        %v1822 = vadd.f32 0.0, %v1821
        %v1823 = vpop.f32.mrf.mxu0
        %v1824 = vadd.f32 0.0, %v1823
        %v1825 = vpop.f32.mrf.mxu0
        %v1826 = vadd.f32 0.0, %v1825
        %v1827 = vpop.f32.mrf.mxu0
        %v1828 = vadd.f32 0.0, %v1827
        %1829 = vmatprep.mubr.bf16.mxu0 %v364
        %1830 = vmatmul.mubr.bf16.gmra.mxu0 %v363
        %v1831 = vpop.f32.mrf.mxu0
        %v1832 = vadd.f32 0.0, %v1831
        %v1833 = vpop.f32.mrf.mxu0
        %v1834 = vadd.f32 0.0, %v1833
        %v1835 = vpop.f32.mrf.mxu0
        %v1836 = vadd.f32 0.0, %v1835
        %v1837 = vpop.f32.mrf.mxu0
        %v1838 = vadd.f32 0.0, %v1837
        %1839 = vmatprep.mubr.bf16.mxu0 %v367
        %1840 = vmatmul.mubr.bf16.gmra.mxu0 %v366
        %v1841 = vpop.f32.mrf.mxu0
        %v1842 = vadd.f32 0.0, %v1841
        %v1843 = vpop.f32.mrf.mxu0
        %v1844 = vadd.f32 0.0, %v1843
        %v1845 = vpop.f32.mrf.mxu0
        %v1846 = vadd.f32 0.0, %v1845
        %v1847 = vpop.f32.mrf.mxu0
        %v1848 = vadd.f32 0.0, %v1847
        %1849 = vmatprep.mubr.bf16.mxu0 %v370
        %1850 = vmatmul.mubr.bf16.gmra.mxu0 %v369
        %v1851 = vpop.f32.mrf.mxu0
        %v1852 = vadd.f32 0.0, %v1851
        %v1853 = vpop.f32.mrf.mxu0
        %v1854 = vadd.f32 0.0, %v1853
        %v1855 = vpop.f32.mrf.mxu0
        %v1856 = vadd.f32 0.0, %v1855
        %v1857 = vpop.f32.mrf.mxu0
        %v1858 = vadd.f32 0.0, %v1857
        %1859 = vmatprep.mubr.bf16.mxu0 %v373
        %1860 = vmatmul.mubr.bf16.gmra.mxu0 %v372
        %v1861 = vpop.f32.mrf.mxu0
        %v1862 = vadd.f32 0.0, %v1861
        %v1863 = vpop.f32.mrf.mxu0
        %v1864 = vadd.f32 0.0, %v1863
        %v1865 = vpop.f32.mrf.mxu0
        %v1866 = vadd.f32 0.0, %v1865
        %v1867 = vpop.f32.mrf.mxu0
        %v1868 = vadd.f32 0.0, %v1867
        %1869 = vmatprep.mubr.bf16.mxu0 %v376
        %1870 = vmatmul.mubr.bf16.gmra.mxu0 %v375
        %v1871 = vpop.f32.mrf.mxu0
        %v1872 = vadd.f32 0.0, %v1871
        %v1873 = vpop.f32.mrf.mxu0
        %v1874 = vadd.f32 0.0, %v1873
        %v1875 = vpop.f32.mrf.mxu0
        %v1876 = vadd.f32 0.0, %v1875
        %v1877 = vpop.f32.mrf.mxu0
        %v1878 = vadd.f32 0.0, %v1877
        %1879 = vmatprep.mubr.bf16.mxu0 %v379
        %1880 = vmatmul.mubr.bf16.gmra.mxu0 %v378
        %v1881 = vpop.f32.mrf.mxu0
        %v1882 = vadd.f32 0.0, %v1881
        %v1883 = vpop.f32.mrf.mxu0
        %v1884 = vadd.f32 0.0, %v1883
        %v1885 = vpop.f32.mrf.mxu0
        %v1886 = vadd.f32 0.0, %v1885
        %v1887 = vpop.f32.mrf.mxu0
        %v1888 = vadd.f32 0.0, %v1887
        %1889 = vmatprep.mubr.bf16.mxu0 %v382
        %1890 = vmatmul.mubr.bf16.gmra.mxu0 %v381
        %v1891 = vpop.f32.mrf.mxu0
        %v1892 = vadd.f32 0.0, %v1891
        %v1893 = vpop.f32.mrf.mxu0
        %v1894 = vadd.f32 0.0, %v1893
        %v1895 = vpop.f32.mrf.mxu0
        %v1896 = vadd.f32 0.0, %v1895
        %v1897 = vpop.f32.mrf.mxu0
        %v1898 = vadd.f32 0.0, %v1897
        %1899 = vmatprep.mubr.bf16.mxu0 %v385
        %1900 = vmatmul.mubr.bf16.gmra.mxu0 %v384
        %v1901 = vpop.f32.mrf.mxu0
        %v1902 = vadd.f32 0.0, %v1901
        %v1903 = vpop.f32.mrf.mxu0
        %v1904 = vadd.f32 0.0, %v1903
        %v1905 = vpop.f32.mrf.mxu0
        %v1906 = vadd.f32 0.0, %v1905
        %v1907 = vpop.f32.mrf.mxu0
        %v1908 = vadd.f32 0.0, %v1907
        %1909 = vmatprep.mubr.bf16.mxu0 %v388
        %1910 = vmatmul.mubr.bf16.gmra.mxu0 %v387
        %v1911 = vpop.f32.mrf.mxu0
        %v1912 = vadd.f32 0.0, %v1911
        %v1913 = vpop.f32.mrf.mxu0
        %v1914 = vadd.f32 0.0, %v1913
        %v1915 = vpop.f32.mrf.mxu0
        %v1916 = vadd.f32 0.0, %v1915
        %v1917 = vpop.f32.mrf.mxu0
        %v1918 = vadd.f32 0.0, %v1917
        %1919 = vmatprep.mubr.bf16.mxu0 %v391
        %1920 = vmatmul.mubr.bf16.gmra.mxu0 %v390
        %v1921 = vpop.f32.mrf.mxu0
        %v1922 = vadd.f32 0.0, %v1921
        %v1923 = vpop.f32.mrf.mxu0
        %v1924 = vadd.f32 0.0, %v1923
        %v1925 = vpop.f32.mrf.mxu0
        %v1926 = vadd.f32 0.0, %v1925
        %v1927 = vpop.f32.mrf.mxu0
        %v1928 = vadd.f32 0.0, %v1927
        %1929 = vdwg.mxu0
        %1930 = vmatprep.subr.bf16.mxu0 %v1513
        %1931 = vmatpush1.bf16.msra.mxu0 %v1512
        %1932 = vmatprep.subr.bf16.mxu0 %v1504
        %1933 = vmatpush1.bf16.msra.mxu0 %v1503
        %1934 = vmatprep.subr.bf16.mxu0 %v1495
        %1935 = vmatpush1.bf16.msra.mxu0 %v1494
        %1936 = vmatprep.subr.bf16.mxu0 %v1486
        %1937 = vmatpush1.bf16.msra.mxu0 %v1485
        %1938 = vmatprep.subr.bf16.mxu0 %v1477
        %1939 = vmatpush1.bf16.msra.mxu0 %v1476
        %1940 = vmatprep.subr.bf16.mxu0 %v1468
        %1941 = vmatpush1.bf16.msra.mxu0 %v1467
        %1942 = vmatprep.subr.bf16.mxu0 %v1459
        %1943 = vmatpush1.bf16.msra.mxu0 %v1458
        %1944 = vmatprep.subr.bf16.mxu0 %v1450
        %1945 = vmatpush1.bf16.msra.mxu0 %v1449
        %1946 = vmatprep.subr.bf16.mxu0 0
        %1947 = vmatpush2.bf16.msra.mxu0 0
        %1948 = vmatprep.subr.bf16.mxu0 0
        %1949 = vmatpush2.bf16.msra.mxu0 0
        %1950 = vmatprep.subr.bf16.mxu0 0
        %1951 = vmatpush2.bf16.msra.mxu0 0
        %1952 = vmatprep.subr.bf16.mxu0 0
        %1953 = vmatpush2.bf16.msra.mxu0 0
        %1954 = vmatprep.subr.bf16.mxu0 0
        %1955 = vmatpush2.bf16.msra.mxu0 0
        %1956 = vmatprep.subr.bf16.mxu0 0
        %1957 = vmatpush2.bf16.msra.mxu0 0
        %1958 = vmatprep.subr.bf16.mxu0 0
        %1959 = vmatpush2.bf16.msra.mxu0 0
        %1960 = vmatprep.subr.bf16.mxu0 0
        %1961 = vmatpush2.bf16.msra.mxu0 0
        %1962 = vmatprep.mubr.bf16.mxu0 0
        %1963 = vmatmul.mubr.bf16.gmra.mxu0 %v347
        %v1964 = vpop.f32.mrf.mxu0
        %v1965 = vadd.f32 %v1772, %v1964
        %v1966 = vpop.f32.mrf.mxu0
        %v1967 = vadd.f32 %v1774, %v1966
        %v1968 = vpop.f32.mrf.mxu0
        %v1969 = vadd.f32 %v1776, %v1968
        %v1970 = vpop.f32.mrf.mxu0
        %v1971 = vadd.f32 %v1778, %v1970
        %1972 = vmatprep.mubr.bf16.mxu0 0
        %1973 = vmatmul.mubr.bf16.gmra.mxu0 %v350
        %v1974 = vpop.f32.mrf.mxu0
        %v1975 = vadd.f32 %v1782, %v1974
        %v1976 = vpop.f32.mrf.mxu0
        %v1977 = vadd.f32 %v1784, %v1976
        %v1978 = vpop.f32.mrf.mxu0
        %v1979 = vadd.f32 %v1786, %v1978
        %v1980 = vpop.f32.mrf.mxu0
        %v1981 = vadd.f32 %v1788, %v1980
        %1982 = vmatprep.mubr.bf16.mxu0 0
        %1983 = vmatmul.mubr.bf16.gmra.mxu0 %v353
        %v1984 = vpop.f32.mrf.mxu0
        %v1985 = vadd.f32 %v1792, %v1984
        %v1986 = vpop.f32.mrf.mxu0
        %v1987 = vadd.f32 %v1794, %v1986
        %v1988 = vpop.f32.mrf.mxu0
        %v1989 = vadd.f32 %v1796, %v1988
        %v1990 = vpop.f32.mrf.mxu0
        %v1991 = vadd.f32 %v1798, %v1990
        %1992 = vmatprep.mubr.bf16.mxu0 0
        %1993 = vmatmul.mubr.bf16.gmra.mxu0 %v356
        %v1994 = vpop.f32.mrf.mxu0
        %v1995 = vadd.f32 %v1802, %v1994
        %v1996 = vpop.f32.mrf.mxu0
        %v1997 = vadd.f32 %v1804, %v1996
        %v1998 = vpop.f32.mrf.mxu0
        %v1999 = vadd.f32 %v1806, %v1998
        %v2000 = vpop.f32.mrf.mxu0
        %v2001 = vadd.f32 %v1808, %v2000
        %2002 = vmatprep.mubr.bf16.mxu0 0
        %2003 = vmatmul.mubr.bf16.gmra.mxu0 %v359
        %v2004 = vpop.f32.mrf.mxu0
        %v2005 = vadd.f32 %v1812, %v2004
        %v2006 = vpop.f32.mrf.mxu0
        %v2007 = vadd.f32 %v1814, %v2006
        %v2008 = vpop.f32.mrf.mxu0
        %v2009 = vadd.f32 %v1816, %v2008
        %v2010 = vpop.f32.mrf.mxu0
        %v2011 = vadd.f32 %v1818, %v2010
        %2012 = vmatprep.mubr.bf16.mxu0 0
        %2013 = vmatmul.mubr.bf16.gmra.mxu0 %v362
        %v2014 = vpop.f32.mrf.mxu0
        %v2015 = vadd.f32 %v1822, %v2014
        %v2016 = vpop.f32.mrf.mxu0
        %v2017 = vadd.f32 %v1824, %v2016
        %v2018 = vpop.f32.mrf.mxu0
        %v2019 = vadd.f32 %v1826, %v2018
        %v2020 = vpop.f32.mrf.mxu0
        %v2021 = vadd.f32 %v1828, %v2020
        %2022 = vmatprep.mubr.bf16.mxu0 0
        %2023 = vmatmul.mubr.bf16.gmra.mxu0 %v365
        %v2024 = vpop.f32.mrf.mxu0
        %v2025 = vadd.f32 %v1832, %v2024
        %v2026 = vpop.f32.mrf.mxu0
        %v2027 = vadd.f32 %v1834, %v2026
        %v2028 = vpop.f32.mrf.mxu0
        %v2029 = vadd.f32 %v1836, %v2028
        %v2030 = vpop.f32.mrf.mxu0
        %v2031 = vadd.f32 %v1838, %v2030
        %2032 = vmatprep.mubr.bf16.mxu0 0
        %2033 = vmatmul.mubr.bf16.gmra.mxu0 %v368
        %v2034 = vpop.f32.mrf.mxu0
        %v2035 = vadd.f32 %v1842, %v2034
        %v2036 = vpop.f32.mrf.mxu0
        %v2037 = vadd.f32 %v1844, %v2036
        %v2038 = vpop.f32.mrf.mxu0
        %v2039 = vadd.f32 %v1846, %v2038
        %v2040 = vpop.f32.mrf.mxu0
        %v2041 = vadd.f32 %v1848, %v2040
        %2042 = vmatprep.mubr.bf16.mxu0 0
        %2043 = vmatmul.mubr.bf16.gmra.mxu0 %v371
        %v2044 = vpop.f32.mrf.mxu0
        %v2045 = vadd.f32 %v1852, %v2044
        %v2046 = vpop.f32.mrf.mxu0
        %v2047 = vadd.f32 %v1854, %v2046
        %v2048 = vpop.f32.mrf.mxu0
        %v2049 = vadd.f32 %v1856, %v2048
        %v2050 = vpop.f32.mrf.mxu0
        %v2051 = vadd.f32 %v1858, %v2050
        %2052 = vmatprep.mubr.bf16.mxu0 0
        %2053 = vmatmul.mubr.bf16.gmra.mxu0 %v374
        %v2054 = vpop.f32.mrf.mxu0
        %v2055 = vadd.f32 %v1862, %v2054
        %v2056 = vpop.f32.mrf.mxu0
        %v2057 = vadd.f32 %v1864, %v2056
        %v2058 = vpop.f32.mrf.mxu0
        %v2059 = vadd.f32 %v1866, %v2058
        %v2060 = vpop.f32.mrf.mxu0
        %v2061 = vadd.f32 %v1868, %v2060
        %2062 = vmatprep.mubr.bf16.mxu0 0
        %2063 = vmatmul.mubr.bf16.gmra.mxu0 %v377
        %v2064 = vpop.f32.mrf.mxu0
        %v2065 = vadd.f32 %v1872, %v2064
        %v2066 = vpop.f32.mrf.mxu0
        %v2067 = vadd.f32 %v1874, %v2066
        %v2068 = vpop.f32.mrf.mxu0
        %v2069 = vadd.f32 %v1876, %v2068
        %v2070 = vpop.f32.mrf.mxu0
        %v2071 = vadd.f32 %v1878, %v2070
        %2072 = vmatprep.mubr.bf16.mxu0 0
        %2073 = vmatmul.mubr.bf16.gmra.mxu0 %v380
        %v2074 = vpop.f32.mrf.mxu0
        %v2075 = vadd.f32 %v1882, %v2074
        %v2076 = vpop.f32.mrf.mxu0
        %v2077 = vadd.f32 %v1884, %v2076
        %v2078 = vpop.f32.mrf.mxu0
        %v2079 = vadd.f32 %v1886, %v2078
        %v2080 = vpop.f32.mrf.mxu0
        %v2081 = vadd.f32 %v1888, %v2080
        %2082 = vmatprep.mubr.bf16.mxu0 0
        %2083 = vmatmul.mubr.bf16.gmra.mxu0 %v383
        %v2084 = vpop.f32.mrf.mxu0
        %v2085 = vadd.f32 %v1892, %v2084
        %v2086 = vpop.f32.mrf.mxu0
        %v2087 = vadd.f32 %v1894, %v2086
        %v2088 = vpop.f32.mrf.mxu0
        %v2089 = vadd.f32 %v1896, %v2088
        %v2090 = vpop.f32.mrf.mxu0
        %v2091 = vadd.f32 %v1898, %v2090
        %2092 = vmatprep.mubr.bf16.mxu0 0
        %2093 = vmatmul.mubr.bf16.gmra.mxu0 %v386
        %v2094 = vpop.f32.mrf.mxu0
        %v2095 = vadd.f32 %v1902, %v2094
        %v2096 = vpop.f32.mrf.mxu0
        %v2097 = vadd.f32 %v1904, %v2096
        %v2098 = vpop.f32.mrf.mxu0
        %v2099 = vadd.f32 %v1906, %v2098
        %v2100 = vpop.f32.mrf.mxu0
        %v2101 = vadd.f32 %v1908, %v2100
        %2102 = vmatprep.mubr.bf16.mxu0 0
        %2103 = vmatmul.mubr.bf16.gmra.mxu0 %v389
        %v2104 = vpop.f32.mrf.mxu0
        %v2105 = vadd.f32 %v1912, %v2104
        %v2106 = vpop.f32.mrf.mxu0
        %v2107 = vadd.f32 %v1914, %v2106
        %v2108 = vpop.f32.mrf.mxu0
        %v2109 = vadd.f32 %v1916, %v2108
        %v2110 = vpop.f32.mrf.mxu0
        %v2111 = vadd.f32 %v1918, %v2110
        %2112 = vmatprep.mubr.bf16.mxu0 0
        %2113 = vmatmul.mubr.bf16.gmra.mxu0 %v392
        %v2114 = vpop.f32.mrf.mxu0
        %v2115 = vadd.f32 %v1922, %v2114
        %v2116 = vpop.f32.mrf.mxu0
        %v2117 = vadd.f32 %v1924, %v2116
        %v2118 = vpop.f32.mrf.mxu0
        %v2119 = vadd.f32 %v1926, %v2118
        %v2120 = vpop.f32.mrf.mxu0
        %v2121 = vadd.f32 %v1928, %v2120
        %2122 = vdwg.mxu0
        %2123 = vmatprep.subr.bf16.mxu0 %v1371
        %2124 = vmatpush1.bf16.msra.mxu0 %v1370
        %2125 = vmatprep.subr.bf16.mxu0 %v1362
        %2126 = vmatpush1.bf16.msra.mxu0 %v1361
        %2127 = vmatprep.subr.bf16.mxu0 %v1353
        %2128 = vmatpush1.bf16.msra.mxu0 %v1352
        %2129 = vmatprep.subr.bf16.mxu0 %v1344
        %2130 = vmatpush1.bf16.msra.mxu0 %v1343
        %2131 = vmatprep.subr.bf16.mxu0 %v1335
        %2132 = vmatpush1.bf16.msra.mxu0 %v1334
        %2133 = vmatprep.subr.bf16.mxu0 %v1326
        %2134 = vmatpush1.bf16.msra.mxu0 %v1325
        %2135 = vmatprep.subr.bf16.mxu0 %v1317
        %2136 = vmatpush1.bf16.msra.mxu0 %v1316
        %2137 = vmatprep.subr.bf16.mxu0 %v1308
        %2138 = vmatpush1.bf16.msra.mxu0 %v1307
        %2139 = vmatprep.subr.bf16.mxu0 %v1443
        %2140 = vmatpush2.bf16.msra.mxu0 %v1442
        %2141 = vmatprep.subr.bf16.mxu0 %v1434
        %2142 = vmatpush2.bf16.msra.mxu0 %v1433
        %2143 = vmatprep.subr.bf16.mxu0 %v1425
        %2144 = vmatpush2.bf16.msra.mxu0 %v1424
        %2145 = vmatprep.subr.bf16.mxu0 %v1416
        %2146 = vmatpush2.bf16.msra.mxu0 %v1415
        %2147 = vmatprep.subr.bf16.mxu0 %v1407
        %2148 = vmatpush2.bf16.msra.mxu0 %v1406
        %2149 = vmatprep.subr.bf16.mxu0 %v1398
        %2150 = vmatpush2.bf16.msra.mxu0 %v1397
        %2151 = vmatprep.subr.bf16.mxu0 %v1389
        %2152 = vmatpush2.bf16.msra.mxu0 %v1388
        %2153 = vmatprep.subr.bf16.mxu0 %v1380
        %2154 = vmatpush2.bf16.msra.mxu0 %v1379
        %2155 = vmatprep.mubr.bf16.mxu0 %v346
        %2156 = vmatmul.mubr.bf16.gmra.mxu0 %v345
        %v2157 = vpop.f32.mrf.mxu0
        %v2158 = vadd.f32 0.0, %v2157
        %v2159 = vpop.f32.mrf.mxu0
        %v2160 = vadd.f32 0.0, %v2159
        %v2161 = vpop.f32.mrf.mxu0
        %v2162 = vadd.f32 0.0, %v2161
        %v2163 = vpop.f32.mrf.mxu0
        %v2164 = vadd.f32 0.0, %v2163
        %2165 = vmatprep.mubr.bf16.mxu0 %v349
        %2166 = vmatmul.mubr.bf16.gmra.mxu0 %v348
        %v2167 = vpop.f32.mrf.mxu0
        %v2168 = vadd.f32 0.0, %v2167
        %v2169 = vpop.f32.mrf.mxu0
        %v2170 = vadd.f32 0.0, %v2169
        %v2171 = vpop.f32.mrf.mxu0
        %v2172 = vadd.f32 0.0, %v2171
        %v2173 = vpop.f32.mrf.mxu0
        %v2174 = vadd.f32 0.0, %v2173
        %2175 = vmatprep.mubr.bf16.mxu0 %v352
        %2176 = vmatmul.mubr.bf16.gmra.mxu0 %v351
        %v2177 = vpop.f32.mrf.mxu0
        %v2178 = vadd.f32 0.0, %v2177
        %v2179 = vpop.f32.mrf.mxu0
        %v2180 = vadd.f32 0.0, %v2179
        %v2181 = vpop.f32.mrf.mxu0
        %v2182 = vadd.f32 0.0, %v2181
        %v2183 = vpop.f32.mrf.mxu0
        %v2184 = vadd.f32 0.0, %v2183
        %2185 = vmatprep.mubr.bf16.mxu0 %v355
        %2186 = vmatmul.mubr.bf16.gmra.mxu0 %v354
        %v2187 = vpop.f32.mrf.mxu0
        %v2188 = vadd.f32 0.0, %v2187
        %v2189 = vpop.f32.mrf.mxu0
        %v2190 = vadd.f32 0.0, %v2189
        %v2191 = vpop.f32.mrf.mxu0
        %v2192 = vadd.f32 0.0, %v2191
        %v2193 = vpop.f32.mrf.mxu0
        %v2194 = vadd.f32 0.0, %v2193
        %2195 = vmatprep.mubr.bf16.mxu0 %v358
        %2196 = vmatmul.mubr.bf16.gmra.mxu0 %v357
        %v2197 = vpop.f32.mrf.mxu0
        %v2198 = vadd.f32 0.0, %v2197
        %v2199 = vpop.f32.mrf.mxu0
        %v2200 = vadd.f32 0.0, %v2199
        %v2201 = vpop.f32.mrf.mxu0
        %v2202 = vadd.f32 0.0, %v2201
        %v2203 = vpop.f32.mrf.mxu0
        %v2204 = vadd.f32 0.0, %v2203
        %2205 = vmatprep.mubr.bf16.mxu0 %v361
        %2206 = vmatmul.mubr.bf16.gmra.mxu0 %v360
        %v2207 = vpop.f32.mrf.mxu0
        %v2208 = vadd.f32 0.0, %v2207
        %v2209 = vpop.f32.mrf.mxu0
        %v2210 = vadd.f32 0.0, %v2209
        %v2211 = vpop.f32.mrf.mxu0
        %v2212 = vadd.f32 0.0, %v2211
        %v2213 = vpop.f32.mrf.mxu0
        %v2214 = vadd.f32 0.0, %v2213
        %2215 = vmatprep.mubr.bf16.mxu0 %v364
        %2216 = vmatmul.mubr.bf16.gmra.mxu0 %v363
        %v2217 = vpop.f32.mrf.mxu0
        %v2218 = vadd.f32 0.0, %v2217
        %v2219 = vpop.f32.mrf.mxu0
        %v2220 = vadd.f32 0.0, %v2219
        %v2221 = vpop.f32.mrf.mxu0
        %v2222 = vadd.f32 0.0, %v2221
        %v2223 = vpop.f32.mrf.mxu0
        %v2224 = vadd.f32 0.0, %v2223
        %2225 = vmatprep.mubr.bf16.mxu0 %v367
        %2226 = vmatmul.mubr.bf16.gmra.mxu0 %v366
        %v2227 = vpop.f32.mrf.mxu0
        %v2228 = vadd.f32 0.0, %v2227
        %v2229 = vpop.f32.mrf.mxu0
        %v2230 = vadd.f32 0.0, %v2229
        %v2231 = vpop.f32.mrf.mxu0
        %v2232 = vadd.f32 0.0, %v2231
        %v2233 = vpop.f32.mrf.mxu0
        %v2234 = vadd.f32 0.0, %v2233
        %2235 = vmatprep.mubr.bf16.mxu0 %v370
        %2236 = vmatmul.mubr.bf16.gmra.mxu0 %v369
        %v2237 = vpop.f32.mrf.mxu0
        %v2238 = vadd.f32 0.0, %v2237
        %v2239 = vpop.f32.mrf.mxu0
        %v2240 = vadd.f32 0.0, %v2239
        %v2241 = vpop.f32.mrf.mxu0
        %v2242 = vadd.f32 0.0, %v2241
        %v2243 = vpop.f32.mrf.mxu0
        %v2244 = vadd.f32 0.0, %v2243
        %2245 = vmatprep.mubr.bf16.mxu0 %v373
        %2246 = vmatmul.mubr.bf16.gmra.mxu0 %v372
        %v2247 = vpop.f32.mrf.mxu0
        %v2248 = vadd.f32 0.0, %v2247
        %v2249 = vpop.f32.mrf.mxu0
        %v2250 = vadd.f32 0.0, %v2249
        %v2251 = vpop.f32.mrf.mxu0
        %v2252 = vadd.f32 0.0, %v2251
        %v2253 = vpop.f32.mrf.mxu0
        %v2254 = vadd.f32 0.0, %v2253
        %2255 = vmatprep.mubr.bf16.mxu0 %v376
        %2256 = vmatmul.mubr.bf16.gmra.mxu0 %v375
        %v2257 = vpop.f32.mrf.mxu0
        %v2258 = vadd.f32 0.0, %v2257
        %v2259 = vpop.f32.mrf.mxu0
        %v2260 = vadd.f32 0.0, %v2259
        %v2261 = vpop.f32.mrf.mxu0
        %v2262 = vadd.f32 0.0, %v2261
        %v2263 = vpop.f32.mrf.mxu0
        %v2264 = vadd.f32 0.0, %v2263
        %2265 = vmatprep.mubr.bf16.mxu0 %v379
        %2266 = vmatmul.mubr.bf16.gmra.mxu0 %v378
        %v2267 = vpop.f32.mrf.mxu0
        %v2268 = vadd.f32 0.0, %v2267
        %v2269 = vpop.f32.mrf.mxu0
        %v2270 = vadd.f32 0.0, %v2269
        %v2271 = vpop.f32.mrf.mxu0
        %v2272 = vadd.f32 0.0, %v2271
        %v2273 = vpop.f32.mrf.mxu0
        %v2274 = vadd.f32 0.0, %v2273
        %2275 = vmatprep.mubr.bf16.mxu0 %v382
        %2276 = vmatmul.mubr.bf16.gmra.mxu0 %v381
        %v2277 = vpop.f32.mrf.mxu0
        %v2278 = vadd.f32 0.0, %v2277
        %v2279 = vpop.f32.mrf.mxu0
        %v2280 = vadd.f32 0.0, %v2279
        %v2281 = vpop.f32.mrf.mxu0
        %v2282 = vadd.f32 0.0, %v2281
        %v2283 = vpop.f32.mrf.mxu0
        %v2284 = vadd.f32 0.0, %v2283
        %2285 = vmatprep.mubr.bf16.mxu0 %v385
        %2286 = vmatmul.mubr.bf16.gmra.mxu0 %v384
        %v2287 = vpop.f32.mrf.mxu0
        %v2288 = vadd.f32 0.0, %v2287
        %v2289 = vpop.f32.mrf.mxu0
        %v2290 = vadd.f32 0.0, %v2289
        %v2291 = vpop.f32.mrf.mxu0
        %v2292 = vadd.f32 0.0, %v2291
        %v2293 = vpop.f32.mrf.mxu0
        %v2294 = vadd.f32 0.0, %v2293
        %2295 = vmatprep.mubr.bf16.mxu0 %v388
        %2296 = vmatmul.mubr.bf16.gmra.mxu0 %v387
        %v2297 = vpop.f32.mrf.mxu0
        %v2298 = vadd.f32 0.0, %v2297
        %v2299 = vpop.f32.mrf.mxu0
        %v2300 = vadd.f32 0.0, %v2299
        %v2301 = vpop.f32.mrf.mxu0
        %v2302 = vadd.f32 0.0, %v2301
        %v2303 = vpop.f32.mrf.mxu0
        %v2304 = vadd.f32 0.0, %v2303
        %2305 = vmatprep.mubr.bf16.mxu0 %v391
        %2306 = vmatmul.mubr.bf16.gmra.mxu0 %v390
        %v2307 = vpop.f32.mrf.mxu0
        %v2308 = vadd.f32 0.0, %v2307
        %v2309 = vpop.f32.mrf.mxu0
        %v2310 = vadd.f32 0.0, %v2309
        %v2311 = vpop.f32.mrf.mxu0
        %v2312 = vadd.f32 0.0, %v2311
        %v2313 = vpop.f32.mrf.mxu0
        %v2314 = vadd.f32 0.0, %v2313
        %2315 = vdwg.mxu0
        %2316 = vmatprep.subr.bf16.mxu0 %v1515
        %2317 = vmatpush1.bf16.msra.mxu0 %v1514
        %2318 = vmatprep.subr.bf16.mxu0 %v1506
        %2319 = vmatpush1.bf16.msra.mxu0 %v1505
        %2320 = vmatprep.subr.bf16.mxu0 %v1497
        %2321 = vmatpush1.bf16.msra.mxu0 %v1496
        %2322 = vmatprep.subr.bf16.mxu0 %v1488
        %2323 = vmatpush1.bf16.msra.mxu0 %v1487
        %2324 = vmatprep.subr.bf16.mxu0 %v1479
        %2325 = vmatpush1.bf16.msra.mxu0 %v1478
        %2326 = vmatprep.subr.bf16.mxu0 %v1470
        %2327 = vmatpush1.bf16.msra.mxu0 %v1469
        %2328 = vmatprep.subr.bf16.mxu0 %v1461
        %2329 = vmatpush1.bf16.msra.mxu0 %v1460
        %2330 = vmatprep.subr.bf16.mxu0 %v1452
        %2331 = vmatpush1.bf16.msra.mxu0 %v1451
        %2332 = vmatprep.subr.bf16.mxu0 0
        %2333 = vmatpush2.bf16.msra.mxu0 0
        %2334 = vmatprep.subr.bf16.mxu0 0
        %2335 = vmatpush2.bf16.msra.mxu0 0
        %2336 = vmatprep.subr.bf16.mxu0 0
        %2337 = vmatpush2.bf16.msra.mxu0 0
        %2338 = vmatprep.subr.bf16.mxu0 0
        %2339 = vmatpush2.bf16.msra.mxu0 0
        %2340 = vmatprep.subr.bf16.mxu0 0
        %2341 = vmatpush2.bf16.msra.mxu0 0
        %2342 = vmatprep.subr.bf16.mxu0 0
        %2343 = vmatpush2.bf16.msra.mxu0 0
        %2344 = vmatprep.subr.bf16.mxu0 0
        %2345 = vmatpush2.bf16.msra.mxu0 0
        %2346 = vmatprep.subr.bf16.mxu0 0
        %2347 = vmatpush2.bf16.msra.mxu0 0
        %2348 = vmatprep.mubr.bf16.mxu0 0
        %2349 = vmatmul.mubr.bf16.gmra.mxu0 %v347
        %v2350 = vpop.f32.mrf.mxu0
        %v2351 = vadd.f32 %v2158, %v2350
        %v2352 = vpop.f32.mrf.mxu0
        %v2353 = vadd.f32 %v2160, %v2352
        %v2354 = vpop.f32.mrf.mxu0
        %v2355 = vadd.f32 %v2162, %v2354
        %v2356 = vpop.f32.mrf.mxu0
        %v2357 = vadd.f32 %v2164, %v2356
        %2358 = vmatprep.mubr.bf16.mxu0 0
        %2359 = vmatmul.mubr.bf16.gmra.mxu0 %v350
        %v2360 = vpop.f32.mrf.mxu0
        %v2361 = vadd.f32 %v2168, %v2360
        %v2362 = vpop.f32.mrf.mxu0
        %v2363 = vadd.f32 %v2170, %v2362
        %v2364 = vpop.f32.mrf.mxu0
        %v2365 = vadd.f32 %v2172, %v2364
        %v2366 = vpop.f32.mrf.mxu0
        %v2367 = vadd.f32 %v2174, %v2366
        %2368 = vmatprep.mubr.bf16.mxu0 0
        %2369 = vmatmul.mubr.bf16.gmra.mxu0 %v353
        %v2370 = vpop.f32.mrf.mxu0
        %v2371 = vadd.f32 %v2178, %v2370
        %v2372 = vpop.f32.mrf.mxu0
        %v2373 = vadd.f32 %v2180, %v2372
        %v2374 = vpop.f32.mrf.mxu0
        %v2375 = vadd.f32 %v2182, %v2374
        %v2376 = vpop.f32.mrf.mxu0
        %v2377 = vadd.f32 %v2184, %v2376
        %2378 = vmatprep.mubr.bf16.mxu0 0
        %2379 = vmatmul.mubr.bf16.gmra.mxu0 %v356
        %v2380 = vpop.f32.mrf.mxu0
        %v2381 = vadd.f32 %v2188, %v2380
        %v2382 = vpop.f32.mrf.mxu0
        %v2383 = vadd.f32 %v2190, %v2382
        %v2384 = vpop.f32.mrf.mxu0
        %v2385 = vadd.f32 %v2192, %v2384
        %v2386 = vpop.f32.mrf.mxu0
        %v2387 = vadd.f32 %v2194, %v2386
        %2388 = vmatprep.mubr.bf16.mxu0 0
        %2389 = vmatmul.mubr.bf16.gmra.mxu0 %v359
        %v2390 = vpop.f32.mrf.mxu0
        %v2391 = vadd.f32 %v2198, %v2390
        %v2392 = vpop.f32.mrf.mxu0
        %v2393 = vadd.f32 %v2200, %v2392
        %v2394 = vpop.f32.mrf.mxu0
        %v2395 = vadd.f32 %v2202, %v2394
        %v2396 = vpop.f32.mrf.mxu0
        %v2397 = vadd.f32 %v2204, %v2396
        %2398 = vmatprep.mubr.bf16.mxu0 0
        %2399 = vmatmul.mubr.bf16.gmra.mxu0 %v362
        %v2400 = vpop.f32.mrf.mxu0
        %v2401 = vadd.f32 %v2208, %v2400
        %v2402 = vpop.f32.mrf.mxu0
        %v2403 = vadd.f32 %v2210, %v2402
        %v2404 = vpop.f32.mrf.mxu0
        %v2405 = vadd.f32 %v2212, %v2404
        %v2406 = vpop.f32.mrf.mxu0
        %v2407 = vadd.f32 %v2214, %v2406
        %2408 = vmatprep.mubr.bf16.mxu0 0
        %2409 = vmatmul.mubr.bf16.gmra.mxu0 %v365
        %v2410 = vpop.f32.mrf.mxu0
        %v2411 = vadd.f32 %v2218, %v2410
        %v2412 = vpop.f32.mrf.mxu0
        %v2413 = vadd.f32 %v2220, %v2412
        %v2414 = vpop.f32.mrf.mxu0
        %v2415 = vadd.f32 %v2222, %v2414
        %v2416 = vpop.f32.mrf.mxu0
        %v2417 = vadd.f32 %v2224, %v2416
        %2418 = vmatprep.mubr.bf16.mxu0 0
        %2419 = vmatmul.mubr.bf16.gmra.mxu0 %v368
        %v2420 = vpop.f32.mrf.mxu0
        %v2421 = vadd.f32 %v2228, %v2420
        %v2422 = vpop.f32.mrf.mxu0
        %v2423 = vadd.f32 %v2230, %v2422
        %v2424 = vpop.f32.mrf.mxu0
        %v2425 = vadd.f32 %v2232, %v2424
        %v2426 = vpop.f32.mrf.mxu0
        %v2427 = vadd.f32 %v2234, %v2426
        %2428 = vmatprep.mubr.bf16.mxu0 0
        %2429 = vmatmul.mubr.bf16.gmra.mxu0 %v371
        %v2430 = vpop.f32.mrf.mxu0
        %v2431 = vadd.f32 %v2238, %v2430
        %v2432 = vpop.f32.mrf.mxu0
        %v2433 = vadd.f32 %v2240, %v2432
        %v2434 = vpop.f32.mrf.mxu0
        %v2435 = vadd.f32 %v2242, %v2434
        %v2436 = vpop.f32.mrf.mxu0
        %v2437 = vadd.f32 %v2244, %v2436
        %2438 = vmatprep.mubr.bf16.mxu0 0
        %2439 = vmatmul.mubr.bf16.gmra.mxu0 %v374
        %v2440 = vpop.f32.mrf.mxu0
        %v2441 = vadd.f32 %v2248, %v2440
        %v2442 = vpop.f32.mrf.mxu0
        %v2443 = vadd.f32 %v2250, %v2442
        %v2444 = vpop.f32.mrf.mxu0
        %v2445 = vadd.f32 %v2252, %v2444
        %v2446 = vpop.f32.mrf.mxu0
        %v2447 = vadd.f32 %v2254, %v2446
        %2448 = vmatprep.mubr.bf16.mxu0 0
        %2449 = vmatmul.mubr.bf16.gmra.mxu0 %v377
        %v2450 = vpop.f32.mrf.mxu0
        %v2451 = vadd.f32 %v2258, %v2450
        %v2452 = vpop.f32.mrf.mxu0
        %v2453 = vadd.f32 %v2260, %v2452
        %v2454 = vpop.f32.mrf.mxu0
        %v2455 = vadd.f32 %v2262, %v2454
        %v2456 = vpop.f32.mrf.mxu0
        %v2457 = vadd.f32 %v2264, %v2456
        %2458 = vmatprep.mubr.bf16.mxu0 0
        %2459 = vmatmul.mubr.bf16.gmra.mxu0 %v380
        %v2460 = vpop.f32.mrf.mxu0
        %v2461 = vadd.f32 %v2268, %v2460
        %v2462 = vpop.f32.mrf.mxu0
        %v2463 = vadd.f32 %v2270, %v2462
        %v2464 = vpop.f32.mrf.mxu0
        %v2465 = vadd.f32 %v2272, %v2464
        %v2466 = vpop.f32.mrf.mxu0
        %v2467 = vadd.f32 %v2274, %v2466
        %2468 = vmatprep.mubr.bf16.mxu0 0
        %2469 = vmatmul.mubr.bf16.gmra.mxu0 %v383
        %v2470 = vpop.f32.mrf.mxu0
        %v2471 = vadd.f32 %v2278, %v2470
        %v2472 = vpop.f32.mrf.mxu0
        %v2473 = vadd.f32 %v2280, %v2472
        %v2474 = vpop.f32.mrf.mxu0
        %v2475 = vadd.f32 %v2282, %v2474
        %v2476 = vpop.f32.mrf.mxu0
        %v2477 = vadd.f32 %v2284, %v2476
        %2478 = vmatprep.mubr.bf16.mxu0 0
        %2479 = vmatmul.mubr.bf16.gmra.mxu0 %v386
        %v2480 = vpop.f32.mrf.mxu0
        %v2481 = vadd.f32 %v2288, %v2480
        %v2482 = vpop.f32.mrf.mxu0
        %v2483 = vadd.f32 %v2290, %v2482
        %v2484 = vpop.f32.mrf.mxu0
        %v2485 = vadd.f32 %v2292, %v2484
        %v2486 = vpop.f32.mrf.mxu0
        %v2487 = vadd.f32 %v2294, %v2486
        %2488 = vmatprep.mubr.bf16.mxu0 0
        %2489 = vmatmul.mubr.bf16.gmra.mxu0 %v389
        %v2490 = vpop.f32.mrf.mxu0
        %v2491 = vadd.f32 %v2298, %v2490
        %v2492 = vpop.f32.mrf.mxu0
        %v2493 = vadd.f32 %v2300, %v2492
        %v2494 = vpop.f32.mrf.mxu0
        %v2495 = vadd.f32 %v2302, %v2494
        %v2496 = vpop.f32.mrf.mxu0
        %v2497 = vadd.f32 %v2304, %v2496
        %2498 = vmatprep.mubr.bf16.mxu0 0
        %2499 = vmatmul.mubr.bf16.gmra.mxu0 %v392
        %v2500 = vpop.f32.mrf.mxu0
        %v2501 = vadd.f32 %v2308, %v2500
        %v2502 = vpop.f32.mrf.mxu0
        %v2503 = vadd.f32 %v2310, %v2502
        %v2504 = vpop.f32.mrf.mxu0
        %v2505 = vadd.f32 %v2312, %v2504
        %v2506 = vpop.f32.mrf.mxu0
        %v2507 = vadd.f32 %v2314, %v2506
        %2508 = vdwg.mxu0
        %2509 = vmatprep.subr.bf16.mxu0 %v1373
        %2510 = vmatpush1.bf16.msra.mxu0 %v1372
        %2511 = vmatprep.subr.bf16.mxu0 %v1364
        %2512 = vmatpush1.bf16.msra.mxu0 %v1363
        %2513 = vmatprep.subr.bf16.mxu0 %v1355
        %2514 = vmatpush1.bf16.msra.mxu0 %v1354
        %2515 = vmatprep.subr.bf16.mxu0 %v1346
        %2516 = vmatpush1.bf16.msra.mxu0 %v1345
        %2517 = vmatprep.subr.bf16.mxu0 %v1337
        %2518 = vmatpush1.bf16.msra.mxu0 %v1336
        %2519 = vmatprep.subr.bf16.mxu0 %v1328
        %2520 = vmatpush1.bf16.msra.mxu0 %v1327
        %2521 = vmatprep.subr.bf16.mxu0 %v1319
        %2522 = vmatpush1.bf16.msra.mxu0 %v1318
        %2523 = vmatprep.subr.bf16.mxu0 %v1310
        %2524 = vmatpush1.bf16.msra.mxu0 %v1309
        %2525 = vmatprep.subr.bf16.mxu0 %v1445
        %2526 = vmatpush2.bf16.msra.mxu0 %v1444
        %2527 = vmatprep.subr.bf16.mxu0 %v1436
        %2528 = vmatpush2.bf16.msra.mxu0 %v1435
        %2529 = vmatprep.subr.bf16.mxu0 %v1427
        %2530 = vmatpush2.bf16.msra.mxu0 %v1426
        %2531 = vmatprep.subr.bf16.mxu0 %v1418
        %2532 = vmatpush2.bf16.msra.mxu0 %v1417
        %2533 = vmatprep.subr.bf16.mxu0 %v1409
        %2534 = vmatpush2.bf16.msra.mxu0 %v1408
        %2535 = vmatprep.subr.bf16.mxu0 %v1400
        %2536 = vmatpush2.bf16.msra.mxu0 %v1399
        %2537 = vmatprep.subr.bf16.mxu0 %v1391
        %2538 = vmatpush2.bf16.msra.mxu0 %v1390
        %2539 = vmatprep.subr.bf16.mxu0 %v1382
        %2540 = vmatpush2.bf16.msra.mxu0 %v1381
        %2541 = vmatprep.mubr.bf16.mxu0 %v346
        %2542 = vmatmul.mubr.bf16.gmra.mxu0 %v345
        %v2543 = vpop.f32.mrf.mxu0
        %v2544 = vadd.f32 0.0, %v2543
        %v2545 = vpop.f32.mrf.mxu0
        %v2546 = vadd.f32 0.0, %v2545
        %v2547 = vpop.f32.mrf.mxu0
        %v2548 = vadd.f32 0.0, %v2547
        %v2549 = vpop.f32.mrf.mxu0
        %v2550 = vadd.f32 0.0, %v2549
        %2551 = vmatprep.mubr.bf16.mxu0 %v349
        %2552 = vmatmul.mubr.bf16.gmra.mxu0 %v348
        %v2553 = vpop.f32.mrf.mxu0
        %v2554 = vadd.f32 0.0, %v2553
        %v2555 = vpop.f32.mrf.mxu0
        %v2556 = vadd.f32 0.0, %v2555
        %v2557 = vpop.f32.mrf.mxu0
        %v2558 = vadd.f32 0.0, %v2557
        %v2559 = vpop.f32.mrf.mxu0
        %v2560 = vadd.f32 0.0, %v2559
        %2561 = vmatprep.mubr.bf16.mxu0 %v352
        %2562 = vmatmul.mubr.bf16.gmra.mxu0 %v351
        %v2563 = vpop.f32.mrf.mxu0
        %v2564 = vadd.f32 0.0, %v2563
        %v2565 = vpop.f32.mrf.mxu0
        %v2566 = vadd.f32 0.0, %v2565
        %v2567 = vpop.f32.mrf.mxu0
        %v2568 = vadd.f32 0.0, %v2567
        %v2569 = vpop.f32.mrf.mxu0
        %v2570 = vadd.f32 0.0, %v2569
        %2571 = vmatprep.mubr.bf16.mxu0 %v355
        %2572 = vmatmul.mubr.bf16.gmra.mxu0 %v354
        %v2573 = vpop.f32.mrf.mxu0
        %v2574 = vadd.f32 0.0, %v2573
        %v2575 = vpop.f32.mrf.mxu0
        %v2576 = vadd.f32 0.0, %v2575
        %v2577 = vpop.f32.mrf.mxu0
        %v2578 = vadd.f32 0.0, %v2577
        %v2579 = vpop.f32.mrf.mxu0
        %v2580 = vadd.f32 0.0, %v2579
        %2581 = vmatprep.mubr.bf16.mxu0 %v358
        %2582 = vmatmul.mubr.bf16.gmra.mxu0 %v357
        %v2583 = vpop.f32.mrf.mxu0
        %v2584 = vadd.f32 0.0, %v2583
        %v2585 = vpop.f32.mrf.mxu0
        %v2586 = vadd.f32 0.0, %v2585
        %v2587 = vpop.f32.mrf.mxu0
        %v2588 = vadd.f32 0.0, %v2587
        %v2589 = vpop.f32.mrf.mxu0
        %v2590 = vadd.f32 0.0, %v2589
        %2591 = vmatprep.mubr.bf16.mxu0 %v361
        %2592 = vmatmul.mubr.bf16.gmra.mxu0 %v360
        %v2593 = vpop.f32.mrf.mxu0
        %v2594 = vadd.f32 0.0, %v2593
        %v2595 = vpop.f32.mrf.mxu0
        %v2596 = vadd.f32 0.0, %v2595
        %v2597 = vpop.f32.mrf.mxu0
        %v2598 = vadd.f32 0.0, %v2597
        %v2599 = vpop.f32.mrf.mxu0
        %v2600 = vadd.f32 0.0, %v2599
        %2601 = vmatprep.mubr.bf16.mxu0 %v364
        %2602 = vmatmul.mubr.bf16.gmra.mxu0 %v363
        %v2603 = vpop.f32.mrf.mxu0
        %v2604 = vadd.f32 0.0, %v2603
        %v2605 = vpop.f32.mrf.mxu0
        %v2606 = vadd.f32 0.0, %v2605
        %v2607 = vpop.f32.mrf.mxu0
        %v2608 = vadd.f32 0.0, %v2607
        %v2609 = vpop.f32.mrf.mxu0
        %v2610 = vadd.f32 0.0, %v2609
        %2611 = vmatprep.mubr.bf16.mxu0 %v367
        %2612 = vmatmul.mubr.bf16.gmra.mxu0 %v366
        %v2613 = vpop.f32.mrf.mxu0
        %v2614 = vadd.f32 0.0, %v2613
        %v2615 = vpop.f32.mrf.mxu0
        %v2616 = vadd.f32 0.0, %v2615
        %v2617 = vpop.f32.mrf.mxu0
        %v2618 = vadd.f32 0.0, %v2617
        %v2619 = vpop.f32.mrf.mxu0
        %v2620 = vadd.f32 0.0, %v2619
        %2621 = vmatprep.mubr.bf16.mxu0 %v370
        %2622 = vmatmul.mubr.bf16.gmra.mxu0 %v369
        %v2623 = vpop.f32.mrf.mxu0
        %v2624 = vadd.f32 0.0, %v2623
        %v2625 = vpop.f32.mrf.mxu0
        %v2626 = vadd.f32 0.0, %v2625
        %v2627 = vpop.f32.mrf.mxu0
        %v2628 = vadd.f32 0.0, %v2627
        %v2629 = vpop.f32.mrf.mxu0
        %v2630 = vadd.f32 0.0, %v2629
        %2631 = vmatprep.mubr.bf16.mxu0 %v373
        %2632 = vmatmul.mubr.bf16.gmra.mxu0 %v372
        %v2633 = vpop.f32.mrf.mxu0
        %v2634 = vadd.f32 0.0, %v2633
        %v2635 = vpop.f32.mrf.mxu0
        %v2636 = vadd.f32 0.0, %v2635
        %v2637 = vpop.f32.mrf.mxu0
        %v2638 = vadd.f32 0.0, %v2637
        %v2639 = vpop.f32.mrf.mxu0
        %v2640 = vadd.f32 0.0, %v2639
        %2641 = vmatprep.mubr.bf16.mxu0 %v376
        %2642 = vmatmul.mubr.bf16.gmra.mxu0 %v375
        %v2643 = vpop.f32.mrf.mxu0
        %v2644 = vadd.f32 0.0, %v2643
        %v2645 = vpop.f32.mrf.mxu0
        %v2646 = vadd.f32 0.0, %v2645
        %v2647 = vpop.f32.mrf.mxu0
        %v2648 = vadd.f32 0.0, %v2647
        %v2649 = vpop.f32.mrf.mxu0
        %v2650 = vadd.f32 0.0, %v2649
        %2651 = vmatprep.mubr.bf16.mxu0 %v379
        %2652 = vmatmul.mubr.bf16.gmra.mxu0 %v378
        %v2653 = vpop.f32.mrf.mxu0
        %v2654 = vadd.f32 0.0, %v2653
        %v2655 = vpop.f32.mrf.mxu0
        %v2656 = vadd.f32 0.0, %v2655
        %v2657 = vpop.f32.mrf.mxu0
        %v2658 = vadd.f32 0.0, %v2657
        %v2659 = vpop.f32.mrf.mxu0
        %v2660 = vadd.f32 0.0, %v2659
        %2661 = vmatprep.mubr.bf16.mxu0 %v382
        %2662 = vmatmul.mubr.bf16.gmra.mxu0 %v381
        %v2663 = vpop.f32.mrf.mxu0
        %v2664 = vadd.f32 0.0, %v2663
        %v2665 = vpop.f32.mrf.mxu0
        %v2666 = vadd.f32 0.0, %v2665
        %v2667 = vpop.f32.mrf.mxu0
        %v2668 = vadd.f32 0.0, %v2667
        %v2669 = vpop.f32.mrf.mxu0
        %v2670 = vadd.f32 0.0, %v2669
        %2671 = vmatprep.mubr.bf16.mxu0 %v385
        %2672 = vmatmul.mubr.bf16.gmra.mxu0 %v384
        %v2673 = vpop.f32.mrf.mxu0
        %v2674 = vadd.f32 0.0, %v2673
        %v2675 = vpop.f32.mrf.mxu0
        %v2676 = vadd.f32 0.0, %v2675
        %v2677 = vpop.f32.mrf.mxu0
        %v2678 = vadd.f32 0.0, %v2677
        %v2679 = vpop.f32.mrf.mxu0
        %v2680 = vadd.f32 0.0, %v2679
        %2681 = vmatprep.mubr.bf16.mxu0 %v388
        %2682 = vmatmul.mubr.bf16.gmra.mxu0 %v387
        %v2683 = vpop.f32.mrf.mxu0
        %v2684 = vadd.f32 0.0, %v2683
        %v2685 = vpop.f32.mrf.mxu0
        %v2686 = vadd.f32 0.0, %v2685
        %v2687 = vpop.f32.mrf.mxu0
        %v2688 = vadd.f32 0.0, %v2687
        %v2689 = vpop.f32.mrf.mxu0
        %v2690 = vadd.f32 0.0, %v2689
        %2691 = vmatprep.mubr.bf16.mxu0 %v391
        %2692 = vmatmul.mubr.bf16.gmra.mxu0 %v390
        %v2693 = vpop.f32.mrf.mxu0
        %v2694 = vadd.f32 0.0, %v2693
        %v2695 = vpop.f32.mrf.mxu0
        %v2696 = vadd.f32 0.0, %v2695
        %v2697 = vpop.f32.mrf.mxu0
        %v2698 = vadd.f32 0.0, %v2697
        %v2699 = vpop.f32.mrf.mxu0
        %v2700 = vadd.f32 0.0, %v2699
        %2701 = vdwg.mxu0
        %2702 = vmatprep.subr.bf16.mxu0 %v1517
        %2703 = vmatpush1.bf16.msra.mxu0 %v1516
        %2704 = vmatprep.subr.bf16.mxu0 %v1508
        %2705 = vmatpush1.bf16.msra.mxu0 %v1507
        %2706 = vmatprep.subr.bf16.mxu0 %v1499
        %2707 = vmatpush1.bf16.msra.mxu0 %v1498
        %2708 = vmatprep.subr.bf16.mxu0 %v1490
        %2709 = vmatpush1.bf16.msra.mxu0 %v1489
        %2710 = vmatprep.subr.bf16.mxu0 %v1481
        %2711 = vmatpush1.bf16.msra.mxu0 %v1480
        %2712 = vmatprep.subr.bf16.mxu0 %v1472
        %2713 = vmatpush1.bf16.msra.mxu0 %v1471
        %2714 = vmatprep.subr.bf16.mxu0 %v1463
        %2715 = vmatpush1.bf16.msra.mxu0 %v1462
        %2716 = vmatprep.subr.bf16.mxu0 %v1454
        %2717 = vmatpush1.bf16.msra.mxu0 %v1453
        %2718 = vmatprep.subr.bf16.mxu0 0
        %2719 = vmatpush2.bf16.msra.mxu0 0
        %2720 = vmatprep.subr.bf16.mxu0 0
        %2721 = vmatpush2.bf16.msra.mxu0 0
        %2722 = vmatprep.subr.bf16.mxu0 0
        %2723 = vmatpush2.bf16.msra.mxu0 0
        %2724 = vmatprep.subr.bf16.mxu0 0
        %2725 = vmatpush2.bf16.msra.mxu0 0
        %2726 = vmatprep.subr.bf16.mxu0 0
        %2727 = vmatpush2.bf16.msra.mxu0 0
        %2728 = vmatprep.subr.bf16.mxu0 0
        %2729 = vmatpush2.bf16.msra.mxu0 0
        %2730 = vmatprep.subr.bf16.mxu0 0
        %2731 = vmatpush2.bf16.msra.mxu0 0
        %2732 = vmatprep.subr.bf16.mxu0 0
        %2733 = vmatpush2.bf16.msra.mxu0 0
        %2734 = vmatprep.mubr.bf16.mxu0 0
        %2735 = vmatmul.mubr.bf16.gmra.mxu0 %v347
        %v2736 = vpop.f32.mrf.mxu0
        %v2737 = vadd.f32 %v2544, %v2736
        %v2738 = vpop.f32.mrf.mxu0
        %v2739 = vadd.f32 %v2546, %v2738
        %v2740 = vpop.f32.mrf.mxu0
        %v2741 = vadd.f32 %v2548, %v2740
        %v2742 = vpop.f32.mrf.mxu0
        %v2743 = vadd.f32 %v2550, %v2742
        %2744 = vmatprep.mubr.bf16.mxu0 0
        %2745 = vmatmul.mubr.bf16.gmra.mxu0 %v350
        %v2746 = vpop.f32.mrf.mxu0
        %v2747 = vadd.f32 %v2554, %v2746
        %v2748 = vpop.f32.mrf.mxu0
        %v2749 = vadd.f32 %v2556, %v2748
        %v2750 = vpop.f32.mrf.mxu0
        %v2751 = vadd.f32 %v2558, %v2750
        %v2752 = vpop.f32.mrf.mxu0
        %v2753 = vadd.f32 %v2560, %v2752
        %2754 = vmatprep.mubr.bf16.mxu0 0
        %2755 = vmatmul.mubr.bf16.gmra.mxu0 %v353
        %v2756 = vpop.f32.mrf.mxu0
        %v2757 = vadd.f32 %v2564, %v2756
        %v2758 = vpop.f32.mrf.mxu0
        %v2759 = vadd.f32 %v2566, %v2758
        %v2760 = vpop.f32.mrf.mxu0
        %v2761 = vadd.f32 %v2568, %v2760
        %v2762 = vpop.f32.mrf.mxu0
        %v2763 = vadd.f32 %v2570, %v2762
        %2764 = vmatprep.mubr.bf16.mxu0 0
        %2765 = vmatmul.mubr.bf16.gmra.mxu0 %v356
        %v2766 = vpop.f32.mrf.mxu0
        %v2767 = vadd.f32 %v2574, %v2766
        %v2768 = vpop.f32.mrf.mxu0
        %v2769 = vadd.f32 %v2576, %v2768
        %v2770 = vpop.f32.mrf.mxu0
        %v2771 = vadd.f32 %v2578, %v2770
        %v2772 = vpop.f32.mrf.mxu0
        %v2773 = vadd.f32 %v2580, %v2772
        %2774 = vmatprep.mubr.bf16.mxu0 0
        %2775 = vmatmul.mubr.bf16.gmra.mxu0 %v359
        %v2776 = vpop.f32.mrf.mxu0
        %v2777 = vadd.f32 %v2584, %v2776
        %v2778 = vpop.f32.mrf.mxu0
        %v2779 = vadd.f32 %v2586, %v2778
        %v2780 = vpop.f32.mrf.mxu0
        %v2781 = vadd.f32 %v2588, %v2780
        %v2782 = vpop.f32.mrf.mxu0
        %v2783 = vadd.f32 %v2590, %v2782
        %2784 = vmatprep.mubr.bf16.mxu0 0
        %2785 = vmatmul.mubr.bf16.gmra.mxu0 %v362
        %v2786 = vpop.f32.mrf.mxu0
        %v2787 = vadd.f32 %v2594, %v2786
        %v2788 = vpop.f32.mrf.mxu0
        %v2789 = vadd.f32 %v2596, %v2788
        %v2790 = vpop.f32.mrf.mxu0
        %v2791 = vadd.f32 %v2598, %v2790
        %v2792 = vpop.f32.mrf.mxu0
        %v2793 = vadd.f32 %v2600, %v2792
        %2794 = vmatprep.mubr.bf16.mxu0 0
        %2795 = vmatmul.mubr.bf16.gmra.mxu0 %v365
        %v2796 = vpop.f32.mrf.mxu0
        %v2797 = vadd.f32 %v2604, %v2796
        %v2798 = vpop.f32.mrf.mxu0
        %v2799 = vadd.f32 %v2606, %v2798
        %v2800 = vpop.f32.mrf.mxu0
        %v2801 = vadd.f32 %v2608, %v2800
        %v2802 = vpop.f32.mrf.mxu0
        %v2803 = vadd.f32 %v2610, %v2802
        %2804 = vmatprep.mubr.bf16.mxu0 0
        %2805 = vmatmul.mubr.bf16.gmra.mxu0 %v368
        %v2806 = vpop.f32.mrf.mxu0
        %v2807 = vadd.f32 %v2614, %v2806
        %v2808 = vpop.f32.mrf.mxu0
        %v2809 = vadd.f32 %v2616, %v2808
        %v2810 = vpop.f32.mrf.mxu0
        %v2811 = vadd.f32 %v2618, %v2810
        %v2812 = vpop.f32.mrf.mxu0
        %v2813 = vadd.f32 %v2620, %v2812
        %2814 = vmatprep.mubr.bf16.mxu0 0
        %2815 = vmatmul.mubr.bf16.gmra.mxu0 %v371
        %v2816 = vpop.f32.mrf.mxu0
        %v2817 = vadd.f32 %v2624, %v2816
        %v2818 = vpop.f32.mrf.mxu0
        %v2819 = vadd.f32 %v2626, %v2818
        %v2820 = vpop.f32.mrf.mxu0
        %v2821 = vadd.f32 %v2628, %v2820
        %v2822 = vpop.f32.mrf.mxu0
        %v2823 = vadd.f32 %v2630, %v2822
        %2824 = vmatprep.mubr.bf16.mxu0 0
        %2825 = vmatmul.mubr.bf16.gmra.mxu0 %v374
        %v2826 = vpop.f32.mrf.mxu0
        %v2827 = vadd.f32 %v2634, %v2826
        %v2828 = vpop.f32.mrf.mxu0
        %v2829 = vadd.f32 %v2636, %v2828
        %v2830 = vpop.f32.mrf.mxu0
        %v2831 = vadd.f32 %v2638, %v2830
        %v2832 = vpop.f32.mrf.mxu0
        %v2833 = vadd.f32 %v2640, %v2832
        %2834 = vmatprep.mubr.bf16.mxu0 0
        %2835 = vmatmul.mubr.bf16.gmra.mxu0 %v377
        %v2836 = vpop.f32.mrf.mxu0
        %v2837 = vadd.f32 %v2644, %v2836
        %v2838 = vpop.f32.mrf.mxu0
        %v2839 = vadd.f32 %v2646, %v2838
        %v2840 = vpop.f32.mrf.mxu0
        %v2841 = vadd.f32 %v2648, %v2840
        %v2842 = vpop.f32.mrf.mxu0
        %v2843 = vadd.f32 %v2650, %v2842
        %2844 = vmatprep.mubr.bf16.mxu0 0
        %2845 = vmatmul.mubr.bf16.gmra.mxu0 %v380
        %v2846 = vpop.f32.mrf.mxu0
        %v2847 = vadd.f32 %v2654, %v2846
        %v2848 = vpop.f32.mrf.mxu0
        %v2849 = vadd.f32 %v2656, %v2848
        %v2850 = vpop.f32.mrf.mxu0
        %v2851 = vadd.f32 %v2658, %v2850
        %v2852 = vpop.f32.mrf.mxu0
        %v2853 = vadd.f32 %v2660, %v2852
        %2854 = vmatprep.mubr.bf16.mxu0 0
        %2855 = vmatmul.mubr.bf16.gmra.mxu0 %v383
        %v2856 = vpop.f32.mrf.mxu0
        %v2857 = vadd.f32 %v2664, %v2856
        %v2858 = vpop.f32.mrf.mxu0
        %v2859 = vadd.f32 %v2666, %v2858
        %v2860 = vpop.f32.mrf.mxu0
        %v2861 = vadd.f32 %v2668, %v2860
        %v2862 = vpop.f32.mrf.mxu0
        %v2863 = vadd.f32 %v2670, %v2862
        %2864 = vmatprep.mubr.bf16.mxu0 0
        %2865 = vmatmul.mubr.bf16.gmra.mxu0 %v386
        %v2866 = vpop.f32.mrf.mxu0
        %v2867 = vadd.f32 %v2674, %v2866
        %v2868 = vpop.f32.mrf.mxu0
        %v2869 = vadd.f32 %v2676, %v2868
        %v2870 = vpop.f32.mrf.mxu0
        %v2871 = vadd.f32 %v2678, %v2870
        %v2872 = vpop.f32.mrf.mxu0
        %v2873 = vadd.f32 %v2680, %v2872
        %2874 = vmatprep.mubr.bf16.mxu0 0
        %2875 = vmatmul.mubr.bf16.gmra.mxu0 %v389
        %v2876 = vpop.f32.mrf.mxu0
        %v2877 = vadd.f32 %v2684, %v2876
        %v2878 = vpop.f32.mrf.mxu0
        %v2879 = vadd.f32 %v2686, %v2878
        %v2880 = vpop.f32.mrf.mxu0
        %v2881 = vadd.f32 %v2688, %v2880
        %v2882 = vpop.f32.mrf.mxu0
        %v2883 = vadd.f32 %v2690, %v2882
        %2884 = vmatprep.mubr.bf16.mxu0 0
        %2885 = vmatmul.mubr.bf16.gmra.mxu0 %v392
        %v2886 = vpop.f32.mrf.mxu0
        %v2887 = vadd.f32 %v2694, %v2886
        %v2888 = vpop.f32.mrf.mxu0
        %v2889 = vadd.f32 %v2696, %v2888
        %v2890 = vpop.f32.mrf.mxu0
        %v2891 = vadd.f32 %v2698, %v2890
        %v2892 = vpop.f32.mrf.mxu0
        %v2893 = vadd.f32 %v2700, %v2892
        %2894 = vdwg.mxu0
        %2895 = vmatprep.subr.bf16.mxu0 %v1375
        %2896 = vmatpush1.bf16.msra.mxu0 %v1374
        %2897 = vmatprep.subr.bf16.mxu0 %v1366
        %2898 = vmatpush1.bf16.msra.mxu0 %v1365
        %2899 = vmatprep.subr.bf16.mxu0 %v1357
        %2900 = vmatpush1.bf16.msra.mxu0 %v1356
        %2901 = vmatprep.subr.bf16.mxu0 %v1348
        %2902 = vmatpush1.bf16.msra.mxu0 %v1347
        %2903 = vmatprep.subr.bf16.mxu0 %v1339
        %2904 = vmatpush1.bf16.msra.mxu0 %v1338
        %2905 = vmatprep.subr.bf16.mxu0 %v1330
        %2906 = vmatpush1.bf16.msra.mxu0 %v1329
        %2907 = vmatprep.subr.bf16.mxu0 %v1321
        %2908 = vmatpush1.bf16.msra.mxu0 %v1320
        %2909 = vmatprep.subr.bf16.mxu0 %v1312
        %2910 = vmatpush1.bf16.msra.mxu0 %v1311
        %2911 = vmatprep.subr.bf16.mxu0 %v1447
        %2912 = vmatpush2.bf16.msra.mxu0 %v1446
        %2913 = vmatprep.subr.bf16.mxu0 %v1438
        %2914 = vmatpush2.bf16.msra.mxu0 %v1437
        %2915 = vmatprep.subr.bf16.mxu0 %v1429
        %2916 = vmatpush2.bf16.msra.mxu0 %v1428
        %2917 = vmatprep.subr.bf16.mxu0 %v1420
        %2918 = vmatpush2.bf16.msra.mxu0 %v1419
        %2919 = vmatprep.subr.bf16.mxu0 %v1411
        %2920 = vmatpush2.bf16.msra.mxu0 %v1410
        %2921 = vmatprep.subr.bf16.mxu0 %v1402
        %2922 = vmatpush2.bf16.msra.mxu0 %v1401
        %2923 = vmatprep.subr.bf16.mxu0 %v1393
        %2924 = vmatpush2.bf16.msra.mxu0 %v1392
        %2925 = vmatprep.subr.bf16.mxu0 %v1384
        %2926 = vmatpush2.bf16.msra.mxu0 %v1383
        %2927 = vmatprep.mubr.bf16.mxu0 %v346
        %2928 = vmatmul.mubr.bf16.gmra.mxu0 %v345
        %v2929 = vpop.f32.mrf.mxu0
        %v2930 = vadd.f32 0.0, %v2929
        %v2931 = vpop.f32.mrf.mxu0
        %v2932 = vadd.f32 0.0, %v2931
        %v2933 = vpop.f32.mrf.mxu0
        %v2934 = vadd.f32 0.0, %v2933
        %v2935 = vpop.f32.mrf.mxu0
        %v2936 = vadd.f32 0.0, %v2935
        %2937 = vmatprep.mubr.bf16.mxu0 %v349
        %2938 = vmatmul.mubr.bf16.gmra.mxu0 %v348
        %v2939 = vpop.f32.mrf.mxu0
        %v2940 = vadd.f32 0.0, %v2939
        %v2941 = vpop.f32.mrf.mxu0
        %v2942 = vadd.f32 0.0, %v2941
        %v2943 = vpop.f32.mrf.mxu0
        %v2944 = vadd.f32 0.0, %v2943
        %v2945 = vpop.f32.mrf.mxu0
        %v2946 = vadd.f32 0.0, %v2945
        %2947 = vmatprep.mubr.bf16.mxu0 %v352
        %2948 = vmatmul.mubr.bf16.gmra.mxu0 %v351
        %v2949 = vpop.f32.mrf.mxu0
        %v2950 = vadd.f32 0.0, %v2949
        %v2951 = vpop.f32.mrf.mxu0
        %v2952 = vadd.f32 0.0, %v2951
        %v2953 = vpop.f32.mrf.mxu0
        %v2954 = vadd.f32 0.0, %v2953
        %v2955 = vpop.f32.mrf.mxu0
        %v2956 = vadd.f32 0.0, %v2955
        %2957 = vmatprep.mubr.bf16.mxu0 %v355
        %2958 = vmatmul.mubr.bf16.gmra.mxu0 %v354
        %v2959 = vpop.f32.mrf.mxu0
        %v2960 = vadd.f32 0.0, %v2959
        %v2961 = vpop.f32.mrf.mxu0
        %v2962 = vadd.f32 0.0, %v2961
        %v2963 = vpop.f32.mrf.mxu0
        %v2964 = vadd.f32 0.0, %v2963
        %v2965 = vpop.f32.mrf.mxu0
        %v2966 = vadd.f32 0.0, %v2965
        %2967 = vmatprep.mubr.bf16.mxu0 %v358
        %2968 = vmatmul.mubr.bf16.gmra.mxu0 %v357
        %v2969 = vpop.f32.mrf.mxu0
        %v2970 = vadd.f32 0.0, %v2969
        %v2971 = vpop.f32.mrf.mxu0
        %v2972 = vadd.f32 0.0, %v2971
        %v2973 = vpop.f32.mrf.mxu0
        %v2974 = vadd.f32 0.0, %v2973
        %v2975 = vpop.f32.mrf.mxu0
        %v2976 = vadd.f32 0.0, %v2975
        %2977 = vmatprep.mubr.bf16.mxu0 %v361
        %2978 = vmatmul.mubr.bf16.gmra.mxu0 %v360
        %v2979 = vpop.f32.mrf.mxu0
        %v2980 = vadd.f32 0.0, %v2979
        %v2981 = vpop.f32.mrf.mxu0
        %v2982 = vadd.f32 0.0, %v2981
        %v2983 = vpop.f32.mrf.mxu0
        %v2984 = vadd.f32 0.0, %v2983
        %v2985 = vpop.f32.mrf.mxu0
        %v2986 = vadd.f32 0.0, %v2985
        %2987 = vmatprep.mubr.bf16.mxu0 %v364
        %2988 = vmatmul.mubr.bf16.gmra.mxu0 %v363
        %v2989 = vpop.f32.mrf.mxu0
        %v2990 = vadd.f32 0.0, %v2989
        %v2991 = vpop.f32.mrf.mxu0
        %v2992 = vadd.f32 0.0, %v2991
        %v2993 = vpop.f32.mrf.mxu0
        %v2994 = vadd.f32 0.0, %v2993
        %v2995 = vpop.f32.mrf.mxu0
        %v2996 = vadd.f32 0.0, %v2995
        %2997 = vmatprep.mubr.bf16.mxu0 %v367
        %2998 = vmatmul.mubr.bf16.gmra.mxu0 %v366
        %v2999 = vpop.f32.mrf.mxu0
        %v3000 = vadd.f32 0.0, %v2999
        %v3001 = vpop.f32.mrf.mxu0
        %v3002 = vadd.f32 0.0, %v3001
        %v3003 = vpop.f32.mrf.mxu0
        %v3004 = vadd.f32 0.0, %v3003
        %v3005 = vpop.f32.mrf.mxu0
        %v3006 = vadd.f32 0.0, %v3005
        %3007 = vmatprep.mubr.bf16.mxu0 %v370
        %3008 = vmatmul.mubr.bf16.gmra.mxu0 %v369
        %v3009 = vpop.f32.mrf.mxu0
        %v3010 = vadd.f32 0.0, %v3009
        %v3011 = vpop.f32.mrf.mxu0
        %v3012 = vadd.f32 0.0, %v3011
        %v3013 = vpop.f32.mrf.mxu0
        %v3014 = vadd.f32 0.0, %v3013
        %v3015 = vpop.f32.mrf.mxu0
        %v3016 = vadd.f32 0.0, %v3015
        %3017 = vmatprep.mubr.bf16.mxu0 %v373
        %3018 = vmatmul.mubr.bf16.gmra.mxu0 %v372
        %v3019 = vpop.f32.mrf.mxu0
        %v3020 = vadd.f32 0.0, %v3019
        %v3021 = vpop.f32.mrf.mxu0
        %v3022 = vadd.f32 0.0, %v3021
        %v3023 = vpop.f32.mrf.mxu0
        %v3024 = vadd.f32 0.0, %v3023
        %v3025 = vpop.f32.mrf.mxu0
        %v3026 = vadd.f32 0.0, %v3025
        %3027 = vmatprep.mubr.bf16.mxu0 %v376
        %3028 = vmatmul.mubr.bf16.gmra.mxu0 %v375
        %v3029 = vpop.f32.mrf.mxu0
        %v3030 = vadd.f32 0.0, %v3029
        %v3031 = vpop.f32.mrf.mxu0
        %v3032 = vadd.f32 0.0, %v3031
        %v3033 = vpop.f32.mrf.mxu0
        %v3034 = vadd.f32 0.0, %v3033
        %v3035 = vpop.f32.mrf.mxu0
        %v3036 = vadd.f32 0.0, %v3035
        %3037 = vmatprep.mubr.bf16.mxu0 %v379
        %3038 = vmatmul.mubr.bf16.gmra.mxu0 %v378
        %v3039 = vpop.f32.mrf.mxu0
        %v3040 = vadd.f32 0.0, %v3039
        %v3041 = vpop.f32.mrf.mxu0
        %v3042 = vadd.f32 0.0, %v3041
        %v3043 = vpop.f32.mrf.mxu0
        %v3044 = vadd.f32 0.0, %v3043
        %v3045 = vpop.f32.mrf.mxu0
        %v3046 = vadd.f32 0.0, %v3045
        %3047 = vmatprep.mubr.bf16.mxu0 %v382
        %3048 = vmatmul.mubr.bf16.gmra.mxu0 %v381
        %v3049 = vpop.f32.mrf.mxu0
        %v3050 = vadd.f32 0.0, %v3049
        %v3051 = vpop.f32.mrf.mxu0
        %v3052 = vadd.f32 0.0, %v3051
        %v3053 = vpop.f32.mrf.mxu0
        %v3054 = vadd.f32 0.0, %v3053
        %v3055 = vpop.f32.mrf.mxu0
        %v3056 = vadd.f32 0.0, %v3055
        %3057 = vmatprep.mubr.bf16.mxu0 %v385
        %3058 = vmatmul.mubr.bf16.gmra.mxu0 %v384
        %v3059 = vpop.f32.mrf.mxu0
        %v3060 = vadd.f32 0.0, %v3059
        %v3061 = vpop.f32.mrf.mxu0
        %v3062 = vadd.f32 0.0, %v3061
        %v3063 = vpop.f32.mrf.mxu0
        %v3064 = vadd.f32 0.0, %v3063
        %v3065 = vpop.f32.mrf.mxu0
        %v3066 = vadd.f32 0.0, %v3065
        %3067 = vmatprep.mubr.bf16.mxu0 %v388
        %3068 = vmatmul.mubr.bf16.gmra.mxu0 %v387
        %v3069 = vpop.f32.mrf.mxu0
        %v3070 = vadd.f32 0.0, %v3069
        %v3071 = vpop.f32.mrf.mxu0
        %v3072 = vadd.f32 0.0, %v3071
        %v3073 = vpop.f32.mrf.mxu0
        %v3074 = vadd.f32 0.0, %v3073
        %v3075 = vpop.f32.mrf.mxu0
        %v3076 = vadd.f32 0.0, %v3075
        %3077 = vmatprep.mubr.bf16.mxu0 %v391
        %3078 = vmatmul.mubr.bf16.gmra.mxu0 %v390
        %v3079 = vpop.f32.mrf.mxu0
        %v3080 = vadd.f32 0.0, %v3079
        %v3081 = vpop.f32.mrf.mxu0
        %v3082 = vadd.f32 0.0, %v3081
        %v3083 = vpop.f32.mrf.mxu0
        %v3084 = vadd.f32 0.0, %v3083
        %v3085 = vpop.f32.mrf.mxu0
        %v3086 = vadd.f32 0.0, %v3085
        %3087 = vdwg.mxu0
        %3088 = vmatprep.subr.bf16.mxu0 %v1519
        %3089 = vmatpush1.bf16.msra.mxu0 %v1518
        %3090 = vmatprep.subr.bf16.mxu0 %v1510
        %3091 = vmatpush1.bf16.msra.mxu0 %v1509
        %3092 = vmatprep.subr.bf16.mxu0 %v1501
        %3093 = vmatpush1.bf16.msra.mxu0 %v1500
        %3094 = vmatprep.subr.bf16.mxu0 %v1492
        %3095 = vmatpush1.bf16.msra.mxu0 %v1491
        %3096 = vmatprep.subr.bf16.mxu0 %v1483
        %3097 = vmatpush1.bf16.msra.mxu0 %v1482
        %3098 = vmatprep.subr.bf16.mxu0 %v1474
        %3099 = vmatpush1.bf16.msra.mxu0 %v1473
        %3100 = vmatprep.subr.bf16.mxu0 %v1465
        %3101 = vmatpush1.bf16.msra.mxu0 %v1464
        %3102 = vmatprep.subr.bf16.mxu0 %v1456
        %3103 = vmatpush1.bf16.msra.mxu0 %v1455
        %3104 = vmatprep.subr.bf16.mxu0 0
        %3105 = vmatpush2.bf16.msra.mxu0 0
        %3106 = vmatprep.subr.bf16.mxu0 0
        %3107 = vmatpush2.bf16.msra.mxu0 0
        %3108 = vmatprep.subr.bf16.mxu0 0
        %3109 = vmatpush2.bf16.msra.mxu0 0
        %3110 = vmatprep.subr.bf16.mxu0 0
        %3111 = vmatpush2.bf16.msra.mxu0 0
        %3112 = vmatprep.subr.bf16.mxu0 0
        %3113 = vmatpush2.bf16.msra.mxu0 0
        %3114 = vmatprep.subr.bf16.mxu0 0
        %3115 = vmatpush2.bf16.msra.mxu0 0
        %3116 = vmatprep.subr.bf16.mxu0 0
        %3117 = vmatpush2.bf16.msra.mxu0 0
        %3118 = vmatprep.subr.bf16.mxu0 0
        %3119 = vmatpush2.bf16.msra.mxu0 0
        %3120 = vmatprep.mubr.bf16.mxu0 0
        %3121 = vmatmul.mubr.bf16.gmra.mxu0 %v347
        %v3122 = vpop.f32.mrf.mxu0
        %v3123 = vadd.f32 %v2930, %v3122
        %v3124 = vpop.f32.mrf.mxu0
        %v3125 = vadd.f32 %v2932, %v3124
        %v3126 = vpop.f32.mrf.mxu0
        %v3127 = vadd.f32 %v2934, %v3126
        %v3128 = vpop.f32.mrf.mxu0
        %v3129 = vadd.f32 %v2936, %v3128
        %3130 = vmatprep.mubr.bf16.mxu0 0
        %3131 = vmatmul.mubr.bf16.gmra.mxu0 %v350
        %v3132 = vpop.f32.mrf.mxu0
        %v3133 = vadd.f32 %v2940, %v3132
        %v3134 = vpop.f32.mrf.mxu0
        %v3135 = vadd.f32 %v2942, %v3134
        %v3136 = vpop.f32.mrf.mxu0
        %v3137 = vadd.f32 %v2944, %v3136
        %v3138 = vpop.f32.mrf.mxu0
        %v3139 = vadd.f32 %v2946, %v3138
        %3140 = vmatprep.mubr.bf16.mxu0 0
        %3141 = vmatmul.mubr.bf16.gmra.mxu0 %v353
        %v3142 = vpop.f32.mrf.mxu0
        %v3143 = vadd.f32 %v2950, %v3142
        %v3144 = vpop.f32.mrf.mxu0
        %v3145 = vadd.f32 %v2952, %v3144
        %v3146 = vpop.f32.mrf.mxu0
        %v3147 = vadd.f32 %v2954, %v3146
        %v3148 = vpop.f32.mrf.mxu0
        %v3149 = vadd.f32 %v2956, %v3148
        %3150 = vmatprep.mubr.bf16.mxu0 0
        %3151 = vmatmul.mubr.bf16.gmra.mxu0 %v356
        %v3152 = vpop.f32.mrf.mxu0
        %v3153 = vadd.f32 %v2960, %v3152
        %v3154 = vpop.f32.mrf.mxu0
        %v3155 = vadd.f32 %v2962, %v3154
        %v3156 = vpop.f32.mrf.mxu0
        %v3157 = vadd.f32 %v2964, %v3156
        %v3158 = vpop.f32.mrf.mxu0
        %v3159 = vadd.f32 %v2966, %v3158
        %3160 = vmatprep.mubr.bf16.mxu0 0
        %3161 = vmatmul.mubr.bf16.gmra.mxu0 %v359
        %v3162 = vpop.f32.mrf.mxu0
        %v3163 = vadd.f32 %v2970, %v3162
        %v3164 = vpop.f32.mrf.mxu0
        %v3165 = vadd.f32 %v2972, %v3164
        %v3166 = vpop.f32.mrf.mxu0
        %v3167 = vadd.f32 %v2974, %v3166
        %v3168 = vpop.f32.mrf.mxu0
        %v3169 = vadd.f32 %v2976, %v3168
        %3170 = vmatprep.mubr.bf16.mxu0 0
        %3171 = vmatmul.mubr.bf16.gmra.mxu0 %v362
        %v3172 = vpop.f32.mrf.mxu0
        %v3173 = vadd.f32 %v2980, %v3172
        %v3174 = vpop.f32.mrf.mxu0
        %v3175 = vadd.f32 %v2982, %v3174
        %v3176 = vpop.f32.mrf.mxu0
        %v3177 = vadd.f32 %v2984, %v3176
        %v3178 = vpop.f32.mrf.mxu0
        %v3179 = vadd.f32 %v2986, %v3178
        %3180 = vmatprep.mubr.bf16.mxu0 0
        %3181 = vmatmul.mubr.bf16.gmra.mxu0 %v365
        %v3182 = vpop.f32.mrf.mxu0
        %v3183 = vadd.f32 %v2990, %v3182
        %v3184 = vpop.f32.mrf.mxu0
        %v3185 = vadd.f32 %v2992, %v3184
        %v3186 = vpop.f32.mrf.mxu0
        %v3187 = vadd.f32 %v2994, %v3186
        %v3188 = vpop.f32.mrf.mxu0
        %v3189 = vadd.f32 %v2996, %v3188
        %3190 = vmatprep.mubr.bf16.mxu0 0
        %3191 = vmatmul.mubr.bf16.gmra.mxu0 %v368
        %v3192 = vpop.f32.mrf.mxu0
        %v3193 = vadd.f32 %v3000, %v3192
        %v3194 = vpop.f32.mrf.mxu0
        %v3195 = vadd.f32 %v3002, %v3194
        %v3196 = vpop.f32.mrf.mxu0
        %v3197 = vadd.f32 %v3004, %v3196
        %v3198 = vpop.f32.mrf.mxu0
        %v3199 = vadd.f32 %v3006, %v3198
        %3200 = vmatprep.mubr.bf16.mxu0 0
        %3201 = vmatmul.mubr.bf16.gmra.mxu0 %v371
        %v3202 = vpop.f32.mrf.mxu0
        %v3203 = vadd.f32 %v3010, %v3202
        %v3204 = vpop.f32.mrf.mxu0
        %v3205 = vadd.f32 %v3012, %v3204
        %v3206 = vpop.f32.mrf.mxu0
        %v3207 = vadd.f32 %v3014, %v3206
        %v3208 = vpop.f32.mrf.mxu0
        %v3209 = vadd.f32 %v3016, %v3208
        %3210 = vmatprep.mubr.bf16.mxu0 0
        %3211 = vmatmul.mubr.bf16.gmra.mxu0 %v374
        %v3212 = vpop.f32.mrf.mxu0
        %v3213 = vadd.f32 %v3020, %v3212
        %v3214 = vpop.f32.mrf.mxu0
        %v3215 = vadd.f32 %v3022, %v3214
        %v3216 = vpop.f32.mrf.mxu0
        %v3217 = vadd.f32 %v3024, %v3216
        %v3218 = vpop.f32.mrf.mxu0
        %v3219 = vadd.f32 %v3026, %v3218
        %3220 = vmatprep.mubr.bf16.mxu0 0
        %3221 = vmatmul.mubr.bf16.gmra.mxu0 %v377
        %v3222 = vpop.f32.mrf.mxu0
        %v3223 = vadd.f32 %v3030, %v3222
        %v3224 = vpop.f32.mrf.mxu0
        %v3225 = vadd.f32 %v3032, %v3224
        %v3226 = vpop.f32.mrf.mxu0
        %v3227 = vadd.f32 %v3034, %v3226
        %v3228 = vpop.f32.mrf.mxu0
        %v3229 = vadd.f32 %v3036, %v3228
        %3230 = vmatprep.mubr.bf16.mxu0 0
        %3231 = vmatmul.mubr.bf16.gmra.mxu0 %v380
        %v3232 = vpop.f32.mrf.mxu0
        %v3233 = vadd.f32 %v3040, %v3232
        %v3234 = vpop.f32.mrf.mxu0
        %v3235 = vadd.f32 %v3042, %v3234
        %v3236 = vpop.f32.mrf.mxu0
        %v3237 = vadd.f32 %v3044, %v3236
        %v3238 = vpop.f32.mrf.mxu0
        %v3239 = vadd.f32 %v3046, %v3238
        %3240 = vmatprep.mubr.bf16.mxu0 0
        %3241 = vmatmul.mubr.bf16.gmra.mxu0 %v383
        %v3242 = vpop.f32.mrf.mxu0
        %v3243 = vadd.f32 %v3050, %v3242
        %v3244 = vpop.f32.mrf.mxu0
        %v3245 = vadd.f32 %v3052, %v3244
        %v3246 = vpop.f32.mrf.mxu0
        %v3247 = vadd.f32 %v3054, %v3246
        %v3248 = vpop.f32.mrf.mxu0
        %v3249 = vadd.f32 %v3056, %v3248
        %3250 = vmatprep.mubr.bf16.mxu0 0
        %3251 = vmatmul.mubr.bf16.gmra.mxu0 %v386
        %v3252 = vpop.f32.mrf.mxu0
        %v3253 = vadd.f32 %v3060, %v3252
        %v3254 = vpop.f32.mrf.mxu0
        %v3255 = vadd.f32 %v3062, %v3254
        %v3256 = vpop.f32.mrf.mxu0
        %v3257 = vadd.f32 %v3064, %v3256
        %v3258 = vpop.f32.mrf.mxu0
        %v3259 = vadd.f32 %v3066, %v3258
        %3260 = vmatprep.mubr.bf16.mxu0 0
        %3261 = vmatmul.mubr.bf16.gmra.mxu0 %v389
        %v3262 = vpop.f32.mrf.mxu0
        %v3263 = vadd.f32 %v3070, %v3262
        %v3264 = vpop.f32.mrf.mxu0
        %v3265 = vadd.f32 %v3072, %v3264
        %v3266 = vpop.f32.mrf.mxu0
        %v3267 = vadd.f32 %v3074, %v3266
        %v3268 = vpop.f32.mrf.mxu0
        %v3269 = vadd.f32 %v3076, %v3268
        %3270 = vmatprep.mubr.bf16.mxu0 0
        %3271 = vmatmul.mubr.bf16.gmra.mxu0 %v392
        %v3272 = vpop.f32.mrf.mxu0
        %v3273 = vadd.f32 %v3080, %v3272
        %v3274 = vpop.f32.mrf.mxu0
        %v3275 = vadd.f32 %v3082, %v3274
        %v3276 = vpop.f32.mrf.mxu0
        %v3277 = vadd.f32 %v3084, %v3276
        %v3278 = vpop.f32.mrf.mxu0
        %v3279 = vadd.f32 %v3086, %v3278
        %3280 = vdwg.mxu0
        %3281 = vmatprep.subr.bf16.mxu0 0
        %3282 = vmatpush1.bf16.msra.mxu0 %v1376
        %3283 = vmatprep.subr.bf16.mxu0 0
        %3284 = vmatpush1.bf16.msra.mxu0 %v1367
        %3285 = vmatprep.subr.bf16.mxu0 0
        %3286 = vmatpush1.bf16.msra.mxu0 %v1358
        %3287 = vmatprep.subr.bf16.mxu0 0
        %3288 = vmatpush1.bf16.msra.mxu0 %v1349
        %3289 = vmatprep.subr.bf16.mxu0 0
        %3290 = vmatpush1.bf16.msra.mxu0 %v1340
        %3291 = vmatprep.subr.bf16.mxu0 0
        %3292 = vmatpush1.bf16.msra.mxu0 %v1331
        %3293 = vmatprep.subr.bf16.mxu0 0
        %3294 = vmatpush1.bf16.msra.mxu0 %v1322
        %3295 = vmatprep.subr.bf16.mxu0 0
        %3296 = vmatpush1.bf16.msra.mxu0 %v1313
        %3297 = vmatprep.subr.bf16.mxu0 0
        %3298 = vmatpush2.bf16.msra.mxu0 %v1448
        %3299 = vmatprep.subr.bf16.mxu0 0
        %3300 = vmatpush2.bf16.msra.mxu0 %v1439
        %3301 = vmatprep.subr.bf16.mxu0 0
        %3302 = vmatpush2.bf16.msra.mxu0 %v1430
        %3303 = vmatprep.subr.bf16.mxu0 0
        %3304 = vmatpush2.bf16.msra.mxu0 %v1421
        %3305 = vmatprep.subr.bf16.mxu0 0
        %3306 = vmatpush2.bf16.msra.mxu0 %v1412
        %3307 = vmatprep.subr.bf16.mxu0 0
        %3308 = vmatpush2.bf16.msra.mxu0 %v1403
        %3309 = vmatprep.subr.bf16.mxu0 0
        %3310 = vmatpush2.bf16.msra.mxu0 %v1394
        %3311 = vmatprep.subr.bf16.mxu0 0
        %3312 = vmatpush2.bf16.msra.mxu0 %v1385
        %3313 = vmatprep.mubr.bf16.mxu0 %v346
        %3314 = vmatmul.mubr.bf16.gmra.mxu0 %v345
        %v3315 = vpop.f32.mrf.mxu0
        %v3316 = vadd.f32 0.0, %v3315
        %v3317 = vpop.f32.mrf.mxu0
        %v3318 = vpop.f32.mrf.mxu0
        %v3319 = vadd.f32 0.0, %v3318
        %v3320 = vpop.f32.mrf.mxu0
        %3321 = vmatprep.mubr.bf16.mxu0 %v349
        %3322 = vmatmul.mubr.bf16.gmra.mxu0 %v348
        %v3323 = vpop.f32.mrf.mxu0
        %v3324 = vadd.f32 0.0, %v3323
        %v3325 = vpop.f32.mrf.mxu0
        %v3326 = vpop.f32.mrf.mxu0
        %v3327 = vadd.f32 0.0, %v3326
        %v3328 = vpop.f32.mrf.mxu0
        %3329 = vmatprep.mubr.bf16.mxu0 %v352
        %3330 = vmatmul.mubr.bf16.gmra.mxu0 %v351
        %v3331 = vpop.f32.mrf.mxu0
        %v3332 = vadd.f32 0.0, %v3331
        %v3333 = vpop.f32.mrf.mxu0
        %v3334 = vpop.f32.mrf.mxu0
        %v3335 = vadd.f32 0.0, %v3334
        %v3336 = vpop.f32.mrf.mxu0
        %3337 = vmatprep.mubr.bf16.mxu0 %v355
        %3338 = vmatmul.mubr.bf16.gmra.mxu0 %v354
        %v3339 = vpop.f32.mrf.mxu0
        %v3340 = vadd.f32 0.0, %v3339
        %v3341 = vpop.f32.mrf.mxu0
        %v3342 = vpop.f32.mrf.mxu0
        %v3343 = vadd.f32 0.0, %v3342
        %v3344 = vpop.f32.mrf.mxu0
        %3345 = vmatprep.mubr.bf16.mxu0 %v358
        %3346 = vmatmul.mubr.bf16.gmra.mxu0 %v357
        %v3347 = vpop.f32.mrf.mxu0
        %v3348 = vadd.f32 0.0, %v3347
        %v3349 = vpop.f32.mrf.mxu0
        %v3350 = vpop.f32.mrf.mxu0
        %v3351 = vadd.f32 0.0, %v3350
        %v3352 = vpop.f32.mrf.mxu0
        %3353 = vmatprep.mubr.bf16.mxu0 %v361
        %3354 = vmatmul.mubr.bf16.gmra.mxu0 %v360
        %v3355 = vpop.f32.mrf.mxu0
        %v3356 = vadd.f32 0.0, %v3355
        %v3357 = vpop.f32.mrf.mxu0
        %v3358 = vpop.f32.mrf.mxu0
        %v3359 = vadd.f32 0.0, %v3358
        %v3360 = vpop.f32.mrf.mxu0
        %3361 = vmatprep.mubr.bf16.mxu0 %v364
        %3362 = vmatmul.mubr.bf16.gmra.mxu0 %v363
        %v3363 = vpop.f32.mrf.mxu0
        %v3364 = vadd.f32 0.0, %v3363
        %v3365 = vpop.f32.mrf.mxu0
        %v3366 = vpop.f32.mrf.mxu0
        %v3367 = vadd.f32 0.0, %v3366
        %v3368 = vpop.f32.mrf.mxu0
        %3369 = vmatprep.mubr.bf16.mxu0 %v367
        %3370 = vmatmul.mubr.bf16.gmra.mxu0 %v366
        %v3371 = vpop.f32.mrf.mxu0
        %v3372 = vadd.f32 0.0, %v3371
        %v3373 = vpop.f32.mrf.mxu0
        %v3374 = vpop.f32.mrf.mxu0
        %v3375 = vadd.f32 0.0, %v3374
        %v3376 = vpop.f32.mrf.mxu0
        %3377 = vmatprep.mubr.bf16.mxu0 %v370
        %3378 = vmatmul.mubr.bf16.gmra.mxu0 %v369
        %v3379 = vpop.f32.mrf.mxu0
        %v3380 = vadd.f32 0.0, %v3379
        %v3381 = vpop.f32.mrf.mxu0
        %v3382 = vpop.f32.mrf.mxu0
        %v3383 = vadd.f32 0.0, %v3382
        %v3384 = vpop.f32.mrf.mxu0
        %3385 = vmatprep.mubr.bf16.mxu0 %v373
        %3386 = vmatmul.mubr.bf16.gmra.mxu0 %v372
        %v3387 = vpop.f32.mrf.mxu0
        %v3388 = vadd.f32 0.0, %v3387
        %v3389 = vpop.f32.mrf.mxu0
        %v3390 = vpop.f32.mrf.mxu0
        %v3391 = vadd.f32 0.0, %v3390
        %v3392 = vpop.f32.mrf.mxu0
        %3393 = vmatprep.mubr.bf16.mxu0 %v376
        %3394 = vmatmul.mubr.bf16.gmra.mxu0 %v375
        %v3395 = vpop.f32.mrf.mxu0
        %v3396 = vadd.f32 0.0, %v3395
        %v3397 = vpop.f32.mrf.mxu0
        %v3398 = vpop.f32.mrf.mxu0
        %v3399 = vadd.f32 0.0, %v3398
        %v3400 = vpop.f32.mrf.mxu0
        %3401 = vmatprep.mubr.bf16.mxu0 %v379
        %3402 = vmatmul.mubr.bf16.gmra.mxu0 %v378
        %v3403 = vpop.f32.mrf.mxu0
        %v3404 = vadd.f32 0.0, %v3403
        %v3405 = vpop.f32.mrf.mxu0
        %v3406 = vpop.f32.mrf.mxu0
        %v3407 = vadd.f32 0.0, %v3406
        %v3408 = vpop.f32.mrf.mxu0
        %3409 = vmatprep.mubr.bf16.mxu0 %v382
        %3410 = vmatmul.mubr.bf16.gmra.mxu0 %v381
        %v3411 = vpop.f32.mrf.mxu0
        %v3412 = vadd.f32 0.0, %v3411
        %v3413 = vpop.f32.mrf.mxu0
        %v3414 = vpop.f32.mrf.mxu0
        %v3415 = vadd.f32 0.0, %v3414
        %v3416 = vpop.f32.mrf.mxu0
        %3417 = vmatprep.mubr.bf16.mxu0 %v385
        %3418 = vmatmul.mubr.bf16.gmra.mxu0 %v384
        %v3419 = vpop.f32.mrf.mxu0
        %v3420 = vadd.f32 0.0, %v3419
        %v3421 = vpop.f32.mrf.mxu0
        %v3422 = vpop.f32.mrf.mxu0
        %v3423 = vadd.f32 0.0, %v3422
        %v3424 = vpop.f32.mrf.mxu0
        %3425 = vmatprep.mubr.bf16.mxu0 %v388
        %3426 = vmatmul.mubr.bf16.gmra.mxu0 %v387
        %v3427 = vpop.f32.mrf.mxu0
        %v3428 = vadd.f32 0.0, %v3427
        %v3429 = vpop.f32.mrf.mxu0
        %v3430 = vpop.f32.mrf.mxu0
        %v3431 = vadd.f32 0.0, %v3430
        %v3432 = vpop.f32.mrf.mxu0
        %3433 = vmatprep.mubr.bf16.mxu0 %v391
        %3434 = vmatmul.mubr.bf16.gmra.mxu0 %v390
        %v3435 = vpop.f32.mrf.mxu0
        %v3436 = vadd.f32 0.0, %v3435
        %v3437 = vpop.f32.mrf.mxu0
        %v3438 = vpop.f32.mrf.mxu0
        %v3439 = vadd.f32 0.0, %v3438
        %v3440 = vpop.f32.mrf.mxu0
        %3441 = vdwg.mxu0
        %3442 = vmatprep.subr.bf16.mxu0 0
        %3443 = vmatpush1.bf16.msra.mxu0 %v1520
        %3444 = vmatprep.subr.bf16.mxu0 0
        %3445 = vmatpush1.bf16.msra.mxu0 %v1511
        %3446 = vmatprep.subr.bf16.mxu0 0
        %3447 = vmatpush1.bf16.msra.mxu0 %v1502
        %3448 = vmatprep.subr.bf16.mxu0 0
        %3449 = vmatpush1.bf16.msra.mxu0 %v1493
        %3450 = vmatprep.subr.bf16.mxu0 0
        %3451 = vmatpush1.bf16.msra.mxu0 %v1484
        %3452 = vmatprep.subr.bf16.mxu0 0
        %3453 = vmatpush1.bf16.msra.mxu0 %v1475
        %3454 = vmatprep.subr.bf16.mxu0 0
        %3455 = vmatpush1.bf16.msra.mxu0 %v1466
        %3456 = vmatprep.subr.bf16.mxu0 0
        %3457 = vmatpush1.bf16.msra.mxu0 %v1457
        %3458 = vmatprep.subr.bf16.mxu0 0
        %3459 = vmatpush2.bf16.msra.mxu0 0
        %3460 = vmatprep.subr.bf16.mxu0 0
        %3461 = vmatpush2.bf16.msra.mxu0 0
        %3462 = vmatprep.subr.bf16.mxu0 0
        %3463 = vmatpush2.bf16.msra.mxu0 0
        %3464 = vmatprep.subr.bf16.mxu0 0
        %3465 = vmatpush2.bf16.msra.mxu0 0
        %3466 = vmatprep.subr.bf16.mxu0 0
        %3467 = vmatpush2.bf16.msra.mxu0 0
        %3468 = vmatprep.subr.bf16.mxu0 0
        %3469 = vmatpush2.bf16.msra.mxu0 0
        %3470 = vmatprep.subr.bf16.mxu0 0
        %3471 = vmatpush2.bf16.msra.mxu0 0
        %3472 = vmatprep.subr.bf16.mxu0 0
        %3473 = vmatpush2.bf16.msra.mxu0 0
        %3474 = vmatprep.mubr.bf16.mxu0 0
        %3475 = vmatmul.mubr.bf16.gmra.mxu0 %v347
        %v3476 = vpop.f32.mrf.mxu0
        %v3477 = vadd.f32 %v3316, %v3476
        %v3478 = vpop.f32.mrf.mxu0
        %v3479 = vpop.f32.mrf.mxu0
        %v3480 = vadd.f32 %v3319, %v3479
        %v3481 = vpop.f32.mrf.mxu0
        %3482 = vmatprep.mubr.bf16.mxu0 0
        %3483 = vmatmul.mubr.bf16.gmra.mxu0 %v350
        %v3484 = vpop.f32.mrf.mxu0
        %v3485 = vadd.f32 %v3324, %v3484
        %v3486 = vpop.f32.mrf.mxu0
        %v3487 = vpop.f32.mrf.mxu0
        %v3488 = vadd.f32 %v3327, %v3487
        %v3489 = vpop.f32.mrf.mxu0
        %3490 = vmatprep.mubr.bf16.mxu0 0
        %3491 = vmatmul.mubr.bf16.gmra.mxu0 %v353
        %v3492 = vpop.f32.mrf.mxu0
        %v3493 = vadd.f32 %v3332, %v3492
        %v3494 = vpop.f32.mrf.mxu0
        %v3495 = vpop.f32.mrf.mxu0
        %v3496 = vadd.f32 %v3335, %v3495
        %v3497 = vpop.f32.mrf.mxu0
        %3498 = vmatprep.mubr.bf16.mxu0 0
        %3499 = vmatmul.mubr.bf16.gmra.mxu0 %v356
        %v3500 = vpop.f32.mrf.mxu0
        %v3501 = vadd.f32 %v3340, %v3500
        %v3502 = vpop.f32.mrf.mxu0
        %v3503 = vpop.f32.mrf.mxu0
        %v3504 = vadd.f32 %v3343, %v3503
        %v3505 = vpop.f32.mrf.mxu0
        %3506 = vmatprep.mubr.bf16.mxu0 0
        %3507 = vmatmul.mubr.bf16.gmra.mxu0 %v359
        %v3508 = vpop.f32.mrf.mxu0
        %v3509 = vadd.f32 %v3348, %v3508
        %v3510 = vpop.f32.mrf.mxu0
        %v3511 = vpop.f32.mrf.mxu0
        %v3512 = vadd.f32 %v3351, %v3511
        %v3513 = vpop.f32.mrf.mxu0
        %3514 = vmatprep.mubr.bf16.mxu0 0
        %3515 = vmatmul.mubr.bf16.gmra.mxu0 %v362
        %v3516 = vpop.f32.mrf.mxu0
        %v3517 = vadd.f32 %v3356, %v3516
        %v3518 = vpop.f32.mrf.mxu0
        %v3519 = vpop.f32.mrf.mxu0
        %v3520 = vadd.f32 %v3359, %v3519
        %v3521 = vpop.f32.mrf.mxu0
        %3522 = vmatprep.mubr.bf16.mxu0 0
        %3523 = vmatmul.mubr.bf16.gmra.mxu0 %v365
        %v3524 = vpop.f32.mrf.mxu0
        %v3525 = vadd.f32 %v3364, %v3524
        %v3526 = vpop.f32.mrf.mxu0
        %v3527 = vpop.f32.mrf.mxu0
        %v3528 = vadd.f32 %v3367, %v3527
        %v3529 = vpop.f32.mrf.mxu0
        %3530 = vmatprep.mubr.bf16.mxu0 0
        %3531 = vmatmul.mubr.bf16.gmra.mxu0 %v368
        %v3532 = vpop.f32.mrf.mxu0
        %v3533 = vadd.f32 %v3372, %v3532
        %v3534 = vpop.f32.mrf.mxu0
        %v3535 = vpop.f32.mrf.mxu0
        %v3536 = vadd.f32 %v3375, %v3535
        %v3537 = vpop.f32.mrf.mxu0
        %3538 = vmatprep.mubr.bf16.mxu0 0
        %3539 = vmatmul.mubr.bf16.gmra.mxu0 %v371
        %v3540 = vpop.f32.mrf.mxu0
        %v3541 = vadd.f32 %v3380, %v3540
        %v3542 = vpop.f32.mrf.mxu0
        %v3543 = vpop.f32.mrf.mxu0
        %v3544 = vadd.f32 %v3383, %v3543
        %v3545 = vpop.f32.mrf.mxu0
        %3546 = vmatprep.mubr.bf16.mxu0 0
        %3547 = vmatmul.mubr.bf16.gmra.mxu0 %v374
        %v3548 = vpop.f32.mrf.mxu0
        %v3549 = vadd.f32 %v3388, %v3548
        %v3550 = vpop.f32.mrf.mxu0
        %v3551 = vpop.f32.mrf.mxu0
        %v3552 = vadd.f32 %v3391, %v3551
        %v3553 = vpop.f32.mrf.mxu0
        %3554 = vmatprep.mubr.bf16.mxu0 0
        %3555 = vmatmul.mubr.bf16.gmra.mxu0 %v377
        %v3556 = vpop.f32.mrf.mxu0
        %v3557 = vadd.f32 %v3396, %v3556
        %v3558 = vpop.f32.mrf.mxu0
        %v3559 = vpop.f32.mrf.mxu0
        %v3560 = vadd.f32 %v3399, %v3559
        %v3561 = vpop.f32.mrf.mxu0
        %3562 = vmatprep.mubr.bf16.mxu0 0
        %3563 = vmatmul.mubr.bf16.gmra.mxu0 %v380
        %v3564 = vpop.f32.mrf.mxu0
        %v3565 = vadd.f32 %v3404, %v3564
        %v3566 = vpop.f32.mrf.mxu0
        %v3567 = vpop.f32.mrf.mxu0
        %v3568 = vadd.f32 %v3407, %v3567
        %v3569 = vpop.f32.mrf.mxu0
        %3570 = vmatprep.mubr.bf16.mxu0 0
        %3571 = vmatmul.mubr.bf16.gmra.mxu0 %v383
        %v3572 = vpop.f32.mrf.mxu0
        %v3573 = vadd.f32 %v3412, %v3572
        %v3574 = vpop.f32.mrf.mxu0
        %v3575 = vpop.f32.mrf.mxu0
        %v3576 = vadd.f32 %v3415, %v3575
        %v3577 = vpop.f32.mrf.mxu0
        %3578 = vmatprep.mubr.bf16.mxu0 0
        %3579 = vmatmul.mubr.bf16.gmra.mxu0 %v386
        %v3580 = vpop.f32.mrf.mxu0
        %v3581 = vadd.f32 %v3420, %v3580
        %v3582 = vpop.f32.mrf.mxu0
        %v3583 = vpop.f32.mrf.mxu0
        %v3584 = vadd.f32 %v3423, %v3583
        %v3585 = vpop.f32.mrf.mxu0
        %3586 = vmatprep.mubr.bf16.mxu0 0
        %3587 = vmatmul.mubr.bf16.gmra.mxu0 %v389
        %v3588 = vpop.f32.mrf.mxu0
        %v3589 = vadd.f32 %v3428, %v3588
        %v3590 = vpop.f32.mrf.mxu0
        %v3591 = vpop.f32.mrf.mxu0
        %v3592 = vadd.f32 %v3431, %v3591
        %v3593 = vpop.f32.mrf.mxu0
        %3594 = vmatprep.mubr.bf16.mxu0 0
        %3595 = vmatmul.mubr.bf16.gmra.mxu0 %v392
        %v3596 = vpop.f32.mrf.mxu0
        %v3597 = vadd.f32 %v3436, %v3596
        %v3598 = vpop.f32.mrf.mxu0
        %v3599 = vpop.f32.mrf.mxu0
        %v3600 = vadd.f32 %v3439, %v3599
        %v3601 = vpop.f32.mrf.mxu0
        %3602 = vdwg.mxu0
        %v3603 = vpack.c.bf16 %v1969, %v1965
        %v3604 = vpack.c.bf16 %v1971, %v1967
        %v3605 = vpack.c.bf16 %v2355, %v2351
        %v3606 = vpack.c.bf16 %v2357, %v2353
        %v3607 = vpack.c.bf16 %v2741, %v2737
        %v3608 = vpack.c.bf16 %v2743, %v2739
        %v3609 = vpack.c.bf16 %v3127, %v3123
        %v3610 = vpack.c.bf16 %v3129, %v3125
        %v3611 = vpack.c.bf16 %v3480, %v3477
        %v3612 = vpack.c.bf16 %v1979, %v1975
        %v3613 = vpack.c.bf16 %v1981, %v1977
        %v3614 = vpack.c.bf16 %v2365, %v2361
        %v3615 = vpack.c.bf16 %v2367, %v2363
        %v3616 = vpack.c.bf16 %v2751, %v2747
        %v3617 = vpack.c.bf16 %v2753, %v2749
        %v3618 = vpack.c.bf16 %v3137, %v3133
        %v3619 = vpack.c.bf16 %v3139, %v3135
        %v3620 = vpack.c.bf16 %v3488, %v3485
        %v3621 = vpack.c.bf16 %v1989, %v1985
        %v3622 = vpack.c.bf16 %v1991, %v1987
        %v3623 = vpack.c.bf16 %v2375, %v2371
        %v3624 = vpack.c.bf16 %v2377, %v2373
        %v3625 = vpack.c.bf16 %v2761, %v2757
        %v3626 = vpack.c.bf16 %v2763, %v2759
        %v3627 = vpack.c.bf16 %v3147, %v3143
        %v3628 = vpack.c.bf16 %v3149, %v3145
        %v3629 = vpack.c.bf16 %v3496, %v3493
        %v3630 = vpack.c.bf16 %v1999, %v1995
        %v3631 = vpack.c.bf16 %v2001, %v1997
        %v3632 = vpack.c.bf16 %v2385, %v2381
        %v3633 = vpack.c.bf16 %v2387, %v2383
        %v3634 = vpack.c.bf16 %v2771, %v2767
        %v3635 = vpack.c.bf16 %v2773, %v2769
        %v3636 = vpack.c.bf16 %v3157, %v3153
        %v3637 = vpack.c.bf16 %v3159, %v3155
        %v3638 = vpack.c.bf16 %v3504, %v3501
        %v3639 = vpack.c.bf16 %v2009, %v2005
        %v3640 = vpack.c.bf16 %v2011, %v2007
        %v3641 = vpack.c.bf16 %v2395, %v2391
        %v3642 = vpack.c.bf16 %v2397, %v2393
        %v3643 = vpack.c.bf16 %v2781, %v2777
        %v3644 = vpack.c.bf16 %v2783, %v2779
        %v3645 = vpack.c.bf16 %v3167, %v3163
        %v3646 = vpack.c.bf16 %v3169, %v3165
        %v3647 = vpack.c.bf16 %v3512, %v3509
        %v3648 = vpack.c.bf16 %v2019, %v2015
        %v3649 = vpack.c.bf16 %v2021, %v2017
        %v3650 = vpack.c.bf16 %v2405, %v2401
        %v3651 = vpack.c.bf16 %v2407, %v2403
        %v3652 = vpack.c.bf16 %v2791, %v2787
        %v3653 = vpack.c.bf16 %v2793, %v2789
        %v3654 = vpack.c.bf16 %v3177, %v3173
        %v3655 = vpack.c.bf16 %v3179, %v3175
        %v3656 = vpack.c.bf16 %v3520, %v3517
        %v3657 = vpack.c.bf16 %v2029, %v2025
        %v3658 = vpack.c.bf16 %v2031, %v2027
        %v3659 = vpack.c.bf16 %v2415, %v2411
        %v3660 = vpack.c.bf16 %v2417, %v2413
        %v3661 = vpack.c.bf16 %v2801, %v2797
        %v3662 = vpack.c.bf16 %v2803, %v2799
        %v3663 = vpack.c.bf16 %v3187, %v3183
        %v3664 = vpack.c.bf16 %v3189, %v3185
        %v3665 = vpack.c.bf16 %v3528, %v3525
        %v3666 = vpack.c.bf16 %v2039, %v2035
        %v3667 = vpack.c.bf16 %v2041, %v2037
        %v3668 = vpack.c.bf16 %v2425, %v2421
        %v3669 = vpack.c.bf16 %v2427, %v2423
        %v3670 = vpack.c.bf16 %v2811, %v2807
        %v3671 = vpack.c.bf16 %v2813, %v2809
        %v3672 = vpack.c.bf16 %v3197, %v3193
        %v3673 = vpack.c.bf16 %v3199, %v3195
        %v3674 = vpack.c.bf16 %v3536, %v3533
        %v3675 = vpack.c.bf16 %v2049, %v2045
        %v3676 = vpack.c.bf16 %v2051, %v2047
        %v3677 = vpack.c.bf16 %v2435, %v2431
        %v3678 = vpack.c.bf16 %v2437, %v2433
        %v3679 = vpack.c.bf16 %v2821, %v2817
        %v3680 = vpack.c.bf16 %v2823, %v2819
        %v3681 = vpack.c.bf16 %v3207, %v3203
        %v3682 = vpack.c.bf16 %v3209, %v3205
        %v3683 = vpack.c.bf16 %v3544, %v3541
        %v3684 = vpack.c.bf16 %v2059, %v2055
        %v3685 = vpack.c.bf16 %v2061, %v2057
        %v3686 = vpack.c.bf16 %v2445, %v2441
        %v3687 = vpack.c.bf16 %v2447, %v2443
        %v3688 = vpack.c.bf16 %v2831, %v2827
        %v3689 = vpack.c.bf16 %v2833, %v2829
        %v3690 = vpack.c.bf16 %v3217, %v3213
        %v3691 = vpack.c.bf16 %v3219, %v3215
        %v3692 = vpack.c.bf16 %v3552, %v3549
        %v3693 = vpack.c.bf16 %v2069, %v2065
        %v3694 = vpack.c.bf16 %v2071, %v2067
        %v3695 = vpack.c.bf16 %v2455, %v2451
        %v3696 = vpack.c.bf16 %v2457, %v2453
        %v3697 = vpack.c.bf16 %v2841, %v2837
        %v3698 = vpack.c.bf16 %v2843, %v2839
        %v3699 = vpack.c.bf16 %v3227, %v3223
        %v3700 = vpack.c.bf16 %v3229, %v3225
        %v3701 = vpack.c.bf16 %v3560, %v3557
        %v3702 = vpack.c.bf16 %v2079, %v2075
        %v3703 = vpack.c.bf16 %v2081, %v2077
        %v3704 = vpack.c.bf16 %v2465, %v2461
        %v3705 = vpack.c.bf16 %v2467, %v2463
        %v3706 = vpack.c.bf16 %v2851, %v2847
        %v3707 = vpack.c.bf16 %v2853, %v2849
        %v3708 = vpack.c.bf16 %v3237, %v3233
        %v3709 = vpack.c.bf16 %v3239, %v3235
        %v3710 = vpack.c.bf16 %v3568, %v3565
        %v3711 = vpack.c.bf16 %v2089, %v2085
        %v3712 = vpack.c.bf16 %v2091, %v2087
        %v3713 = vpack.c.bf16 %v2475, %v2471
        %v3714 = vpack.c.bf16 %v2477, %v2473
        %v3715 = vpack.c.bf16 %v2861, %v2857
        %v3716 = vpack.c.bf16 %v2863, %v2859
        %v3717 = vpack.c.bf16 %v3247, %v3243
        %v3718 = vpack.c.bf16 %v3249, %v3245
        %v3719 = vpack.c.bf16 %v3576, %v3573
        %v3720 = vpack.c.bf16 %v2099, %v2095
        %v3721 = vpack.c.bf16 %v2101, %v2097
        %v3722 = vpack.c.bf16 %v2485, %v2481
        %v3723 = vpack.c.bf16 %v2487, %v2483
        %v3724 = vpack.c.bf16 %v2871, %v2867
        %v3725 = vpack.c.bf16 %v2873, %v2869
        %v3726 = vpack.c.bf16 %v3257, %v3253
        %v3727 = vpack.c.bf16 %v3259, %v3255
        %v3728 = vpack.c.bf16 %v3584, %v3581
        %v3729 = vpack.c.bf16 %v2109, %v2105
        %v3730 = vpack.c.bf16 %v2111, %v2107
        %v3731 = vpack.c.bf16 %v2495, %v2491
        %v3732 = vpack.c.bf16 %v2497, %v2493
        %v3733 = vpack.c.bf16 %v2881, %v2877
        %v3734 = vpack.c.bf16 %v2883, %v2879
        %v3735 = vpack.c.bf16 %v3267, %v3263
        %v3736 = vpack.c.bf16 %v3269, %v3265
        %v3737 = vpack.c.bf16 %v3592, %v3589
        %v3738 = vpack.c.bf16 %v2119, %v2115
        %v3739 = vpack.c.bf16 %v2121, %v2117
        %v3740 = vpack.c.bf16 %v2505, %v2501
        %v3741 = vpack.c.bf16 %v2507, %v2503
        %v3742 = vpack.c.bf16 %v2891, %v2887
        %v3743 = vpack.c.bf16 %v2893, %v2889
        %v3744 = vpack.c.bf16 %v3277, %v3273
        %v3745 = vpack.c.bf16 %v3279, %v3275
        %v3746 = vpack.c.bf16 %v3600, %v3597
        %v3747 = vld [vmem:[#allocation7] sm:$0xff]
        %v3748 = vld [vmem:[#allocation7 + $0x8] sm:$0xf]
        %v3749 = vld [vmem:[#allocation7 + $0xc] sm:$0xff]
        %v3750 = vld [vmem:[#allocation7 + $0x14] sm:$0xf]
        %v3751 = vld [vmem:[#allocation7 + $0x18] sm:$0xff]
        %v3752 = vld [vmem:[#allocation7 + $0x20] sm:$0xf]
        %v3753 = vld [vmem:[#allocation7 + $0x24] sm:$0xff]
        %v3754 = vld [vmem:[#allocation7 + $0x2c] sm:$0xf]
        %v3755 = vld [vmem:[#allocation7 + $0x30] sm:$0xff]
        %v3756 = vld [vmem:[#allocation7 + $0x38] sm:$0xf]
        %v3757 = vld [vmem:[#allocation7 + $0x3c] sm:$0xff]
        %v3758 = vld [vmem:[#allocation7 + $0x44] sm:$0xf]
        %v3759 = vld [vmem:[#allocation7 + $0x48] sm:$0xff]
        %v3760 = vld [vmem:[#allocation7 + $0x50] sm:$0xf]
        %v3761 = vld [vmem:[#allocation7 + $0x54] sm:$0xff]
        %v3762 = vld [vmem:[#allocation7 + $0x5c] sm:$0xf]
        %v3763 = vld [vmem:[#allocation7 + $0x60] sm:$0xff]
        %v3764 = vld [vmem:[#allocation7 + $0x68] sm:$0xf]
        %v3765 = vld [vmem:[#allocation7 + $0x6c] sm:$0xff]
        %v3766 = vld [vmem:[#allocation7 + $0x74] sm:$0xf]
        %v3767 = vld [vmem:[#allocation7 + $0x78] sm:$0xff]
        %v3768 = vld [vmem:[#allocation7 + $0x80] sm:$0xf]
        %v3769 = vld [vmem:[#allocation7 + $0x84] sm:$0xff]
        %v3770 = vld [vmem:[#allocation7 + $0x8c] sm:$0xf]
        %v3771 = vld [vmem:[#allocation7 + $0x90] sm:$0xff]
        %v3772 = vld [vmem:[#allocation7 + $0x98] sm:$0xf]
        %v3773 = vld [vmem:[#allocation7 + $0x9c] sm:$0xff]
        %v3774 = vld [vmem:[#allocation7 + $0xa4] sm:$0xf]
        %v3775 = vld [vmem:[#allocation7 + $0xa8] sm:$0xff]
        %v3776 = vld [vmem:[#allocation7 + $0xb0] sm:$0xf]
        %v3777 = vld [vmem:[#allocation7 + $0xb4] sm:$0xff]
        %v3778 = vld [vmem:[#allocation7 + $0xbc] sm:$0xf]
        %v3779 = vld [vmem:[#allocation7 + $0xc0] sm:$0xff]
        %v3780 = vld [vmem:[#allocation7 + $0xc8] sm:$0xf]
        %v3781 = vld [vmem:[#allocation7 + $0xcc] sm:$0xff]
        %v3782 = vld [vmem:[#allocation7 + $0xd4] sm:$0xf]
        %v3783 = vld [vmem:[#allocation7 + $0xd8] sm:$0xff]
        %v3784 = vld [vmem:[#allocation7 + $0xe0] sm:$0xf]
        %v3785 = vld [vmem:[#allocation7 + $0xe4] sm:$0xff]
        %v3786 = vld [vmem:[#allocation7 + $0xec] sm:$0xf]
        %v3787 = vld [vmem:[#allocation7 + $0xf0] sm:$0xff]
        %v3788 = vld [vmem:[#allocation7 + $0xf8] sm:$0xf]
        %v3789 = vld [vmem:[#allocation7 + $0xfc] sm:$0xff]
        %v3790 = vld [vmem:[#allocation7 + $0x104] sm:$0xf]
        %v3791 = vld [vmem:[#allocation7 + $0x108] sm:$0xff]
        %v3792 = vld [vmem:[#allocation7 + $0x110] sm:$0xf]
        %v3793 = vld [vmem:[#allocation7 + $0x114] sm:$0xff]
        %v3794 = vld [vmem:[#allocation7 + $0x11c] sm:$0xf]
        %v3795 = vld [vmem:[#allocation7 + $0x120] sm:$0xff]
        %v3796 = vld [vmem:[#allocation7 + $0x128] sm:$0xf]
        %v3797 = vld [vmem:[#allocation7 + $0x12c] sm:$0xff]
        %v3798 = vld [vmem:[#allocation7 + $0x134] sm:$0xf]
        %v3799 = vld [vmem:[#allocation7 + $0x138] sm:$0xff]
        %v3800 = vld [vmem:[#allocation7 + $0x140] sm:$0xf]
        %v3801 = vld [vmem:[#allocation7 + $0x144] sm:$0xff]
        %v3802 = vld [vmem:[#allocation7 + $0x14c] sm:$0xf]
        %v3803 = vld [vmem:[#allocation7 + $0x150] sm:$0xff]
        %v3804 = vld [vmem:[#allocation7 + $0x158] sm:$0xf]
        %v3805 = vld [vmem:[#allocation7 + $0x15c] sm:$0xff]
        %v3806 = vld [vmem:[#allocation7 + $0x164] sm:$0xf]
        %v3807 = vld [vmem:[#allocation7 + $0x168] sm:$0xff]
        %v3808 = vld [vmem:[#allocation7 + $0x170] sm:$0xf]
        %v3809 = vld [vmem:[#allocation7 + $0x174] sm:$0xff]
        %v3810 = vld [vmem:[#allocation7 + $0x17c] sm:$0xf]
        %v3811 = vld [vmem:[#allocation7 + $0x180] sm:$0xff]
        %v3812 = vld [vmem:[#allocation7 + $0x188] sm:$0xf]
        %v3813 = vld [vmem:[#allocation7 + $0x18c] sm:$0xff]
        %v3814 = vld [vmem:[#allocation7 + $0x194] sm:$0xf]
        %v3815 = vld [vmem:[#allocation7 + $0x198] sm:$0xff]
        %v3816 = vld [vmem:[#allocation7 + $0x1a0] sm:$0xf]
        %v3817 = vld [vmem:[#allocation7 + $0x1a4] sm:$0xff]
        %v3818 = vld [vmem:[#allocation7 + $0x1ac] sm:$0xf]
        %v3819 = vld [vmem:[#allocation7 + $0x1b0] sm:$0xff]
        %v3820 = vld [vmem:[#allocation7 + $0x1b8] sm:$0xf]
        %v3821 = vld [vmem:[#allocation7 + $0x1bc] sm:$0xff]
        %v3822 = vld [vmem:[#allocation7 + $0x1c4] sm:$0xf]
        %v3823 = vld [vmem:[#allocation7 + $0x1c8] sm:$0xff]
        %v3824 = vld [vmem:[#allocation7 + $0x1d0] sm:$0xf]
        %v3825 = vld [vmem:[#allocation7 + $0x1d4] sm:$0xff]
        %v3826 = vld [vmem:[#allocation7 + $0x1dc] sm:$0xf]
        %v3827 = vld [vmem:[#allocation7 + $0x1e0] sm:$0xff]
        %v3828 = vld [vmem:[#allocation7 + $0x1e8] sm:$0xf]
        %v3829 = vld [vmem:[#allocation7 + $0x1ec] sm:$0xff]
        %v3830 = vld [vmem:[#allocation7 + $0x1f4] sm:$0xf]
        %v3831 = vld [vmem:[#allocation7 + $0x1f8] sm:$0xff]
        %v3832 = vld [vmem:[#allocation7 + $0x200] sm:$0xf]
        %v3833 = vld [vmem:[#allocation7 + $0x204] sm:$0xff]
        %v3834 = vld [vmem:[#allocation7 + $0x20c] sm:$0xf]
        %v3835 = vld [vmem:[#allocation7 + $0x210] sm:$0xff]
        %v3836 = vld [vmem:[#allocation7 + $0x218] sm:$0xf]
        %v3837 = vld [vmem:[#allocation7 + $0x21c] sm:$0xff]
        %v3838 = vld [vmem:[#allocation7 + $0x224] sm:$0xf]
        %v3839 = vld [vmem:[#allocation7 + $0x228] sm:$0xff]
        %v3840 = vld [vmem:[#allocation7 + $0x230] sm:$0xf]
        %v3841 = vld [vmem:[#allocation7 + $0x234] sm:$0xff]
        %v3842 = vld [vmem:[#allocation7 + $0x23c] sm:$0xf]
        %v3843 = vld [vmem:[%s3] sm:$0x7]
        %v3844 = vlaneseq
        %v3845 = vshrl.u32 %v3844, 7
        %v3846 = vadd.s32 %v3845, 8
        %v3847 = vadd.s32 %v3845, 16
        %v3848 = vadd.s32 %v3845, 24
        %v3849 = vadd.s32 %v3845, 32
        %v3850 = vadd.s32 %v3845, 40
        %v3851 = vadd.s32 %v3845, 48
        %v3852 = vadd.s32 %v3845, 56
        %v3853 = vadd.s32 %v3845, 64
        %v3854 = vadd.s32 %v3845, 72
        %v3855 = vadd.s32 %v3845, 80
        %v3856 = vadd.s32 %v3845, 88
        %v3857 = vadd.s32 %v3845, 96
        %v3858 = vadd.s32 %v3845, 104
        %v3859 = vadd.s32 %v3845, 112
        %v3860 = vadd.s32 %v3845, 120
        %v3861 = vlaneseq
        %v3862 = vand.u32 %v3861, 127
        %vm3863 = vcmp.ge.s32.totalorder %v3845, %v3862
        %vm3864 = vcmp.ge.s32.totalorder %v3846, %v3862
        %vm3865 = vcmp.ge.s32.totalorder %v3847, %v3862
        %vm3866 = vcmp.ge.s32.totalorder %v3848, %v3862
        %vm3867 = vcmp.ge.s32.totalorder %v3849, %v3862
        %vm3868 = vcmp.ge.s32.totalorder %v3850, %v3862
        %vm3869 = vcmp.ge.s32.totalorder %v3851, %v3862
        %vm3870 = vcmp.ge.s32.totalorder %v3852, %v3862
        %vm3871 = vcmp.ge.s32.totalorder %v3853, %v3862
        %vm3872 = vcmp.ge.s32.totalorder %v3854, %v3862
        %vm3873 = vcmp.ge.s32.totalorder %v3855, %v3862
        %vm3874 = vcmp.ge.s32.totalorder %v3856, %v3862
        %vm3875 = vcmp.ge.s32.totalorder %v3857, %v3862
        %vm3876 = vcmp.ge.s32.totalorder %v3858, %v3862
        %vm3877 = vcmp.ge.s32.totalorder %v3859, %v3862
        %vm3878 = vcmp.ge.s32.totalorder %v3860, %v3862
        %vm3879 = vcmask 523264
        %v3881 = vsel %vm3879, %v3603, 0
        %v3884 = vsel %vm3879, %v3612, 0
        %v3887 = vsel %vm3879, %v3621, 0
        %v3890 = vsel %vm3879, %v3630, 0
        %v3893 = vsel %vm3879, %v3639, 0
        %v3896 = vsel %vm3879, %v3648, 0
        %v3899 = vsel %vm3879, %v3657, 0
        %v3902 = vsel %vm3879, %v3666, 0
        %v3905 = vsel %vm3879, %v3606, 0
        %v3908 = vsel %vm3879, %v3615, 0
        %v3911 = vsel %vm3879, %v3624, 0
        %v3914 = vsel %vm3879, %v3633, 0
        %v3917 = vsel %vm3879, %v3642, 0
        %v3920 = vsel %vm3879, %v3651, 0
        %v3923 = vsel %vm3879, %v3660, 0
        %v3926 = vsel %vm3879, %v3669, 0
        %3928 = vmatprep.subr.bf16.mxu0 0
        %3929 = vmatpush1.bf16.xpose.msra.mxu0 %v3926
        %3930 = vmatprep.subr.bf16.mxu0 0
        %3931 = vmatpush1.bf16.xpose.msra.mxu0 %v3923
        %3932 = vmatprep.subr.bf16.mxu0 0
        %3933 = vmatpush1.bf16.xpose.msra.mxu0 %v3920
        %3934 = vmatprep.subr.bf16.mxu0 0
        %3935 = vmatpush1.bf16.xpose.msra.mxu0 %v3917
        %3936 = vmatprep.subr.bf16.mxu0 0
        %3937 = vmatpush1.bf16.xpose.msra.mxu0 %v3914
        %3938 = vmatprep.subr.bf16.mxu0 0
        %3939 = vmatpush1.bf16.xpose.msra.mxu0 %v3911
        %3940 = vmatprep.subr.bf16.mxu0 0
        %3941 = vmatpush1.bf16.xpose.msra.mxu0 %v3908
        %3942 = vmatprep.subr.bf16.mxu0 0
        %3943 = vmatpush1.bf16.xpose.msra.mxu0 %v3905
        %3944 = vmatprep.subr.bf16.mxu0 0
        %3945 = vmatpush2.bf16.xpose.msra.mxu0 0
        %3946 = vmatprep.subr.bf16.mxu0 0
        %3947 = vmatpush2.bf16.xpose.msra.mxu0 0
        %3948 = vmatprep.subr.bf16.mxu0 0
        %3949 = vmatpush2.bf16.xpose.msra.mxu0 0
        %3950 = vmatprep.subr.bf16.mxu0 0
        %3951 = vmatpush2.bf16.xpose.msra.mxu0 0
        %3952 = vmatprep.subr.bf16.mxu0 0
        %3953 = vmatpush2.bf16.xpose.msra.mxu0 0
        %3954 = vmatprep.subr.bf16.mxu0 0
        %3955 = vmatpush2.bf16.xpose.msra.mxu0 0
        %3956 = vmatprep.subr.bf16.mxu0 0
        %3957 = vmatpush2.bf16.xpose.msra.mxu0 0
        %3958 = vmatprep.subr.bf16.mxu0 0
        %3959 = vmatpush2.bf16.xpose.msra.mxu0 0
        %3960 = vmatprep.mubr.bf16.mxu0 0
        %3961 = vmatmul.mubr.bf16.gmra.mxu0 %v3881
        %v3962 = vpop.f32.mrf.mxu0
        %v3963 = vadd.f32 0.0, %v3962
        %v3964 = vpop.f32.mrf.mxu0
        %v3965 = vpop.f32.mrf.mxu0
        %v3966 = vadd.f32 0.0, %v3965
        %v3967 = vpop.f32.mrf.mxu0
        %3968 = vmatprep.mubr.bf16.mxu0 0
        %3969 = vmatmul.mubr.bf16.gmra.mxu0 %v3884
        %v3970 = vpop.f32.mrf.mxu0
        %v3971 = vadd.f32 0.0, %v3970
        %v3972 = vpop.f32.mrf.mxu0
        %v3973 = vpop.f32.mrf.mxu0
        %v3974 = vadd.f32 0.0, %v3973
        %v3975 = vpop.f32.mrf.mxu0
        %3976 = vmatprep.mubr.bf16.mxu0 0
        %3977 = vmatmul.mubr.bf16.gmra.mxu0 %v3887
        %v3978 = vpop.f32.mrf.mxu0
        %v3979 = vadd.f32 0.0, %v3978
        %v3980 = vpop.f32.mrf.mxu0
        %v3981 = vpop.f32.mrf.mxu0
        %v3982 = vadd.f32 0.0, %v3981
        %v3983 = vpop.f32.mrf.mxu0
        %3984 = vmatprep.mubr.bf16.mxu0 0
        %3985 = vmatmul.mubr.bf16.gmra.mxu0 %v3890
        %v3986 = vpop.f32.mrf.mxu0
        %v3987 = vadd.f32 0.0, %v3986
        %v3988 = vpop.f32.mrf.mxu0
        %v3989 = vpop.f32.mrf.mxu0
        %v3990 = vadd.f32 0.0, %v3989
        %v3991 = vpop.f32.mrf.mxu0
        %3992 = vmatprep.mubr.bf16.mxu0 0
        %3993 = vmatmul.mubr.bf16.gmra.mxu0 %v3893
        %v3994 = vpop.f32.mrf.mxu0
        %v3995 = vadd.f32 0.0, %v3994
        %v3996 = vpop.f32.mrf.mxu0
        %v3997 = vpop.f32.mrf.mxu0
        %v3998 = vadd.f32 0.0, %v3997
        %v3999 = vpop.f32.mrf.mxu0
        %4000 = vmatprep.mubr.bf16.mxu0 0
        %4001 = vmatmul.mubr.bf16.gmra.mxu0 %v3896
        %v4002 = vpop.f32.mrf.mxu0
        %v4003 = vadd.f32 0.0, %v4002
        %v4004 = vpop.f32.mrf.mxu0
        %v4005 = vpop.f32.mrf.mxu0
        %v4006 = vadd.f32 0.0, %v4005
        %v4007 = vpop.f32.mrf.mxu0
        %4008 = vmatprep.mubr.bf16.mxu0 0
        %4009 = vmatmul.mubr.bf16.gmra.mxu0 %v3899
        %v4010 = vpop.f32.mrf.mxu0
        %v4011 = vadd.f32 0.0, %v4010
        %v4012 = vpop.f32.mrf.mxu0
        %v4013 = vpop.f32.mrf.mxu0
        %v4014 = vadd.f32 0.0, %v4013
        %v4015 = vpop.f32.mrf.mxu0
        %4016 = vmatprep.mubr.bf16.mxu0 0
        %4017 = vmatmul.mubr.bf16.gmra.mxu0 %v3902
        %v4018 = vpop.f32.mrf.mxu0
        %v4019 = vadd.f32 0.0, %v4018
        %v4020 = vpop.f32.mrf.mxu0
        %v4021 = vpop.f32.mrf.mxu0
        %v4022 = vadd.f32 0.0, %v4021
        %v4023 = vpop.f32.mrf.mxu0
        %4024 = vdwg.mxu0
        %v4025 = vmul.f32 %v3963, 0.05103104
        %v4026 = vmul.f32 %v3966, 0.05103104
        %v4027 = vmul.f32 %v3971, 0.05103104
        %v4028 = vmul.f32 %v3974, 0.05103104
        %v4029 = vmul.f32 %v3979, 0.05103104
        %v4030 = vmul.f32 %v3982, 0.05103104
        %v4031 = vmul.f32 %v3987, 0.05103104
        %v4032 = vmul.f32 %v3990, 0.05103104
        %v4033 = vmul.f32 %v3995, 0.05103104
        %v4034 = vmul.f32 %v3998, 0.05103104
        %v4035 = vmul.f32 %v4003, 0.05103104
        %v4036 = vmul.f32 %v4006, 0.05103104
        %v4037 = vmul.f32 %v4011, 0.05103104
        %v4038 = vmul.f32 %v4014, 0.05103104
        %v4039 = vmul.f32 %v4019, 0.05103104
        %v4040 = vmul.f32 %v4022, 0.05103104
        %v4041 = vsel %vm3863, %v4025, -1e+30
        %v4042 = vsel %vm3864, %v4026, -1e+30
        %v4043 = vsel %vm3865, %v4027, -1e+30
        %v4044 = vsel %vm3866, %v4028, -1e+30
        %v4045 = vsel %vm3867, %v4029, -1e+30
        %v4046 = vsel %vm3868, %v4030, -1e+30
        %v4047 = vsel %vm3869, %v4031, -1e+30
        %v4048 = vsel %vm3870, %v4032, -1e+30
        %v4049 = vsel %vm3871, %v4033, -1e+30
        %v4050 = vsel %vm3872, %v4034, -1e+30
        %v4051 = vsel %vm3873, %v4035, -1e+30
        %v4052 = vsel %vm3874, %v4036, -1e+30
        %v4053 = vsel %vm3875, %v4037, -1e+30
        %v4054 = vsel %vm3876, %v4038, -1e+30
        %v4055 = vsel %vm3877, %v4039, -1e+30
        %v4056 = vsel %vm3878, %v4040, -1e+30
        %4057 = vmax.xlane.f32.xlu0 %v4041
        %v4058 = vpop.xlane.xlu0 %4057
        %4059 = vmax.xlane.f32.xlu0 %v4042
        %v4060 = vpop.xlane.xlu0 %4059
        %4061 = vmax.xlane.f32.xlu0 %v4043
        %v4062 = vpop.xlane.xlu0 %4061
        %4063 = vmax.xlane.f32.xlu0 %v4044
        %v4064 = vpop.xlane.xlu0 %4063
        %4065 = vmax.xlane.f32.xlu0 %v4045
        %v4066 = vpop.xlane.xlu0 %4065
        %4067 = vmax.xlane.f32.xlu0 %v4046
        %v4068 = vpop.xlane.xlu0 %4067
        %4069 = vmax.xlane.f32.xlu0 %v4047
        %v4070 = vpop.xlane.xlu0 %4069
        %4071 = vmax.xlane.f32.xlu0 %v4048
        %v4072 = vpop.xlane.xlu0 %4071
        %4073 = vmax.xlane.f32.xlu0 %v4049
        %v4074 = vpop.xlane.xlu0 %4073
        %4075 = vmax.xlane.f32.xlu0 %v4050
        %v4076 = vpop.xlane.xlu0 %4075
        %4077 = vmax.xlane.f32.xlu0 %v4051
        %v4078 = vpop.xlane.xlu0 %4077
        %4079 = vmax.xlane.f32.xlu0 %v4052
        %v4080 = vpop.xlane.xlu0 %4079
        %4081 = vmax.xlane.f32.xlu0 %v4053
        %v4082 = vpop.xlane.xlu0 %4081
        %4083 = vmax.xlane.f32.xlu0 %v4054
        %v4084 = vpop.xlane.xlu0 %4083
        %4085 = vmax.xlane.f32.xlu0 %v4055
        %v4086 = vpop.xlane.xlu0 %4085
        %4087 = vmax.xlane.f32.xlu0 %v4056
        %v4088 = vpop.xlane.xlu0 %4087
        %v4089 = vsub.f32 %v4041, %v4058
        %v4090 = vsub.f32 %v4042, %v4060
        %v4091 = vsub.f32 %v4043, %v4062
        %v4092 = vsub.f32 %v4044, %v4064
        %v4093 = vsub.f32 %v4045, %v4066
        %v4094 = vsub.f32 %v4046, %v4068
        %v4095 = vsub.f32 %v4047, %v4070
        %v4096 = vsub.f32 %v4048, %v4072
        %v4097 = vsub.f32 %v4049, %v4074
        %v4098 = vsub.f32 %v4050, %v4076
        %v4099 = vsub.f32 %v4051, %v4078
        %v4100 = vsub.f32 %v4052, %v4080
        %v4101 = vsub.f32 %v4053, %v4082
        %v4102 = vsub.f32 %v4054, %v4084
        %v4103 = vsub.f32 %v4055, %v4086
        %v4104 = vsub.f32 %v4056, %v4088
        %v4105 = vmul.f32 %v4089, 1.442695
        %v4106 = vpow.pop %v4105
        %v4107 = vmul.f32 %v4090, 1.442695
        %v4108 = vpow.pop %v4107
        %v4109 = vmul.f32 %v4091, 1.442695
        %v4110 = vpow.pop %v4109
        %v4111 = vmul.f32 %v4092, 1.442695
        %v4112 = vpow.pop %v4111
        %v4113 = vmul.f32 %v4093, 1.442695
        %v4114 = vpow.pop %v4113
        %v4115 = vmul.f32 %v4094, 1.442695
        %v4116 = vpow.pop %v4115
        %v4117 = vmul.f32 %v4095, 1.442695
        %v4118 = vpow.pop %v4117
        %v4119 = vmul.f32 %v4096, 1.442695
        %v4120 = vpow.pop %v4119
        %v4121 = vmul.f32 %v4097, 1.442695
        %v4122 = vpow.pop %v4121
        %v4123 = vmul.f32 %v4098, 1.442695
        %v4124 = vpow.pop %v4123
        %v4125 = vmul.f32 %v4099, 1.442695
        %v4126 = vpow.pop %v4125
        %v4127 = vmul.f32 %v4100, 1.442695
        %v4128 = vpow.pop %v4127
        %v4129 = vmul.f32 %v4101, 1.442695
        %v4130 = vpow.pop %v4129
        %v4131 = vmul.f32 %v4102, 1.442695
        %v4132 = vpow.pop %v4131
        %v4133 = vmul.f32 %v4103, 1.442695
        %v4134 = vpow.pop %v4133
        %v4135 = vmul.f32 %v4104, 1.442695
        %v4136 = vpow.pop %v4135
        %4137 = vadd.xlane.f32.xlu0 %v4106
        %v4138 = vpop.xlane.xlu0 %4137
        %4139 = vadd.xlane.f32.xlu0 %v4108
        %v4140 = vpop.xlane.xlu0 %4139
        %4141 = vadd.xlane.f32.xlu0 %v4110
        %v4142 = vpop.xlane.xlu0 %4141
        %4143 = vadd.xlane.f32.xlu0 %v4112
        %v4144 = vpop.xlane.xlu0 %4143
        %4145 = vadd.xlane.f32.xlu0 %v4114
        %v4146 = vpop.xlane.xlu0 %4145
        %4147 = vadd.xlane.f32.xlu0 %v4116
        %v4148 = vpop.xlane.xlu0 %4147
        %4149 = vadd.xlane.f32.xlu0 %v4118
        %v4150 = vpop.xlane.xlu0 %4149
        %4151 = vadd.xlane.f32.xlu0 %v4120
        %v4152 = vpop.xlane.xlu0 %4151
        %4153 = vadd.xlane.f32.xlu0 %v4122
        %v4154 = vpop.xlane.xlu0 %4153
        %4155 = vadd.xlane.f32.xlu0 %v4124
        %v4156 = vpop.xlane.xlu0 %4155
        %4157 = vadd.xlane.f32.xlu0 %v4126
        %v4158 = vpop.xlane.xlu0 %4157
        %4159 = vadd.xlane.f32.xlu0 %v4128
        %v4160 = vpop.xlane.xlu0 %4159
        %4161 = vadd.xlane.f32.xlu0 %v4130
        %v4162 = vpop.xlane.xlu0 %4161
        %4163 = vadd.xlane.f32.xlu0 %v4132
        %v4164 = vpop.xlane.xlu0 %4163
        %4165 = vadd.xlane.f32.xlu0 %v4134
        %v4166 = vpop.xlane.xlu0 %4165
        %4167 = vadd.xlane.f32.xlu0 %v4136
        %v4168 = vpop.xlane.xlu0 %4167
        %v4169 = vrcp.pop %v4138
        %v4170 = vrcp.pop %v4140
        %v4171 = vrcp.pop %v4142
        %v4172 = vrcp.pop %v4144
        %v4173 = vrcp.pop %v4146
        %v4174 = vrcp.pop %v4148
        %v4175 = vrcp.pop %v4150
        %v4176 = vrcp.pop %v4152
        %v4177 = vrcp.pop %v4154
        %v4178 = vrcp.pop %v4156
        %v4179 = vrcp.pop %v4158
        %v4180 = vrcp.pop %v4160
        %v4181 = vrcp.pop %v4162
        %v4182 = vrcp.pop %v4164
        %v4183 = vrcp.pop %v4166
        %v4184 = vrcp.pop %v4168
        %v4185 = vmul.f32 %v4106, %v4169
        %v4186 = vmul.f32 %v4108, %v4170
        %v4187 = vmul.f32 %v4110, %v4171
        %v4188 = vmul.f32 %v4112, %v4172
        %v4189 = vmul.f32 %v4114, %v4173
        %v4190 = vmul.f32 %v4116, %v4174
        %v4191 = vmul.f32 %v4118, %v4175
        %v4192 = vmul.f32 %v4120, %v4176
        %v4193 = vmul.f32 %v4122, %v4177
        %v4194 = vmul.f32 %v4124, %v4178
        %v4195 = vmul.f32 %v4126, %v4179
        %v4196 = vmul.f32 %v4128, %v4180
        %v4197 = vmul.f32 %v4130, %v4181
        %v4198 = vmul.f32 %v4132, %v4182
        %v4199 = vmul.f32 %v4134, %v4183
        %v4200 = vmul.f32 %v4136, %v4184
        %v4201 = vpack.c.bf16 %v4186, %v4185
        %v4202 = vpack.c.bf16 %v4188, %v4187
        %v4203 = vpack.c.bf16 %v4190, %v4189
        %v4204 = vpack.c.bf16 %v4192, %v4191
        %v4205 = vpack.c.bf16 %v4194, %v4193
        %v4206 = vpack.c.bf16 %v4196, %v4195
        %v4207 = vpack.c.bf16 %v4198, %v4197
        %v4208 = vpack.c.bf16 %v4200, %v4199
        %4209 = vmatprep.subr.bf16.mxu0 0
        %4210 = vmatpush1.bf16.msra.mxu0 %v3672
        %4211 = vmatprep.subr.bf16.mxu0 0
        %4212 = vmatpush1.bf16.msra.mxu0 %v3663
        %4213 = vmatprep.subr.bf16.mxu0 0
        %4214 = vmatpush1.bf16.msra.mxu0 %v3654
        %4215 = vmatprep.subr.bf16.mxu0 0
        %4216 = vmatpush1.bf16.msra.mxu0 %v3645
        %4217 = vmatprep.subr.bf16.mxu0 0
        %4218 = vmatpush1.bf16.msra.mxu0 %v3636
        %4219 = vmatprep.subr.bf16.mxu0 0
        %4220 = vmatpush1.bf16.msra.mxu0 %v3627
        %4221 = vmatprep.subr.bf16.mxu0 0
        %4222 = vmatpush1.bf16.msra.mxu0 %v3618
        %4223 = vmatprep.subr.bf16.mxu0 0
        %4224 = vmatpush1.bf16.msra.mxu0 %v3609
        %4225 = vmatprep.subr.bf16.mxu0 0
        %4226 = vmatpush2.bf16.msra.mxu0 0
        %4227 = vmatprep.subr.bf16.mxu0 0
        %4228 = vmatpush2.bf16.msra.mxu0 0
        %4229 = vmatprep.subr.bf16.mxu0 0
        %4230 = vmatpush2.bf16.msra.mxu0 0
        %4231 = vmatprep.subr.bf16.mxu0 0
        %4232 = vmatpush2.bf16.msra.mxu0 0
        %4233 = vmatprep.subr.bf16.mxu0 0
        %4234 = vmatpush2.bf16.msra.mxu0 0
        %4235 = vmatprep.subr.bf16.mxu0 0
        %4236 = vmatpush2.bf16.msra.mxu0 0
        %4237 = vmatprep.subr.bf16.mxu0 0
        %4238 = vmatpush2.bf16.msra.mxu0 0
        %4239 = vmatprep.subr.bf16.mxu0 0
        %4240 = vmatpush2.bf16.msra.mxu0 0
        %4241 = vmatprep.mubr.bf16.mxu0 0
        %4242 = vmatmul.mubr.bf16.gmra.mxu0 %v4201
        %v4243 = vpop.f32.mrf.mxu0
        %v4244 = vadd.f32 0.0, %v4243
        %v4245 = vpop.f32.mrf.mxu0
        %v4246 = vpop.f32.mrf.mxu0
        %v4247 = vadd.f32 0.0, %v4246
        %v4248 = vpop.f32.mrf.mxu0
        %4249 = vmatprep.mubr.bf16.mxu0 0
        %4250 = vmatmul.mubr.bf16.gmra.mxu0 %v4202
        %v4251 = vpop.f32.mrf.mxu0
        %v4252 = vadd.f32 0.0, %v4251
        %v4253 = vpop.f32.mrf.mxu0
        %v4254 = vpop.f32.mrf.mxu0
        %v4255 = vadd.f32 0.0, %v4254
        %v4256 = vpop.f32.mrf.mxu0
        %4257 = vmatprep.mubr.bf16.mxu0 0
        %4258 = vmatmul.mubr.bf16.gmra.mxu0 %v4203
        %v4259 = vpop.f32.mrf.mxu0
        %v4260 = vadd.f32 0.0, %v4259
        %v4261 = vpop.f32.mrf.mxu0
        %v4262 = vpop.f32.mrf.mxu0
        %v4263 = vadd.f32 0.0, %v4262
        %v4264 = vpop.f32.mrf.mxu0
        %4265 = vmatprep.mubr.bf16.mxu0 0
        %4266 = vmatmul.mubr.bf16.gmra.mxu0 %v4204
        %v4267 = vpop.f32.mrf.mxu0
        %v4268 = vadd.f32 0.0, %v4267
        %v4269 = vpop.f32.mrf.mxu0
        %v4270 = vpop.f32.mrf.mxu0
        %v4271 = vadd.f32 0.0, %v4270
        %v4272 = vpop.f32.mrf.mxu0
        %4273 = vmatprep.mubr.bf16.mxu0 0
        %4274 = vmatmul.mubr.bf16.gmra.mxu0 %v4205
        %v4275 = vpop.f32.mrf.mxu0
        %v4276 = vadd.f32 0.0, %v4275
        %v4277 = vpop.f32.mrf.mxu0
        %v4278 = vpop.f32.mrf.mxu0
        %v4279 = vadd.f32 0.0, %v4278
        %v4280 = vpop.f32.mrf.mxu0
        %4281 = vmatprep.mubr.bf16.mxu0 0
        %4282 = vmatmul.mubr.bf16.gmra.mxu0 %v4206
        %v4283 = vpop.f32.mrf.mxu0
        %v4284 = vadd.f32 0.0, %v4283
        %v4285 = vpop.f32.mrf.mxu0
        %v4286 = vpop.f32.mrf.mxu0
        %v4287 = vadd.f32 0.0, %v4286
        %v4288 = vpop.f32.mrf.mxu0
        %4289 = vmatprep.mubr.bf16.mxu0 0
        %4290 = vmatmul.mubr.bf16.gmra.mxu0 %v4207
        %v4291 = vpop.f32.mrf.mxu0
        %v4292 = vadd.f32 0.0, %v4291
        %v4293 = vpop.f32.mrf.mxu0
        %v4294 = vpop.f32.mrf.mxu0
        %v4295 = vadd.f32 0.0, %v4294
        %v4296 = vpop.f32.mrf.mxu0
        %4297 = vmatprep.mubr.bf16.mxu0 0
        %4298 = vmatmul.mubr.bf16.gmra.mxu0 %v4208
        %v4299 = vpop.f32.mrf.mxu0
        %v4300 = vadd.f32 0.0, %v4299
        %v4301 = vpop.f32.mrf.mxu0
        %v4302 = vpop.f32.mrf.mxu0
        %v4303 = vadd.f32 0.0, %v4302
        %v4304 = vpop.f32.mrf.mxu0
        %4305 = vdwg.mxu0
        %v4306 = vpack.c.bf16 %v4247, %v4244
        %v4307 = vpack.c.bf16 %v4255, %v4252
        %v4308 = vpack.c.bf16 %v4263, %v4260
        %v4309 = vpack.c.bf16 %v4271, %v4268
        %v4310 = vpack.c.bf16 %v4279, %v4276
        %v4311 = vpack.c.bf16 %v4287, %v4284
        %v4312 = vpack.c.bf16 %v4295, %v4292
        %v4313 = vpack.c.bf16 %v4303, %v4300
        %4322 = vrot.lane.b32.xlu0 %v3603, 64
        %v4323 = vpop.permute.xlu0 %4322
        %4324 = vrot.lane.b32.xlu0 %v3612, 64
        %v4325 = vpop.permute.xlu0 %4324
        %4326 = vrot.lane.b32.xlu0 %v3621, 64
        %v4327 = vpop.permute.xlu0 %4326
        %4328 = vrot.lane.b32.xlu0 %v3630, 64
        %v4329 = vpop.permute.xlu0 %4328
        %4330 = vrot.lane.b32.xlu0 %v3639, 64
        %v4331 = vpop.permute.xlu0 %4330
        %4332 = vrot.lane.b32.xlu0 %v3648, 64
        %v4333 = vpop.permute.xlu0 %4332
        %4334 = vrot.lane.b32.xlu0 %v3657, 64
        %v4335 = vpop.permute.xlu0 %4334
        %4336 = vrot.lane.b32.xlu0 %v3666, 64
        %v4337 = vpop.permute.xlu0 %4336
        %4346 = vrot.lane.b32.xlu0 %v3606, 64
        %v4347 = vpop.permute.xlu0 %4346
        %4348 = vrot.lane.b32.xlu0 %v3615, 64
        %v4349 = vpop.permute.xlu0 %4348
        %4350 = vrot.lane.b32.xlu0 %v3624, 64
        %v4351 = vpop.permute.xlu0 %4350
        %4352 = vrot.lane.b32.xlu0 %v3633, 64
        %v4353 = vpop.permute.xlu0 %4352
        %4354 = vrot.lane.b32.xlu0 %v3642, 64
        %v4355 = vpop.permute.xlu0 %4354
        %4356 = vrot.lane.b32.xlu0 %v3651, 64
        %v4357 = vpop.permute.xlu0 %4356
        %4358 = vrot.lane.b32.xlu0 %v3660, 64
        %v4359 = vpop.permute.xlu0 %4358
        %4360 = vrot.lane.b32.xlu0 %v3669, 64
        %v4361 = vpop.permute.xlu0 %4360
        %v4363 = vsel %vm3879, %v4323, 0
        %v4366 = vsel %vm3879, %v4325, 0
        %v4369 = vsel %vm3879, %v4327, 0
        %v4372 = vsel %vm3879, %v4329, 0
        %v4375 = vsel %vm3879, %v4331, 0
        %v4378 = vsel %vm3879, %v4333, 0
        %v4381 = vsel %vm3879, %v4335, 0
        %v4384 = vsel %vm3879, %v4337, 0
        %v4387 = vsel %vm3879, %v4347, 0
        %v4390 = vsel %vm3879, %v4349, 0
        %v4393 = vsel %vm3879, %v4351, 0
        %v4396 = vsel %vm3879, %v4353, 0
        %v4399 = vsel %vm3879, %v4355, 0
        %v4402 = vsel %vm3879, %v4357, 0
        %v4405 = vsel %vm3879, %v4359, 0
        %v4408 = vsel %vm3879, %v4361, 0
        %4410 = vmatprep.subr.bf16.mxu0 0
        %4411 = vmatpush1.bf16.xpose.msra.mxu0 %v4408
        %4412 = vmatprep.subr.bf16.mxu0 0
        %4413 = vmatpush1.bf16.xpose.msra.mxu0 %v4405
        %4414 = vmatprep.subr.bf16.mxu0 0
        %4415 = vmatpush1.bf16.xpose.msra.mxu0 %v4402
        %4416 = vmatprep.subr.bf16.mxu0 0
        %4417 = vmatpush1.bf16.xpose.msra.mxu0 %v4399
        %4418 = vmatprep.subr.bf16.mxu0 0
        %4419 = vmatpush1.bf16.xpose.msra.mxu0 %v4396
        %4420 = vmatprep.subr.bf16.mxu0 0
        %4421 = vmatpush1.bf16.xpose.msra.mxu0 %v4393
        %4422 = vmatprep.subr.bf16.mxu0 0
        %4423 = vmatpush1.bf16.xpose.msra.mxu0 %v4390
        %4424 = vmatprep.subr.bf16.mxu0 0
        %4425 = vmatpush1.bf16.xpose.msra.mxu0 %v4387
        %4426 = vmatprep.subr.bf16.mxu0 0
        %4427 = vmatpush2.bf16.xpose.msra.mxu0 0
        %4428 = vmatprep.subr.bf16.mxu0 0
        %4429 = vmatpush2.bf16.xpose.msra.mxu0 0
        %4430 = vmatprep.subr.bf16.mxu0 0
        %4431 = vmatpush2.bf16.xpose.msra.mxu0 0
        %4432 = vmatprep.subr.bf16.mxu0 0
        %4433 = vmatpush2.bf16.xpose.msra.mxu0 0
        %4434 = vmatprep.subr.bf16.mxu0 0
        %4435 = vmatpush2.bf16.xpose.msra.mxu0 0
        %4436 = vmatprep.subr.bf16.mxu0 0
        %4437 = vmatpush2.bf16.xpose.msra.mxu0 0
        %4438 = vmatprep.subr.bf16.mxu0 0
        %4439 = vmatpush2.bf16.xpose.msra.mxu0 0
        %4440 = vmatprep.subr.bf16.mxu0 0
        %4441 = vmatpush2.bf16.xpose.msra.mxu0 0
        %4442 = vmatprep.mubr.bf16.mxu0 0
        %4443 = vmatmul.mubr.bf16.gmra.mxu0 %v4363
        %v4444 = vpop.f32.mrf.mxu0
        %v4445 = vadd.f32 0.0, %v4444
        %v4446 = vpop.f32.mrf.mxu0
        %v4447 = vpop.f32.mrf.mxu0
        %v4448 = vadd.f32 0.0, %v4447
        %v4449 = vpop.f32.mrf.mxu0
        %4450 = vmatprep.mubr.bf16.mxu0 0
        %4451 = vmatmul.mubr.bf16.gmra.mxu0 %v4366
        %v4452 = vpop.f32.mrf.mxu0
        %v4453 = vadd.f32 0.0, %v4452
        %v4454 = vpop.f32.mrf.mxu0
        %v4455 = vpop.f32.mrf.mxu0
        %v4456 = vadd.f32 0.0, %v4455
        %v4457 = vpop.f32.mrf.mxu0
        %4458 = vmatprep.mubr.bf16.mxu0 0
        %4459 = vmatmul.mubr.bf16.gmra.mxu0 %v4369
        %v4460 = vpop.f32.mrf.mxu0
        %v4461 = vadd.f32 0.0, %v4460
        %v4462 = vpop.f32.mrf.mxu0
        %v4463 = vpop.f32.mrf.mxu0
        %v4464 = vadd.f32 0.0, %v4463
        %v4465 = vpop.f32.mrf.mxu0
        %4466 = vmatprep.mubr.bf16.mxu0 0
        %4467 = vmatmul.mubr.bf16.gmra.mxu0 %v4372
        %v4468 = vpop.f32.mrf.mxu0
        %v4469 = vadd.f32 0.0, %v4468
        %v4470 = vpop.f32.mrf.mxu0
        %v4471 = vpop.f32.mrf.mxu0
        %v4472 = vadd.f32 0.0, %v4471
        %v4473 = vpop.f32.mrf.mxu0
        %4474 = vmatprep.mubr.bf16.mxu0 0
        %4475 = vmatmul.mubr.bf16.gmra.mxu0 %v4375
        %v4476 = vpop.f32.mrf.mxu0
        %v4477 = vadd.f32 0.0, %v4476
        %v4478 = vpop.f32.mrf.mxu0
        %v4479 = vpop.f32.mrf.mxu0
        %v4480 = vadd.f32 0.0, %v4479
        %v4481 = vpop.f32.mrf.mxu0
        %4482 = vmatprep.mubr.bf16.mxu0 0
        %4483 = vmatmul.mubr.bf16.gmra.mxu0 %v4378
        %v4484 = vpop.f32.mrf.mxu0
        %v4485 = vadd.f32 0.0, %v4484
        %v4486 = vpop.f32.mrf.mxu0
        %v4487 = vpop.f32.mrf.mxu0
        %v4488 = vadd.f32 0.0, %v4487
        %v4489 = vpop.f32.mrf.mxu0
        %4490 = vmatprep.mubr.bf16.mxu0 0
        %4491 = vmatmul.mubr.bf16.gmra.mxu0 %v4381
        %v4492 = vpop.f32.mrf.mxu0
        %v4493 = vadd.f32 0.0, %v4492
        %v4494 = vpop.f32.mrf.mxu0
        %v4495 = vpop.f32.mrf.mxu0
        %v4496 = vadd.f32 0.0, %v4495
        %v4497 = vpop.f32.mrf.mxu0
        %4498 = vmatprep.mubr.bf16.mxu0 0
        %4499 = vmatmul.mubr.bf16.gmra.mxu0 %v4384
        %v4500 = vpop.f32.mrf.mxu0
        %v4501 = vadd.f32 0.0, %v4500
        %v4502 = vpop.f32.mrf.mxu0
        %v4503 = vpop.f32.mrf.mxu0
        %v4504 = vadd.f32 0.0, %v4503
        %v4505 = vpop.f32.mrf.mxu0
        %4506 = vdwg.mxu0
        %v4507 = vmul.f32 %v4445, 0.05103104
        %v4508 = vmul.f32 %v4448, 0.05103104
        %v4509 = vmul.f32 %v4453, 0.05103104
        %v4510 = vmul.f32 %v4456, 0.05103104
        %v4511 = vmul.f32 %v4461, 0.05103104
        %v4512 = vmul.f32 %v4464, 0.05103104
        %v4513 = vmul.f32 %v4469, 0.05103104
        %v4514 = vmul.f32 %v4472, 0.05103104
        %v4515 = vmul.f32 %v4477, 0.05103104
        %v4516 = vmul.f32 %v4480, 0.05103104
        %v4517 = vmul.f32 %v4485, 0.05103104
        %v4518 = vmul.f32 %v4488, 0.05103104
        %v4519 = vmul.f32 %v4493, 0.05103104
        %v4520 = vmul.f32 %v4496, 0.05103104
        %v4521 = vmul.f32 %v4501, 0.05103104
        %v4522 = vmul.f32 %v4504, 0.05103104
        %v4523 = vsel %vm3863, %v4507, -1e+30
        %v4524 = vsel %vm3864, %v4508, -1e+30
        %v4525 = vsel %vm3865, %v4509, -1e+30
        %v4526 = vsel %vm3866, %v4510, -1e+30
        %v4527 = vsel %vm3867, %v4511, -1e+30
        %v4528 = vsel %vm3868, %v4512, -1e+30
        %v4529 = vsel %vm3869, %v4513, -1e+30
        %v4530 = vsel %vm3870, %v4514, -1e+30
        %v4531 = vsel %vm3871, %v4515, -1e+30
        %v4532 = vsel %vm3872, %v4516, -1e+30
        %v4533 = vsel %vm3873, %v4517, -1e+30
        %v4534 = vsel %vm3874, %v4518, -1e+30
        %v4535 = vsel %vm3875, %v4519, -1e+30
        %v4536 = vsel %vm3876, %v4520, -1e+30
        %v4537 = vsel %vm3877, %v4521, -1e+30
        %v4538 = vsel %vm3878, %v4522, -1e+30
        %4539 = vmax.xlane.f32.xlu0 %v4523
        %v4540 = vpop.xlane.xlu0 %4539
        %4541 = vmax.xlane.f32.xlu0 %v4524
        %v4542 = vpop.xlane.xlu0 %4541
        %4543 = vmax.xlane.f32.xlu0 %v4525
        %v4544 = vpop.xlane.xlu0 %4543
        %4545 = vmax.xlane.f32.xlu0 %v4526
        %v4546 = vpop.xlane.xlu0 %4545
        %4547 = vmax.xlane.f32.xlu0 %v4527
        %v4548 = vpop.xlane.xlu0 %4547
        %4549 = vmax.xlane.f32.xlu0 %v4528
        %v4550 = vpop.xlane.xlu0 %4549
        %4551 = vmax.xlane.f32.xlu0 %v4529
        %v4552 = vpop.xlane.xlu0 %4551
        %4553 = vmax.xlane.f32.xlu0 %v4530
        %v4554 = vpop.xlane.xlu0 %4553
        %4555 = vmax.xlane.f32.xlu0 %v4531
        %v4556 = vpop.xlane.xlu0 %4555
        %4557 = vmax.xlane.f32.xlu0 %v4532
        %v4558 = vpop.xlane.xlu0 %4557
        %4559 = vmax.xlane.f32.xlu0 %v4533
        %v4560 = vpop.xlane.xlu0 %4559
        %4561 = vmax.xlane.f32.xlu0 %v4534
        %v4562 = vpop.xlane.xlu0 %4561
        %4563 = vmax.xlane.f32.xlu0 %v4535
        %v4564 = vpop.xlane.xlu0 %4563
        %4565 = vmax.xlane.f32.xlu0 %v4536
        %v4566 = vpop.xlane.xlu0 %4565
        %4567 = vmax.xlane.f32.xlu0 %v4537
        %v4568 = vpop.xlane.xlu0 %4567
        %4569 = vmax.xlane.f32.xlu0 %v4538
        %v4570 = vpop.xlane.xlu0 %4569
        %v4571 = vsub.f32 %v4523, %v4540
        %v4572 = vsub.f32 %v4524, %v4542
        %v4573 = vsub.f32 %v4525, %v4544
        %v4574 = vsub.f32 %v4526, %v4546
        %v4575 = vsub.f32 %v4527, %v4548
        %v4576 = vsub.f32 %v4528, %v4550
        %v4577 = vsub.f32 %v4529, %v4552
        %v4578 = vsub.f32 %v4530, %v4554
        %v4579 = vsub.f32 %v4531, %v4556
        %v4580 = vsub.f32 %v4532, %v4558
        %v4581 = vsub.f32 %v4533, %v4560
        %v4582 = vsub.f32 %v4534, %v4562
        %v4583 = vsub.f32 %v4535, %v4564
        %v4584 = vsub.f32 %v4536, %v4566
        %v4585 = vsub.f32 %v4537, %v4568
        %v4586 = vsub.f32 %v4538, %v4570
        %v4587 = vmul.f32 %v4571, 1.442695
        %v4588 = vpow.pop %v4587
        %v4589 = vmul.f32 %v4572, 1.442695
        %v4590 = vpow.pop %v4589
        %v4591 = vmul.f32 %v4573, 1.442695
        %v4592 = vpow.pop %v4591
        %v4593 = vmul.f32 %v4574, 1.442695
        %v4594 = vpow.pop %v4593
        %v4595 = vmul.f32 %v4575, 1.442695
        %v4596 = vpow.pop %v4595
        %v4597 = vmul.f32 %v4576, 1.442695
        %v4598 = vpow.pop %v4597
        %v4599 = vmul.f32 %v4577, 1.442695
        %v4600 = vpow.pop %v4599
        %v4601 = vmul.f32 %v4578, 1.442695
        %v4602 = vpow.pop %v4601
        %v4603 = vmul.f32 %v4579, 1.442695
        %v4604 = vpow.pop %v4603
        %v4605 = vmul.f32 %v4580, 1.442695
        %v4606 = vpow.pop %v4605
        %v4607 = vmul.f32 %v4581, 1.442695
        %v4608 = vpow.pop %v4607
        %v4609 = vmul.f32 %v4582, 1.442695
        %v4610 = vpow.pop %v4609
        %v4611 = vmul.f32 %v4583, 1.442695
        %v4612 = vpow.pop %v4611
        %v4613 = vmul.f32 %v4584, 1.442695
        %v4614 = vpow.pop %v4613
        %v4615 = vmul.f32 %v4585, 1.442695
        %v4616 = vpow.pop %v4615
        %v4617 = vmul.f32 %v4586, 1.442695
        %v4618 = vpow.pop %v4617
        %4619 = vadd.xlane.f32.xlu0 %v4588
        %v4620 = vpop.xlane.xlu0 %4619
        %4621 = vadd.xlane.f32.xlu0 %v4590
        %v4622 = vpop.xlane.xlu0 %4621
        %4623 = vadd.xlane.f32.xlu0 %v4592
        %v4624 = vpop.xlane.xlu0 %4623
        %4625 = vadd.xlane.f32.xlu0 %v4594
        %v4626 = vpop.xlane.xlu0 %4625
        %4627 = vadd.xlane.f32.xlu0 %v4596
        %v4628 = vpop.xlane.xlu0 %4627
        %4629 = vadd.xlane.f32.xlu0 %v4598
        %v4630 = vpop.xlane.xlu0 %4629
        %4631 = vadd.xlane.f32.xlu0 %v4600
        %v4632 = vpop.xlane.xlu0 %4631
        %4633 = vadd.xlane.f32.xlu0 %v4602
        %v4634 = vpop.xlane.xlu0 %4633
        %4635 = vadd.xlane.f32.xlu0 %v4604
        %v4636 = vpop.xlane.xlu0 %4635
        %4637 = vadd.xlane.f32.xlu0 %v4606
        %v4638 = vpop.xlane.xlu0 %4637
        %4639 = vadd.xlane.f32.xlu0 %v4608
        %v4640 = vpop.xlane.xlu0 %4639
        %4641 = vadd.xlane.f32.xlu0 %v4610
        %v4642 = vpop.xlane.xlu0 %4641
        %4643 = vadd.xlane.f32.xlu0 %v4612
        %v4644 = vpop.xlane.xlu0 %4643
        %4645 = vadd.xlane.f32.xlu0 %v4614
        %v4646 = vpop.xlane.xlu0 %4645
        %4647 = vadd.xlane.f32.xlu0 %v4616
        %v4648 = vpop.xlane.xlu0 %4647
        %4649 = vadd.xlane.f32.xlu0 %v4618
        %v4650 = vpop.xlane.xlu0 %4649
        %v4651 = vrcp.pop %v4620
        %v4652 = vrcp.pop %v4622
        %v4653 = vrcp.pop %v4624
        %v4654 = vrcp.pop %v4626
        %v4655 = vrcp.pop %v4628
        %v4656 = vrcp.pop %v4630
        %v4657 = vrcp.pop %v4632
        %v4658 = vrcp.pop %v4634
        %v4659 = vrcp.pop %v4636
        %v4660 = vrcp.pop %v4638
        %v4661 = vrcp.pop %v4640
        %v4662 = vrcp.pop %v4642
        %v4663 = vrcp.pop %v4644
        %v4664 = vrcp.pop %v4646
        %v4665 = vrcp.pop %v4648
        %v4666 = vrcp.pop %v4650
        %v4667 = vmul.f32 %v4588, %v4651
        %v4668 = vmul.f32 %v4590, %v4652
        %v4669 = vmul.f32 %v4592, %v4653
        %v4670 = vmul.f32 %v4594, %v4654
        %v4671 = vmul.f32 %v4596, %v4655
        %v4672 = vmul.f32 %v4598, %v4656
        %v4673 = vmul.f32 %v4600, %v4657
        %v4674 = vmul.f32 %v4602, %v4658
        %v4675 = vmul.f32 %v4604, %v4659
        %v4676 = vmul.f32 %v4606, %v4660
        %v4677 = vmul.f32 %v4608, %v4661
        %v4678 = vmul.f32 %v4610, %v4662
        %v4679 = vmul.f32 %v4612, %v4663
        %v4680 = vmul.f32 %v4614, %v4664
        %v4681 = vmul.f32 %v4616, %v4665
        %v4682 = vmul.f32 %v4618, %v4666
        %v4683 = vpack.c.bf16 %v4668, %v4667
        %v4684 = vpack.c.bf16 %v4670, %v4669
        %v4685 = vpack.c.bf16 %v4672, %v4671
        %v4686 = vpack.c.bf16 %v4674, %v4673
        %v4687 = vpack.c.bf16 %v4676, %v4675
        %v4688 = vpack.c.bf16 %v4678, %v4677
        %v4689 = vpack.c.bf16 %v4680, %v4679
        %v4690 = vpack.c.bf16 %v4682, %v4681
        %4699 = vrot.lane.b32.xlu0 %v3609, 64
        %v4700 = vpop.permute.xlu0 %4699
        %4701 = vrot.lane.b32.xlu0 %v3618, 64
        %v4702 = vpop.permute.xlu0 %4701
        %4703 = vrot.lane.b32.xlu0 %v3627, 64
        %v4704 = vpop.permute.xlu0 %4703
        %4705 = vrot.lane.b32.xlu0 %v3636, 64
        %v4706 = vpop.permute.xlu0 %4705
        %4707 = vrot.lane.b32.xlu0 %v3645, 64
        %v4708 = vpop.permute.xlu0 %4707
        %4709 = vrot.lane.b32.xlu0 %v3654, 64
        %v4710 = vpop.permute.xlu0 %4709
        %4711 = vrot.lane.b32.xlu0 %v3663, 64
        %v4712 = vpop.permute.xlu0 %4711
        %4713 = vrot.lane.b32.xlu0 %v3672, 64
        %v4714 = vpop.permute.xlu0 %4713
        %4723 = vmatprep.subr.bf16.mxu0 0
        %4724 = vmatpush1.bf16.msra.mxu0 %v4714
        %4725 = vmatprep.subr.bf16.mxu0 0
        %4726 = vmatpush1.bf16.msra.mxu0 %v4712
        %4727 = vmatprep.subr.bf16.mxu0 0
        %4728 = vmatpush1.bf16.msra.mxu0 %v4710
        %4729 = vmatprep.subr.bf16.mxu0 0
        %4730 = vmatpush1.bf16.msra.mxu0 %v4708
        %4731 = vmatprep.subr.bf16.mxu0 0
        %4732 = vmatpush1.bf16.msra.mxu0 %v4706
        %4733 = vmatprep.subr.bf16.mxu0 0
        %4734 = vmatpush1.bf16.msra.mxu0 %v4704
        %4735 = vmatprep.subr.bf16.mxu0 0
        %4736 = vmatpush1.bf16.msra.mxu0 %v4702
        %4737 = vmatprep.subr.bf16.mxu0 0
        %4738 = vmatpush1.bf16.msra.mxu0 %v4700
        %4739 = vmatprep.subr.bf16.mxu0 0
        %4740 = vmatpush2.bf16.msra.mxu0 0
        %4741 = vmatprep.subr.bf16.mxu0 0
        %4742 = vmatpush2.bf16.msra.mxu0 0
        %4743 = vmatprep.subr.bf16.mxu0 0
        %4744 = vmatpush2.bf16.msra.mxu0 0
        %4745 = vmatprep.subr.bf16.mxu0 0
        %4746 = vmatpush2.bf16.msra.mxu0 0
        %4747 = vmatprep.subr.bf16.mxu0 0
        %4748 = vmatpush2.bf16.msra.mxu0 0
        %4749 = vmatprep.subr.bf16.mxu0 0
        %4750 = vmatpush2.bf16.msra.mxu0 0
        %4751 = vmatprep.subr.bf16.mxu0 0
        %4752 = vmatpush2.bf16.msra.mxu0 0
        %4753 = vmatprep.subr.bf16.mxu0 0
        %4754 = vmatpush2.bf16.msra.mxu0 0
        %4755 = vmatprep.mubr.bf16.mxu0 0
        %4756 = vmatmul.mubr.bf16.gmra.mxu0 %v4683
        %v4757 = vpop.f32.mrf.mxu0
        %v4758 = vadd.f32 0.0, %v4757
        %v4759 = vpop.f32.mrf.mxu0
        %v4760 = vpop.f32.mrf.mxu0
        %v4761 = vadd.f32 0.0, %v4760
        %v4762 = vpop.f32.mrf.mxu0
        %4763 = vmatprep.mubr.bf16.mxu0 0
        %4764 = vmatmul.mubr.bf16.gmra.mxu0 %v4684
        %v4765 = vpop.f32.mrf.mxu0
        %v4766 = vadd.f32 0.0, %v4765
        %v4767 = vpop.f32.mrf.mxu0
        %v4768 = vpop.f32.mrf.mxu0
        %v4769 = vadd.f32 0.0, %v4768
        %v4770 = vpop.f32.mrf.mxu0
        %4771 = vmatprep.mubr.bf16.mxu0 0
        %4772 = vmatmul.mubr.bf16.gmra.mxu0 %v4685
        %v4773 = vpop.f32.mrf.mxu0
        %v4774 = vadd.f32 0.0, %v4773
        %v4775 = vpop.f32.mrf.mxu0
        %v4776 = vpop.f32.mrf.mxu0
        %v4777 = vadd.f32 0.0, %v4776
        %v4778 = vpop.f32.mrf.mxu0
        %4779 = vmatprep.mubr.bf16.mxu0 0
        %4780 = vmatmul.mubr.bf16.gmra.mxu0 %v4686
        %v4781 = vpop.f32.mrf.mxu0
        %v4782 = vadd.f32 0.0, %v4781
        %v4783 = vpop.f32.mrf.mxu0
        %v4784 = vpop.f32.mrf.mxu0
        %v4785 = vadd.f32 0.0, %v4784
        %v4786 = vpop.f32.mrf.mxu0
        %4787 = vmatprep.mubr.bf16.mxu0 0
        %4788 = vmatmul.mubr.bf16.gmra.mxu0 %v4687
        %v4789 = vpop.f32.mrf.mxu0
        %v4790 = vadd.f32 0.0, %v4789
        %v4791 = vpop.f32.mrf.mxu0
        %v4792 = vpop.f32.mrf.mxu0
        %v4793 = vadd.f32 0.0, %v4792
        %v4794 = vpop.f32.mrf.mxu0
        %4795 = vmatprep.mubr.bf16.mxu0 0
        %4796 = vmatmul.mubr.bf16.gmra.mxu0 %v4688
        %v4797 = vpop.f32.mrf.mxu0
        %v4798 = vadd.f32 0.0, %v4797
        %v4799 = vpop.f32.mrf.mxu0
        %v4800 = vpop.f32.mrf.mxu0
        %v4801 = vadd.f32 0.0, %v4800
        %v4802 = vpop.f32.mrf.mxu0
        %4803 = vmatprep.mubr.bf16.mxu0 0
        %4804 = vmatmul.mubr.bf16.gmra.mxu0 %v4689
        %v4805 = vpop.f32.mrf.mxu0
        %v4806 = vadd.f32 0.0, %v4805
        %v4807 = vpop.f32.mrf.mxu0
        %v4808 = vpop.f32.mrf.mxu0
        %v4809 = vadd.f32 0.0, %v4808
        %v4810 = vpop.f32.mrf.mxu0
        %4811 = vmatprep.mubr.bf16.mxu0 0
        %4812 = vmatmul.mubr.bf16.gmra.mxu0 %v4690
        %v4813 = vpop.f32.mrf.mxu0
        %v4814 = vadd.f32 0.0, %v4813
        %v4815 = vpop.f32.mrf.mxu0
        %v4816 = vpop.f32.mrf.mxu0
        %v4817 = vadd.f32 0.0, %v4816
        %v4818 = vpop.f32.mrf.mxu0
        %4819 = vdwg.mxu0
        %v4820 = vpack.c.bf16 %v4761, %v4758
        %v4821 = vpack.c.bf16 %v4769, %v4766
        %v4822 = vpack.c.bf16 %v4777, %v4774
        %v4823 = vpack.c.bf16 %v4785, %v4782
        %v4824 = vpack.c.bf16 %v4793, %v4790
        %v4825 = vpack.c.bf16 %v4801, %v4798
        %v4826 = vpack.c.bf16 %v4809, %v4806
        %v4827 = vpack.c.bf16 %v4817, %v4814
        %v4829 = vsel %vm3879, %v3604, 0
        %v4832 = vsel %vm3879, %v3613, 0
        %v4835 = vsel %vm3879, %v3622, 0
        %v4838 = vsel %vm3879, %v3631, 0
        %v4841 = vsel %vm3879, %v3640, 0
        %v4844 = vsel %vm3879, %v3649, 0
        %v4847 = vsel %vm3879, %v3658, 0
        %v4850 = vsel %vm3879, %v3667, 0
        %v4853 = vsel %vm3879, %v3607, 0
        %v4856 = vsel %vm3879, %v3616, 0
        %v4859 = vsel %vm3879, %v3625, 0
        %v4862 = vsel %vm3879, %v3634, 0
        %v4865 = vsel %vm3879, %v3643, 0
        %v4868 = vsel %vm3879, %v3652, 0
        %v4871 = vsel %vm3879, %v3661, 0
        %v4874 = vsel %vm3879, %v3670, 0
        %4876 = vmatprep.subr.bf16.mxu0 0
        %4877 = vmatpush1.bf16.xpose.msra.mxu0 %v4874
        %4878 = vmatprep.subr.bf16.mxu0 0
        %4879 = vmatpush1.bf16.xpose.msra.mxu0 %v4871
        %4880 = vmatprep.subr.bf16.mxu0 0
        %4881 = vmatpush1.bf16.xpose.msra.mxu0 %v4868
        %4882 = vmatprep.subr.bf16.mxu0 0
        %4883 = vmatpush1.bf16.xpose.msra.mxu0 %v4865
        %4884 = vmatprep.subr.bf16.mxu0 0
        %4885 = vmatpush1.bf16.xpose.msra.mxu0 %v4862
        %4886 = vmatprep.subr.bf16.mxu0 0
        %4887 = vmatpush1.bf16.xpose.msra.mxu0 %v4859
        %4888 = vmatprep.subr.bf16.mxu0 0
        %4889 = vmatpush1.bf16.xpose.msra.mxu0 %v4856
        %4890 = vmatprep.subr.bf16.mxu0 0
        %4891 = vmatpush1.bf16.xpose.msra.mxu0 %v4853
        %4892 = vmatprep.subr.bf16.mxu0 0
        %4893 = vmatpush2.bf16.xpose.msra.mxu0 0
        %4894 = vmatprep.subr.bf16.mxu0 0
        %4895 = vmatpush2.bf16.xpose.msra.mxu0 0
        %4896 = vmatprep.subr.bf16.mxu0 0
        %4897 = vmatpush2.bf16.xpose.msra.mxu0 0
        %4898 = vmatprep.subr.bf16.mxu0 0
        %4899 = vmatpush2.bf16.xpose.msra.mxu0 0
        %4900 = vmatprep.subr.bf16.mxu0 0
        %4901 = vmatpush2.bf16.xpose.msra.mxu0 0
        %4902 = vmatprep.subr.bf16.mxu0 0
        %4903 = vmatpush2.bf16.xpose.msra.mxu0 0
        %4904 = vmatprep.subr.bf16.mxu0 0
        %4905 = vmatpush2.bf16.xpose.msra.mxu0 0
        %4906 = vmatprep.subr.bf16.mxu0 0
        %4907 = vmatpush2.bf16.xpose.msra.mxu0 0
        %4908 = vmatprep.mubr.bf16.mxu0 0
        %4909 = vmatmul.mubr.bf16.gmra.mxu0 %v4829
        %v4910 = vpop.f32.mrf.mxu0
        %v4911 = vadd.f32 0.0, %v4910
        %v4912 = vpop.f32.mrf.mxu0
        %v4913 = vpop.f32.mrf.mxu0
        %v4914 = vadd.f32 0.0, %v4913
        %v4915 = vpop.f32.mrf.mxu0
        %4916 = vmatprep.mubr.bf16.mxu0 0
        %4917 = vmatmul.mubr.bf16.gmra.mxu0 %v4832
        %v4918 = vpop.f32.mrf.mxu0
        %v4919 = vadd.f32 0.0, %v4918
        %v4920 = vpop.f32.mrf.mxu0
        %v4921 = vpop.f32.mrf.mxu0
        %v4922 = vadd.f32 0.0, %v4921
        %v4923 = vpop.f32.mrf.mxu0
        %4924 = vmatprep.mubr.bf16.mxu0 0
        %4925 = vmatmul.mubr.bf16.gmra.mxu0 %v4835
        %v4926 = vpop.f32.mrf.mxu0
        %v4927 = vadd.f32 0.0, %v4926
        %v4928 = vpop.f32.mrf.mxu0
        %v4929 = vpop.f32.mrf.mxu0
        %v4930 = vadd.f32 0.0, %v4929
        %v4931 = vpop.f32.mrf.mxu0
        %4932 = vmatprep.mubr.bf16.mxu0 0
        %4933 = vmatmul.mubr.bf16.gmra.mxu0 %v4838
        %v4934 = vpop.f32.mrf.mxu0
        %v4935 = vadd.f32 0.0, %v4934
        %v4936 = vpop.f32.mrf.mxu0
        %v4937 = vpop.f32.mrf.mxu0
        %v4938 = vadd.f32 0.0, %v4937
        %v4939 = vpop.f32.mrf.mxu0
        %4940 = vmatprep.mubr.bf16.mxu0 0
        %4941 = vmatmul.mubr.bf16.gmra.mxu0 %v4841
        %v4942 = vpop.f32.mrf.mxu0
        %v4943 = vadd.f32 0.0, %v4942
        %v4944 = vpop.f32.mrf.mxu0
        %v4945 = vpop.f32.mrf.mxu0
        %v4946 = vadd.f32 0.0, %v4945
        %v4947 = vpop.f32.mrf.mxu0
        %4948 = vmatprep.mubr.bf16.mxu0 0
        %4949 = vmatmul.mubr.bf16.gmra.mxu0 %v4844
        %v4950 = vpop.f32.mrf.mxu0
        %v4951 = vadd.f32 0.0, %v4950
        %v4952 = vpop.f32.mrf.mxu0
        %v4953 = vpop.f32.mrf.mxu0
        %v4954 = vadd.f32 0.0, %v4953
        %v4955 = vpop.f32.mrf.mxu0
        %4956 = vmatprep.mubr.bf16.mxu0 0
        %4957 = vmatmul.mubr.bf16.gmra.mxu0 %v4847
        %v4958 = vpop.f32.mrf.mxu0
        %v4959 = vadd.f32 0.0, %v4958
        %v4960 = vpop.f32.mrf.mxu0
        %v4961 = vpop.f32.mrf.mxu0
        %v4962 = vadd.f32 0.0, %v4961
        %v4963 = vpop.f32.mrf.mxu0
        %4964 = vmatprep.mubr.bf16.mxu0 0
        %4965 = vmatmul.mubr.bf16.gmra.mxu0 %v4850
        %v4966 = vpop.f32.mrf.mxu0
        %v4967 = vadd.f32 0.0, %v4966
        %v4968 = vpop.f32.mrf.mxu0
        %v4969 = vpop.f32.mrf.mxu0
        %v4970 = vadd.f32 0.0, %v4969
        %v4971 = vpop.f32.mrf.mxu0
        %4972 = vdwg.mxu0
        %v4973 = vmul.f32 %v4911, 0.05103104
        %v4974 = vmul.f32 %v4914, 0.05103104
        %v4975 = vmul.f32 %v4919, 0.05103104
        %v4976 = vmul.f32 %v4922, 0.05103104
        %v4977 = vmul.f32 %v4927, 0.05103104
        %v4978 = vmul.f32 %v4930, 0.05103104
        %v4979 = vmul.f32 %v4935, 0.05103104
        %v4980 = vmul.f32 %v4938, 0.05103104
        %v4981 = vmul.f32 %v4943, 0.05103104
        %v4982 = vmul.f32 %v4946, 0.05103104
        %v4983 = vmul.f32 %v4951, 0.05103104
        %v4984 = vmul.f32 %v4954, 0.05103104
        %v4985 = vmul.f32 %v4959, 0.05103104
        %v4986 = vmul.f32 %v4962, 0.05103104
        %v4987 = vmul.f32 %v4967, 0.05103104
        %v4988 = vmul.f32 %v4970, 0.05103104
        %v4989 = vsel %vm3863, %v4973, -1e+30
        %v4990 = vsel %vm3864, %v4974, -1e+30
        %v4991 = vsel %vm3865, %v4975, -1e+30
        %v4992 = vsel %vm3866, %v4976, -1e+30
        %v4993 = vsel %vm3867, %v4977, -1e+30
        %v4994 = vsel %vm3868, %v4978, -1e+30
        %v4995 = vsel %vm3869, %v4979, -1e+30
        %v4996 = vsel %vm3870, %v4980, -1e+30
        %v4997 = vsel %vm3871, %v4981, -1e+30
        %v4998 = vsel %vm3872, %v4982, -1e+30
        %v4999 = vsel %vm3873, %v4983, -1e+30
        %v5000 = vsel %vm3874, %v4984, -1e+30
        %v5001 = vsel %vm3875, %v4985, -1e+30
        %v5002 = vsel %vm3876, %v4986, -1e+30
        %v5003 = vsel %vm3877, %v4987, -1e+30
        %v5004 = vsel %vm3878, %v4988, -1e+30
        %5005 = vmax.xlane.f32.xlu0 %v4989
        %v5006 = vpop.xlane.xlu0 %5005
        %5007 = vmax.xlane.f32.xlu0 %v4990
        %v5008 = vpop.xlane.xlu0 %5007
        %5009 = vmax.xlane.f32.xlu0 %v4991
        %v5010 = vpop.xlane.xlu0 %5009
        %5011 = vmax.xlane.f32.xlu0 %v4992
        %v5012 = vpop.xlane.xlu0 %5011
        %5013 = vmax.xlane.f32.xlu0 %v4993
        %v5014 = vpop.xlane.xlu0 %5013
        %5015 = vmax.xlane.f32.xlu0 %v4994
        %v5016 = vpop.xlane.xlu0 %5015
        %5017 = vmax.xlane.f32.xlu0 %v4995
        %v5018 = vpop.xlane.xlu0 %5017
        %5019 = vmax.xlane.f32.xlu0 %v4996
        %v5020 = vpop.xlane.xlu0 %5019
        %5021 = vmax.xlane.f32.xlu0 %v4997
        %v5022 = vpop.xlane.xlu0 %5021
        %5023 = vmax.xlane.f32.xlu0 %v4998
        %v5024 = vpop.xlane.xlu0 %5023
        %5025 = vmax.xlane.f32.xlu0 %v4999
        %v5026 = vpop.xlane.xlu0 %5025
        %5027 = vmax.xlane.f32.xlu0 %v5000
        %v5028 = vpop.xlane.xlu0 %5027
        %5029 = vmax.xlane.f32.xlu0 %v5001
        %v5030 = vpop.xlane.xlu0 %5029
        %5031 = vmax.xlane.f32.xlu0 %v5002
        %v5032 = vpop.xlane.xlu0 %5031
        %5033 = vmax.xlane.f32.xlu0 %v5003
        %v5034 = vpop.xlane.xlu0 %5033
        %5035 = vmax.xlane.f32.xlu0 %v5004
        %v5036 = vpop.xlane.xlu0 %5035
        %v5037 = vsub.f32 %v4989, %v5006
        %v5038 = vsub.f32 %v4990, %v5008
        %v5039 = vsub.f32 %v4991, %v5010
        %v5040 = vsub.f32 %v4992, %v5012
        %v5041 = vsub.f32 %v4993, %v5014
        %v5042 = vsub.f32 %v4994, %v5016
        %v5043 = vsub.f32 %v4995, %v5018
        %v5044 = vsub.f32 %v4996, %v5020
        %v5045 = vsub.f32 %v4997, %v5022
        %v5046 = vsub.f32 %v4998, %v5024
        %v5047 = vsub.f32 %v4999, %v5026
        %v5048 = vsub.f32 %v5000, %v5028
        %v5049 = vsub.f32 %v5001, %v5030
        %v5050 = vsub.f32 %v5002, %v5032
        %v5051 = vsub.f32 %v5003, %v5034
        %v5052 = vsub.f32 %v5004, %v5036
        %v5053 = vmul.f32 %v5037, 1.442695
        %v5054 = vpow.pop %v5053
        %v5055 = vmul.f32 %v5038, 1.442695
        %v5056 = vpow.pop %v5055
        %v5057 = vmul.f32 %v5039, 1.442695
        %v5058 = vpow.pop %v5057
        %v5059 = vmul.f32 %v5040, 1.442695
        %v5060 = vpow.pop %v5059
        %v5061 = vmul.f32 %v5041, 1.442695
        %v5062 = vpow.pop %v5061
        %v5063 = vmul.f32 %v5042, 1.442695
        %v5064 = vpow.pop %v5063
        %v5065 = vmul.f32 %v5043, 1.442695
        %v5066 = vpow.pop %v5065
        %v5067 = vmul.f32 %v5044, 1.442695
        %v5068 = vpow.pop %v5067
        %v5069 = vmul.f32 %v5045, 1.442695
        %v5070 = vpow.pop %v5069
        %v5071 = vmul.f32 %v5046, 1.442695
        %v5072 = vpow.pop %v5071
        %v5073 = vmul.f32 %v5047, 1.442695
        %v5074 = vpow.pop %v5073
        %v5075 = vmul.f32 %v5048, 1.442695
        %v5076 = vpow.pop %v5075
        %v5077 = vmul.f32 %v5049, 1.442695
        %v5078 = vpow.pop %v5077
        %v5079 = vmul.f32 %v5050, 1.442695
        %v5080 = vpow.pop %v5079
        %v5081 = vmul.f32 %v5051, 1.442695
        %v5082 = vpow.pop %v5081
        %v5083 = vmul.f32 %v5052, 1.442695
        %v5084 = vpow.pop %v5083
        %5085 = vadd.xlane.f32.xlu0 %v5054
        %v5086 = vpop.xlane.xlu0 %5085
        %5087 = vadd.xlane.f32.xlu0 %v5056
        %v5088 = vpop.xlane.xlu0 %5087
        %5089 = vadd.xlane.f32.xlu0 %v5058
        %v5090 = vpop.xlane.xlu0 %5089
        %5091 = vadd.xlane.f32.xlu0 %v5060
        %v5092 = vpop.xlane.xlu0 %5091
        %5093 = vadd.xlane.f32.xlu0 %v5062
        %v5094 = vpop.xlane.xlu0 %5093
        %5095 = vadd.xlane.f32.xlu0 %v5064
        %v5096 = vpop.xlane.xlu0 %5095
        %5097 = vadd.xlane.f32.xlu0 %v5066
        %v5098 = vpop.xlane.xlu0 %5097
        %5099 = vadd.xlane.f32.xlu0 %v5068
        %v5100 = vpop.xlane.xlu0 %5099
        %5101 = vadd.xlane.f32.xlu0 %v5070
        %v5102 = vpop.xlane.xlu0 %5101
        %5103 = vadd.xlane.f32.xlu0 %v5072
        %v5104 = vpop.xlane.xlu0 %5103
        %5105 = vadd.xlane.f32.xlu0 %v5074
        %v5106 = vpop.xlane.xlu0 %5105
        %5107 = vadd.xlane.f32.xlu0 %v5076
        %v5108 = vpop.xlane.xlu0 %5107
        %5109 = vadd.xlane.f32.xlu0 %v5078
        %v5110 = vpop.xlane.xlu0 %5109
        %5111 = vadd.xlane.f32.xlu0 %v5080
        %v5112 = vpop.xlane.xlu0 %5111
        %5113 = vadd.xlane.f32.xlu0 %v5082
        %v5114 = vpop.xlane.xlu0 %5113
        %5115 = vadd.xlane.f32.xlu0 %v5084
        %v5116 = vpop.xlane.xlu0 %5115
        %v5117 = vrcp.pop %v5086
        %v5118 = vrcp.pop %v5088
        %v5119 = vrcp.pop %v5090
        %v5120 = vrcp.pop %v5092
        %v5121 = vrcp.pop %v5094
        %v5122 = vrcp.pop %v5096
        %v5123 = vrcp.pop %v5098
        %v5124 = vrcp.pop %v5100
        %v5125 = vrcp.pop %v5102
        %v5126 = vrcp.pop %v5104
        %v5127 = vrcp.pop %v5106
        %v5128 = vrcp.pop %v5108
        %v5129 = vrcp.pop %v5110
        %v5130 = vrcp.pop %v5112
        %v5131 = vrcp.pop %v5114
        %v5132 = vrcp.pop %v5116
        %v5133 = vmul.f32 %v5054, %v5117
        %v5134 = vmul.f32 %v5056, %v5118
        %v5135 = vmul.f32 %v5058, %v5119
        %v5136 = vmul.f32 %v5060, %v5120
        %v5137 = vmul.f32 %v5062, %v5121
        %v5138 = vmul.f32 %v5064, %v5122
        %v5139 = vmul.f32 %v5066, %v5123
        %v5140 = vmul.f32 %v5068, %v5124
        %v5141 = vmul.f32 %v5070, %v5125
        %v5142 = vmul.f32 %v5072, %v5126
        %v5143 = vmul.f32 %v5074, %v5127
        %v5144 = vmul.f32 %v5076, %v5128
        %v5145 = vmul.f32 %v5078, %v5129
        %v5146 = vmul.f32 %v5080, %v5130
        %v5147 = vmul.f32 %v5082, %v5131
        %v5148 = vmul.f32 %v5084, %v5132
        %v5149 = vpack.c.bf16 %v5134, %v5133
        %v5150 = vpack.c.bf16 %v5136, %v5135
        %v5151 = vpack.c.bf16 %v5138, %v5137
        %v5152 = vpack.c.bf16 %v5140, %v5139
        %v5153 = vpack.c.bf16 %v5142, %v5141
        %v5154 = vpack.c.bf16 %v5144, %v5143
        %v5155 = vpack.c.bf16 %v5146, %v5145
        %v5156 = vpack.c.bf16 %v5148, %v5147
        %5157 = vmatprep.subr.bf16.mxu0 0
        %5158 = vmatpush1.bf16.msra.mxu0 %v3673
        %5159 = vmatprep.subr.bf16.mxu0 0
        %5160 = vmatpush1.bf16.msra.mxu0 %v3664
        %5161 = vmatprep.subr.bf16.mxu0 0
        %5162 = vmatpush1.bf16.msra.mxu0 %v3655
        %5163 = vmatprep.subr.bf16.mxu0 0
        %5164 = vmatpush1.bf16.msra.mxu0 %v3646
        %5165 = vmatprep.subr.bf16.mxu0 0
        %5166 = vmatpush1.bf16.msra.mxu0 %v3637
        %5167 = vmatprep.subr.bf16.mxu0 0
        %5168 = vmatpush1.bf16.msra.mxu0 %v3628
        %5169 = vmatprep.subr.bf16.mxu0 0
        %5170 = vmatpush1.bf16.msra.mxu0 %v3619
        %5171 = vmatprep.subr.bf16.mxu0 0
        %5172 = vmatpush1.bf16.msra.mxu0 %v3610
        %5173 = vmatprep.subr.bf16.mxu0 0
        %5174 = vmatpush2.bf16.msra.mxu0 0
        %5175 = vmatprep.subr.bf16.mxu0 0
        %5176 = vmatpush2.bf16.msra.mxu0 0
        %5177 = vmatprep.subr.bf16.mxu0 0
        %5178 = vmatpush2.bf16.msra.mxu0 0
        %5179 = vmatprep.subr.bf16.mxu0 0
        %5180 = vmatpush2.bf16.msra.mxu0 0
        %5181 = vmatprep.subr.bf16.mxu0 0
        %5182 = vmatpush2.bf16.msra.mxu0 0
        %5183 = vmatprep.subr.bf16.mxu0 0
        %5184 = vmatpush2.bf16.msra.mxu0 0
        %5185 = vmatprep.subr.bf16.mxu0 0
        %5186 = vmatpush2.bf16.msra.mxu0 0
        %5187 = vmatprep.subr.bf16.mxu0 0
        %5188 = vmatpush2.bf16.msra.mxu0 0
        %5189 = vmatprep.mubr.bf16.mxu0 0
        %5190 = vmatmul.mubr.bf16.gmra.mxu0 %v5149
        %v5191 = vpop.f32.mrf.mxu0
        %v5192 = vadd.f32 0.0, %v5191
        %v5193 = vpop.f32.mrf.mxu0
        %v5194 = vpop.f32.mrf.mxu0
        %v5195 = vadd.f32 0.0, %v5194
        %v5196 = vpop.f32.mrf.mxu0
        %5197 = vmatprep.mubr.bf16.mxu0 0
        %5198 = vmatmul.mubr.bf16.gmra.mxu0 %v5150
        %v5199 = vpop.f32.mrf.mxu0
        %v5200 = vadd.f32 0.0, %v5199
        %v5201 = vpop.f32.mrf.mxu0
        %v5202 = vpop.f32.mrf.mxu0
        %v5203 = vadd.f32 0.0, %v5202
        %v5204 = vpop.f32.mrf.mxu0
        %5205 = vmatprep.mubr.bf16.mxu0 0
        %5206 = vmatmul.mubr.bf16.gmra.mxu0 %v5151
        %v5207 = vpop.f32.mrf.mxu0
        %v5208 = vadd.f32 0.0, %v5207
        %v5209 = vpop.f32.mrf.mxu0
        %v5210 = vpop.f32.mrf.mxu0
        %v5211 = vadd.f32 0.0, %v5210
        %v5212 = vpop.f32.mrf.mxu0
        %5213 = vmatprep.mubr.bf16.mxu0 0
        %5214 = vmatmul.mubr.bf16.gmra.mxu0 %v5152
        %v5215 = vpop.f32.mrf.mxu0
        %v5216 = vadd.f32 0.0, %v5215
        %v5217 = vpop.f32.mrf.mxu0
        %v5218 = vpop.f32.mrf.mxu0
        %v5219 = vadd.f32 0.0, %v5218
        %v5220 = vpop.f32.mrf.mxu0
        %5221 = vmatprep.mubr.bf16.mxu0 0
        %5222 = vmatmul.mubr.bf16.gmra.mxu0 %v5153
        %v5223 = vpop.f32.mrf.mxu0
        %v5224 = vadd.f32 0.0, %v5223
        %v5225 = vpop.f32.mrf.mxu0
        %v5226 = vpop.f32.mrf.mxu0
        %v5227 = vadd.f32 0.0, %v5226
        %v5228 = vpop.f32.mrf.mxu0
        %5229 = vmatprep.mubr.bf16.mxu0 0
        %5230 = vmatmul.mubr.bf16.gmra.mxu0 %v5154
        %v5231 = vpop.f32.mrf.mxu0
        %v5232 = vadd.f32 0.0, %v5231
        %v5233 = vpop.f32.mrf.mxu0
        %v5234 = vpop.f32.mrf.mxu0
        %v5235 = vadd.f32 0.0, %v5234
        %v5236 = vpop.f32.mrf.mxu0
        %5237 = vmatprep.mubr.bf16.mxu0 0
        %5238 = vmatmul.mubr.bf16.gmra.mxu0 %v5155
        %v5239 = vpop.f32.mrf.mxu0
        %v5240 = vadd.f32 0.0, %v5239
        %v5241 = vpop.f32.mrf.mxu0
        %v5242 = vpop.f32.mrf.mxu0
        %v5243 = vadd.f32 0.0, %v5242
        %v5244 = vpop.f32.mrf.mxu0
        %5245 = vmatprep.mubr.bf16.mxu0 0
        %5246 = vmatmul.mubr.bf16.gmra.mxu0 %v5156
        %v5247 = vpop.f32.mrf.mxu0
        %v5248 = vadd.f32 0.0, %v5247
        %v5249 = vpop.f32.mrf.mxu0
        %v5250 = vpop.f32.mrf.mxu0
        %v5251 = vadd.f32 0.0, %v5250
        %v5252 = vpop.f32.mrf.mxu0
        %5253 = vdwg.mxu0
        %v5254 = vpack.c.bf16 %v5195, %v5192
        %v5255 = vpack.c.bf16 %v5203, %v5200
        %v5256 = vpack.c.bf16 %v5211, %v5208
        %v5257 = vpack.c.bf16 %v5219, %v5216
        %v5258 = vpack.c.bf16 %v5227, %v5224
        %v5259 = vpack.c.bf16 %v5235, %v5232
        %v5260 = vpack.c.bf16 %v5243, %v5240
        %v5261 = vpack.c.bf16 %v5251, %v5248
        %5270 = vrot.lane.b32.xlu0 %v3604, 64
        %v5271 = vpop.permute.xlu0 %5270
        %5272 = vrot.lane.b32.xlu0 %v3613, 64
        %v5273 = vpop.permute.xlu0 %5272
        %5274 = vrot.lane.b32.xlu0 %v3622, 64
        %v5275 = vpop.permute.xlu0 %5274
        %5276 = vrot.lane.b32.xlu0 %v3631, 64
        %v5277 = vpop.permute.xlu0 %5276
        %5278 = vrot.lane.b32.xlu0 %v3640, 64
        %v5279 = vpop.permute.xlu0 %5278
        %5280 = vrot.lane.b32.xlu0 %v3649, 64
        %v5281 = vpop.permute.xlu0 %5280
        %5282 = vrot.lane.b32.xlu0 %v3658, 64
        %v5283 = vpop.permute.xlu0 %5282
        %5284 = vrot.lane.b32.xlu0 %v3667, 64
        %v5285 = vpop.permute.xlu0 %5284
        %5294 = vrot.lane.b32.xlu0 %v3607, 64
        %v5295 = vpop.permute.xlu0 %5294
        %5296 = vrot.lane.b32.xlu0 %v3616, 64
        %v5297 = vpop.permute.xlu0 %5296
        %5298 = vrot.lane.b32.xlu0 %v3625, 64
        %v5299 = vpop.permute.xlu0 %5298
        %5300 = vrot.lane.b32.xlu0 %v3634, 64
        %v5301 = vpop.permute.xlu0 %5300
        %5302 = vrot.lane.b32.xlu0 %v3643, 64
        %v5303 = vpop.permute.xlu0 %5302
        %5304 = vrot.lane.b32.xlu0 %v3652, 64
        %v5305 = vpop.permute.xlu0 %5304
        %5306 = vrot.lane.b32.xlu0 %v3661, 64
        %v5307 = vpop.permute.xlu0 %5306
        %5308 = vrot.lane.b32.xlu0 %v3670, 64
        %v5309 = vpop.permute.xlu0 %5308
        %v5311 = vsel %vm3879, %v5271, 0
        %v5314 = vsel %vm3879, %v5273, 0
        %v5317 = vsel %vm3879, %v5275, 0
        %v5320 = vsel %vm3879, %v5277, 0
        %v5323 = vsel %vm3879, %v5279, 0
        %v5326 = vsel %vm3879, %v5281, 0
        %v5329 = vsel %vm3879, %v5283, 0
        %v5332 = vsel %vm3879, %v5285, 0
        %v5335 = vsel %vm3879, %v5295, 0
        %v5338 = vsel %vm3879, %v5297, 0
        %v5341 = vsel %vm3879, %v5299, 0
        %v5344 = vsel %vm3879, %v5301, 0
        %v5347 = vsel %vm3879, %v5303, 0
        %v5350 = vsel %vm3879, %v5305, 0
        %v5353 = vsel %vm3879, %v5307, 0
        %v5356 = vsel %vm3879, %v5309, 0
        %5358 = vmatprep.subr.bf16.mxu0 0
        %5359 = vmatpush1.bf16.xpose.msra.mxu0 %v5356
        %5360 = vmatprep.subr.bf16.mxu0 0
        %5361 = vmatpush1.bf16.xpose.msra.mxu0 %v5353
        %5362 = vmatprep.subr.bf16.mxu0 0
        %5363 = vmatpush1.bf16.xpose.msra.mxu0 %v5350
        %5364 = vmatprep.subr.bf16.mxu0 0
        %5365 = vmatpush1.bf16.xpose.msra.mxu0 %v5347
        %5366 = vmatprep.subr.bf16.mxu0 0
        %5367 = vmatpush1.bf16.xpose.msra.mxu0 %v5344
        %5368 = vmatprep.subr.bf16.mxu0 0
        %5369 = vmatpush1.bf16.xpose.msra.mxu0 %v5341
        %5370 = vmatprep.subr.bf16.mxu0 0
        %5371 = vmatpush1.bf16.xpose.msra.mxu0 %v5338
        %5372 = vmatprep.subr.bf16.mxu0 0
        %5373 = vmatpush1.bf16.xpose.msra.mxu0 %v5335
        %5374 = vmatprep.subr.bf16.mxu0 0
        %5375 = vmatpush2.bf16.xpose.msra.mxu0 0
        %5376 = vmatprep.subr.bf16.mxu0 0
        %5377 = vmatpush2.bf16.xpose.msra.mxu0 0
        %5378 = vmatprep.subr.bf16.mxu0 0
        %5379 = vmatpush2.bf16.xpose.msra.mxu0 0
        %5380 = vmatprep.subr.bf16.mxu0 0
        %5381 = vmatpush2.bf16.xpose.msra.mxu0 0
        %5382 = vmatprep.subr.bf16.mxu0 0
        %5383 = vmatpush2.bf16.xpose.msra.mxu0 0
        %5384 = vmatprep.subr.bf16.mxu0 0
        %5385 = vmatpush2.bf16.xpose.msra.mxu0 0
        %5386 = vmatprep.subr.bf16.mxu0 0
        %5387 = vmatpush2.bf16.xpose.msra.mxu0 0
        %5388 = vmatprep.subr.bf16.mxu0 0
        %5389 = vmatpush2.bf16.xpose.msra.mxu0 0
        %5390 = vmatprep.mubr.bf16.mxu0 0
        %5391 = vmatmul.mubr.bf16.gmra.mxu0 %v5311
        %v5392 = vpop.f32.mrf.mxu0
        %v5393 = vadd.f32 0.0, %v5392
        %v5394 = vpop.f32.mrf.mxu0
        %v5395 = vpop.f32.mrf.mxu0
        %v5396 = vadd.f32 0.0, %v5395
        %v5397 = vpop.f32.mrf.mxu0
        %5398 = vmatprep.mubr.bf16.mxu0 0
        %5399 = vmatmul.mubr.bf16.gmra.mxu0 %v5314
        %v5400 = vpop.f32.mrf.mxu0
        %v5401 = vadd.f32 0.0, %v5400
        %v5402 = vpop.f32.mrf.mxu0
        %v5403 = vpop.f32.mrf.mxu0
        %v5404 = vadd.f32 0.0, %v5403
        %v5405 = vpop.f32.mrf.mxu0
        %5406 = vmatprep.mubr.bf16.mxu0 0
        %5407 = vmatmul.mubr.bf16.gmra.mxu0 %v5317
        %v5408 = vpop.f32.mrf.mxu0
        %v5409 = vadd.f32 0.0, %v5408
        %v5410 = vpop.f32.mrf.mxu0
        %v5411 = vpop.f32.mrf.mxu0
        %v5412 = vadd.f32 0.0, %v5411
        %v5413 = vpop.f32.mrf.mxu0
        %5414 = vmatprep.mubr.bf16.mxu0 0
        %5415 = vmatmul.mubr.bf16.gmra.mxu0 %v5320
        %v5416 = vpop.f32.mrf.mxu0
        %v5417 = vadd.f32 0.0, %v5416
        %v5418 = vpop.f32.mrf.mxu0
        %v5419 = vpop.f32.mrf.mxu0
        %v5420 = vadd.f32 0.0, %v5419
        %v5421 = vpop.f32.mrf.mxu0
        %5422 = vmatprep.mubr.bf16.mxu0 0
        %5423 = vmatmul.mubr.bf16.gmra.mxu0 %v5323
        %v5424 = vpop.f32.mrf.mxu0
        %v5425 = vadd.f32 0.0, %v5424
        %v5426 = vpop.f32.mrf.mxu0
        %v5427 = vpop.f32.mrf.mxu0
        %v5428 = vadd.f32 0.0, %v5427
        %v5429 = vpop.f32.mrf.mxu0
        %5430 = vmatprep.mubr.bf16.mxu0 0
        %5431 = vmatmul.mubr.bf16.gmra.mxu0 %v5326
        %v5432 = vpop.f32.mrf.mxu0
        %v5433 = vadd.f32 0.0, %v5432
        %v5434 = vpop.f32.mrf.mxu0
        %v5435 = vpop.f32.mrf.mxu0
        %v5436 = vadd.f32 0.0, %v5435
        %v5437 = vpop.f32.mrf.mxu0
        %5438 = vmatprep.mubr.bf16.mxu0 0
        %5439 = vmatmul.mubr.bf16.gmra.mxu0 %v5329
        %v5440 = vpop.f32.mrf.mxu0
        %v5441 = vadd.f32 0.0, %v5440
        %v5442 = vpop.f32.mrf.mxu0
        %v5443 = vpop.f32.mrf.mxu0
        %v5444 = vadd.f32 0.0, %v5443
        %v5445 = vpop.f32.mrf.mxu0
        %5446 = vmatprep.mubr.bf16.mxu0 0
        %5447 = vmatmul.mubr.bf16.gmra.mxu0 %v5332
        %v5448 = vpop.f32.mrf.mxu0
        %v5449 = vadd.f32 0.0, %v5448
        %v5450 = vpop.f32.mrf.mxu0
        %v5451 = vpop.f32.mrf.mxu0
        %v5452 = vadd.f32 0.0, %v5451
        %v5453 = vpop.f32.mrf.mxu0
        %5454 = vdwg.mxu0
        %v5455 = vmul.f32 %v5393, 0.05103104
        %v5456 = vmul.f32 %v5396, 0.05103104
        %v5457 = vmul.f32 %v5401, 0.05103104
        %v5458 = vmul.f32 %v5404, 0.05103104
        %v5459 = vmul.f32 %v5409, 0.05103104
        %v5460 = vmul.f32 %v5412, 0.05103104
        %v5461 = vmul.f32 %v5417, 0.05103104
        %v5462 = vmul.f32 %v5420, 0.05103104
        %v5463 = vmul.f32 %v5425, 0.05103104
        %v5464 = vmul.f32 %v5428, 0.05103104
        %v5465 = vmul.f32 %v5433, 0.05103104
        %v5466 = vmul.f32 %v5436, 0.05103104
        %v5467 = vmul.f32 %v5441, 0.05103104
        %v5468 = vmul.f32 %v5444, 0.05103104
        %v5469 = vmul.f32 %v5449, 0.05103104
        %v5470 = vmul.f32 %v5452, 0.05103104
        %v5471 = vsel %vm3863, %v5455, -1e+30
        %v5472 = vsel %vm3864, %v5456, -1e+30
        %v5473 = vsel %vm3865, %v5457, -1e+30
        %v5474 = vsel %vm3866, %v5458, -1e+30
        %v5475 = vsel %vm3867, %v5459, -1e+30
        %v5476 = vsel %vm3868, %v5460, -1e+30
        %v5477 = vsel %vm3869, %v5461, -1e+30
        %v5478 = vsel %vm3870, %v5462, -1e+30
        %v5479 = vsel %vm3871, %v5463, -1e+30
        %v5480 = vsel %vm3872, %v5464, -1e+30
        %v5481 = vsel %vm3873, %v5465, -1e+30
        %v5482 = vsel %vm3874, %v5466, -1e+30
        %v5483 = vsel %vm3875, %v5467, -1e+30
        %v5484 = vsel %vm3876, %v5468, -1e+30
        %v5485 = vsel %vm3877, %v5469, -1e+30
        %v5486 = vsel %vm3878, %v5470, -1e+30
        %5487 = vmax.xlane.f32.xlu0 %v5471
        %v5488 = vpop.xlane.xlu0 %5487
        %5489 = vmax.xlane.f32.xlu0 %v5472
        %v5490 = vpop.xlane.xlu0 %5489
        %5491 = vmax.xlane.f32.xlu0 %v5473
        %v5492 = vpop.xlane.xlu0 %5491
        %5493 = vmax.xlane.f32.xlu0 %v5474
        %v5494 = vpop.xlane.xlu0 %5493
        %5495 = vmax.xlane.f32.xlu0 %v5475
        %v5496 = vpop.xlane.xlu0 %5495
        %5497 = vmax.xlane.f32.xlu0 %v5476
        %v5498 = vpop.xlane.xlu0 %5497
        %5499 = vmax.xlane.f32.xlu0 %v5477
        %v5500 = vpop.xlane.xlu0 %5499
        %5501 = vmax.xlane.f32.xlu0 %v5478
        %v5502 = vpop.xlane.xlu0 %5501
        %5503 = vmax.xlane.f32.xlu0 %v5479
        %v5504 = vpop.xlane.xlu0 %5503
        %5505 = vmax.xlane.f32.xlu0 %v5480
        %v5506 = vpop.xlane.xlu0 %5505
        %5507 = vmax.xlane.f32.xlu0 %v5481
        %v5508 = vpop.xlane.xlu0 %5507
        %5509 = vmax.xlane.f32.xlu0 %v5482
        %v5510 = vpop.xlane.xlu0 %5509
        %5511 = vmax.xlane.f32.xlu0 %v5483
        %v5512 = vpop.xlane.xlu0 %5511
        %5513 = vmax.xlane.f32.xlu0 %v5484
        %v5514 = vpop.xlane.xlu0 %5513
        %5515 = vmax.xlane.f32.xlu0 %v5485
        %v5516 = vpop.xlane.xlu0 %5515
        %5517 = vmax.xlane.f32.xlu0 %v5486
        %v5518 = vpop.xlane.xlu0 %5517
        %v5519 = vsub.f32 %v5471, %v5488
        %v5520 = vsub.f32 %v5472, %v5490
        %v5521 = vsub.f32 %v5473, %v5492
        %v5522 = vsub.f32 %v5474, %v5494
        %v5523 = vsub.f32 %v5475, %v5496
        %v5524 = vsub.f32 %v5476, %v5498
        %v5525 = vsub.f32 %v5477, %v5500
        %v5526 = vsub.f32 %v5478, %v5502
        %v5527 = vsub.f32 %v5479, %v5504
        %v5528 = vsub.f32 %v5480, %v5506
        %v5529 = vsub.f32 %v5481, %v5508
        %v5530 = vsub.f32 %v5482, %v5510
        %v5531 = vsub.f32 %v5483, %v5512
        %v5532 = vsub.f32 %v5484, %v5514
        %v5533 = vsub.f32 %v5485, %v5516
        %v5534 = vsub.f32 %v5486, %v5518
        %v5535 = vmul.f32 %v5519, 1.442695
        %v5536 = vpow.pop %v5535
        %v5537 = vmul.f32 %v5520, 1.442695
        %v5538 = vpow.pop %v5537
        %v5539 = vmul.f32 %v5521, 1.442695
        %v5540 = vpow.pop %v5539
        %v5541 = vmul.f32 %v5522, 1.442695
        %v5542 = vpow.pop %v5541
        %v5543 = vmul.f32 %v5523, 1.442695
        %v5544 = vpow.pop %v5543
        %v5545 = vmul.f32 %v5524, 1.442695
        %v5546 = vpow.pop %v5545
        %v5547 = vmul.f32 %v5525, 1.442695
        %v5548 = vpow.pop %v5547
        %v5549 = vmul.f32 %v5526, 1.442695
        %v5550 = vpow.pop %v5549
        %v5551 = vmul.f32 %v5527, 1.442695
        %v5552 = vpow.pop %v5551
        %v5553 = vmul.f32 %v5528, 1.442695
        %v5554 = vpow.pop %v5553
        %v5555 = vmul.f32 %v5529, 1.442695
        %v5556 = vpow.pop %v5555
        %v5557 = vmul.f32 %v5530, 1.442695
        %v5558 = vpow.pop %v5557
        %v5559 = vmul.f32 %v5531, 1.442695
        %v5560 = vpow.pop %v5559
        %v5561 = vmul.f32 %v5532, 1.442695
        %v5562 = vpow.pop %v5561
        %v5563 = vmul.f32 %v5533, 1.442695
        %v5564 = vpow.pop %v5563
        %v5565 = vmul.f32 %v5534, 1.442695
        %v5566 = vpow.pop %v5565
        %5567 = vadd.xlane.f32.xlu0 %v5536
        %v5568 = vpop.xlane.xlu0 %5567
        %5569 = vadd.xlane.f32.xlu0 %v5538
        %v5570 = vpop.xlane.xlu0 %5569
        %5571 = vadd.xlane.f32.xlu0 %v5540
        %v5572 = vpop.xlane.xlu0 %5571
        %5573 = vadd.xlane.f32.xlu0 %v5542
        %v5574 = vpop.xlane.xlu0 %5573
        %5575 = vadd.xlane.f32.xlu0 %v5544
        %v5576 = vpop.xlane.xlu0 %5575
        %5577 = vadd.xlane.f32.xlu0 %v5546
        %v5578 = vpop.xlane.xlu0 %5577
        %5579 = vadd.xlane.f32.xlu0 %v5548
        %v5580 = vpop.xlane.xlu0 %5579
        %5581 = vadd.xlane.f32.xlu0 %v5550
        %v5582 = vpop.xlane.xlu0 %5581
        %5583 = vadd.xlane.f32.xlu0 %v5552
        %v5584 = vpop.xlane.xlu0 %5583
        %5585 = vadd.xlane.f32.xlu0 %v5554
        %v5586 = vpop.xlane.xlu0 %5585
        %5587 = vadd.xlane.f32.xlu0 %v5556
        %v5588 = vpop.xlane.xlu0 %5587
        %5589 = vadd.xlane.f32.xlu0 %v5558
        %v5590 = vpop.xlane.xlu0 %5589
        %5591 = vadd.xlane.f32.xlu0 %v5560
        %v5592 = vpop.xlane.xlu0 %5591
        %5593 = vadd.xlane.f32.xlu0 %v5562
        %v5594 = vpop.xlane.xlu0 %5593
        %5595 = vadd.xlane.f32.xlu0 %v5564
        %v5596 = vpop.xlane.xlu0 %5595
        %5597 = vadd.xlane.f32.xlu0 %v5566
        %v5598 = vpop.xlane.xlu0 %5597
        %v5599 = vrcp.pop %v5568
        %v5600 = vrcp.pop %v5570
        %v5601 = vrcp.pop %v5572
        %v5602 = vrcp.pop %v5574
        %v5603 = vrcp.pop %v5576
        %v5604 = vrcp.pop %v5578
        %v5605 = vrcp.pop %v5580
        %v5606 = vrcp.pop %v5582
        %v5607 = vrcp.pop %v5584
        %v5608 = vrcp.pop %v5586
        %v5609 = vrcp.pop %v5588
        %v5610 = vrcp.pop %v5590
        %v5611 = vrcp.pop %v5592
        %v5612 = vrcp.pop %v5594
        %v5613 = vrcp.pop %v5596
        %v5614 = vrcp.pop %v5598
        %v5615 = vmul.f32 %v5536, %v5599
        %v5616 = vmul.f32 %v5538, %v5600
        %v5617 = vmul.f32 %v5540, %v5601
        %v5618 = vmul.f32 %v5542, %v5602
        %v5619 = vmul.f32 %v5544, %v5603
        %v5620 = vmul.f32 %v5546, %v5604
        %v5621 = vmul.f32 %v5548, %v5605
        %v5622 = vmul.f32 %v5550, %v5606
        %v5623 = vmul.f32 %v5552, %v5607
        %v5624 = vmul.f32 %v5554, %v5608
        %v5625 = vmul.f32 %v5556, %v5609
        %v5626 = vmul.f32 %v5558, %v5610
        %v5627 = vmul.f32 %v5560, %v5611
        %v5628 = vmul.f32 %v5562, %v5612
        %v5629 = vmul.f32 %v5564, %v5613
        %v5630 = vmul.f32 %v5566, %v5614
        %v5631 = vpack.c.bf16 %v5616, %v5615
        %v5632 = vpack.c.bf16 %v5618, %v5617
        %v5633 = vpack.c.bf16 %v5620, %v5619
        %v5634 = vpack.c.bf16 %v5622, %v5621
        %v5635 = vpack.c.bf16 %v5624, %v5623
        %v5636 = vpack.c.bf16 %v5626, %v5625
        %v5637 = vpack.c.bf16 %v5628, %v5627
        %v5638 = vpack.c.bf16 %v5630, %v5629
        %5647 = vrot.lane.b32.xlu0 %v3610, 64
        %v5648 = vpop.permute.xlu0 %5647
        %5649 = vrot.lane.b32.xlu0 %v3619, 64
        %v5650 = vpop.permute.xlu0 %5649
        %5651 = vrot.lane.b32.xlu0 %v3628, 64
        %v5652 = vpop.permute.xlu0 %5651
        %5653 = vrot.lane.b32.xlu0 %v3637, 64
        %v5654 = vpop.permute.xlu0 %5653
        %5655 = vrot.lane.b32.xlu0 %v3646, 64
        %v5656 = vpop.permute.xlu0 %5655
        %5657 = vrot.lane.b32.xlu0 %v3655, 64
        %v5658 = vpop.permute.xlu0 %5657
        %5659 = vrot.lane.b32.xlu0 %v3664, 64
        %v5660 = vpop.permute.xlu0 %5659
        %5661 = vrot.lane.b32.xlu0 %v3673, 64
        %v5662 = vpop.permute.xlu0 %5661
        %5671 = vmatprep.subr.bf16.mxu0 0
        %5672 = vmatpush1.bf16.msra.mxu0 %v5662
        %5673 = vmatprep.subr.bf16.mxu0 0
        %5674 = vmatpush1.bf16.msra.mxu0 %v5660
        %5675 = vmatprep.subr.bf16.mxu0 0
        %5676 = vmatpush1.bf16.msra.mxu0 %v5658
        %5677 = vmatprep.subr.bf16.mxu0 0
        %5678 = vmatpush1.bf16.msra.mxu0 %v5656
        %5679 = vmatprep.subr.bf16.mxu0 0
        %5680 = vmatpush1.bf16.msra.mxu0 %v5654
        %5681 = vmatprep.subr.bf16.mxu0 0
        %5682 = vmatpush1.bf16.msra.mxu0 %v5652
        %5683 = vmatprep.subr.bf16.mxu0 0
        %5684 = vmatpush1.bf16.msra.mxu0 %v5650
        %5685 = vmatprep.subr.bf16.mxu0 0
        %5686 = vmatpush1.bf16.msra.mxu0 %v5648
        %5687 = vmatprep.subr.bf16.mxu0 0
        %5688 = vmatpush2.bf16.msra.mxu0 0
        %5689 = vmatprep.subr.bf16.mxu0 0
        %5690 = vmatpush2.bf16.msra.mxu0 0
        %5691 = vmatprep.subr.bf16.mxu0 0
        %5692 = vmatpush2.bf16.msra.mxu0 0
        %5693 = vmatprep.subr.bf16.mxu0 0
        %5694 = vmatpush2.bf16.msra.mxu0 0
        %5695 = vmatprep.subr.bf16.mxu0 0
        %5696 = vmatpush2.bf16.msra.mxu0 0
        %5697 = vmatprep.subr.bf16.mxu0 0
        %5698 = vmatpush2.bf16.msra.mxu0 0
        %5699 = vmatprep.subr.bf16.mxu0 0
        %5700 = vmatpush2.bf16.msra.mxu0 0
        %5701 = vmatprep.subr.bf16.mxu0 0
        %5702 = vmatpush2.bf16.msra.mxu0 0
        %5703 = vmatprep.mubr.bf16.mxu0 0
        %5704 = vmatmul.mubr.bf16.gmra.mxu0 %v5631
        %v5705 = vpop.f32.mrf.mxu0
        %v5706 = vadd.f32 0.0, %v5705
        %v5707 = vpop.f32.mrf.mxu0
        %v5708 = vpop.f32.mrf.mxu0
        %v5709 = vadd.f32 0.0, %v5708
        %v5710 = vpop.f32.mrf.mxu0
        %5711 = vmatprep.mubr.bf16.mxu0 0
        %5712 = vmatmul.mubr.bf16.gmra.mxu0 %v5632
        %v5713 = vpop.f32.mrf.mxu0
        %v5714 = vadd.f32 0.0, %v5713
        %v5715 = vpop.f32.mrf.mxu0
        %v5716 = vpop.f32.mrf.mxu0
        %v5717 = vadd.f32 0.0, %v5716
        %v5718 = vpop.f32.mrf.mxu0
        %5719 = vmatprep.mubr.bf16.mxu0 0
        %5720 = vmatmul.mubr.bf16.gmra.mxu0 %v5633
        %v5721 = vpop.f32.mrf.mxu0
        %v5722 = vadd.f32 0.0, %v5721
        %v5723 = vpop.f32.mrf.mxu0
        %v5724 = vpop.f32.mrf.mxu0
        %v5725 = vadd.f32 0.0, %v5724
        %v5726 = vpop.f32.mrf.mxu0
        %5727 = vmatprep.mubr.bf16.mxu0 0
        %5728 = vmatmul.mubr.bf16.gmra.mxu0 %v5634
        %v5729 = vpop.f32.mrf.mxu0
        %v5730 = vadd.f32 0.0, %v5729
        %v5731 = vpop.f32.mrf.mxu0
        %v5732 = vpop.f32.mrf.mxu0
        %v5733 = vadd.f32 0.0, %v5732
        %v5734 = vpop.f32.mrf.mxu0
        %5735 = vmatprep.mubr.bf16.mxu0 0
        %5736 = vmatmul.mubr.bf16.gmra.mxu0 %v5635
        %v5737 = vpop.f32.mrf.mxu0
        %v5738 = vadd.f32 0.0, %v5737
        %v5739 = vpop.f32.mrf.mxu0
        %v5740 = vpop.f32.mrf.mxu0
        %v5741 = vadd.f32 0.0, %v5740
        %v5742 = vpop.f32.mrf.mxu0
        %5743 = vmatprep.mubr.bf16.mxu0 0
        %5744 = vmatmul.mubr.bf16.gmra.mxu0 %v5636
        %v5745 = vpop.f32.mrf.mxu0
        %v5746 = vadd.f32 0.0, %v5745
        %v5747 = vpop.f32.mrf.mxu0
        %v5748 = vpop.f32.mrf.mxu0
        %v5749 = vadd.f32 0.0, %v5748
        %v5750 = vpop.f32.mrf.mxu0
        %5751 = vmatprep.mubr.bf16.mxu0 0
        %5752 = vmatmul.mubr.bf16.gmra.mxu0 %v5637
        %v5753 = vpop.f32.mrf.mxu0
        %v5754 = vadd.f32 0.0, %v5753
        %v5755 = vpop.f32.mrf.mxu0
        %v5756 = vpop.f32.mrf.mxu0
        %v5757 = vadd.f32 0.0, %v5756
        %v5758 = vpop.f32.mrf.mxu0
        %5759 = vmatprep.mubr.bf16.mxu0 0
        %5760 = vmatmul.mubr.bf16.gmra.mxu0 %v5638
        %v5761 = vpop.f32.mrf.mxu0
        %v5762 = vadd.f32 0.0, %v5761
        %v5763 = vpop.f32.mrf.mxu0
        %v5764 = vpop.f32.mrf.mxu0
        %v5765 = vadd.f32 0.0, %v5764
        %v5766 = vpop.f32.mrf.mxu0
        %5767 = vdwg.mxu0
        %v5768 = vpack.c.bf16 %v5709, %v5706
        %v5769 = vpack.c.bf16 %v5717, %v5714
        %v5770 = vpack.c.bf16 %v5725, %v5722
        %v5771 = vpack.c.bf16 %v5733, %v5730
        %v5772 = vpack.c.bf16 %v5741, %v5738
        %v5773 = vpack.c.bf16 %v5749, %v5746
        %v5774 = vpack.c.bf16 %v5757, %v5754
        %v5775 = vpack.c.bf16 %v5765, %v5762
        %v5777 = vsel %vm3879, %v3605, 0
        %v5780 = vsel %vm3879, %v3614, 0
        %v5783 = vsel %vm3879, %v3623, 0
        %v5786 = vsel %vm3879, %v3632, 0
        %v5789 = vsel %vm3879, %v3641, 0
        %v5792 = vsel %vm3879, %v3650, 0
        %v5795 = vsel %vm3879, %v3659, 0
        %v5798 = vsel %vm3879, %v3668, 0
        %v5801 = vsel %vm3879, %v3608, 0
        %v5804 = vsel %vm3879, %v3617, 0
        %v5807 = vsel %vm3879, %v3626, 0
        %v5810 = vsel %vm3879, %v3635, 0
        %v5813 = vsel %vm3879, %v3644, 0
        %v5816 = vsel %vm3879, %v3653, 0
        %v5819 = vsel %vm3879, %v3662, 0
        %v5822 = vsel %vm3879, %v3671, 0
        %5824 = vmatprep.subr.bf16.mxu0 0
        %5825 = vmatpush1.bf16.xpose.msra.mxu0 %v5822
        %5826 = vmatprep.subr.bf16.mxu0 0
        %5827 = vmatpush1.bf16.xpose.msra.mxu0 %v5819
        %5828 = vmatprep.subr.bf16.mxu0 0
        %5829 = vmatpush1.bf16.xpose.msra.mxu0 %v5816
        %5830 = vmatprep.subr.bf16.mxu0 0
        %5831 = vmatpush1.bf16.xpose.msra.mxu0 %v5813
        %5832 = vmatprep.subr.bf16.mxu0 0
        %5833 = vmatpush1.bf16.xpose.msra.mxu0 %v5810
        %5834 = vmatprep.subr.bf16.mxu0 0
        %5835 = vmatpush1.bf16.xpose.msra.mxu0 %v5807
        %5836 = vmatprep.subr.bf16.mxu0 0
        %5837 = vmatpush1.bf16.xpose.msra.mxu0 %v5804
        %5838 = vmatprep.subr.bf16.mxu0 0
        %5839 = vmatpush1.bf16.xpose.msra.mxu0 %v5801
        %5840 = vmatprep.subr.bf16.mxu0 0
        %5841 = vmatpush2.bf16.xpose.msra.mxu0 0
        %5842 = vmatprep.subr.bf16.mxu0 0
        %5843 = vmatpush2.bf16.xpose.msra.mxu0 0
        %5844 = vmatprep.subr.bf16.mxu0 0
        %5845 = vmatpush2.bf16.xpose.msra.mxu0 0
        %5846 = vmatprep.subr.bf16.mxu0 0
        %5847 = vmatpush2.bf16.xpose.msra.mxu0 0
        %5848 = vmatprep.subr.bf16.mxu0 0
        %5849 = vmatpush2.bf16.xpose.msra.mxu0 0
        %5850 = vmatprep.subr.bf16.mxu0 0
        %5851 = vmatpush2.bf16.xpose.msra.mxu0 0
        %5852 = vmatprep.subr.bf16.mxu0 0
        %5853 = vmatpush2.bf16.xpose.msra.mxu0 0
        %5854 = vmatprep.subr.bf16.mxu0 0
        %5855 = vmatpush2.bf16.xpose.msra.mxu0 0
        %5856 = vmatprep.mubr.bf16.mxu0 0
        %5857 = vmatmul.mubr.bf16.gmra.mxu0 %v5777
        %v5858 = vpop.f32.mrf.mxu0
        %v5859 = vadd.f32 0.0, %v5858
        %v5860 = vpop.f32.mrf.mxu0
        %v5861 = vpop.f32.mrf.mxu0
        %v5862 = vadd.f32 0.0, %v5861
        %v5863 = vpop.f32.mrf.mxu0
        %5864 = vmatprep.mubr.bf16.mxu0 0
        %5865 = vmatmul.mubr.bf16.gmra.mxu0 %v5780
        %v5866 = vpop.f32.mrf.mxu0
        %v5867 = vadd.f32 0.0, %v5866
        %v5868 = vpop.f32.mrf.mxu0
        %v5869 = vpop.f32.mrf.mxu0
        %v5870 = vadd.f32 0.0, %v5869
        %v5871 = vpop.f32.mrf.mxu0
        %5872 = vmatprep.mubr.bf16.mxu0 0
        %5873 = vmatmul.mubr.bf16.gmra.mxu0 %v5783
        %v5874 = vpop.f32.mrf.mxu0
        %v5875 = vadd.f32 0.0, %v5874
        %v5876 = vpop.f32.mrf.mxu0
        %v5877 = vpop.f32.mrf.mxu0
        %v5878 = vadd.f32 0.0, %v5877
        %v5879 = vpop.f32.mrf.mxu0
        %5880 = vmatprep.mubr.bf16.mxu0 0
        %5881 = vmatmul.mubr.bf16.gmra.mxu0 %v5786
        %v5882 = vpop.f32.mrf.mxu0
        %v5883 = vadd.f32 0.0, %v5882
        %v5884 = vpop.f32.mrf.mxu0
        %v5885 = vpop.f32.mrf.mxu0
        %v5886 = vadd.f32 0.0, %v5885
        %v5887 = vpop.f32.mrf.mxu0
        %5888 = vmatprep.mubr.bf16.mxu0 0
        %5889 = vmatmul.mubr.bf16.gmra.mxu0 %v5789
        %v5890 = vpop.f32.mrf.mxu0
        %v5891 = vadd.f32 0.0, %v5890
        %v5892 = vpop.f32.mrf.mxu0
        %v5893 = vpop.f32.mrf.mxu0
        %v5894 = vadd.f32 0.0, %v5893
        %v5895 = vpop.f32.mrf.mxu0
        %5896 = vmatprep.mubr.bf16.mxu0 0
        %5897 = vmatmul.mubr.bf16.gmra.mxu0 %v5792
        %v5898 = vpop.f32.mrf.mxu0
        %v5899 = vadd.f32 0.0, %v5898
        %v5900 = vpop.f32.mrf.mxu0
        %v5901 = vpop.f32.mrf.mxu0
        %v5902 = vadd.f32 0.0, %v5901
        %v5903 = vpop.f32.mrf.mxu0
        %5904 = vmatprep.mubr.bf16.mxu0 0
        %5905 = vmatmul.mubr.bf16.gmra.mxu0 %v5795
        %v5906 = vpop.f32.mrf.mxu0
        %v5907 = vadd.f32 0.0, %v5906
        %v5908 = vpop.f32.mrf.mxu0
        %v5909 = vpop.f32.mrf.mxu0
        %v5910 = vadd.f32 0.0, %v5909
        %v5911 = vpop.f32.mrf.mxu0
        %5912 = vmatprep.mubr.bf16.mxu0 0
        %5913 = vmatmul.mubr.bf16.gmra.mxu0 %v5798
        %v5914 = vpop.f32.mrf.mxu0
        %v5915 = vadd.f32 0.0, %v5914
        %v5916 = vpop.f32.mrf.mxu0
        %v5917 = vpop.f32.mrf.mxu0
        %v5918 = vadd.f32 0.0, %v5917
        %v5919 = vpop.f32.mrf.mxu0
        %5920 = vdwg.mxu0
        %v5921 = vmul.f32 %v5859, 0.05103104
        %v5922 = vmul.f32 %v5862, 0.05103104
        %v5923 = vmul.f32 %v5867, 0.05103104
        %v5924 = vmul.f32 %v5870, 0.05103104
        %v5925 = vmul.f32 %v5875, 0.05103104
        %v5926 = vmul.f32 %v5878, 0.05103104
        %v5927 = vmul.f32 %v5883, 0.05103104
        %v5928 = vmul.f32 %v5886, 0.05103104
        %v5929 = vmul.f32 %v5891, 0.05103104
        %v5930 = vmul.f32 %v5894, 0.05103104
        %v5931 = vmul.f32 %v5899, 0.05103104
        %v5932 = vmul.f32 %v5902, 0.05103104
        %v5933 = vmul.f32 %v5907, 0.05103104
        %v5934 = vmul.f32 %v5910, 0.05103104
        %v5935 = vmul.f32 %v5915, 0.05103104
        %v5936 = vmul.f32 %v5918, 0.05103104
        %v5937 = vsel %vm3863, %v5921, -1e+30
        %v5938 = vsel %vm3864, %v5922, -1e+30
        %v5939 = vsel %vm3865, %v5923, -1e+30
        %v5940 = vsel %vm3866, %v5924, -1e+30
        %v5941 = vsel %vm3867, %v5925, -1e+30
        %v5942 = vsel %vm3868, %v5926, -1e+30
        %v5943 = vsel %vm3869, %v5927, -1e+30
        %v5944 = vsel %vm3870, %v5928, -1e+30
        %v5945 = vsel %vm3871, %v5929, -1e+30
        %v5946 = vsel %vm3872, %v5930, -1e+30
        %v5947 = vsel %vm3873, %v5931, -1e+30
        %v5948 = vsel %vm3874, %v5932, -1e+30
        %v5949 = vsel %vm3875, %v5933, -1e+30
        %v5950 = vsel %vm3876, %v5934, -1e+30
        %v5951 = vsel %vm3877, %v5935, -1e+30
        %v5952 = vsel %vm3878, %v5936, -1e+30
        %5953 = vmax.xlane.f32.xlu0 %v5937
        %v5954 = vpop.xlane.xlu0 %5953
        %5955 = vmax.xlane.f32.xlu0 %v5938
        %v5956 = vpop.xlane.xlu0 %5955
        %5957 = vmax.xlane.f32.xlu0 %v5939
        %v5958 = vpop.xlane.xlu0 %5957
        %5959 = vmax.xlane.f32.xlu0 %v5940
        %v5960 = vpop.xlane.xlu0 %5959
        %5961 = vmax.xlane.f32.xlu0 %v5941
        %v5962 = vpop.xlane.xlu0 %5961
        %5963 = vmax.xlane.f32.xlu0 %v5942
        %v5964 = vpop.xlane.xlu0 %5963
        %5965 = vmax.xlane.f32.xlu0 %v5943
        %v5966 = vpop.xlane.xlu0 %5965
        %5967 = vmax.xlane.f32.xlu0 %v5944
        %v5968 = vpop.xlane.xlu0 %5967
        %5969 = vmax.xlane.f32.xlu0 %v5945
        %v5970 = vpop.xlane.xlu0 %5969
        %5971 = vmax.xlane.f32.xlu0 %v5946
        %v5972 = vpop.xlane.xlu0 %5971
        %5973 = vmax.xlane.f32.xlu0 %v5947
        %v5974 = vpop.xlane.xlu0 %5973
        %5975 = vmax.xlane.f32.xlu0 %v5948
        %v5976 = vpop.xlane.xlu0 %5975
        %5977 = vmax.xlane.f32.xlu0 %v5949
        %v5978 = vpop.xlane.xlu0 %5977
        %5979 = vmax.xlane.f32.xlu0 %v5950
        %v5980 = vpop.xlane.xlu0 %5979
        %5981 = vmax.xlane.f32.xlu0 %v5951
        %v5982 = vpop.xlane.xlu0 %5981
        %5983 = vmax.xlane.f32.xlu0 %v5952
        %v5984 = vpop.xlane.xlu0 %5983
        %v5985 = vsub.f32 %v5937, %v5954
        %v5986 = vsub.f32 %v5938, %v5956
        %v5987 = vsub.f32 %v5939, %v5958
        %v5988 = vsub.f32 %v5940, %v5960
        %v5989 = vsub.f32 %v5941, %v5962
        %v5990 = vsub.f32 %v5942, %v5964
        %v5991 = vsub.f32 %v5943, %v5966
        %v5992 = vsub.f32 %v5944, %v5968
        %v5993 = vsub.f32 %v5945, %v5970
        %v5994 = vsub.f32 %v5946, %v5972
        %v5995 = vsub.f32 %v5947, %v5974
        %v5996 = vsub.f32 %v5948, %v5976
        %v5997 = vsub.f32 %v5949, %v5978
        %v5998 = vsub.f32 %v5950, %v5980
        %v5999 = vsub.f32 %v5951, %v5982
        %v6000 = vsub.f32 %v5952, %v5984
        %v6001 = vmul.f32 %v5985, 1.442695
        %v6002 = vpow.pop %v6001
        %v6003 = vmul.f32 %v5986, 1.442695
        %v6004 = vpow.pop %v6003
        %v6005 = vmul.f32 %v5987, 1.442695
        %v6006 = vpow.pop %v6005
        %v6007 = vmul.f32 %v5988, 1.442695
        %v6008 = vpow.pop %v6007
        %v6009 = vmul.f32 %v5989, 1.442695
        %v6010 = vpow.pop %v6009
        %v6011 = vmul.f32 %v5990, 1.442695
        %v6012 = vpow.pop %v6011
        %v6013 = vmul.f32 %v5991, 1.442695
        %v6014 = vpow.pop %v6013
        %v6015 = vmul.f32 %v5992, 1.442695
        %v6016 = vpow.pop %v6015
        %v6017 = vmul.f32 %v5993, 1.442695
        %v6018 = vpow.pop %v6017
        %v6019 = vmul.f32 %v5994, 1.442695
        %v6020 = vpow.pop %v6019
        %v6021 = vmul.f32 %v5995, 1.442695
        %v6022 = vpow.pop %v6021
        %v6023 = vmul.f32 %v5996, 1.442695
        %v6024 = vpow.pop %v6023
        %v6025 = vmul.f32 %v5997, 1.442695
        %v6026 = vpow.pop %v6025
        %v6027 = vmul.f32 %v5998, 1.442695
        %v6028 = vpow.pop %v6027
        %v6029 = vmul.f32 %v5999, 1.442695
        %v6030 = vpow.pop %v6029
        %v6031 = vmul.f32 %v6000, 1.442695
        %v6032 = vpow.pop %v6031
        %6033 = vadd.xlane.f32.xlu0 %v6002
        %v6034 = vpop.xlane.xlu0 %6033
        %6035 = vadd.xlane.f32.xlu0 %v6004
        %v6036 = vpop.xlane.xlu0 %6035
        %6037 = vadd.xlane.f32.xlu0 %v6006
        %v6038 = vpop.xlane.xlu0 %6037
        %6039 = vadd.xlane.f32.xlu0 %v6008
        %v6040 = vpop.xlane.xlu0 %6039
        %6041 = vadd.xlane.f32.xlu0 %v6010
        %v6042 = vpop.xlane.xlu0 %6041
        %6043 = vadd.xlane.f32.xlu0 %v6012
        %v6044 = vpop.xlane.xlu0 %6043
        %6045 = vadd.xlane.f32.xlu0 %v6014
        %v6046 = vpop.xlane.xlu0 %6045
        %6047 = vadd.xlane.f32.xlu0 %v6016
        %v6048 = vpop.xlane.xlu0 %6047
        %6049 = vadd.xlane.f32.xlu0 %v6018
        %v6050 = vpop.xlane.xlu0 %6049
        %6051 = vadd.xlane.f32.xlu0 %v6020
        %v6052 = vpop.xlane.xlu0 %6051
        %6053 = vadd.xlane.f32.xlu0 %v6022
        %v6054 = vpop.xlane.xlu0 %6053
        %6055 = vadd.xlane.f32.xlu0 %v6024
        %v6056 = vpop.xlane.xlu0 %6055
        %6057 = vadd.xlane.f32.xlu0 %v6026
        %v6058 = vpop.xlane.xlu0 %6057
        %6059 = vadd.xlane.f32.xlu0 %v6028
        %v6060 = vpop.xlane.xlu0 %6059
        %6061 = vadd.xlane.f32.xlu0 %v6030
        %v6062 = vpop.xlane.xlu0 %6061
        %6063 = vadd.xlane.f32.xlu0 %v6032
        %v6064 = vpop.xlane.xlu0 %6063
        %v6065 = vrcp.pop %v6034
        %v6066 = vrcp.pop %v6036
        %v6067 = vrcp.pop %v6038
        %v6068 = vrcp.pop %v6040
        %v6069 = vrcp.pop %v6042
        %v6070 = vrcp.pop %v6044
        %v6071 = vrcp.pop %v6046
        %v6072 = vrcp.pop %v6048
        %v6073 = vrcp.pop %v6050
        %v6074 = vrcp.pop %v6052
        %v6075 = vrcp.pop %v6054
        %v6076 = vrcp.pop %v6056
        %v6077 = vrcp.pop %v6058
        %v6078 = vrcp.pop %v6060
        %v6079 = vrcp.pop %v6062
        %v6080 = vrcp.pop %v6064
        %v6081 = vmul.f32 %v6002, %v6065
        %v6082 = vmul.f32 %v6004, %v6066
        %v6083 = vmul.f32 %v6006, %v6067
        %v6084 = vmul.f32 %v6008, %v6068
        %v6085 = vmul.f32 %v6010, %v6069
        %v6086 = vmul.f32 %v6012, %v6070
        %v6087 = vmul.f32 %v6014, %v6071
        %v6088 = vmul.f32 %v6016, %v6072
        %v6089 = vmul.f32 %v6018, %v6073
        %v6090 = vmul.f32 %v6020, %v6074
        %v6091 = vmul.f32 %v6022, %v6075
        %v6092 = vmul.f32 %v6024, %v6076
        %v6093 = vmul.f32 %v6026, %v6077
        %v6094 = vmul.f32 %v6028, %v6078
        %v6095 = vmul.f32 %v6030, %v6079
        %v6096 = vmul.f32 %v6032, %v6080
        %v6097 = vpack.c.bf16 %v6082, %v6081
        %v6098 = vpack.c.bf16 %v6084, %v6083
        %v6099 = vpack.c.bf16 %v6086, %v6085
        %v6100 = vpack.c.bf16 %v6088, %v6087
        %v6101 = vpack.c.bf16 %v6090, %v6089
        %v6102 = vpack.c.bf16 %v6092, %v6091
        %v6103 = vpack.c.bf16 %v6094, %v6093
        %v6104 = vpack.c.bf16 %v6096, %v6095
        %6105 = vmatprep.subr.bf16.mxu0 0
        %6106 = vmatpush1.bf16.msra.mxu0 %v3674
        %6107 = vmatprep.subr.bf16.mxu0 0
        %6108 = vmatpush1.bf16.msra.mxu0 %v3665
        %6109 = vmatprep.subr.bf16.mxu0 0
        %6110 = vmatpush1.bf16.msra.mxu0 %v3656
        %6111 = vmatprep.subr.bf16.mxu0 0
        %6112 = vmatpush1.bf16.msra.mxu0 %v3647
        %6113 = vmatprep.subr.bf16.mxu0 0
        %6114 = vmatpush1.bf16.msra.mxu0 %v3638
        %6115 = vmatprep.subr.bf16.mxu0 0
        %6116 = vmatpush1.bf16.msra.mxu0 %v3629
        %6117 = vmatprep.subr.bf16.mxu0 0
        %6118 = vmatpush1.bf16.msra.mxu0 %v3620
        %6119 = vmatprep.subr.bf16.mxu0 0
        %6120 = vmatpush1.bf16.msra.mxu0 %v3611
        %6121 = vmatprep.subr.bf16.mxu0 0
        %6122 = vmatpush2.bf16.msra.mxu0 0
        %6123 = vmatprep.subr.bf16.mxu0 0
        %6124 = vmatpush2.bf16.msra.mxu0 0
        %6125 = vmatprep.subr.bf16.mxu0 0
        %6126 = vmatpush2.bf16.msra.mxu0 0
        %6127 = vmatprep.subr.bf16.mxu0 0
        %6128 = vmatpush2.bf16.msra.mxu0 0
        %6129 = vmatprep.subr.bf16.mxu0 0
        %6130 = vmatpush2.bf16.msra.mxu0 0
        %6131 = vmatprep.subr.bf16.mxu0 0
        %6132 = vmatpush2.bf16.msra.mxu0 0
        %6133 = vmatprep.subr.bf16.mxu0 0
        %6134 = vmatpush2.bf16.msra.mxu0 0
        %6135 = vmatprep.subr.bf16.mxu0 0
        %6136 = vmatpush2.bf16.msra.mxu0 0
        %6137 = vmatprep.mubr.bf16.mxu0 0
        %6138 = vmatmul.mubr.bf16.gmra.mxu0 %v6097
        %v6139 = vpop.f32.mrf.mxu0
        %v6140 = vadd.f32 0.0, %v6139
        %v6141 = vpop.f32.mrf.mxu0
        %v6142 = vpop.f32.mrf.mxu0
        %v6143 = vadd.f32 0.0, %v6142
        %v6144 = vpop.f32.mrf.mxu0
        %6145 = vmatprep.mubr.bf16.mxu0 0
        %6146 = vmatmul.mubr.bf16.gmra.mxu0 %v6098
        %v6147 = vpop.f32.mrf.mxu0
        %v6148 = vadd.f32 0.0, %v6147
        %v6149 = vpop.f32.mrf.mxu0
        %v6150 = vpop.f32.mrf.mxu0
        %v6151 = vadd.f32 0.0, %v6150
        %v6152 = vpop.f32.mrf.mxu0
        %6153 = vmatprep.mubr.bf16.mxu0 0
        %6154 = vmatmul.mubr.bf16.gmra.mxu0 %v6099
        %v6155 = vpop.f32.mrf.mxu0
        %v6156 = vadd.f32 0.0, %v6155
        %v6157 = vpop.f32.mrf.mxu0
        %v6158 = vpop.f32.mrf.mxu0
        %v6159 = vadd.f32 0.0, %v6158
        %v6160 = vpop.f32.mrf.mxu0
        %6161 = vmatprep.mubr.bf16.mxu0 0
        %6162 = vmatmul.mubr.bf16.gmra.mxu0 %v6100
        %v6163 = vpop.f32.mrf.mxu0
        %v6164 = vadd.f32 0.0, %v6163
        %v6165 = vpop.f32.mrf.mxu0
        %v6166 = vpop.f32.mrf.mxu0
        %v6167 = vadd.f32 0.0, %v6166
        %v6168 = vpop.f32.mrf.mxu0
        %6169 = vmatprep.mubr.bf16.mxu0 0
        %6170 = vmatmul.mubr.bf16.gmra.mxu0 %v6101
        %v6171 = vpop.f32.mrf.mxu0
        %v6172 = vadd.f32 0.0, %v6171
        %v6173 = vpop.f32.mrf.mxu0
        %v6174 = vpop.f32.mrf.mxu0
        %v6175 = vadd.f32 0.0, %v6174
        %v6176 = vpop.f32.mrf.mxu0
        %6177 = vmatprep.mubr.bf16.mxu0 0
        %6178 = vmatmul.mubr.bf16.gmra.mxu0 %v6102
        %v6179 = vpop.f32.mrf.mxu0
        %v6180 = vadd.f32 0.0, %v6179
        %v6181 = vpop.f32.mrf.mxu0
        %v6182 = vpop.f32.mrf.mxu0
        %v6183 = vadd.f32 0.0, %v6182
        %v6184 = vpop.f32.mrf.mxu0
        %6185 = vmatprep.mubr.bf16.mxu0 0
        %6186 = vmatmul.mubr.bf16.gmra.mxu0 %v6103
        %v6187 = vpop.f32.mrf.mxu0
        %v6188 = vadd.f32 0.0, %v6187
        %v6189 = vpop.f32.mrf.mxu0
        %v6190 = vpop.f32.mrf.mxu0
        %v6191 = vadd.f32 0.0, %v6190
        %v6192 = vpop.f32.mrf.mxu0
        %6193 = vmatprep.mubr.bf16.mxu0 0
        %6194 = vmatmul.mubr.bf16.gmra.mxu0 %v6104
        %v6195 = vpop.f32.mrf.mxu0
        %v6196 = vadd.f32 0.0, %v6195
        %v6197 = vpop.f32.mrf.mxu0
        %v6198 = vpop.f32.mrf.mxu0
        %v6199 = vadd.f32 0.0, %v6198
        %v6200 = vpop.f32.mrf.mxu0
        %6201 = vdwg.mxu0
        %v6202 = vpack.c.bf16 %v6143, %v6140
        %v6203 = vpack.c.bf16 %v6151, %v6148
        %v6204 = vpack.c.bf16 %v6159, %v6156
        %v6205 = vpack.c.bf16 %v6167, %v6164
        %v6206 = vpack.c.bf16 %v6175, %v6172
        %v6207 = vpack.c.bf16 %v6183, %v6180
        %v6208 = vpack.c.bf16 %v6191, %v6188
        %v6209 = vpack.c.bf16 %v6199, %v6196
        %6218 = vrot.lane.b32.xlu0 %v3605, 64
        %v6219 = vpop.permute.xlu0 %6218
        %6220 = vrot.lane.b32.xlu0 %v3614, 64
        %v6221 = vpop.permute.xlu0 %6220
        %6222 = vrot.lane.b32.xlu0 %v3623, 64
        %v6223 = vpop.permute.xlu0 %6222
        %6224 = vrot.lane.b32.xlu0 %v3632, 64
        %v6225 = vpop.permute.xlu0 %6224
        %6226 = vrot.lane.b32.xlu0 %v3641, 64
        %v6227 = vpop.permute.xlu0 %6226
        %6228 = vrot.lane.b32.xlu0 %v3650, 64
        %v6229 = vpop.permute.xlu0 %6228
        %6230 = vrot.lane.b32.xlu0 %v3659, 64
        %v6231 = vpop.permute.xlu0 %6230
        %6232 = vrot.lane.b32.xlu0 %v3668, 64
        %v6233 = vpop.permute.xlu0 %6232
        %6242 = vrot.lane.b32.xlu0 %v3608, 64
        %v6243 = vpop.permute.xlu0 %6242
        %6244 = vrot.lane.b32.xlu0 %v3617, 64
        %v6245 = vpop.permute.xlu0 %6244
        %6246 = vrot.lane.b32.xlu0 %v3626, 64
        %v6247 = vpop.permute.xlu0 %6246
        %6248 = vrot.lane.b32.xlu0 %v3635, 64
        %v6249 = vpop.permute.xlu0 %6248
        %6250 = vrot.lane.b32.xlu0 %v3644, 64
        %v6251 = vpop.permute.xlu0 %6250
        %6252 = vrot.lane.b32.xlu0 %v3653, 64
        %v6253 = vpop.permute.xlu0 %6252
        %6254 = vrot.lane.b32.xlu0 %v3662, 64
        %v6255 = vpop.permute.xlu0 %6254
        %6256 = vrot.lane.b32.xlu0 %v3671, 64
        %v6257 = vpop.permute.xlu0 %6256
        %v6259 = vsel %vm3879, %v6219, 0
        %v6262 = vsel %vm3879, %v6221, 0
        %v6265 = vsel %vm3879, %v6223, 0
        %v6268 = vsel %vm3879, %v6225, 0
        %v6271 = vsel %vm3879, %v6227, 0
        %v6274 = vsel %vm3879, %v6229, 0
        %v6277 = vsel %vm3879, %v6231, 0
        %v6280 = vsel %vm3879, %v6233, 0
        %v6283 = vsel %vm3879, %v6243, 0
        %v6286 = vsel %vm3879, %v6245, 0
        %v6289 = vsel %vm3879, %v6247, 0
        %v6292 = vsel %vm3879, %v6249, 0
        %v6295 = vsel %vm3879, %v6251, 0
        %v6298 = vsel %vm3879, %v6253, 0
        %v6301 = vsel %vm3879, %v6255, 0
        %v6304 = vsel %vm3879, %v6257, 0
        %6306 = vmatprep.subr.bf16.mxu0 0
        %6307 = vmatpush1.bf16.xpose.msra.mxu0 %v6304
        %6308 = vmatprep.subr.bf16.mxu0 0
        %6309 = vmatpush1.bf16.xpose.msra.mxu0 %v6301
        %6310 = vmatprep.subr.bf16.mxu0 0
        %6311 = vmatpush1.bf16.xpose.msra.mxu0 %v6298
        %6312 = vmatprep.subr.bf16.mxu0 0
        %6313 = vmatpush1.bf16.xpose.msra.mxu0 %v6295
        %6314 = vmatprep.subr.bf16.mxu0 0
        %6315 = vmatpush1.bf16.xpose.msra.mxu0 %v6292
        %6316 = vmatprep.subr.bf16.mxu0 0
        %6317 = vmatpush1.bf16.xpose.msra.mxu0 %v6289
        %6318 = vmatprep.subr.bf16.mxu0 0
        %6319 = vmatpush1.bf16.xpose.msra.mxu0 %v6286
        %6320 = vmatprep.subr.bf16.mxu0 0
        %6321 = vmatpush1.bf16.xpose.msra.mxu0 %v6283
        %6322 = vmatprep.subr.bf16.mxu0 0
        %6323 = vmatpush2.bf16.xpose.msra.mxu0 0
        %6324 = vmatprep.subr.bf16.mxu0 0
        %6325 = vmatpush2.bf16.xpose.msra.mxu0 0
        %6326 = vmatprep.subr.bf16.mxu0 0
        %6327 = vmatpush2.bf16.xpose.msra.mxu0 0
        %6328 = vmatprep.subr.bf16.mxu0 0
        %6329 = vmatpush2.bf16.xpose.msra.mxu0 0
        %6330 = vmatprep.subr.bf16.mxu0 0
        %6331 = vmatpush2.bf16.xpose.msra.mxu0 0
        %6332 = vmatprep.subr.bf16.mxu0 0
        %6333 = vmatpush2.bf16.xpose.msra.mxu0 0
        %6334 = vmatprep.subr.bf16.mxu0 0
        %6335 = vmatpush2.bf16.xpose.msra.mxu0 0
        %6336 = vmatprep.subr.bf16.mxu0 0
        %6337 = vmatpush2.bf16.xpose.msra.mxu0 0
        %6338 = vmatprep.mubr.bf16.mxu0 0
        %6339 = vmatmul.mubr.bf16.gmra.mxu0 %v6259
        %v6340 = vpop.f32.mrf.mxu0
        %v6341 = vadd.f32 0.0, %v6340
        %v6342 = vpop.f32.mrf.mxu0
        %v6343 = vpop.f32.mrf.mxu0
        %v6344 = vadd.f32 0.0, %v6343
        %v6345 = vpop.f32.mrf.mxu0
        %6346 = vmatprep.mubr.bf16.mxu0 0
        %6347 = vmatmul.mubr.bf16.gmra.mxu0 %v6262
        %v6348 = vpop.f32.mrf.mxu0
        %v6349 = vadd.f32 0.0, %v6348
        %v6350 = vpop.f32.mrf.mxu0
        %v6351 = vpop.f32.mrf.mxu0
        %v6352 = vadd.f32 0.0, %v6351
        %v6353 = vpop.f32.mrf.mxu0
        %6354 = vmatprep.mubr.bf16.mxu0 0
        %6355 = vmatmul.mubr.bf16.gmra.mxu0 %v6265
        %v6356 = vpop.f32.mrf.mxu0
        %v6357 = vadd.f32 0.0, %v6356
        %v6358 = vpop.f32.mrf.mxu0
        %v6359 = vpop.f32.mrf.mxu0
        %v6360 = vadd.f32 0.0, %v6359
        %v6361 = vpop.f32.mrf.mxu0
        %6362 = vmatprep.mubr.bf16.mxu0 0
        %6363 = vmatmul.mubr.bf16.gmra.mxu0 %v6268
        %v6364 = vpop.f32.mrf.mxu0
        %v6365 = vadd.f32 0.0, %v6364
        %v6366 = vpop.f32.mrf.mxu0
        %v6367 = vpop.f32.mrf.mxu0
        %v6368 = vadd.f32 0.0, %v6367
        %v6369 = vpop.f32.mrf.mxu0
        %6370 = vmatprep.mubr.bf16.mxu0 0
        %6371 = vmatmul.mubr.bf16.gmra.mxu0 %v6271
        %v6372 = vpop.f32.mrf.mxu0
        %v6373 = vadd.f32 0.0, %v6372
        %v6374 = vpop.f32.mrf.mxu0
        %v6375 = vpop.f32.mrf.mxu0
        %v6376 = vadd.f32 0.0, %v6375
        %v6377 = vpop.f32.mrf.mxu0
        %6378 = vmatprep.mubr.bf16.mxu0 0
        %6379 = vmatmul.mubr.bf16.gmra.mxu0 %v6274
        %v6380 = vpop.f32.mrf.mxu0
        %v6381 = vadd.f32 0.0, %v6380
        %v6382 = vpop.f32.mrf.mxu0
        %v6383 = vpop.f32.mrf.mxu0
        %v6384 = vadd.f32 0.0, %v6383
        %v6385 = vpop.f32.mrf.mxu0
        %6386 = vmatprep.mubr.bf16.mxu0 0
        %6387 = vmatmul.mubr.bf16.gmra.mxu0 %v6277
        %v6388 = vpop.f32.mrf.mxu0
        %v6389 = vadd.f32 0.0, %v6388
        %v6390 = vpop.f32.mrf.mxu0
        %v6391 = vpop.f32.mrf.mxu0
        %v6392 = vadd.f32 0.0, %v6391
        %v6393 = vpop.f32.mrf.mxu0
        %6394 = vmatprep.mubr.bf16.mxu0 0
        %6395 = vmatmul.mubr.bf16.gmra.mxu0 %v6280
        %v6396 = vpop.f32.mrf.mxu0
        %v6397 = vadd.f32 0.0, %v6396
        %v6398 = vpop.f32.mrf.mxu0
        %v6399 = vpop.f32.mrf.mxu0
        %v6400 = vadd.f32 0.0, %v6399
        %v6401 = vpop.f32.mrf.mxu0
        %6402 = vdwg.mxu0
        %v6403 = vmul.f32 %v6341, 0.05103104
        %v6404 = vmul.f32 %v6344, 0.05103104
        %v6405 = vmul.f32 %v6349, 0.05103104
        %v6406 = vmul.f32 %v6352, 0.05103104
        %v6407 = vmul.f32 %v6357, 0.05103104
        %v6408 = vmul.f32 %v6360, 0.05103104
        %v6409 = vmul.f32 %v6365, 0.05103104
        %v6410 = vmul.f32 %v6368, 0.05103104
        %v6411 = vmul.f32 %v6373, 0.05103104
        %v6412 = vmul.f32 %v6376, 0.05103104
        %v6413 = vmul.f32 %v6381, 0.05103104
        %v6414 = vmul.f32 %v6384, 0.05103104
        %v6415 = vmul.f32 %v6389, 0.05103104
        %v6416 = vmul.f32 %v6392, 0.05103104
        %v6417 = vmul.f32 %v6397, 0.05103104
        %v6418 = vmul.f32 %v6400, 0.05103104
        %v6419 = vsel %vm3863, %v6403, -1e+30
        %v6420 = vsel %vm3864, %v6404, -1e+30
        %v6421 = vsel %vm3865, %v6405, -1e+30
        %v6422 = vsel %vm3866, %v6406, -1e+30
        %v6423 = vsel %vm3867, %v6407, -1e+30
        %v6424 = vsel %vm3868, %v6408, -1e+30
        %v6425 = vsel %vm3869, %v6409, -1e+30
        %v6426 = vsel %vm3870, %v6410, -1e+30
        %v6427 = vsel %vm3871, %v6411, -1e+30
        %v6428 = vsel %vm3872, %v6412, -1e+30
        %v6429 = vsel %vm3873, %v6413, -1e+30
        %v6430 = vsel %vm3874, %v6414, -1e+30
        %v6431 = vsel %vm3875, %v6415, -1e+30
        %v6432 = vsel %vm3876, %v6416, -1e+30
        %v6433 = vsel %vm3877, %v6417, -1e+30
        %v6434 = vsel %vm3878, %v6418, -1e+30
        %6435 = vmax.xlane.f32.xlu0 %v6419
        %v6436 = vpop.xlane.xlu0 %6435
        %6437 = vmax.xlane.f32.xlu0 %v6420
        %v6438 = vpop.xlane.xlu0 %6437
        %6439 = vmax.xlane.f32.xlu0 %v6421
        %v6440 = vpop.xlane.xlu0 %6439
        %6441 = vmax.xlane.f32.xlu0 %v6422
        %v6442 = vpop.xlane.xlu0 %6441
        %6443 = vmax.xlane.f32.xlu0 %v6423
        %v6444 = vpop.xlane.xlu0 %6443
        %6445 = vmax.xlane.f32.xlu0 %v6424
        %v6446 = vpop.xlane.xlu0 %6445
        %6447 = vmax.xlane.f32.xlu0 %v6425
        %v6448 = vpop.xlane.xlu0 %6447
        %6449 = vmax.xlane.f32.xlu0 %v6426
        %v6450 = vpop.xlane.xlu0 %6449
        %6451 = vmax.xlane.f32.xlu0 %v6427
        %v6452 = vpop.xlane.xlu0 %6451
        %6453 = vmax.xlane.f32.xlu0 %v6428
        %v6454 = vpop.xlane.xlu0 %6453
        %6455 = vmax.xlane.f32.xlu0 %v6429
        %v6456 = vpop.xlane.xlu0 %6455
        %6457 = vmax.xlane.f32.xlu0 %v6430
        %v6458 = vpop.xlane.xlu0 %6457
        %6459 = vmax.xlane.f32.xlu0 %v6431
        %v6460 = vpop.xlane.xlu0 %6459
        %6461 = vmax.xlane.f32.xlu0 %v6432
        %v6462 = vpop.xlane.xlu0 %6461
        %6463 = vmax.xlane.f32.xlu0 %v6433
        %v6464 = vpop.xlane.xlu0 %6463
        %6465 = vmax.xlane.f32.xlu0 %v6434
        %v6466 = vpop.xlane.xlu0 %6465
        %v6467 = vsub.f32 %v6419, %v6436
        %v6468 = vsub.f32 %v6420, %v6438
        %v6469 = vsub.f32 %v6421, %v6440
        %v6470 = vsub.f32 %v6422, %v6442
        %v6471 = vsub.f32 %v6423, %v6444
        %v6472 = vsub.f32 %v6424, %v6446
        %v6473 = vsub.f32 %v6425, %v6448
        %v6474 = vsub.f32 %v6426, %v6450
        %v6475 = vsub.f32 %v6427, %v6452
        %v6476 = vsub.f32 %v6428, %v6454
        %v6477 = vsub.f32 %v6429, %v6456
        %v6478 = vsub.f32 %v6430, %v6458
        %v6479 = vsub.f32 %v6431, %v6460
        %v6480 = vsub.f32 %v6432, %v6462
        %v6481 = vsub.f32 %v6433, %v6464
        %v6482 = vsub.f32 %v6434, %v6466
        %v6483 = vmul.f32 %v6467, 1.442695
        %v6484 = vpow.pop %v6483
        %v6485 = vmul.f32 %v6468, 1.442695
        %v6486 = vpow.pop %v6485
        %v6487 = vmul.f32 %v6469, 1.442695
        %v6488 = vpow.pop %v6487
        %v6489 = vmul.f32 %v6470, 1.442695
        %v6490 = vpow.pop %v6489
        %v6491 = vmul.f32 %v6471, 1.442695
        %v6492 = vpow.pop %v6491
        %v6493 = vmul.f32 %v6472, 1.442695
        %v6494 = vpow.pop %v6493
        %v6495 = vmul.f32 %v6473, 1.442695
        %v6496 = vpow.pop %v6495
        %v6497 = vmul.f32 %v6474, 1.442695
        %v6498 = vpow.pop %v6497
        %v6499 = vmul.f32 %v6475, 1.442695
        %v6500 = vpow.pop %v6499
        %v6501 = vmul.f32 %v6476, 1.442695
        %v6502 = vpow.pop %v6501
        %v6503 = vmul.f32 %v6477, 1.442695
        %v6504 = vpow.pop %v6503
        %v6505 = vmul.f32 %v6478, 1.442695
        %v6506 = vpow.pop %v6505
        %v6507 = vmul.f32 %v6479, 1.442695
        %v6508 = vpow.pop %v6507
        %v6509 = vmul.f32 %v6480, 1.442695
        %v6510 = vpow.pop %v6509
        %v6511 = vmul.f32 %v6481, 1.442695
        %v6512 = vpow.pop %v6511
        %v6513 = vmul.f32 %v6482, 1.442695
        %v6514 = vpow.pop %v6513
        %6515 = vadd.xlane.f32.xlu0 %v6484
        %v6516 = vpop.xlane.xlu0 %6515
        %6517 = vadd.xlane.f32.xlu0 %v6486
        %v6518 = vpop.xlane.xlu0 %6517
        %6519 = vadd.xlane.f32.xlu0 %v6488
        %v6520 = vpop.xlane.xlu0 %6519
        %6521 = vadd.xlane.f32.xlu0 %v6490
        %v6522 = vpop.xlane.xlu0 %6521
        %6523 = vadd.xlane.f32.xlu0 %v6492
        %v6524 = vpop.xlane.xlu0 %6523
        %6525 = vadd.xlane.f32.xlu0 %v6494
        %v6526 = vpop.xlane.xlu0 %6525
        %6527 = vadd.xlane.f32.xlu0 %v6496
        %v6528 = vpop.xlane.xlu0 %6527
        %6529 = vadd.xlane.f32.xlu0 %v6498
        %v6530 = vpop.xlane.xlu0 %6529
        %6531 = vadd.xlane.f32.xlu0 %v6500
        %v6532 = vpop.xlane.xlu0 %6531
        %6533 = vadd.xlane.f32.xlu0 %v6502
        %v6534 = vpop.xlane.xlu0 %6533
        %6535 = vadd.xlane.f32.xlu0 %v6504
        %v6536 = vpop.xlane.xlu0 %6535
        %6537 = vadd.xlane.f32.xlu0 %v6506
        %v6538 = vpop.xlane.xlu0 %6537
        %6539 = vadd.xlane.f32.xlu0 %v6508
        %v6540 = vpop.xlane.xlu0 %6539
        %6541 = vadd.xlane.f32.xlu0 %v6510
        %v6542 = vpop.xlane.xlu0 %6541
        %6543 = vadd.xlane.f32.xlu0 %v6512
        %v6544 = vpop.xlane.xlu0 %6543
        %6545 = vadd.xlane.f32.xlu0 %v6514
        %v6546 = vpop.xlane.xlu0 %6545
        %v6547 = vrcp.pop %v6516
        %v6548 = vrcp.pop %v6518
        %v6549 = vrcp.pop %v6520
        %v6550 = vrcp.pop %v6522
        %v6551 = vrcp.pop %v6524
        %v6552 = vrcp.pop %v6526
        %v6553 = vrcp.pop %v6528
        %v6554 = vrcp.pop %v6530
        %v6555 = vrcp.pop %v6532
        %v6556 = vrcp.pop %v6534
        %v6557 = vrcp.pop %v6536
        %v6558 = vrcp.pop %v6538
        %v6559 = vrcp.pop %v6540
        %v6560 = vrcp.pop %v6542
        %v6561 = vrcp.pop %v6544
        %v6562 = vrcp.pop %v6546
        %v6563 = vmul.f32 %v6484, %v6547
        %v6564 = vmul.f32 %v6486, %v6548
        %v6565 = vmul.f32 %v6488, %v6549
        %v6566 = vmul.f32 %v6490, %v6550
        %v6567 = vmul.f32 %v6492, %v6551
        %v6568 = vmul.f32 %v6494, %v6552
        %v6569 = vmul.f32 %v6496, %v6553
        %v6570 = vmul.f32 %v6498, %v6554
        %v6571 = vmul.f32 %v6500, %v6555
        %v6572 = vmul.f32 %v6502, %v6556
        %v6573 = vmul.f32 %v6504, %v6557
        %v6574 = vmul.f32 %v6506, %v6558
        %v6575 = vmul.f32 %v6508, %v6559
        %v6576 = vmul.f32 %v6510, %v6560
        %v6577 = vmul.f32 %v6512, %v6561
        %v6578 = vmul.f32 %v6514, %v6562
        %v6579 = vpack.c.bf16 %v6564, %v6563
        %v6580 = vpack.c.bf16 %v6566, %v6565
        %v6581 = vpack.c.bf16 %v6568, %v6567
        %v6582 = vpack.c.bf16 %v6570, %v6569
        %v6583 = vpack.c.bf16 %v6572, %v6571
        %v6584 = vpack.c.bf16 %v6574, %v6573
        %v6585 = vpack.c.bf16 %v6576, %v6575
        %v6586 = vpack.c.bf16 %v6578, %v6577
        %6595 = vrot.lane.b32.xlu0 %v3611, 64
        %v6596 = vpop.permute.xlu0 %6595
        %6597 = vrot.lane.b32.xlu0 %v3620, 64
        %v6598 = vpop.permute.xlu0 %6597
        %6599 = vrot.lane.b32.xlu0 %v3629, 64
        %v6600 = vpop.permute.xlu0 %6599
        %6601 = vrot.lane.b32.xlu0 %v3638, 64
        %v6602 = vpop.permute.xlu0 %6601
        %6603 = vrot.lane.b32.xlu0 %v3647, 64
        %v6604 = vpop.permute.xlu0 %6603
        %6605 = vrot.lane.b32.xlu0 %v3656, 64
        %v6606 = vpop.permute.xlu0 %6605
        %6607 = vrot.lane.b32.xlu0 %v3665, 64
        %v6608 = vpop.permute.xlu0 %6607
        %6609 = vrot.lane.b32.xlu0 %v3674, 64
        %v6610 = vpop.permute.xlu0 %6609
        %6619 = vmatprep.subr.bf16.mxu0 0
        %6620 = vmatpush1.bf16.msra.mxu0 %v6610
        %6621 = vmatprep.subr.bf16.mxu0 0
        %6622 = vmatpush1.bf16.msra.mxu0 %v6608
        %6623 = vmatprep.subr.bf16.mxu0 0
        %6624 = vmatpush1.bf16.msra.mxu0 %v6606
        %6625 = vmatprep.subr.bf16.mxu0 0
        %6626 = vmatpush1.bf16.msra.mxu0 %v6604
        %6627 = vmatprep.subr.bf16.mxu0 0
        %6628 = vmatpush1.bf16.msra.mxu0 %v6602
        %6629 = vmatprep.subr.bf16.mxu0 0
        %6630 = vmatpush1.bf16.msra.mxu0 %v6600
        %6631 = vmatprep.subr.bf16.mxu0 0
        %6632 = vmatpush1.bf16.msra.mxu0 %v6598
        %6633 = vmatprep.subr.bf16.mxu0 0
        %6634 = vmatpush1.bf16.msra.mxu0 %v6596
        %6635 = vmatprep.subr.bf16.mxu0 0
        %6636 = vmatpush2.bf16.msra.mxu0 0
        %6637 = vmatprep.subr.bf16.mxu0 0
        %6638 = vmatpush2.bf16.msra.mxu0 0
        %6639 = vmatprep.subr.bf16.mxu0 0
        %6640 = vmatpush2.bf16.msra.mxu0 0
        %6641 = vmatprep.subr.bf16.mxu0 0
        %6642 = vmatpush2.bf16.msra.mxu0 0
        %6643 = vmatprep.subr.bf16.mxu0 0
        %6644 = vmatpush2.bf16.msra.mxu0 0
        %6645 = vmatprep.subr.bf16.mxu0 0
        %6646 = vmatpush2.bf16.msra.mxu0 0
        %6647 = vmatprep.subr.bf16.mxu0 0
        %6648 = vmatpush2.bf16.msra.mxu0 0
        %6649 = vmatprep.subr.bf16.mxu0 0
        %6650 = vmatpush2.bf16.msra.mxu0 0
        %6651 = vmatprep.mubr.bf16.mxu0 0
        %6652 = vmatmul.mubr.bf16.gmra.mxu0 %v6579
        %v6653 = vpop.f32.mrf.mxu0
        %v6654 = vadd.f32 0.0, %v6653
        %v6655 = vpop.f32.mrf.mxu0
        %v6656 = vpop.f32.mrf.mxu0
        %v6657 = vadd.f32 0.0, %v6656
        %v6658 = vpop.f32.mrf.mxu0
        %6659 = vmatprep.mubr.bf16.mxu0 0
        %6660 = vmatmul.mubr.bf16.gmra.mxu0 %v6580
        %v6661 = vpop.f32.mrf.mxu0
        %v6662 = vadd.f32 0.0, %v6661
        %v6663 = vpop.f32.mrf.mxu0
        %v6664 = vpop.f32.mrf.mxu0
        %v6665 = vadd.f32 0.0, %v6664
        %v6666 = vpop.f32.mrf.mxu0
        %6667 = vmatprep.mubr.bf16.mxu0 0
        %6668 = vmatmul.mubr.bf16.gmra.mxu0 %v6581
        %v6669 = vpop.f32.mrf.mxu0
        %v6670 = vadd.f32 0.0, %v6669
        %v6671 = vpop.f32.mrf.mxu0
        %v6672 = vpop.f32.mrf.mxu0
        %v6673 = vadd.f32 0.0, %v6672
        %v6674 = vpop.f32.mrf.mxu0
        %6675 = vmatprep.mubr.bf16.mxu0 0
        %6676 = vmatmul.mubr.bf16.gmra.mxu0 %v6582
        %v6677 = vpop.f32.mrf.mxu0
        %v6678 = vadd.f32 0.0, %v6677
        %v6679 = vpop.f32.mrf.mxu0
        %v6680 = vpop.f32.mrf.mxu0
        %v6681 = vadd.f32 0.0, %v6680
        %v6682 = vpop.f32.mrf.mxu0
        %6683 = vmatprep.mubr.bf16.mxu0 0
        %6684 = vmatmul.mubr.bf16.gmra.mxu0 %v6583
        %v6685 = vpop.f32.mrf.mxu0
        %v6686 = vadd.f32 0.0, %v6685
        %v6687 = vpop.f32.mrf.mxu0
        %v6688 = vpop.f32.mrf.mxu0
        %v6689 = vadd.f32 0.0, %v6688
        %v6690 = vpop.f32.mrf.mxu0
        %6691 = vmatprep.mubr.bf16.mxu0 0
        %6692 = vmatmul.mubr.bf16.gmra.mxu0 %v6584
        %v6693 = vpop.f32.mrf.mxu0
        %v6694 = vadd.f32 0.0, %v6693
        %v6695 = vpop.f32.mrf.mxu0
        %v6696 = vpop.f32.mrf.mxu0
        %v6697 = vadd.f32 0.0, %v6696
        %v6698 = vpop.f32.mrf.mxu0
        %6699 = vmatprep.mubr.bf16.mxu0 0
        %6700 = vmatmul.mubr.bf16.gmra.mxu0 %v6585
        %v6701 = vpop.f32.mrf.mxu0
        %v6702 = vadd.f32 0.0, %v6701
        %v6703 = vpop.f32.mrf.mxu0
        %v6704 = vpop.f32.mrf.mxu0
        %v6705 = vadd.f32 0.0, %v6704
        %v6706 = vpop.f32.mrf.mxu0
        %6707 = vmatprep.mubr.bf16.mxu0 0
        %6708 = vmatmul.mubr.bf16.gmra.mxu0 %v6586
        %v6709 = vpop.f32.mrf.mxu0
        %v6710 = vadd.f32 0.0, %v6709
        %v6711 = vpop.f32.mrf.mxu0
        %v6712 = vpop.f32.mrf.mxu0
        %v6713 = vadd.f32 0.0, %v6712
        %v6714 = vpop.f32.mrf.mxu0
        %6715 = vdwg.mxu0
        %v6716 = vpack.c.bf16 %v6657, %v6654
        %v6717 = vpack.c.bf16 %v6665, %v6662
        %v6718 = vpack.c.bf16 %v6673, %v6670
        %v6719 = vpack.c.bf16 %v6681, %v6678
        %v6720 = vpack.c.bf16 %v6689, %v6686
        %v6721 = vpack.c.bf16 %v6697, %v6694
        %v6722 = vpack.c.bf16 %v6705, %v6702
        %v6723 = vpack.c.bf16 %v6713, %v6710
        %6732 = vrot.lane.b32.xlu0 %v4820, 64
        %v6733 = vpop.permute.xlu0 %6732
        %6734 = vrot.lane.b32.xlu0 %v4821, 64
        %v6735 = vpop.permute.xlu0 %6734
        %6736 = vrot.lane.b32.xlu0 %v4822, 64
        %v6737 = vpop.permute.xlu0 %6736
        %6738 = vrot.lane.b32.xlu0 %v4823, 64
        %v6739 = vpop.permute.xlu0 %6738
        %6740 = vrot.lane.b32.xlu0 %v4824, 64
        %v6741 = vpop.permute.xlu0 %6740
        %6742 = vrot.lane.b32.xlu0 %v4825, 64
        %v6743 = vpop.permute.xlu0 %6742
        %6744 = vrot.lane.b32.xlu0 %v4826, 64
        %v6745 = vpop.permute.xlu0 %6744
        %6746 = vrot.lane.b32.xlu0 %v4827, 64
        %v6747 = vpop.permute.xlu0 %6746
        %6756 = vrot.lane.b32.xlu0 %v5768, 64
        %v6757 = vpop.permute.xlu0 %6756
        %6758 = vrot.lane.b32.xlu0 %v5769, 64
        %v6759 = vpop.permute.xlu0 %6758
        %6760 = vrot.lane.b32.xlu0 %v5770, 64
        %v6761 = vpop.permute.xlu0 %6760
        %6762 = vrot.lane.b32.xlu0 %v5771, 64
        %v6763 = vpop.permute.xlu0 %6762
        %6764 = vrot.lane.b32.xlu0 %v5772, 64
        %v6765 = vpop.permute.xlu0 %6764
        %6766 = vrot.lane.b32.xlu0 %v5773, 64
        %v6767 = vpop.permute.xlu0 %6766
        %6768 = vrot.lane.b32.xlu0 %v5774, 64
        %v6769 = vpop.permute.xlu0 %6768
        %6770 = vrot.lane.b32.xlu0 %v5775, 64
        %v6771 = vpop.permute.xlu0 %6770
        %6780 = vrot.lane.b32.xlu0 %v6716, 64
        %v6781 = vpop.permute.xlu0 %6780
        %6782 = vrot.lane.b32.xlu0 %v6717, 64
        %v6783 = vpop.permute.xlu0 %6782
        %6784 = vrot.lane.b32.xlu0 %v6718, 64
        %v6785 = vpop.permute.xlu0 %6784
        %6786 = vrot.lane.b32.xlu0 %v6719, 64
        %v6787 = vpop.permute.xlu0 %6786
        %6788 = vrot.lane.b32.xlu0 %v6720, 64
        %v6789 = vpop.permute.xlu0 %6788
        %6790 = vrot.lane.b32.xlu0 %v6721, 64
        %v6791 = vpop.permute.xlu0 %6790
        %6792 = vrot.lane.b32.xlu0 %v6722, 64
        %v6793 = vpop.permute.xlu0 %6792
        %6794 = vrot.lane.b32.xlu0 %v6723, 64
        %v6795 = vpop.permute.xlu0 %6794
        %v6798 = vsel %vm3879, %v4306, %v6733
        %v6802 = vsel %vm3879, %v4307, %v6735
        %v6806 = vsel %vm3879, %v4308, %v6737
        %v6810 = vsel %vm3879, %v4309, %v6739
        %v6814 = vsel %vm3879, %v4310, %v6741
        %v6818 = vsel %vm3879, %v4311, %v6743
        %v6822 = vsel %vm3879, %v4312, %v6745
        %v6826 = vsel %vm3879, %v4313, %v6747
        %v6830 = vsel %vm3879, %v5254, %v6757
        %v6834 = vsel %vm3879, %v5255, %v6759
        %v6838 = vsel %vm3879, %v5256, %v6761
        %v6842 = vsel %vm3879, %v5257, %v6763
        %v6846 = vsel %vm3879, %v5258, %v6765
        %v6850 = vsel %vm3879, %v5259, %v6767
        %v6854 = vsel %vm3879, %v5260, %v6769
        %v6858 = vsel %vm3879, %v5261, %v6771
        %v6862 = vsel %vm3879, %v6202, %v6781
        %v6866 = vsel %vm3879, %v6203, %v6783
        %v6870 = vsel %vm3879, %v6204, %v6785
        %v6874 = vsel %vm3879, %v6205, %v6787
        %v6878 = vsel %vm3879, %v6206, %v6789
        %v6882 = vsel %vm3879, %v6207, %v6791
        %v6886 = vsel %vm3879, %v6208, %v6793
        %v6890 = vsel %vm3879, %v6209, %v6795
        %v6893 = vlaneseq
        %v6894 = vshrl.u32 %v6893, 7
        %v6895 = vsub.s32 0, %v6894
        %v6896 = vrot.slane %v3843, %v6895
        %v6897 = vlaneseq
        %v6898 = vshrl.u32 %v6897, 7
        %v6899 = vsub.s32 1, %v6898
        %v6900 = vrot.slane %v3843, %v6899
        %v6901 = vlaneseq
        %v6902 = vshrl.u32 %v6901, 7
        %v6903 = vsub.s32 2, %v6902
        %v6904 = vrot.slane %v3843, %v6903
        %v7004 = vunpack.c.l.b16 %v3747
        %v7005 = vunpack.c.h.b16 %v3747
        %v7006 = vunpack.c.l.b16 %v3748
        %v7007 = vunpack.c.l.b16 %v3749
        %v7008 = vunpack.c.h.b16 %v3749
        %v7009 = vunpack.c.l.b16 %v3750
        %v7010 = vunpack.c.l.b16 %v3751
        %v7011 = vunpack.c.h.b16 %v3751
        %v7012 = vunpack.c.l.b16 %v3752
        %v7013 = vunpack.c.l.b16 %v3753
        %v7014 = vunpack.c.h.b16 %v3753
        %v7015 = vunpack.c.l.b16 %v3754
        %v7016 = vunpack.c.l.b16 %v3755
        %v7017 = vunpack.c.h.b16 %v3755
        %v7018 = vunpack.c.l.b16 %v3756
        %v7019 = vunpack.c.l.b16 %v3757
        %v7020 = vunpack.c.h.b16 %v3757
        %v7021 = vunpack.c.l.b16 %v3758
        %v7022 = vunpack.c.l.b16 %v3759
        %v7023 = vunpack.c.h.b16 %v3759
        %v7024 = vunpack.c.l.b16 %v3760
        %v7025 = vunpack.c.l.b16 %v3761
        %v7026 = vunpack.c.h.b16 %v3761
        %v7027 = vunpack.c.l.b16 %v3762
        %v7028 = vunpack.c.l.b16 %v3763
        %v7029 = vunpack.c.h.b16 %v3763
        %v7030 = vunpack.c.l.b16 %v3764
        %v7031 = vunpack.c.l.b16 %v3765
        %v7032 = vunpack.c.h.b16 %v3765
        %v7033 = vunpack.c.l.b16 %v3766
        %v7034 = vunpack.c.l.b16 %v3767
        %v7035 = vunpack.c.h.b16 %v3767
        %v7036 = vunpack.c.l.b16 %v3768
        %v7037 = vunpack.c.l.b16 %v3769
        %v7038 = vunpack.c.h.b16 %v3769
        %v7039 = vunpack.c.l.b16 %v3770
        %v7040 = vunpack.c.l.b16 %v3771
        %v7041 = vunpack.c.h.b16 %v3771
        %v7042 = vunpack.c.l.b16 %v3772
        %v7043 = vunpack.c.l.b16 %v3773
        %v7044 = vunpack.c.h.b16 %v3773
        %v7045 = vunpack.c.l.b16 %v3774
        %v7046 = vunpack.c.l.b16 %v3775
        %v7047 = vunpack.c.h.b16 %v3775
        %v7048 = vunpack.c.l.b16 %v3776
        %v7049 = vunpack.c.l.b16 %v3777
        %v7050 = vunpack.c.h.b16 %v3777
        %v7051 = vunpack.c.l.b16 %v3778
        %v7052 = vunpack.c.l.b16 %v3779
        %v7053 = vunpack.c.h.b16 %v3779
        %v7054 = vunpack.c.l.b16 %v3780
        %v7055 = vunpack.c.l.b16 %v3781
        %v7056 = vunpack.c.h.b16 %v3781
        %v7057 = vunpack.c.l.b16 %v3782
        %v7058 = vunpack.c.l.b16 %v3783
        %v7059 = vunpack.c.h.b16 %v3783
        %v7060 = vunpack.c.l.b16 %v3784
        %v7061 = vunpack.c.l.b16 %v3785
        %v7062 = vunpack.c.h.b16 %v3785
        %v7063 = vunpack.c.l.b16 %v3786
        %v7064 = vunpack.c.l.b16 %v3787
        %v7065 = vunpack.c.h.b16 %v3787
        %v7066 = vunpack.c.l.b16 %v3788
        %v7067 = vunpack.c.l.b16 %v3789
        %v7068 = vunpack.c.h.b16 %v3789
        %v7069 = vunpack.c.l.b16 %v3790
        %v7070 = vunpack.c.l.b16 %v3791
        %v7071 = vunpack.c.h.b16 %v3791
        %v7072 = vunpack.c.l.b16 %v3792
        %v7073 = vunpack.c.l.b16 %v3793
        %v7074 = vunpack.c.h.b16 %v3793
        %v7075 = vunpack.c.l.b16 %v3794
        %v7076 = vunpack.c.l.b16 %v3795
        %v7077 = vunpack.c.h.b16 %v3795
        %v7078 = vunpack.c.l.b16 %v3796
        %v7079 = vunpack.c.l.b16 %v3797
        %v7080 = vunpack.c.h.b16 %v3797
        %v7081 = vunpack.c.l.b16 %v3798
        %v7082 = vunpack.c.l.b16 %v3799
        %v7083 = vunpack.c.h.b16 %v3799
        %v7084 = vunpack.c.l.b16 %v3800
        %v7085 = vunpack.c.l.b16 %v3801
        %v7086 = vunpack.c.h.b16 %v3801
        %v7087 = vunpack.c.l.b16 %v3802
        %v7088 = vunpack.c.l.b16 %v3803
        %v7089 = vunpack.c.h.b16 %v3803
        %v7090 = vunpack.c.l.b16 %v3804
        %v7091 = vunpack.c.l.b16 %v3805
        %v7092 = vunpack.c.h.b16 %v3805
        %v7093 = vunpack.c.l.b16 %v3806
        %v7094 = vunpack.c.l.b16 %v3807
        %v7095 = vunpack.c.h.b16 %v3807
        %v7096 = vunpack.c.l.b16 %v3808
        %v7097 = vunpack.c.l.b16 %v3809
        %v7098 = vunpack.c.h.b16 %v3809
        %v7099 = vunpack.c.l.b16 %v3810
        %v7100 = vunpack.c.l.b16 %v3811
        %v7101 = vunpack.c.h.b16 %v3811
        %v7102 = vunpack.c.l.b16 %v3812
        %v7103 = vunpack.c.l.b16 %v3813
        %v7104 = vunpack.c.h.b16 %v3813
        %v7105 = vunpack.c.l.b16 %v3814
        %v7106 = vunpack.c.l.b16 %v3815
        %v7107 = vunpack.c.h.b16 %v3815
        %v7108 = vunpack.c.l.b16 %v3816
        %v7109 = vunpack.c.l.b16 %v3817
        %v7110 = vunpack.c.h.b16 %v3817
        %v7111 = vunpack.c.l.b16 %v3818
        %v7112 = vunpack.c.l.b16 %v3819
        %v7113 = vunpack.c.h.b16 %v3819
        %v7114 = vunpack.c.l.b16 %v3820
        %v7115 = vunpack.c.l.b16 %v3821
        %v7116 = vunpack.c.h.b16 %v3821
        %v7117 = vunpack.c.l.b16 %v3822
        %v7118 = vunpack.c.l.b16 %v3823
        %v7119 = vunpack.c.h.b16 %v3823
        %v7120 = vunpack.c.l.b16 %v3824
        %v7121 = vunpack.c.l.b16 %v3825
        %v7122 = vunpack.c.h.b16 %v3825
        %v7123 = vunpack.c.l.b16 %v3826
        %v7124 = vunpack.c.l.b16 %v3827
        %v7125 = vunpack.c.h.b16 %v3827
        %v7126 = vunpack.c.l.b16 %v3828
        %v7127 = vunpack.c.l.b16 %v3829
        %v7128 = vunpack.c.h.b16 %v3829
        %v7129 = vunpack.c.l.b16 %v3830
        %v7130 = vunpack.c.l.b16 %v3831
        %v7131 = vunpack.c.h.b16 %v3831
        %v7132 = vunpack.c.l.b16 %v3832
        %v7133 = vunpack.c.l.b16 %v3833
        %v7134 = vunpack.c.h.b16 %v3833
        %v7135 = vunpack.c.l.b16 %v3834
        %v7136 = vunpack.c.l.b16 %v3835
        %v7137 = vunpack.c.h.b16 %v3835
        %v7138 = vunpack.c.l.b16 %v3836
        %v7139 = vunpack.c.l.b16 %v3837
        %v7140 = vunpack.c.h.b16 %v3837
        %v7141 = vunpack.c.l.b16 %v3838
        %v7142 = vunpack.c.l.b16 %v3839
        %v7143 = vunpack.c.h.b16 %v3839
        %v7144 = vunpack.c.l.b16 %v3840
        %v7145 = vunpack.c.l.b16 %v3841
        %v7146 = vunpack.c.h.b16 %v3841
        %v7147 = vunpack.c.l.b16 %v3842
        %v7148 = vpack.c.b16 %v7007, %v7004
        %v7149 = vpack.c.b16 %v7008, %v7005
        %v7150 = vpack.c.b16 %v7009, %v7006
        %v7151 = vpack.c.b16 %v7013, %v7010
        %v7152 = vpack.c.b16 %v7014, %v7011
        %v7153 = vpack.c.b16 %v7015, %v7012
        %v7154 = vpack.c.b16 %v7019, %v7016
        %v7155 = vpack.c.b16 %v7020, %v7017
        %v7156 = vpack.c.b16 %v7021, %v7018
        %v7157 = vpack.c.b16 %v7025, %v7022
        %v7158 = vpack.c.b16 %v7026, %v7023
        %v7159 = vpack.c.b16 %v7027, %v7024
        %v7160 = vpack.c.b16 %v7031, %v7028
        %v7161 = vpack.c.b16 %v7032, %v7029
        %v7162 = vpack.c.b16 %v7033, %v7030
        %v7163 = vpack.c.b16 %v7037, %v7034
        %v7164 = vpack.c.b16 %v7038, %v7035
        %v7165 = vpack.c.b16 %v7039, %v7036
        %v7166 = vpack.c.b16 %v7043, %v7040
        %v7167 = vpack.c.b16 %v7044, %v7041
        %v7168 = vpack.c.b16 %v7045, %v7042
        %v7169 = vpack.c.b16 %v7049, %v7046
        %v7170 = vpack.c.b16 %v7050, %v7047
        %v7171 = vpack.c.b16 %v7051, %v7048
        %v7172 = vpack.c.b16 %v7055, %v7052
        %v7173 = vpack.c.b16 %v7056, %v7053
        %v7174 = vpack.c.b16 %v7057, %v7054
        %v7175 = vpack.c.b16 %v7061, %v7058
        %v7176 = vpack.c.b16 %v7062, %v7059
        %v7177 = vpack.c.b16 %v7063, %v7060
        %v7178 = vpack.c.b16 %v7067, %v7064
        %v7179 = vpack.c.b16 %v7068, %v7065
        %v7180 = vpack.c.b16 %v7069, %v7066
        %v7181 = vpack.c.b16 %v7073, %v7070
        %v7182 = vpack.c.b16 %v7074, %v7071
        %v7183 = vpack.c.b16 %v7075, %v7072
        %v7184 = vpack.c.b16 %v7079, %v7076
        %v7185 = vpack.c.b16 %v7080, %v7077
        %v7186 = vpack.c.b16 %v7081, %v7078
        %v7187 = vpack.c.b16 %v7085, %v7082
        %v7188 = vpack.c.b16 %v7086, %v7083
        %v7189 = vpack.c.b16 %v7087, %v7084
        %v7190 = vpack.c.b16 %v7091, %v7088
        %v7191 = vpack.c.b16 %v7092, %v7089
        %v7192 = vpack.c.b16 %v7093, %v7090
        %v7193 = vpack.c.b16 %v7097, %v7094
        %v7194 = vpack.c.b16 %v7098, %v7095
        %v7195 = vpack.c.b16 %v7099, %v7096
        %v7196 = vpack.c.b16 %v7103, %v7100
        %v7197 = vpack.c.b16 %v7104, %v7101
        %v7198 = vpack.c.b16 %v7105, %v7102
        %v7199 = vpack.c.b16 %v7109, %v7106
        %v7200 = vpack.c.b16 %v7110, %v7107
        %v7201 = vpack.c.b16 %v7111, %v7108
        %v7202 = vpack.c.b16 %v7115, %v7112
        %v7203 = vpack.c.b16 %v7116, %v7113
        %v7204 = vpack.c.b16 %v7117, %v7114
        %v7205 = vpack.c.b16 %v7121, %v7118
        %v7206 = vpack.c.b16 %v7122, %v7119
        %v7207 = vpack.c.b16 %v7123, %v7120
        %v7208 = vpack.c.b16 %v7127, %v7124
        %v7209 = vpack.c.b16 %v7128, %v7125
        %v7210 = vpack.c.b16 %v7129, %v7126
        %v7211 = vpack.c.b16 %v7133, %v7130
        %v7212 = vpack.c.b16 %v7134, %v7131
        %v7213 = vpack.c.b16 %v7135, %v7132
        %v7214 = vpack.c.b16 %v7139, %v7136
        %v7215 = vpack.c.b16 %v7140, %v7137
        %v7216 = vpack.c.b16 %v7141, %v7138
        %v7217 = vpack.c.b16 %v7145, %v7142
        %v7218 = vpack.c.b16 %v7146, %v7143
        %v7219 = vpack.c.b16 %v7147, %v7144
        %7292 = vmatprep.subr.bf16.mxu0 %v7170
        %7293 = vmatpush1.bf16.msra.mxu0 %v7169
        %7294 = vmatprep.subr.bf16.mxu0 %v7167
        %7295 = vmatpush1.bf16.msra.mxu0 %v7166
        %7296 = vmatprep.subr.bf16.mxu0 %v7164
        %7297 = vmatpush1.bf16.msra.mxu0 %v7163
        %7298 = vmatprep.subr.bf16.mxu0 %v7161
        %7299 = vmatpush1.bf16.msra.mxu0 %v7160
        %7300 = vmatprep.subr.bf16.mxu0 %v7158
        %7301 = vmatpush1.bf16.msra.mxu0 %v7157
        %7302 = vmatprep.subr.bf16.mxu0 %v7155
        %7303 = vmatpush1.bf16.msra.mxu0 %v7154
        %7304 = vmatprep.subr.bf16.mxu0 %v7152
        %7305 = vmatpush1.bf16.msra.mxu0 %v7151
        %7306 = vmatprep.subr.bf16.mxu0 %v7149
        %7307 = vmatpush1.bf16.msra.mxu0 %v7148
        %7308 = vmatprep.subr.bf16.mxu0 %v7194
        %7309 = vmatpush2.bf16.msra.mxu0 %v7193
        %7310 = vmatprep.subr.bf16.mxu0 %v7191
        %7311 = vmatpush2.bf16.msra.mxu0 %v7190
        %7312 = vmatprep.subr.bf16.mxu0 %v7188
        %7313 = vmatpush2.bf16.msra.mxu0 %v7187
        %7314 = vmatprep.subr.bf16.mxu0 %v7185
        %7315 = vmatpush2.bf16.msra.mxu0 %v7184
        %7316 = vmatprep.subr.bf16.mxu0 %v7182
        %7317 = vmatpush2.bf16.msra.mxu0 %v7181
        %7318 = vmatprep.subr.bf16.mxu0 %v7179
        %7319 = vmatpush2.bf16.msra.mxu0 %v7178
        %7320 = vmatprep.subr.bf16.mxu0 %v7176
        %7321 = vmatpush2.bf16.msra.mxu0 %v7175
        %7322 = vmatprep.subr.bf16.mxu0 %v7173
        %7323 = vmatpush2.bf16.msra.mxu0 %v7172
        %7324 = vmatprep.mubr.bf16.mxu0 %v6830
        %7325 = vmatmul.mubr.bf16.gmra.mxu0 %v6798
        %v7326 = vpop.f32.mrf.mxu0
        %v7327 = vadd.f32 %v6896, %v7326
        %v7328 = vpop.f32.mrf.mxu0
        %v7329 = vadd.f32 %v6900, %v7328
        %v7330 = vpop.f32.mrf.mxu0
        %v7331 = vadd.f32 %v6896, %v7330
        %v7332 = vpop.f32.mrf.mxu0
        %v7333 = vadd.f32 %v6900, %v7332
        %7334 = vmatprep.mubr.bf16.mxu0 %v6834
        %7335 = vmatmul.mubr.bf16.gmra.mxu0 %v6802
        %v7336 = vpop.f32.mrf.mxu0
        %v7337 = vadd.f32 %v6896, %v7336
        %v7338 = vpop.f32.mrf.mxu0
        %v7339 = vadd.f32 %v6900, %v7338
        %v7340 = vpop.f32.mrf.mxu0
        %v7341 = vadd.f32 %v6896, %v7340
        %v7342 = vpop.f32.mrf.mxu0
        %v7343 = vadd.f32 %v6900, %v7342
        %7344 = vmatprep.mubr.bf16.mxu0 %v6838
        %7345 = vmatmul.mubr.bf16.gmra.mxu0 %v6806
        %v7346 = vpop.f32.mrf.mxu0
        %v7347 = vadd.f32 %v6896, %v7346
        %v7348 = vpop.f32.mrf.mxu0
        %v7349 = vadd.f32 %v6900, %v7348
        %v7350 = vpop.f32.mrf.mxu0
        %v7351 = vadd.f32 %v6896, %v7350
        %v7352 = vpop.f32.mrf.mxu0
        %v7353 = vadd.f32 %v6900, %v7352
        %7354 = vmatprep.mubr.bf16.mxu0 %v6842
        %7355 = vmatmul.mubr.bf16.gmra.mxu0 %v6810
        %v7356 = vpop.f32.mrf.mxu0
        %v7357 = vadd.f32 %v6896, %v7356
        %v7358 = vpop.f32.mrf.mxu0
        %v7359 = vadd.f32 %v6900, %v7358
        %v7360 = vpop.f32.mrf.mxu0
        %v7361 = vadd.f32 %v6896, %v7360
        %v7362 = vpop.f32.mrf.mxu0
        %v7363 = vadd.f32 %v6900, %v7362
        %7364 = vmatprep.mubr.bf16.mxu0 %v6846
        %7365 = vmatmul.mubr.bf16.gmra.mxu0 %v6814
        %v7366 = vpop.f32.mrf.mxu0
        %v7367 = vadd.f32 %v6896, %v7366
        %v7368 = vpop.f32.mrf.mxu0
        %v7369 = vadd.f32 %v6900, %v7368
        %v7370 = vpop.f32.mrf.mxu0
        %v7371 = vadd.f32 %v6896, %v7370
        %v7372 = vpop.f32.mrf.mxu0
        %v7373 = vadd.f32 %v6900, %v7372
        %7374 = vmatprep.mubr.bf16.mxu0 %v6850
        %7375 = vmatmul.mubr.bf16.gmra.mxu0 %v6818
        %v7376 = vpop.f32.mrf.mxu0
        %v7377 = vadd.f32 %v6896, %v7376
        %v7378 = vpop.f32.mrf.mxu0
        %v7379 = vadd.f32 %v6900, %v7378
        %v7380 = vpop.f32.mrf.mxu0
        %v7381 = vadd.f32 %v6896, %v7380
        %v7382 = vpop.f32.mrf.mxu0
        %v7383 = vadd.f32 %v6900, %v7382
        %7384 = vmatprep.mubr.bf16.mxu0 %v6854
        %7385 = vmatmul.mubr.bf16.gmra.mxu0 %v6822
        %v7386 = vpop.f32.mrf.mxu0
        %v7387 = vadd.f32 %v6896, %v7386
        %v7388 = vpop.f32.mrf.mxu0
        %v7389 = vadd.f32 %v6900, %v7388
        %v7390 = vpop.f32.mrf.mxu0
        %v7391 = vadd.f32 %v6896, %v7390
        %v7392 = vpop.f32.mrf.mxu0
        %v7393 = vadd.f32 %v6900, %v7392
        %7394 = vmatprep.mubr.bf16.mxu0 %v6858
        %7395 = vmatmul.mubr.bf16.gmra.mxu0 %v6826
        %v7396 = vpop.f32.mrf.mxu0
        %v7397 = vadd.f32 %v6896, %v7396
        %v7398 = vpop.f32.mrf.mxu0
        %v7399 = vadd.f32 %v6900, %v7398
        %v7400 = vpop.f32.mrf.mxu0
        %v7401 = vadd.f32 %v6896, %v7400
        %v7402 = vpop.f32.mrf.mxu0
        %v7403 = vadd.f32 %v6900, %v7402
        %7404 = vdwg.mxu0
        %7405 = vmatprep.subr.bf16.mxu0 %v7218
        %7406 = vmatpush1.bf16.msra.mxu0 %v7217
        %7407 = vmatprep.subr.bf16.mxu0 %v7215
        %7408 = vmatpush1.bf16.msra.mxu0 %v7214
        %7409 = vmatprep.subr.bf16.mxu0 %v7212
        %7410 = vmatpush1.bf16.msra.mxu0 %v7211
        %7411 = vmatprep.subr.bf16.mxu0 %v7209
        %7412 = vmatpush1.bf16.msra.mxu0 %v7208
        %7413 = vmatprep.subr.bf16.mxu0 %v7206
        %7414 = vmatpush1.bf16.msra.mxu0 %v7205
        %7415 = vmatprep.subr.bf16.mxu0 %v7203
        %7416 = vmatpush1.bf16.msra.mxu0 %v7202
        %7417 = vmatprep.subr.bf16.mxu0 %v7200
        %7418 = vmatpush1.bf16.msra.mxu0 %v7199
        %7419 = vmatprep.subr.bf16.mxu0 %v7197
        %7420 = vmatpush1.bf16.msra.mxu0 %v7196
        %7421 = vmatprep.subr.bf16.mxu0 0
        %7422 = vmatpush2.bf16.msra.mxu0 0
        %7423 = vmatprep.subr.bf16.mxu0 0
        %7424 = vmatpush2.bf16.msra.mxu0 0
        %7425 = vmatprep.subr.bf16.mxu0 0
        %7426 = vmatpush2.bf16.msra.mxu0 0
        %7427 = vmatprep.subr.bf16.mxu0 0
        %7428 = vmatpush2.bf16.msra.mxu0 0
        %7429 = vmatprep.subr.bf16.mxu0 0
        %7430 = vmatpush2.bf16.msra.mxu0 0
        %7431 = vmatprep.subr.bf16.mxu0 0
        %7432 = vmatpush2.bf16.msra.mxu0 0
        %7433 = vmatprep.subr.bf16.mxu0 0
        %7434 = vmatpush2.bf16.msra.mxu0 0
        %7435 = vmatprep.subr.bf16.mxu0 0
        %7436 = vmatpush2.bf16.msra.mxu0 0
        %7437 = vmatprep.mubr.bf16.mxu0 0
        %7438 = vmatmul.mubr.bf16.gmra.mxu0 %v6862
        %v7439 = vpop.f32.mrf.mxu0
        %v7440 = vadd.f32 %v7327, %v7439
        %v7441 = vpop.f32.mrf.mxu0
        %v7442 = vadd.f32 %v7329, %v7441
        %v7443 = vpop.f32.mrf.mxu0
        %v7444 = vadd.f32 %v7331, %v7443
        %v7445 = vpop.f32.mrf.mxu0
        %v7446 = vadd.f32 %v7333, %v7445
        %7447 = vmatprep.mubr.bf16.mxu0 0
        %7448 = vmatmul.mubr.bf16.gmra.mxu0 %v6866
        %v7449 = vpop.f32.mrf.mxu0
        %v7450 = vadd.f32 %v7337, %v7449
        %v7451 = vpop.f32.mrf.mxu0
        %v7452 = vadd.f32 %v7339, %v7451
        %v7453 = vpop.f32.mrf.mxu0
        %v7454 = vadd.f32 %v7341, %v7453
        %v7455 = vpop.f32.mrf.mxu0
        %v7456 = vadd.f32 %v7343, %v7455
        %7457 = vmatprep.mubr.bf16.mxu0 0
        %7458 = vmatmul.mubr.bf16.gmra.mxu0 %v6870
        %v7459 = vpop.f32.mrf.mxu0
        %v7460 = vadd.f32 %v7347, %v7459
        %v7461 = vpop.f32.mrf.mxu0
        %v7462 = vadd.f32 %v7349, %v7461
        %v7463 = vpop.f32.mrf.mxu0
        %v7464 = vadd.f32 %v7351, %v7463
        %v7465 = vpop.f32.mrf.mxu0
        %v7466 = vadd.f32 %v7353, %v7465
        %7467 = vmatprep.mubr.bf16.mxu0 0
        %7468 = vmatmul.mubr.bf16.gmra.mxu0 %v6874
        %v7469 = vpop.f32.mrf.mxu0
        %v7470 = vadd.f32 %v7357, %v7469
        %v7471 = vpop.f32.mrf.mxu0
        %v7472 = vadd.f32 %v7359, %v7471
        %v7473 = vpop.f32.mrf.mxu0
        %v7474 = vadd.f32 %v7361, %v7473
        %v7475 = vpop.f32.mrf.mxu0
        %v7476 = vadd.f32 %v7363, %v7475
        %7477 = vmatprep.mubr.bf16.mxu0 0
        %7478 = vmatmul.mubr.bf16.gmra.mxu0 %v6878
        %v7479 = vpop.f32.mrf.mxu0
        %v7480 = vadd.f32 %v7367, %v7479
        %v7481 = vpop.f32.mrf.mxu0
        %v7482 = vadd.f32 %v7369, %v7481
        %v7483 = vpop.f32.mrf.mxu0
        %v7484 = vadd.f32 %v7371, %v7483
        %v7485 = vpop.f32.mrf.mxu0
        %v7486 = vadd.f32 %v7373, %v7485
        %7487 = vmatprep.mubr.bf16.mxu0 0
        %7488 = vmatmul.mubr.bf16.gmra.mxu0 %v6882
        %v7489 = vpop.f32.mrf.mxu0
        %v7490 = vadd.f32 %v7377, %v7489
        %v7491 = vpop.f32.mrf.mxu0
        %v7492 = vadd.f32 %v7379, %v7491
        %v7493 = vpop.f32.mrf.mxu0
        %v7494 = vadd.f32 %v7381, %v7493
        %v7495 = vpop.f32.mrf.mxu0
        %v7496 = vadd.f32 %v7383, %v7495
        %7497 = vmatprep.mubr.bf16.mxu0 0
        %7498 = vmatmul.mubr.bf16.gmra.mxu0 %v6886
        %v7499 = vpop.f32.mrf.mxu0
        %v7500 = vadd.f32 %v7387, %v7499
        %v7501 = vpop.f32.mrf.mxu0
        %v7502 = vadd.f32 %v7389, %v7501
        %v7503 = vpop.f32.mrf.mxu0
        %v7504 = vadd.f32 %v7391, %v7503
        %v7505 = vpop.f32.mrf.mxu0
        %v7506 = vadd.f32 %v7393, %v7505
        %7507 = vmatprep.mubr.bf16.mxu0 0
        %7508 = vmatmul.mubr.bf16.gmra.mxu0 %v6890
        %v7509 = vpop.f32.mrf.mxu0
        %v7510 = vadd.f32 %v7397, %v7509
        %v7511 = vpop.f32.mrf.mxu0
        %v7512 = vadd.f32 %v7399, %v7511
        %v7513 = vpop.f32.mrf.mxu0
        %v7514 = vadd.f32 %v7401, %v7513
        %v7515 = vpop.f32.mrf.mxu0
        %v7516 = vadd.f32 %v7403, %v7515
        %7517 = vdwg.mxu0
        %7518 = vmatprep.subr.bf16.mxu0 0
        %7519 = vmatpush1.bf16.msra.mxu0 %v7171
        %7520 = vmatprep.subr.bf16.mxu0 0
        %7521 = vmatpush1.bf16.msra.mxu0 %v7168
        %7522 = vmatprep.subr.bf16.mxu0 0
        %7523 = vmatpush1.bf16.msra.mxu0 %v7165
        %7524 = vmatprep.subr.bf16.mxu0 0
        %7525 = vmatpush1.bf16.msra.mxu0 %v7162
        %7526 = vmatprep.subr.bf16.mxu0 0
        %7527 = vmatpush1.bf16.msra.mxu0 %v7159
        %7528 = vmatprep.subr.bf16.mxu0 0
        %7529 = vmatpush1.bf16.msra.mxu0 %v7156
        %7530 = vmatprep.subr.bf16.mxu0 0
        %7531 = vmatpush1.bf16.msra.mxu0 %v7153
        %7532 = vmatprep.subr.bf16.mxu0 0
        %7533 = vmatpush1.bf16.msra.mxu0 %v7150
        %7534 = vmatprep.subr.bf16.mxu0 0
        %7535 = vmatpush2.bf16.msra.mxu0 %v7195
        %7536 = vmatprep.subr.bf16.mxu0 0
        %7537 = vmatpush2.bf16.msra.mxu0 %v7192
        %7538 = vmatprep.subr.bf16.mxu0 0
        %7539 = vmatpush2.bf16.msra.mxu0 %v7189
        %7540 = vmatprep.subr.bf16.mxu0 0
        %7541 = vmatpush2.bf16.msra.mxu0 %v7186
        %7542 = vmatprep.subr.bf16.mxu0 0
        %7543 = vmatpush2.bf16.msra.mxu0 %v7183
        %7544 = vmatprep.subr.bf16.mxu0 0
        %7545 = vmatpush2.bf16.msra.mxu0 %v7180
        %7546 = vmatprep.subr.bf16.mxu0 0
        %7547 = vmatpush2.bf16.msra.mxu0 %v7177
        %7548 = vmatprep.subr.bf16.mxu0 0
        %7549 = vmatpush2.bf16.msra.mxu0 %v7174
        %7550 = vmatprep.mubr.bf16.mxu0 %v6830
        %7551 = vmatmul.mubr.bf16.gmra.mxu0 %v6798
        %v7552 = vpop.f32.mrf.mxu0
        %v7553 = vadd.f32 %v6904, %v7552
        %v7554 = vpop.f32.mrf.mxu0
        %v7555 = vpop.f32.mrf.mxu0
        %v7556 = vadd.f32 %v6904, %v7555
        %v7557 = vpop.f32.mrf.mxu0
        %7558 = vmatprep.mubr.bf16.mxu0 %v6834
        %7559 = vmatmul.mubr.bf16.gmra.mxu0 %v6802
        %v7560 = vpop.f32.mrf.mxu0
        %v7561 = vadd.f32 %v6904, %v7560
        %v7562 = vpop.f32.mrf.mxu0
        %v7563 = vpop.f32.mrf.mxu0
        %v7564 = vadd.f32 %v6904, %v7563
        %v7565 = vpop.f32.mrf.mxu0
        %7566 = vmatprep.mubr.bf16.mxu0 %v6838
        %7567 = vmatmul.mubr.bf16.gmra.mxu0 %v6806
        %v7568 = vpop.f32.mrf.mxu0
        %v7569 = vadd.f32 %v6904, %v7568
        %v7570 = vpop.f32.mrf.mxu0
        %v7571 = vpop.f32.mrf.mxu0
        %v7572 = vadd.f32 %v6904, %v7571
        %v7573 = vpop.f32.mrf.mxu0
        %7574 = vmatprep.mubr.bf16.mxu0 %v6842
        %7575 = vmatmul.mubr.bf16.gmra.mxu0 %v6810
        %v7576 = vpop.f32.mrf.mxu0
        %v7577 = vadd.f32 %v6904, %v7576
        %v7578 = vpop.f32.mrf.mxu0
        %v7579 = vpop.f32.mrf.mxu0
        %v7580 = vadd.f32 %v6904, %v7579
        %v7581 = vpop.f32.mrf.mxu0
        %7582 = vmatprep.mubr.bf16.mxu0 %v6846
        %7583 = vmatmul.mubr.bf16.gmra.mxu0 %v6814
        %v7584 = vpop.f32.mrf.mxu0
        %v7585 = vadd.f32 %v6904, %v7584
        %v7586 = vpop.f32.mrf.mxu0
        %v7587 = vpop.f32.mrf.mxu0
        %v7588 = vadd.f32 %v6904, %v7587
        %v7589 = vpop.f32.mrf.mxu0
        %7590 = vmatprep.mubr.bf16.mxu0 %v6850
        %7591 = vmatmul.mubr.bf16.gmra.mxu0 %v6818
        %v7592 = vpop.f32.mrf.mxu0
        %v7593 = vadd.f32 %v6904, %v7592
        %v7594 = vpop.f32.mrf.mxu0
        %v7595 = vpop.f32.mrf.mxu0
        %v7596 = vadd.f32 %v6904, %v7595
        %v7597 = vpop.f32.mrf.mxu0
        %7598 = vmatprep.mubr.bf16.mxu0 %v6854
        %7599 = vmatmul.mubr.bf16.gmra.mxu0 %v6822
        %v7600 = vpop.f32.mrf.mxu0
        %v7601 = vadd.f32 %v6904, %v7600
        %v7602 = vpop.f32.mrf.mxu0
        %v7603 = vpop.f32.mrf.mxu0
        %v7604 = vadd.f32 %v6904, %v7603
        %v7605 = vpop.f32.mrf.mxu0
        %7606 = vmatprep.mubr.bf16.mxu0 %v6858
        %7607 = vmatmul.mubr.bf16.gmra.mxu0 %v6826
        %v7608 = vpop.f32.mrf.mxu0
        %v7609 = vadd.f32 %v6904, %v7608
        %v7610 = vpop.f32.mrf.mxu0
        %v7611 = vpop.f32.mrf.mxu0
        %v7612 = vadd.f32 %v6904, %v7611
        %v7613 = vpop.f32.mrf.mxu0
        %7614 = vdwg.mxu0
        %7615 = vmatprep.subr.bf16.mxu0 0
        %7616 = vmatpush1.bf16.msra.mxu0 %v7219
        %7617 = vmatprep.subr.bf16.mxu0 0
        %7618 = vmatpush1.bf16.msra.mxu0 %v7216
        %7619 = vmatprep.subr.bf16.mxu0 0
        %7620 = vmatpush1.bf16.msra.mxu0 %v7213
        %7621 = vmatprep.subr.bf16.mxu0 0
        %7622 = vmatpush1.bf16.msra.mxu0 %v7210
        %7623 = vmatprep.subr.bf16.mxu0 0
        %7624 = vmatpush1.bf16.msra.mxu0 %v7207
        %7625 = vmatprep.subr.bf16.mxu0 0
        %7626 = vmatpush1.bf16.msra.mxu0 %v7204
        %7627 = vmatprep.subr.bf16.mxu0 0
        %7628 = vmatpush1.bf16.msra.mxu0 %v7201
        %7629 = vmatprep.subr.bf16.mxu0 0
        %7630 = vmatpush1.bf16.msra.mxu0 %v7198
        %7631 = vmatprep.subr.bf16.mxu0 0
        %7632 = vmatpush2.bf16.msra.mxu0 0
        %7633 = vmatprep.subr.bf16.mxu0 0
        %7634 = vmatpush2.bf16.msra.mxu0 0
        %7635 = vmatprep.subr.bf16.mxu0 0
        %7636 = vmatpush2.bf16.msra.mxu0 0
        %7637 = vmatprep.subr.bf16.mxu0 0
        %7638 = vmatpush2.bf16.msra.mxu0 0
        %7639 = vmatprep.subr.bf16.mxu0 0
        %7640 = vmatpush2.bf16.msra.mxu0 0
        %7641 = vmatprep.subr.bf16.mxu0 0
        %7642 = vmatpush2.bf16.msra.mxu0 0
        %7643 = vmatprep.subr.bf16.mxu0 0
        %7644 = vmatpush2.bf16.msra.mxu0 0
        %7645 = vmatprep.subr.bf16.mxu0 0
        %7646 = vmatpush2.bf16.msra.mxu0 0
        %7647 = vmatprep.mubr.bf16.mxu0 0
        %7648 = vmatmul.mubr.bf16.gmra.mxu0 %v6862
        %v7649 = vpop.f32.mrf.mxu0
        %v7650 = vadd.f32 %v7553, %v7649
        %v7651 = vpop.f32.mrf.mxu0
        %v7652 = vpop.f32.mrf.mxu0
        %v7653 = vadd.f32 %v7556, %v7652
        %v7654 = vpop.f32.mrf.mxu0
        %7655 = vmatprep.mubr.bf16.mxu0 0
        %7656 = vmatmul.mubr.bf16.gmra.mxu0 %v6866
        %v7657 = vpop.f32.mrf.mxu0
        %v7658 = vadd.f32 %v7561, %v7657
        %v7659 = vpop.f32.mrf.mxu0
        %v7660 = vpop.f32.mrf.mxu0
        %v7661 = vadd.f32 %v7564, %v7660
        %v7662 = vpop.f32.mrf.mxu0
        %7663 = vmatprep.mubr.bf16.mxu0 0
        %7664 = vmatmul.mubr.bf16.gmra.mxu0 %v6870
        %v7665 = vpop.f32.mrf.mxu0
        %v7666 = vadd.f32 %v7569, %v7665
        %v7667 = vpop.f32.mrf.mxu0
        %v7668 = vpop.f32.mrf.mxu0
        %v7669 = vadd.f32 %v7572, %v7668
        %v7670 = vpop.f32.mrf.mxu0
        %7671 = vmatprep.mubr.bf16.mxu0 0
        %7672 = vmatmul.mubr.bf16.gmra.mxu0 %v6874
        %v7673 = vpop.f32.mrf.mxu0
        %v7674 = vadd.f32 %v7577, %v7673
        %v7675 = vpop.f32.mrf.mxu0
        %v7676 = vpop.f32.mrf.mxu0
        %v7677 = vadd.f32 %v7580, %v7676
        %v7678 = vpop.f32.mrf.mxu0
        %7679 = vmatprep.mubr.bf16.mxu0 0
        %7680 = vmatmul.mubr.bf16.gmra.mxu0 %v6878
        %v7681 = vpop.f32.mrf.mxu0
        %v7682 = vadd.f32 %v7585, %v7681
        %v7683 = vpop.f32.mrf.mxu0
        %v7684 = vpop.f32.mrf.mxu0
        %v7685 = vadd.f32 %v7588, %v7684
        %v7686 = vpop.f32.mrf.mxu0
        %7687 = vmatprep.mubr.bf16.mxu0 0
        %7688 = vmatmul.mubr.bf16.gmra.mxu0 %v6882
        %v7689 = vpop.f32.mrf.mxu0
        %v7690 = vadd.f32 %v7593, %v7689
        %v7691 = vpop.f32.mrf.mxu0
        %v7692 = vpop.f32.mrf.mxu0
        %v7693 = vadd.f32 %v7596, %v7692
        %v7694 = vpop.f32.mrf.mxu0
        %7695 = vmatprep.mubr.bf16.mxu0 0
        %7696 = vmatmul.mubr.bf16.gmra.mxu0 %v6886
        %v7697 = vpop.f32.mrf.mxu0
        %v7698 = vadd.f32 %v7601, %v7697
        %v7699 = vpop.f32.mrf.mxu0
        %v7700 = vpop.f32.mrf.mxu0
        %v7701 = vadd.f32 %v7604, %v7700
        %v7702 = vpop.f32.mrf.mxu0
        %7703 = vmatprep.mubr.bf16.mxu0 0
        %7704 = vmatmul.mubr.bf16.gmra.mxu0 %v6890
        %v7705 = vpop.f32.mrf.mxu0
        %v7706 = vadd.f32 %v7609, %v7705
        %v7707 = vpop.f32.mrf.mxu0
        %v7708 = vpop.f32.mrf.mxu0
        %v7709 = vadd.f32 %v7612, %v7708
        %v7710 = vpop.f32.mrf.mxu0
        %7711 = vdwg.mxu0
        %7712 = vst [vmem:[%s245] sm:$0xff] %v7440
        %7713 = vst [vmem:[%s245 + $0x8] sm:$0xff] %v7442
        %7714 = vst [vmem:[%s245 + $0x10] sm:$0xff] %v7650
        %7715 = vst [vmem:[%s245 + $0x18] sm:$0xff] %v7444
        %7716 = vst [vmem:[%s245 + $0x20] sm:$0xff] %v7446
        %7717 = vst [vmem:[%s245 + $0x28] sm:$0xff] %v7653
        %7718 = vst [vmem:[%s245 + $0x30] sm:$0xff] %v7450
        %7719 = vst [vmem:[%s245 + $0x38] sm:$0xff] %v7452
        %7720 = vst [vmem:[%s245 + $0x40] sm:$0xff] %v7658
        %7721 = vst [vmem:[%s245 + $0x48] sm:$0xff] %v7454
        %7722 = vst [vmem:[%s245 + $0x50] sm:$0xff] %v7456
        %7723 = vst [vmem:[%s245 + $0x58] sm:$0xff] %v7661
        %7724 = vst [vmem:[%s245 + $0x60] sm:$0xff] %v7460
        %7725 = vst [vmem:[%s245 + $0x68] sm:$0xff] %v7462
        %7726 = vst [vmem:[%s245 + $0x70] sm:$0xff] %v7666
        %7727 = vst [vmem:[%s245 + $0x78] sm:$0xff] %v7464
        %7728 = vst [vmem:[%s245 + $0x80] sm:$0xff] %v7466
        %7729 = vst [vmem:[%s245 + $0x88] sm:$0xff] %v7669
        %7730 = vst [vmem:[%s245 + $0x90] sm:$0xff] %v7470
        %7731 = vst [vmem:[%s245 + $0x98] sm:$0xff] %v7472
        %7732 = vst [vmem:[%s245 + $0xa0] sm:$0xff] %v7674
        %7733 = vst [vmem:[%s245 + $0xa8] sm:$0xff] %v7474
        %7734 = vst [vmem:[%s245 + $0xb0] sm:$0xff] %v7476
        %7735 = vst [vmem:[%s245 + $0xb8] sm:$0xff] %v7677
        %7736 = vst [vmem:[%s245 + $0xc0] sm:$0xff] %v7480
        %7737 = vst [vmem:[%s245 + $0xc8] sm:$0xff] %v7482
        %7738 = vst [vmem:[%s245 + $0xd0] sm:$0xff] %v7682
        %7739 = vst [vmem:[%s245 + $0xd8] sm:$0xff] %v7484
        %7740 = vst [vmem:[%s245 + $0xe0] sm:$0xff] %v7486
        %7741 = vst [vmem:[%s245 + $0xe8] sm:$0xff] %v7685
        %7742 = vst [vmem:[%s245 + $0xf0] sm:$0xff] %v7490
        %7743 = vst [vmem:[%s245 + $0xf8] sm:$0xff] %v7492
        %7744 = vst [vmem:[%s245 + $0x100] sm:$0xff] %v7690
        %7745 = vst [vmem:[%s245 + $0x108] sm:$0xff] %v7494
        %7746 = vst [vmem:[%s245 + $0x110] sm:$0xff] %v7496
        %7747 = vst [vmem:[%s245 + $0x118] sm:$0xff] %v7693
        %7748 = vst [vmem:[%s245 + $0x120] sm:$0xff] %v7500
        %7749 = vst [vmem:[%s245 + $0x128] sm:$0xff] %v7502
        %7750 = vst [vmem:[%s245 + $0x130] sm:$0xff] %v7698
        %7751 = vst [vmem:[%s245 + $0x138] sm:$0xff] %v7504
        %7752 = vst [vmem:[%s245 + $0x140] sm:$0xff] %v7506
        %7753 = vst [vmem:[%s245 + $0x148] sm:$0xff] %v7701
        %7754 = vst [vmem:[%s245 + $0x150] sm:$0xff] %v7510
        %7755 = vst [vmem:[%s245 + $0x158] sm:$0xff] %v7512
        %7756 = vst [vmem:[%s245 + $0x160] sm:$0xff] %v7706
        %7757 = vst [vmem:[%s245 + $0x168] sm:$0xff] %v7514
        %7758 = vst [vmem:[%s245 + $0x170] sm:$0xff] %v7516
        %7759 = vst [vmem:[%s245 + $0x178] sm:$0xff] %v7709
        %v7761 = vsel %vm3879, %v3675, 0
        %v7764 = vsel %vm3879, %v3684, 0
        %v7767 = vsel %vm3879, %v3693, 0
        %v7770 = vsel %vm3879, %v3702, 0
        %v7773 = vsel %vm3879, %v3711, 0
        %v7776 = vsel %vm3879, %v3720, 0
        %v7779 = vsel %vm3879, %v3729, 0
        %v7782 = vsel %vm3879, %v3738, 0
        %v7785 = vsel %vm3879, %v3678, 0
        %v7788 = vsel %vm3879, %v3687, 0
        %v7791 = vsel %vm3879, %v3696, 0
        %v7794 = vsel %vm3879, %v3705, 0
        %v7797 = vsel %vm3879, %v3714, 0
        %v7800 = vsel %vm3879, %v3723, 0
        %v7803 = vsel %vm3879, %v3732, 0
        %v7806 = vsel %vm3879, %v3741, 0
        %7808 = vmatprep.subr.bf16.mxu0 0
        %7809 = vmatpush1.bf16.xpose.msra.mxu0 %v7806
        %7810 = vmatprep.subr.bf16.mxu0 0
        %7811 = vmatpush1.bf16.xpose.msra.mxu0 %v7803
        %7812 = vmatprep.subr.bf16.mxu0 0
        %7813 = vmatpush1.bf16.xpose.msra.mxu0 %v7800
        %7814 = vmatprep.subr.bf16.mxu0 0
        %7815 = vmatpush1.bf16.xpose.msra.mxu0 %v7797
        %7816 = vmatprep.subr.bf16.mxu0 0
        %7817 = vmatpush1.bf16.xpose.msra.mxu0 %v7794
        %7818 = vmatprep.subr.bf16.mxu0 0
        %7819 = vmatpush1.bf16.xpose.msra.mxu0 %v7791
        %7820 = vmatprep.subr.bf16.mxu0 0
        %7821 = vmatpush1.bf16.xpose.msra.mxu0 %v7788
        %7822 = vmatprep.subr.bf16.mxu0 0
        %7823 = vmatpush1.bf16.xpose.msra.mxu0 %v7785
        %7824 = vmatprep.subr.bf16.mxu0 0
        %7825 = vmatpush2.bf16.xpose.msra.mxu0 0
        %7826 = vmatprep.subr.bf16.mxu0 0
        %7827 = vmatpush2.bf16.xpose.msra.mxu0 0
        %7828 = vmatprep.subr.bf16.mxu0 0
        %7829 = vmatpush2.bf16.xpose.msra.mxu0 0
        %7830 = vmatprep.subr.bf16.mxu0 0
        %7831 = vmatpush2.bf16.xpose.msra.mxu0 0
        %7832 = vmatprep.subr.bf16.mxu0 0
        %7833 = vmatpush2.bf16.xpose.msra.mxu0 0
        %7834 = vmatprep.subr.bf16.mxu0 0
        %7835 = vmatpush2.bf16.xpose.msra.mxu0 0
        %7836 = vmatprep.subr.bf16.mxu0 0
        %7837 = vmatpush2.bf16.xpose.msra.mxu0 0
        %7838 = vmatprep.subr.bf16.mxu0 0
        %7839 = vmatpush2.bf16.xpose.msra.mxu0 0
        %7840 = vmatprep.mubr.bf16.mxu0 0
        %7841 = vmatmul.mubr.bf16.gmra.mxu0 %v7761
        %v7842 = vpop.f32.mrf.mxu0
        %v7843 = vadd.f32 0.0, %v7842
        %v7844 = vpop.f32.mrf.mxu0
        %v7845 = vpop.f32.mrf.mxu0
        %v7846 = vadd.f32 0.0, %v7845
        %v7847 = vpop.f32.mrf.mxu0
        %7848 = vmatprep.mubr.bf16.mxu0 0
        %7849 = vmatmul.mubr.bf16.gmra.mxu0 %v7764
        %v7850 = vpop.f32.mrf.mxu0
        %v7851 = vadd.f32 0.0, %v7850
        %v7852 = vpop.f32.mrf.mxu0
        %v7853 = vpop.f32.mrf.mxu0
        %v7854 = vadd.f32 0.0, %v7853
        %v7855 = vpop.f32.mrf.mxu0
        %7856 = vmatprep.mubr.bf16.mxu0 0
        %7857 = vmatmul.mubr.bf16.gmra.mxu0 %v7767
        %v7858 = vpop.f32.mrf.mxu0
        %v7859 = vadd.f32 0.0, %v7858
        %v7860 = vpop.f32.mrf.mxu0
        %v7861 = vpop.f32.mrf.mxu0
        %v7862 = vadd.f32 0.0, %v7861
        %v7863 = vpop.f32.mrf.mxu0
        %7864 = vmatprep.mubr.bf16.mxu0 0
        %7865 = vmatmul.mubr.bf16.gmra.mxu0 %v7770
        %v7866 = vpop.f32.mrf.mxu0
        %v7867 = vadd.f32 0.0, %v7866
        %v7868 = vpop.f32.mrf.mxu0
        %v7869 = vpop.f32.mrf.mxu0
        %v7870 = vadd.f32 0.0, %v7869
        %v7871 = vpop.f32.mrf.mxu0
        %7872 = vmatprep.mubr.bf16.mxu0 0
        %7873 = vmatmul.mubr.bf16.gmra.mxu0 %v7773
        %v7874 = vpop.f32.mrf.mxu0
        %v7875 = vadd.f32 0.0, %v7874
        %v7876 = vpop.f32.mrf.mxu0
        %v7877 = vpop.f32.mrf.mxu0
        %v7878 = vadd.f32 0.0, %v7877
        %v7879 = vpop.f32.mrf.mxu0
        %7880 = vmatprep.mubr.bf16.mxu0 0
        %7881 = vmatmul.mubr.bf16.gmra.mxu0 %v7776
        %v7882 = vpop.f32.mrf.mxu0
        %v7883 = vadd.f32 0.0, %v7882
        %v7884 = vpop.f32.mrf.mxu0
        %v7885 = vpop.f32.mrf.mxu0
        %v7886 = vadd.f32 0.0, %v7885
        %v7887 = vpop.f32.mrf.mxu0
        %7888 = vmatprep.mubr.bf16.mxu0 0
        %7889 = vmatmul.mubr.bf16.gmra.mxu0 %v7779
        %v7890 = vpop.f32.mrf.mxu0
        %v7891 = vadd.f32 0.0, %v7890
        %v7892 = vpop.f32.mrf.mxu0
        %v7893 = vpop.f32.mrf.mxu0
        %v7894 = vadd.f32 0.0, %v7893
        %v7895 = vpop.f32.mrf.mxu0
        %7896 = vmatprep.mubr.bf16.mxu0 0
        %7897 = vmatmul.mubr.bf16.gmra.mxu0 %v7782
        %v7898 = vpop.f32.mrf.mxu0
        %v7899 = vadd.f32 0.0, %v7898
        %v7900 = vpop.f32.mrf.mxu0
        %v7901 = vpop.f32.mrf.mxu0
        %v7902 = vadd.f32 0.0, %v7901
        %v7903 = vpop.f32.mrf.mxu0
        %7904 = vdwg.mxu0
        %v7905 = vmul.f32 %v7843, 0.05103104
        %v7906 = vmul.f32 %v7846, 0.05103104
        %v7907 = vmul.f32 %v7851, 0.05103104
        %v7908 = vmul.f32 %v7854, 0.05103104
        %v7909 = vmul.f32 %v7859, 0.05103104
        %v7910 = vmul.f32 %v7862, 0.05103104
        %v7911 = vmul.f32 %v7867, 0.05103104
        %v7912 = vmul.f32 %v7870, 0.05103104
        %v7913 = vmul.f32 %v7875, 0.05103104
        %v7914 = vmul.f32 %v7878, 0.05103104
        %v7915 = vmul.f32 %v7883, 0.05103104
        %v7916 = vmul.f32 %v7886, 0.05103104
        %v7917 = vmul.f32 %v7891, 0.05103104
        %v7918 = vmul.f32 %v7894, 0.05103104
        %v7919 = vmul.f32 %v7899, 0.05103104
        %v7920 = vmul.f32 %v7902, 0.05103104
        %v7921 = vsel %vm3863, %v7905, -1e+30
        %v7922 = vsel %vm3864, %v7906, -1e+30
        %v7923 = vsel %vm3865, %v7907, -1e+30
        %v7924 = vsel %vm3866, %v7908, -1e+30
        %v7925 = vsel %vm3867, %v7909, -1e+30
        %v7926 = vsel %vm3868, %v7910, -1e+30
        %v7927 = vsel %vm3869, %v7911, -1e+30
        %v7928 = vsel %vm3870, %v7912, -1e+30
        %v7929 = vsel %vm3871, %v7913, -1e+30
        %v7930 = vsel %vm3872, %v7914, -1e+30
        %v7931 = vsel %vm3873, %v7915, -1e+30
        %v7932 = vsel %vm3874, %v7916, -1e+30
        %v7933 = vsel %vm3875, %v7917, -1e+30
        %v7934 = vsel %vm3876, %v7918, -1e+30
        %v7935 = vsel %vm3877, %v7919, -1e+30
        %v7936 = vsel %vm3878, %v7920, -1e+30
        %7937 = vmax.xlane.f32.xlu0 %v7921
        %v7938 = vpop.xlane.xlu0 %7937
        %7939 = vmax.xlane.f32.xlu0 %v7922
        %v7940 = vpop.xlane.xlu0 %7939
        %7941 = vmax.xlane.f32.xlu0 %v7923
        %v7942 = vpop.xlane.xlu0 %7941
        %7943 = vmax.xlane.f32.xlu0 %v7924
        %v7944 = vpop.xlane.xlu0 %7943
        %7945 = vmax.xlane.f32.xlu0 %v7925
        %v7946 = vpop.xlane.xlu0 %7945
        %7947 = vmax.xlane.f32.xlu0 %v7926
        %v7948 = vpop.xlane.xlu0 %7947
        %7949 = vmax.xlane.f32.xlu0 %v7927
        %v7950 = vpop.xlane.xlu0 %7949
        %7951 = vmax.xlane.f32.xlu0 %v7928
        %v7952 = vpop.xlane.xlu0 %7951
        %7953 = vmax.xlane.f32.xlu0 %v7929
        %v7954 = vpop.xlane.xlu0 %7953
        %7955 = vmax.xlane.f32.xlu0 %v7930
        %v7956 = vpop.xlane.xlu0 %7955
        %7957 = vmax.xlane.f32.xlu0 %v7931
        %v7958 = vpop.xlane.xlu0 %7957
        %7959 = vmax.xlane.f32.xlu0 %v7932
        %v7960 = vpop.xlane.xlu0 %7959
        %7961 = vmax.xlane.f32.xlu0 %v7933
        %v7962 = vpop.xlane.xlu0 %7961
        %7963 = vmax.xlane.f32.xlu0 %v7934
        %v7964 = vpop.xlane.xlu0 %7963
        %7965 = vmax.xlane.f32.xlu0 %v7935
        %v7966 = vpop.xlane.xlu0 %7965
        %7967 = vmax.xlane.f32.xlu0 %v7936
        %v7968 = vpop.xlane.xlu0 %7967
        %v7969 = vsub.f32 %v7921, %v7938
        %v7970 = vsub.f32 %v7922, %v7940
        %v7971 = vsub.f32 %v7923, %v7942
        %v7972 = vsub.f32 %v7924, %v7944
        %v7973 = vsub.f32 %v7925, %v7946
        %v7974 = vsub.f32 %v7926, %v7948
        %v7975 = vsub.f32 %v7927, %v7950
        %v7976 = vsub.f32 %v7928, %v7952
        %v7977 = vsub.f32 %v7929, %v7954
        %v7978 = vsub.f32 %v7930, %v7956
        %v7979 = vsub.f32 %v7931, %v7958
        %v7980 = vsub.f32 %v7932, %v7960
        %v7981 = vsub.f32 %v7933, %v7962
        %v7982 = vsub.f32 %v7934, %v7964
        %v7983 = vsub.f32 %v7935, %v7966
        %v7984 = vsub.f32 %v7936, %v7968
        %v7985 = vmul.f32 %v7969, 1.442695
        %v7986 = vpow.pop %v7985
        %v7987 = vmul.f32 %v7970, 1.442695
        %v7988 = vpow.pop %v7987
        %v7989 = vmul.f32 %v7971, 1.442695
        %v7990 = vpow.pop %v7989
        %v7991 = vmul.f32 %v7972, 1.442695
        %v7992 = vpow.pop %v7991
        %v7993 = vmul.f32 %v7973, 1.442695
        %v7994 = vpow.pop %v7993
        %v7995 = vmul.f32 %v7974, 1.442695
        %v7996 = vpow.pop %v7995
        %v7997 = vmul.f32 %v7975, 1.442695
        %v7998 = vpow.pop %v7997
        %v7999 = vmul.f32 %v7976, 1.442695
        %v8000 = vpow.pop %v7999
        %v8001 = vmul.f32 %v7977, 1.442695
        %v8002 = vpow.pop %v8001
        %v8003 = vmul.f32 %v7978, 1.442695
        %v8004 = vpow.pop %v8003
        %v8005 = vmul.f32 %v7979, 1.442695
        %v8006 = vpow.pop %v8005
        %v8007 = vmul.f32 %v7980, 1.442695
        %v8008 = vpow.pop %v8007
        %v8009 = vmul.f32 %v7981, 1.442695
        %v8010 = vpow.pop %v8009
        %v8011 = vmul.f32 %v7982, 1.442695
        %v8012 = vpow.pop %v8011
        %v8013 = vmul.f32 %v7983, 1.442695
        %v8014 = vpow.pop %v8013
        %v8015 = vmul.f32 %v7984, 1.442695
        %v8016 = vpow.pop %v8015
        %8017 = vadd.xlane.f32.xlu0 %v7986
        %v8018 = vpop.xlane.xlu0 %8017
        %8019 = vadd.xlane.f32.xlu0 %v7988
        %v8020 = vpop.xlane.xlu0 %8019
        %8021 = vadd.xlane.f32.xlu0 %v7990
        %v8022 = vpop.xlane.xlu0 %8021
        %8023 = vadd.xlane.f32.xlu0 %v7992
        %v8024 = vpop.xlane.xlu0 %8023
        %8025 = vadd.xlane.f32.xlu0 %v7994
        %v8026 = vpop.xlane.xlu0 %8025
        %8027 = vadd.xlane.f32.xlu0 %v7996
        %v8028 = vpop.xlane.xlu0 %8027
        %8029 = vadd.xlane.f32.xlu0 %v7998
        %v8030 = vpop.xlane.xlu0 %8029
        %8031 = vadd.xlane.f32.xlu0 %v8000
        %v8032 = vpop.xlane.xlu0 %8031
        %8033 = vadd.xlane.f32.xlu0 %v8002
        %v8034 = vpop.xlane.xlu0 %8033
        %8035 = vadd.xlane.f32.xlu0 %v8004
        %v8036 = vpop.xlane.xlu0 %8035
        %8037 = vadd.xlane.f32.xlu0 %v8006
        %v8038 = vpop.xlane.xlu0 %8037
        %8039 = vadd.xlane.f32.xlu0 %v8008
        %v8040 = vpop.xlane.xlu0 %8039
        %8041 = vadd.xlane.f32.xlu0 %v8010
        %v8042 = vpop.xlane.xlu0 %8041
        %8043 = vadd.xlane.f32.xlu0 %v8012
        %v8044 = vpop.xlane.xlu0 %8043
        %8045 = vadd.xlane.f32.xlu0 %v8014
        %v8046 = vpop.xlane.xlu0 %8045
        %8047 = vadd.xlane.f32.xlu0 %v8016
        %v8048 = vpop.xlane.xlu0 %8047
        %v8049 = vrcp.pop %v8018
        %v8050 = vrcp.pop %v8020
        %v8051 = vrcp.pop %v8022
        %v8052 = vrcp.pop %v8024
        %v8053 = vrcp.pop %v8026
        %v8054 = vrcp.pop %v8028
        %v8055 = vrcp.pop %v8030
        %v8056 = vrcp.pop %v8032
        %v8057 = vrcp.pop %v8034
        %v8058 = vrcp.pop %v8036
        %v8059 = vrcp.pop %v8038
        %v8060 = vrcp.pop %v8040
        %v8061 = vrcp.pop %v8042
        %v8062 = vrcp.pop %v8044
        %v8063 = vrcp.pop %v8046
        %v8064 = vrcp.pop %v8048
        %v8065 = vmul.f32 %v7986, %v8049
        %v8066 = vmul.f32 %v7988, %v8050
        %v8067 = vmul.f32 %v7990, %v8051
        %v8068 = vmul.f32 %v7992, %v8052
        %v8069 = vmul.f32 %v7994, %v8053
        %v8070 = vmul.f32 %v7996, %v8054
        %v8071 = vmul.f32 %v7998, %v8055
        %v8072 = vmul.f32 %v8000, %v8056
        %v8073 = vmul.f32 %v8002, %v8057
        %v8074 = vmul.f32 %v8004, %v8058
        %v8075 = vmul.f32 %v8006, %v8059
        %v8076 = vmul.f32 %v8008, %v8060
        %v8077 = vmul.f32 %v8010, %v8061
        %v8078 = vmul.f32 %v8012, %v8062
        %v8079 = vmul.f32 %v8014, %v8063
        %v8080 = vmul.f32 %v8016, %v8064
        %v8081 = vpack.c.bf16 %v8066, %v8065
        %v8082 = vpack.c.bf16 %v8068, %v8067
        %v8083 = vpack.c.bf16 %v8070, %v8069
        %v8084 = vpack.c.bf16 %v8072, %v8071
        %v8085 = vpack.c.bf16 %v8074, %v8073
        %v8086 = vpack.c.bf16 %v8076, %v8075
        %v8087 = vpack.c.bf16 %v8078, %v8077
        %v8088 = vpack.c.bf16 %v8080, %v8079
        %8089 = vmatprep.subr.bf16.mxu0 0
        %8090 = vmatpush1.bf16.msra.mxu0 %v3744
        %8091 = vmatprep.subr.bf16.mxu0 0
        %8092 = vmatpush1.bf16.msra.mxu0 %v3735
        %8093 = vmatprep.subr.bf16.mxu0 0
        %8094 = vmatpush1.bf16.msra.mxu0 %v3726
        %8095 = vmatprep.subr.bf16.mxu0 0
        %8096 = vmatpush1.bf16.msra.mxu0 %v3717
        %8097 = vmatprep.subr.bf16.mxu0 0
        %8098 = vmatpush1.bf16.msra.mxu0 %v3708
        %8099 = vmatprep.subr.bf16.mxu0 0
        %8100 = vmatpush1.bf16.msra.mxu0 %v3699
        %8101 = vmatprep.subr.bf16.mxu0 0
        %8102 = vmatpush1.bf16.msra.mxu0 %v3690
        %8103 = vmatprep.subr.bf16.mxu0 0
        %8104 = vmatpush1.bf16.msra.mxu0 %v3681
        %8105 = vmatprep.subr.bf16.mxu0 0
        %8106 = vmatpush2.bf16.msra.mxu0 0
        %8107 = vmatprep.subr.bf16.mxu0 0
        %8108 = vmatpush2.bf16.msra.mxu0 0
        %8109 = vmatprep.subr.bf16.mxu0 0
        %8110 = vmatpush2.bf16.msra.mxu0 0
        %8111 = vmatprep.subr.bf16.mxu0 0
        %8112 = vmatpush2.bf16.msra.mxu0 0
        %8113 = vmatprep.subr.bf16.mxu0 0
        %8114 = vmatpush2.bf16.msra.mxu0 0
        %8115 = vmatprep.subr.bf16.mxu0 0
        %8116 = vmatpush2.bf16.msra.mxu0 0
        %8117 = vmatprep.subr.bf16.mxu0 0
        %8118 = vmatpush2.bf16.msra.mxu0 0
        %8119 = vmatprep.subr.bf16.mxu0 0
        %8120 = vmatpush2.bf16.msra.mxu0 0
        %8121 = vmatprep.mubr.bf16.mxu0 0
        %8122 = vmatmul.mubr.bf16.gmra.mxu0 %v8081
        %v8123 = vpop.f32.mrf.mxu0
        %v8124 = vadd.f32 0.0, %v8123
        %v8125 = vpop.f32.mrf.mxu0
        %v8126 = vpop.f32.mrf.mxu0
        %v8127 = vadd.f32 0.0, %v8126
        %v8128 = vpop.f32.mrf.mxu0
        %8129 = vmatprep.mubr.bf16.mxu0 0
        %8130 = vmatmul.mubr.bf16.gmra.mxu0 %v8082
        %v8131 = vpop.f32.mrf.mxu0
        %v8132 = vadd.f32 0.0, %v8131
        %v8133 = vpop.f32.mrf.mxu0
        %v8134 = vpop.f32.mrf.mxu0
        %v8135 = vadd.f32 0.0, %v8134
        %v8136 = vpop.f32.mrf.mxu0
        %8137 = vmatprep.mubr.bf16.mxu0 0
        %8138 = vmatmul.mubr.bf16.gmra.mxu0 %v8083
        %v8139 = vpop.f32.mrf.mxu0
        %v8140 = vadd.f32 0.0, %v8139
        %v8141 = vpop.f32.mrf.mxu0
        %v8142 = vpop.f32.mrf.mxu0
        %v8143 = vadd.f32 0.0, %v8142
        %v8144 = vpop.f32.mrf.mxu0
        %8145 = vmatprep.mubr.bf16.mxu0 0
        %8146 = vmatmul.mubr.bf16.gmra.mxu0 %v8084
        %v8147 = vpop.f32.mrf.mxu0
        %v8148 = vadd.f32 0.0, %v8147
        %v8149 = vpop.f32.mrf.mxu0
        %v8150 = vpop.f32.mrf.mxu0
        %v8151 = vadd.f32 0.0, %v8150
        %v8152 = vpop.f32.mrf.mxu0
        %8153 = vmatprep.mubr.bf16.mxu0 0
        %8154 = vmatmul.mubr.bf16.gmra.mxu0 %v8085
        %v8155 = vpop.f32.mrf.mxu0
        %v8156 = vadd.f32 0.0, %v8155
        %v8157 = vpop.f32.mrf.mxu0
        %v8158 = vpop.f32.mrf.mxu0
        %v8159 = vadd.f32 0.0, %v8158
        %v8160 = vpop.f32.mrf.mxu0
        %8161 = vmatprep.mubr.bf16.mxu0 0
        %8162 = vmatmul.mubr.bf16.gmra.mxu0 %v8086
        %v8163 = vpop.f32.mrf.mxu0
        %v8164 = vadd.f32 0.0, %v8163
        %v8165 = vpop.f32.mrf.mxu0
        %v8166 = vpop.f32.mrf.mxu0
        %v8167 = vadd.f32 0.0, %v8166
        %v8168 = vpop.f32.mrf.mxu0
        %8169 = vmatprep.mubr.bf16.mxu0 0
        %8170 = vmatmul.mubr.bf16.gmra.mxu0 %v8087
        %v8171 = vpop.f32.mrf.mxu0
        %v8172 = vadd.f32 0.0, %v8171
        %v8173 = vpop.f32.mrf.mxu0
        %v8174 = vpop.f32.mrf.mxu0
        %v8175 = vadd.f32 0.0, %v8174
        %v8176 = vpop.f32.mrf.mxu0
        %8177 = vmatprep.mubr.bf16.mxu0 0
        %8178 = vmatmul.mubr.bf16.gmra.mxu0 %v8088
        %v8179 = vpop.f32.mrf.mxu0
        %v8180 = vadd.f32 0.0, %v8179
        %v8181 = vpop.f32.mrf.mxu0
        %v8182 = vpop.f32.mrf.mxu0
        %v8183 = vadd.f32 0.0, %v8182
        %v8184 = vpop.f32.mrf.mxu0
        %8185 = vdwg.mxu0
        %v8186 = vpack.c.bf16 %v8127, %v8124
        %v8187 = vpack.c.bf16 %v8135, %v8132
        %v8188 = vpack.c.bf16 %v8143, %v8140
        %v8189 = vpack.c.bf16 %v8151, %v8148
        %v8190 = vpack.c.bf16 %v8159, %v8156
        %v8191 = vpack.c.bf16 %v8167, %v8164
        %v8192 = vpack.c.bf16 %v8175, %v8172
        %v8193 = vpack.c.bf16 %v8183, %v8180
        %8202 = vrot.lane.b32.xlu0 %v3675, 64
        %v8203 = vpop.permute.xlu0 %8202
        %8204 = vrot.lane.b32.xlu0 %v3684, 64
        %v8205 = vpop.permute.xlu0 %8204
        %8206 = vrot.lane.b32.xlu0 %v3693, 64
        %v8207 = vpop.permute.xlu0 %8206
        %8208 = vrot.lane.b32.xlu0 %v3702, 64
        %v8209 = vpop.permute.xlu0 %8208
        %8210 = vrot.lane.b32.xlu0 %v3711, 64
        %v8211 = vpop.permute.xlu0 %8210
        %8212 = vrot.lane.b32.xlu0 %v3720, 64
        %v8213 = vpop.permute.xlu0 %8212
        %8214 = vrot.lane.b32.xlu0 %v3729, 64
        %v8215 = vpop.permute.xlu0 %8214
        %8216 = vrot.lane.b32.xlu0 %v3738, 64
        %v8217 = vpop.permute.xlu0 %8216
        %8226 = vrot.lane.b32.xlu0 %v3678, 64
        %v8227 = vpop.permute.xlu0 %8226
        %8228 = vrot.lane.b32.xlu0 %v3687, 64
        %v8229 = vpop.permute.xlu0 %8228
        %8230 = vrot.lane.b32.xlu0 %v3696, 64
        %v8231 = vpop.permute.xlu0 %8230
        %8232 = vrot.lane.b32.xlu0 %v3705, 64
        %v8233 = vpop.permute.xlu0 %8232
        %8234 = vrot.lane.b32.xlu0 %v3714, 64
        %v8235 = vpop.permute.xlu0 %8234
        %8236 = vrot.lane.b32.xlu0 %v3723, 64
        %v8237 = vpop.permute.xlu0 %8236
        %8238 = vrot.lane.b32.xlu0 %v3732, 64
        %v8239 = vpop.permute.xlu0 %8238
        %8240 = vrot.lane.b32.xlu0 %v3741, 64
        %v8241 = vpop.permute.xlu0 %8240
        %v8243 = vsel %vm3879, %v8203, 0
        %v8246 = vsel %vm3879, %v8205, 0
        %v8249 = vsel %vm3879, %v8207, 0
        %v8252 = vsel %vm3879, %v8209, 0
        %v8255 = vsel %vm3879, %v8211, 0
        %v8258 = vsel %vm3879, %v8213, 0
        %v8261 = vsel %vm3879, %v8215, 0
        %v8264 = vsel %vm3879, %v8217, 0
        %v8267 = vsel %vm3879, %v8227, 0
        %v8270 = vsel %vm3879, %v8229, 0
        %v8273 = vsel %vm3879, %v8231, 0
        %v8276 = vsel %vm3879, %v8233, 0
        %v8279 = vsel %vm3879, %v8235, 0
        %v8282 = vsel %vm3879, %v8237, 0
        %v8285 = vsel %vm3879, %v8239, 0
        %v8288 = vsel %vm3879, %v8241, 0
        %8290 = vmatprep.subr.bf16.mxu0 0
        %8291 = vmatpush1.bf16.xpose.msra.mxu0 %v8288
        %8292 = vmatprep.subr.bf16.mxu0 0
        %8293 = vmatpush1.bf16.xpose.msra.mxu0 %v8285
        %8294 = vmatprep.subr.bf16.mxu0 0
        %8295 = vmatpush1.bf16.xpose.msra.mxu0 %v8282
        %8296 = vmatprep.subr.bf16.mxu0 0
        %8297 = vmatpush1.bf16.xpose.msra.mxu0 %v8279
        %8298 = vmatprep.subr.bf16.mxu0 0
        %8299 = vmatpush1.bf16.xpose.msra.mxu0 %v8276
        %8300 = vmatprep.subr.bf16.mxu0 0
        %8301 = vmatpush1.bf16.xpose.msra.mxu0 %v8273
        %8302 = vmatprep.subr.bf16.mxu0 0
        %8303 = vmatpush1.bf16.xpose.msra.mxu0 %v8270
        %8304 = vmatprep.subr.bf16.mxu0 0
        %8305 = vmatpush1.bf16.xpose.msra.mxu0 %v8267
        %8306 = vmatprep.subr.bf16.mxu0 0
        %8307 = vmatpush2.bf16.xpose.msra.mxu0 0
        %8308 = vmatprep.subr.bf16.mxu0 0
        %8309 = vmatpush2.bf16.xpose.msra.mxu0 0
        %8310 = vmatprep.subr.bf16.mxu0 0
        %8311 = vmatpush2.bf16.xpose.msra.mxu0 0
        %8312 = vmatprep.subr.bf16.mxu0 0
        %8313 = vmatpush2.bf16.xpose.msra.mxu0 0
        %8314 = vmatprep.subr.bf16.mxu0 0
        %8315 = vmatpush2.bf16.xpose.msra.mxu0 0
        %8316 = vmatprep.subr.bf16.mxu0 0
        %8317 = vmatpush2.bf16.xpose.msra.mxu0 0
        %8318 = vmatprep.subr.bf16.mxu0 0
        %8319 = vmatpush2.bf16.xpose.msra.mxu0 0
        %8320 = vmatprep.subr.bf16.mxu0 0
        %8321 = vmatpush2.bf16.xpose.msra.mxu0 0
        %8322 = vmatprep.mubr.bf16.mxu0 0
        %8323 = vmatmul.mubr.bf16.gmra.mxu0 %v8243
        %v8324 = vpop.f32.mrf.mxu0
        %v8325 = vadd.f32 0.0, %v8324
        %v8326 = vpop.f32.mrf.mxu0
        %v8327 = vpop.f32.mrf.mxu0
        %v8328 = vadd.f32 0.0, %v8327
        %v8329 = vpop.f32.mrf.mxu0
        %8330 = vmatprep.mubr.bf16.mxu0 0
        %8331 = vmatmul.mubr.bf16.gmra.mxu0 %v8246
        %v8332 = vpop.f32.mrf.mxu0
        %v8333 = vadd.f32 0.0, %v8332
        %v8334 = vpop.f32.mrf.mxu0
        %v8335 = vpop.f32.mrf.mxu0
        %v8336 = vadd.f32 0.0, %v8335
        %v8337 = vpop.f32.mrf.mxu0
        %8338 = vmatprep.mubr.bf16.mxu0 0
        %8339 = vmatmul.mubr.bf16.gmra.mxu0 %v8249
        %v8340 = vpop.f32.mrf.mxu0
        %v8341 = vadd.f32 0.0, %v8340
        %v8342 = vpop.f32.mrf.mxu0
        %v8343 = vpop.f32.mrf.mxu0
        %v8344 = vadd.f32 0.0, %v8343
        %v8345 = vpop.f32.mrf.mxu0
        %8346 = vmatprep.mubr.bf16.mxu0 0
        %8347 = vmatmul.mubr.bf16.gmra.mxu0 %v8252
        %v8348 = vpop.f32.mrf.mxu0
        %v8349 = vadd.f32 0.0, %v8348
        %v8350 = vpop.f32.mrf.mxu0
        %v8351 = vpop.f32.mrf.mxu0
        %v8352 = vadd.f32 0.0, %v8351
        %v8353 = vpop.f32.mrf.mxu0
        %8354 = vmatprep.mubr.bf16.mxu0 0
        %8355 = vmatmul.mubr.bf16.gmra.mxu0 %v8255
        %v8356 = vpop.f32.mrf.mxu0
        %v8357 = vadd.f32 0.0, %v8356
        %v8358 = vpop.f32.mrf.mxu0
        %v8359 = vpop.f32.mrf.mxu0
        %v8360 = vadd.f32 0.0, %v8359
        %v8361 = vpop.f32.mrf.mxu0
        %8362 = vmatprep.mubr.bf16.mxu0 0
        %8363 = vmatmul.mubr.bf16.gmra.mxu0 %v8258
        %v8364 = vpop.f32.mrf.mxu0
        %v8365 = vadd.f32 0.0, %v8364
        %v8366 = vpop.f32.mrf.mxu0
        %v8367 = vpop.f32.mrf.mxu0
        %v8368 = vadd.f32 0.0, %v8367
        %v8369 = vpop.f32.mrf.mxu0
        %8370 = vmatprep.mubr.bf16.mxu0 0
        %8371 = vmatmul.mubr.bf16.gmra.mxu0 %v8261
        %v8372 = vpop.f32.mrf.mxu0
        %v8373 = vadd.f32 0.0, %v8372
        %v8374 = vpop.f32.mrf.mxu0
        %v8375 = vpop.f32.mrf.mxu0
        %v8376 = vadd.f32 0.0, %v8375
        %v8377 = vpop.f32.mrf.mxu0
        %8378 = vmatprep.mubr.bf16.mxu0 0
        %8379 = vmatmul.mubr.bf16.gmra.mxu0 %v8264
        %v8380 = vpop.f32.mrf.mxu0
        %v8381 = vadd.f32 0.0, %v8380
        %v8382 = vpop.f32.mrf.mxu0
        %v8383 = vpop.f32.mrf.mxu0
        %v8384 = vadd.f32 0.0, %v8383
        %v8385 = vpop.f32.mrf.mxu0
        %8386 = vdwg.mxu0
        %v8387 = vmul.f32 %v8325, 0.05103104
        %v8388 = vmul.f32 %v8328, 0.05103104
        %v8389 = vmul.f32 %v8333, 0.05103104
        %v8390 = vmul.f32 %v8336, 0.05103104
        %v8391 = vmul.f32 %v8341, 0.05103104
        %v8392 = vmul.f32 %v8344, 0.05103104
        %v8393 = vmul.f32 %v8349, 0.05103104
        %v8394 = vmul.f32 %v8352, 0.05103104
        %v8395 = vmul.f32 %v8357, 0.05103104
        %v8396 = vmul.f32 %v8360, 0.05103104
        %v8397 = vmul.f32 %v8365, 0.05103104
        %v8398 = vmul.f32 %v8368, 0.05103104
        %v8399 = vmul.f32 %v8373, 0.05103104
        %v8400 = vmul.f32 %v8376, 0.05103104
        %v8401 = vmul.f32 %v8381, 0.05103104
        %v8402 = vmul.f32 %v8384, 0.05103104
        %v8403 = vsel %vm3863, %v8387, -1e+30
        %v8404 = vsel %vm3864, %v8388, -1e+30
        %v8405 = vsel %vm3865, %v8389, -1e+30
        %v8406 = vsel %vm3866, %v8390, -1e+30
        %v8407 = vsel %vm3867, %v8391, -1e+30
        %v8408 = vsel %vm3868, %v8392, -1e+30
        %v8409 = vsel %vm3869, %v8393, -1e+30
        %v8410 = vsel %vm3870, %v8394, -1e+30
        %v8411 = vsel %vm3871, %v8395, -1e+30
        %v8412 = vsel %vm3872, %v8396, -1e+30
        %v8413 = vsel %vm3873, %v8397, -1e+30
        %v8414 = vsel %vm3874, %v8398, -1e+30
        %v8415 = vsel %vm3875, %v8399, -1e+30
        %v8416 = vsel %vm3876, %v8400, -1e+30
        %v8417 = vsel %vm3877, %v8401, -1e+30
        %v8418 = vsel %vm3878, %v8402, -1e+30
        %8419 = vmax.xlane.f32.xlu0 %v8403
        %v8420 = vpop.xlane.xlu0 %8419
        %8421 = vmax.xlane.f32.xlu0 %v8404
        %v8422 = vpop.xlane.xlu0 %8421
        %8423 = vmax.xlane.f32.xlu0 %v8405
        %v8424 = vpop.xlane.xlu0 %8423
        %8425 = vmax.xlane.f32.xlu0 %v8406
        %v8426 = vpop.xlane.xlu0 %8425
        %8427 = vmax.xlane.f32.xlu0 %v8407
        %v8428 = vpop.xlane.xlu0 %8427
        %8429 = vmax.xlane.f32.xlu0 %v8408
        %v8430 = vpop.xlane.xlu0 %8429
        %8431 = vmax.xlane.f32.xlu0 %v8409
        %v8432 = vpop.xlane.xlu0 %8431
        %8433 = vmax.xlane.f32.xlu0 %v8410
        %v8434 = vpop.xlane.xlu0 %8433
        %8435 = vmax.xlane.f32.xlu0 %v8411
        %v8436 = vpop.xlane.xlu0 %8435
        %8437 = vmax.xlane.f32.xlu0 %v8412
        %v8438 = vpop.xlane.xlu0 %8437
        %8439 = vmax.xlane.f32.xlu0 %v8413
        %v8440 = vpop.xlane.xlu0 %8439
        %8441 = vmax.xlane.f32.xlu0 %v8414
        %v8442 = vpop.xlane.xlu0 %8441
        %8443 = vmax.xlane.f32.xlu0 %v8415
        %v8444 = vpop.xlane.xlu0 %8443
        %8445 = vmax.xlane.f32.xlu0 %v8416
        %v8446 = vpop.xlane.xlu0 %8445
        %8447 = vmax.xlane.f32.xlu0 %v8417
        %v8448 = vpop.xlane.xlu0 %8447
        %8449 = vmax.xlane.f32.xlu0 %v8418
        %v8450 = vpop.xlane.xlu0 %8449
        %v8451 = vsub.f32 %v8403, %v8420
        %v8452 = vsub.f32 %v8404, %v8422
        %v8453 = vsub.f32 %v8405, %v8424
        %v8454 = vsub.f32 %v8406, %v8426
        %v8455 = vsub.f32 %v8407, %v8428
        %v8456 = vsub.f32 %v8408, %v8430
        %v8457 = vsub.f32 %v8409, %v8432
        %v8458 = vsub.f32 %v8410, %v8434
        %v8459 = vsub.f32 %v8411, %v8436
        %v8460 = vsub.f32 %v8412, %v8438
        %v8461 = vsub.f32 %v8413, %v8440
        %v8462 = vsub.f32 %v8414, %v8442
        %v8463 = vsub.f32 %v8415, %v8444
        %v8464 = vsub.f32 %v8416, %v8446
        %v8465 = vsub.f32 %v8417, %v8448
        %v8466 = vsub.f32 %v8418, %v8450
        %v8467 = vmul.f32 %v8451, 1.442695
        %v8468 = vpow.pop %v8467
        %v8469 = vmul.f32 %v8452, 1.442695
        %v8470 = vpow.pop %v8469
        %v8471 = vmul.f32 %v8453, 1.442695
        %v8472 = vpow.pop %v8471
        %v8473 = vmul.f32 %v8454, 1.442695
        %v8474 = vpow.pop %v8473
        %v8475 = vmul.f32 %v8455, 1.442695
        %v8476 = vpow.pop %v8475
        %v8477 = vmul.f32 %v8456, 1.442695
        %v8478 = vpow.pop %v8477
        %v8479 = vmul.f32 %v8457, 1.442695
        %v8480 = vpow.pop %v8479
        %v8481 = vmul.f32 %v8458, 1.442695
        %v8482 = vpow.pop %v8481
        %v8483 = vmul.f32 %v8459, 1.442695
        %v8484 = vpow.pop %v8483
        %v8485 = vmul.f32 %v8460, 1.442695
        %v8486 = vpow.pop %v8485
        %v8487 = vmul.f32 %v8461, 1.442695
        %v8488 = vpow.pop %v8487
        %v8489 = vmul.f32 %v8462, 1.442695
        %v8490 = vpow.pop %v8489
        %v8491 = vmul.f32 %v8463, 1.442695
        %v8492 = vpow.pop %v8491
        %v8493 = vmul.f32 %v8464, 1.442695
        %v8494 = vpow.pop %v8493
        %v8495 = vmul.f32 %v8465, 1.442695
        %v8496 = vpow.pop %v8495
        %v8497 = vmul.f32 %v8466, 1.442695
        %v8498 = vpow.pop %v8497
        %8499 = vadd.xlane.f32.xlu0 %v8468
        %v8500 = vpop.xlane.xlu0 %8499
        %8501 = vadd.xlane.f32.xlu0 %v8470
        %v8502 = vpop.xlane.xlu0 %8501
        %8503 = vadd.xlane.f32.xlu0 %v8472
        %v8504 = vpop.xlane.xlu0 %8503
        %8505 = vadd.xlane.f32.xlu0 %v8474
        %v8506 = vpop.xlane.xlu0 %8505
        %8507 = vadd.xlane.f32.xlu0 %v8476
        %v8508 = vpop.xlane.xlu0 %8507
        %8509 = vadd.xlane.f32.xlu0 %v8478
        %v8510 = vpop.xlane.xlu0 %8509
        %8511 = vadd.xlane.f32.xlu0 %v8480
        %v8512 = vpop.xlane.xlu0 %8511
        %8513 = vadd.xlane.f32.xlu0 %v8482
        %v8514 = vpop.xlane.xlu0 %8513
        %8515 = vadd.xlane.f32.xlu0 %v8484
        %v8516 = vpop.xlane.xlu0 %8515
        %8517 = vadd.xlane.f32.xlu0 %v8486
        %v8518 = vpop.xlane.xlu0 %8517
        %8519 = vadd.xlane.f32.xlu0 %v8488
        %v8520 = vpop.xlane.xlu0 %8519
        %8521 = vadd.xlane.f32.xlu0 %v8490
        %v8522 = vpop.xlane.xlu0 %8521
        %8523 = vadd.xlane.f32.xlu0 %v8492
        %v8524 = vpop.xlane.xlu0 %8523
        %8525 = vadd.xlane.f32.xlu0 %v8494
        %v8526 = vpop.xlane.xlu0 %8525
        %8527 = vadd.xlane.f32.xlu0 %v8496
        %v8528 = vpop.xlane.xlu0 %8527
        %8529 = vadd.xlane.f32.xlu0 %v8498
        %v8530 = vpop.xlane.xlu0 %8529
        %v8531 = vrcp.pop %v8500
        %v8532 = vrcp.pop %v8502
        %v8533 = vrcp.pop %v8504
        %v8534 = vrcp.pop %v8506
        %v8535 = vrcp.pop %v8508
        %v8536 = vrcp.pop %v8510
        %v8537 = vrcp.pop %v8512
        %v8538 = vrcp.pop %v8514
        %v8539 = vrcp.pop %v8516
        %v8540 = vrcp.pop %v8518
        %v8541 = vrcp.pop %v8520
        %v8542 = vrcp.pop %v8522
        %v8543 = vrcp.pop %v8524
        %v8544 = vrcp.pop %v8526
        %v8545 = vrcp.pop %v8528
        %v8546 = vrcp.pop %v8530
        %v8547 = vmul.f32 %v8468, %v8531
        %v8548 = vmul.f32 %v8470, %v8532
        %v8549 = vmul.f32 %v8472, %v8533
        %v8550 = vmul.f32 %v8474, %v8534
        %v8551 = vmul.f32 %v8476, %v8535
        %v8552 = vmul.f32 %v8478, %v8536
        %v8553 = vmul.f32 %v8480, %v8537
        %v8554 = vmul.f32 %v8482, %v8538
        %v8555 = vmul.f32 %v8484, %v8539
        %v8556 = vmul.f32 %v8486, %v8540
        %v8557 = vmul.f32 %v8488, %v8541
        %v8558 = vmul.f32 %v8490, %v8542
        %v8559 = vmul.f32 %v8492, %v8543
        %v8560 = vmul.f32 %v8494, %v8544
        %v8561 = vmul.f32 %v8496, %v8545
        %v8562 = vmul.f32 %v8498, %v8546
        %v8563 = vpack.c.bf16 %v8548, %v8547
        %v8564 = vpack.c.bf16 %v8550, %v8549
        %v8565 = vpack.c.bf16 %v8552, %v8551
        %v8566 = vpack.c.bf16 %v8554, %v8553
        %v8567 = vpack.c.bf16 %v8556, %v8555
        %v8568 = vpack.c.bf16 %v8558, %v8557
        %v8569 = vpack.c.bf16 %v8560, %v8559
        %v8570 = vpack.c.bf16 %v8562, %v8561
        %8579 = vrot.lane.b32.xlu0 %v3681, 64
        %v8580 = vpop.permute.xlu0 %8579
        %8581 = vrot.lane.b32.xlu0 %v3690, 64
        %v8582 = vpop.permute.xlu0 %8581
        %8583 = vrot.lane.b32.xlu0 %v3699, 64
        %v8584 = vpop.permute.xlu0 %8583
        %8585 = vrot.lane.b32.xlu0 %v3708, 64
        %v8586 = vpop.permute.xlu0 %8585
        %8587 = vrot.lane.b32.xlu0 %v3717, 64
        %v8588 = vpop.permute.xlu0 %8587
        %8589 = vrot.lane.b32.xlu0 %v3726, 64
        %v8590 = vpop.permute.xlu0 %8589
        %8591 = vrot.lane.b32.xlu0 %v3735, 64
        %v8592 = vpop.permute.xlu0 %8591
        %8593 = vrot.lane.b32.xlu0 %v3744, 64
        %v8594 = vpop.permute.xlu0 %8593
        %8603 = vmatprep.subr.bf16.mxu0 0
        %8604 = vmatpush1.bf16.msra.mxu0 %v8594
        %8605 = vmatprep.subr.bf16.mxu0 0
        %8606 = vmatpush1.bf16.msra.mxu0 %v8592
        %8607 = vmatprep.subr.bf16.mxu0 0
        %8608 = vmatpush1.bf16.msra.mxu0 %v8590
        %8609 = vmatprep.subr.bf16.mxu0 0
        %8610 = vmatpush1.bf16.msra.mxu0 %v8588
        %8611 = vmatprep.subr.bf16.mxu0 0
        %8612 = vmatpush1.bf16.msra.mxu0 %v8586
        %8613 = vmatprep.subr.bf16.mxu0 0
        %8614 = vmatpush1.bf16.msra.mxu0 %v8584
        %8615 = vmatprep.subr.bf16.mxu0 0
        %8616 = vmatpush1.bf16.msra.mxu0 %v8582
        %8617 = vmatprep.subr.bf16.mxu0 0
        %8618 = vmatpush1.bf16.msra.mxu0 %v8580
        %8619 = vmatprep.subr.bf16.mxu0 0
        %8620 = vmatpush2.bf16.msra.mxu0 0
        %8621 = vmatprep.subr.bf16.mxu0 0
        %8622 = vmatpush2.bf16.msra.mxu0 0
        %8623 = vmatprep.subr.bf16.mxu0 0
        %8624 = vmatpush2.bf16.msra.mxu0 0
        %8625 = vmatprep.subr.bf16.mxu0 0
        %8626 = vmatpush2.bf16.msra.mxu0 0
        %8627 = vmatprep.subr.bf16.mxu0 0
        %8628 = vmatpush2.bf16.msra.mxu0 0
        %8629 = vmatprep.subr.bf16.mxu0 0
        %8630 = vmatpush2.bf16.msra.mxu0 0
        %8631 = vmatprep.subr.bf16.mxu0 0
        %8632 = vmatpush2.bf16.msra.mxu0 0
        %8633 = vmatprep.subr.bf16.mxu0 0
        %8634 = vmatpush2.bf16.msra.mxu0 0
        %8635 = vmatprep.mubr.bf16.mxu0 0
        %8636 = vmatmul.mubr.bf16.gmra.mxu0 %v8563
        %v8637 = vpop.f32.mrf.mxu0
        %v8638 = vadd.f32 0.0, %v8637
        %v8639 = vpop.f32.mrf.mxu0
        %v8640 = vpop.f32.mrf.mxu0
        %v8641 = vadd.f32 0.0, %v8640
        %v8642 = vpop.f32.mrf.mxu0
        %8643 = vmatprep.mubr.bf16.mxu0 0
        %8644 = vmatmul.mubr.bf16.gmra.mxu0 %v8564
        %v8645 = vpop.f32.mrf.mxu0
        %v8646 = vadd.f32 0.0, %v8645
        %v8647 = vpop.f32.mrf.mxu0
        %v8648 = vpop.f32.mrf.mxu0
        %v8649 = vadd.f32 0.0, %v8648
        %v8650 = vpop.f32.mrf.mxu0
        %8651 = vmatprep.mubr.bf16.mxu0 0
        %8652 = vmatmul.mubr.bf16.gmra.mxu0 %v8565
        %v8653 = vpop.f32.mrf.mxu0
        %v8654 = vadd.f32 0.0, %v8653
        %v8655 = vpop.f32.mrf.mxu0
        %v8656 = vpop.f32.mrf.mxu0
        %v8657 = vadd.f32 0.0, %v8656
        %v8658 = vpop.f32.mrf.mxu0
        %8659 = vmatprep.mubr.bf16.mxu0 0
        %8660 = vmatmul.mubr.bf16.gmra.mxu0 %v8566
        %v8661 = vpop.f32.mrf.mxu0
        %v8662 = vadd.f32 0.0, %v8661
        %v8663 = vpop.f32.mrf.mxu0
        %v8664 = vpop.f32.mrf.mxu0
        %v8665 = vadd.f32 0.0, %v8664
        %v8666 = vpop.f32.mrf.mxu0
        %8667 = vmatprep.mubr.bf16.mxu0 0
        %8668 = vmatmul.mubr.bf16.gmra.mxu0 %v8567
        %v8669 = vpop.f32.mrf.mxu0
        %v8670 = vadd.f32 0.0, %v8669
        %v8671 = vpop.f32.mrf.mxu0
        %v8672 = vpop.f32.mrf.mxu0
        %v8673 = vadd.f32 0.0, %v8672
        %v8674 = vpop.f32.mrf.mxu0
        %8675 = vmatprep.mubr.bf16.mxu0 0
        %8676 = vmatmul.mubr.bf16.gmra.mxu0 %v8568
        %v8677 = vpop.f32.mrf.mxu0
        %v8678 = vadd.f32 0.0, %v8677
        %v8679 = vpop.f32.mrf.mxu0
        %v8680 = vpop.f32.mrf.mxu0
        %v8681 = vadd.f32 0.0, %v8680
        %v8682 = vpop.f32.mrf.mxu0
        %8683 = vmatprep.mubr.bf16.mxu0 0
        %8684 = vmatmul.mubr.bf16.gmra.mxu0 %v8569
        %v8685 = vpop.f32.mrf.mxu0
        %v8686 = vadd.f32 0.0, %v8685
        %v8687 = vpop.f32.mrf.mxu0
        %v8688 = vpop.f32.mrf.mxu0
        %v8689 = vadd.f32 0.0, %v8688
        %v8690 = vpop.f32.mrf.mxu0
        %8691 = vmatprep.mubr.bf16.mxu0 0
        %8692 = vmatmul.mubr.bf16.gmra.mxu0 %v8570
        %v8693 = vpop.f32.mrf.mxu0
        %v8694 = vadd.f32 0.0, %v8693
        %v8695 = vpop.f32.mrf.mxu0
        %v8696 = vpop.f32.mrf.mxu0
        %v8697 = vadd.f32 0.0, %v8696
        %v8698 = vpop.f32.mrf.mxu0
        %8699 = vdwg.mxu0
        %v8700 = vpack.c.bf16 %v8641, %v8638
        %v8701 = vpack.c.bf16 %v8649, %v8646
        %v8702 = vpack.c.bf16 %v8657, %v8654
        %v8703 = vpack.c.bf16 %v8665, %v8662
        %v8704 = vpack.c.bf16 %v8673, %v8670
        %v8705 = vpack.c.bf16 %v8681, %v8678
        %v8706 = vpack.c.bf16 %v8689, %v8686
        %v8707 = vpack.c.bf16 %v8697, %v8694
        %v8709 = vsel %vm3879, %v3676, 0
        %v8712 = vsel %vm3879, %v3685, 0
        %v8715 = vsel %vm3879, %v3694, 0
        %v8718 = vsel %vm3879, %v3703, 0
        %v8721 = vsel %vm3879, %v3712, 0
        %v8724 = vsel %vm3879, %v3721, 0
        %v8727 = vsel %vm3879, %v3730, 0
        %v8730 = vsel %vm3879, %v3739, 0
        %v8733 = vsel %vm3879, %v3679, 0
        %v8736 = vsel %vm3879, %v3688, 0
        %v8739 = vsel %vm3879, %v3697, 0
        %v8742 = vsel %vm3879, %v3706, 0
        %v8745 = vsel %vm3879, %v3715, 0
        %v8748 = vsel %vm3879, %v3724, 0
        %v8751 = vsel %vm3879, %v3733, 0
        %v8754 = vsel %vm3879, %v3742, 0
        %8756 = vmatprep.subr.bf16.mxu0 0
        %8757 = vmatpush1.bf16.xpose.msra.mxu0 %v8754
        %8758 = vmatprep.subr.bf16.mxu0 0
        %8759 = vmatpush1.bf16.xpose.msra.mxu0 %v8751
        %8760 = vmatprep.subr.bf16.mxu0 0
        %8761 = vmatpush1.bf16.xpose.msra.mxu0 %v8748
        %8762 = vmatprep.subr.bf16.mxu0 0
        %8763 = vmatpush1.bf16.xpose.msra.mxu0 %v8745
        %8764 = vmatprep.subr.bf16.mxu0 0
        %8765 = vmatpush1.bf16.xpose.msra.mxu0 %v8742
        %8766 = vmatprep.subr.bf16.mxu0 0
        %8767 = vmatpush1.bf16.xpose.msra.mxu0 %v8739
        %8768 = vmatprep.subr.bf16.mxu0 0
        %8769 = vmatpush1.bf16.xpose.msra.mxu0 %v8736
        %8770 = vmatprep.subr.bf16.mxu0 0
        %8771 = vmatpush1.bf16.xpose.msra.mxu0 %v8733
        %8772 = vmatprep.subr.bf16.mxu0 0
        %8773 = vmatpush2.bf16.xpose.msra.mxu0 0
        %8774 = vmatprep.subr.bf16.mxu0 0
        %8775 = vmatpush2.bf16.xpose.msra.mxu0 0
        %8776 = vmatprep.subr.bf16.mxu0 0
        %8777 = vmatpush2.bf16.xpose.msra.mxu0 0
        %8778 = vmatprep.subr.bf16.mxu0 0
        %8779 = vmatpush2.bf16.xpose.msra.mxu0 0
        %8780 = vmatprep.subr.bf16.mxu0 0
        %8781 = vmatpush2.bf16.xpose.msra.mxu0 0
        %8782 = vmatprep.subr.bf16.mxu0 0
        %8783 = vmatpush2.bf16.xpose.msra.mxu0 0
        %8784 = vmatprep.subr.bf16.mxu0 0
        %8785 = vmatpush2.bf16.xpose.msra.mxu0 0
        %8786 = vmatprep.subr.bf16.mxu0 0
        %8787 = vmatpush2.bf16.xpose.msra.mxu0 0
        %8788 = vmatprep.mubr.bf16.mxu0 0
        %8789 = vmatmul.mubr.bf16.gmra.mxu0 %v8709
        %v8790 = vpop.f32.mrf.mxu0
        %v8791 = vadd.f32 0.0, %v8790
        %v8792 = vpop.f32.mrf.mxu0
        %v8793 = vpop.f32.mrf.mxu0
        %v8794 = vadd.f32 0.0, %v8793
        %v8795 = vpop.f32.mrf.mxu0
        %8796 = vmatprep.mubr.bf16.mxu0 0
        %8797 = vmatmul.mubr.bf16.gmra.mxu0 %v8712
        %v8798 = vpop.f32.mrf.mxu0
        %v8799 = vadd.f32 0.0, %v8798
        %v8800 = vpop.f32.mrf.mxu0
        %v8801 = vpop.f32.mrf.mxu0
        %v8802 = vadd.f32 0.0, %v8801
        %v8803 = vpop.f32.mrf.mxu0
        %8804 = vmatprep.mubr.bf16.mxu0 0
        %8805 = vmatmul.mubr.bf16.gmra.mxu0 %v8715
        %v8806 = vpop.f32.mrf.mxu0
        %v8807 = vadd.f32 0.0, %v8806
        %v8808 = vpop.f32.mrf.mxu0
        %v8809 = vpop.f32.mrf.mxu0
        %v8810 = vadd.f32 0.0, %v8809
        %v8811 = vpop.f32.mrf.mxu0
        %8812 = vmatprep.mubr.bf16.mxu0 0
        %8813 = vmatmul.mubr.bf16.gmra.mxu0 %v8718
        %v8814 = vpop.f32.mrf.mxu0
        %v8815 = vadd.f32 0.0, %v8814
        %v8816 = vpop.f32.mrf.mxu0
        %v8817 = vpop.f32.mrf.mxu0
        %v8818 = vadd.f32 0.0, %v8817
        %v8819 = vpop.f32.mrf.mxu0
        %8820 = vmatprep.mubr.bf16.mxu0 0
        %8821 = vmatmul.mubr.bf16.gmra.mxu0 %v8721
        %v8822 = vpop.f32.mrf.mxu0
        %v8823 = vadd.f32 0.0, %v8822
        %v8824 = vpop.f32.mrf.mxu0
        %v8825 = vpop.f32.mrf.mxu0
        %v8826 = vadd.f32 0.0, %v8825
        %v8827 = vpop.f32.mrf.mxu0
        %8828 = vmatprep.mubr.bf16.mxu0 0
        %8829 = vmatmul.mubr.bf16.gmra.mxu0 %v8724
        %v8830 = vpop.f32.mrf.mxu0
        %v8831 = vadd.f32 0.0, %v8830
        %v8832 = vpop.f32.mrf.mxu0
        %v8833 = vpop.f32.mrf.mxu0
        %v8834 = vadd.f32 0.0, %v8833
        %v8835 = vpop.f32.mrf.mxu0
        %8836 = vmatprep.mubr.bf16.mxu0 0
        %8837 = vmatmul.mubr.bf16.gmra.mxu0 %v8727
        %v8838 = vpop.f32.mrf.mxu0
        %v8839 = vadd.f32 0.0, %v8838
        %v8840 = vpop.f32.mrf.mxu0
        %v8841 = vpop.f32.mrf.mxu0
        %v8842 = vadd.f32 0.0, %v8841
        %v8843 = vpop.f32.mrf.mxu0
        %8844 = vmatprep.mubr.bf16.mxu0 0
        %8845 = vmatmul.mubr.bf16.gmra.mxu0 %v8730
        %v8846 = vpop.f32.mrf.mxu0
        %v8847 = vadd.f32 0.0, %v8846
        %v8848 = vpop.f32.mrf.mxu0
        %v8849 = vpop.f32.mrf.mxu0
        %v8850 = vadd.f32 0.0, %v8849
        %v8851 = vpop.f32.mrf.mxu0
        %8852 = vdwg.mxu0
        %v8853 = vmul.f32 %v8791, 0.05103104
        %v8854 = vmul.f32 %v8794, 0.05103104
        %v8855 = vmul.f32 %v8799, 0.05103104
        %v8856 = vmul.f32 %v8802, 0.05103104
        %v8857 = vmul.f32 %v8807, 0.05103104
        %v8858 = vmul.f32 %v8810, 0.05103104
        %v8859 = vmul.f32 %v8815, 0.05103104
        %v8860 = vmul.f32 %v8818, 0.05103104
        %v8861 = vmul.f32 %v8823, 0.05103104
        %v8862 = vmul.f32 %v8826, 0.05103104
        %v8863 = vmul.f32 %v8831, 0.05103104
        %v8864 = vmul.f32 %v8834, 0.05103104
        %v8865 = vmul.f32 %v8839, 0.05103104
        %v8866 = vmul.f32 %v8842, 0.05103104
        %v8867 = vmul.f32 %v8847, 0.05103104
        %v8868 = vmul.f32 %v8850, 0.05103104
        %v8869 = vsel %vm3863, %v8853, -1e+30
        %v8870 = vsel %vm3864, %v8854, -1e+30
        %v8871 = vsel %vm3865, %v8855, -1e+30
        %v8872 = vsel %vm3866, %v8856, -1e+30
        %v8873 = vsel %vm3867, %v8857, -1e+30
        %v8874 = vsel %vm3868, %v8858, -1e+30
        %v8875 = vsel %vm3869, %v8859, -1e+30
        %v8876 = vsel %vm3870, %v8860, -1e+30
        %v8877 = vsel %vm3871, %v8861, -1e+30
        %v8878 = vsel %vm3872, %v8862, -1e+30
        %v8879 = vsel %vm3873, %v8863, -1e+30
        %v8880 = vsel %vm3874, %v8864, -1e+30
        %v8881 = vsel %vm3875, %v8865, -1e+30
        %v8882 = vsel %vm3876, %v8866, -1e+30
        %v8883 = vsel %vm3877, %v8867, -1e+30
        %v8884 = vsel %vm3878, %v8868, -1e+30
        %8885 = vmax.xlane.f32.xlu0 %v8869
        %v8886 = vpop.xlane.xlu0 %8885
        %8887 = vmax.xlane.f32.xlu0 %v8870
        %v8888 = vpop.xlane.xlu0 %8887
        %8889 = vmax.xlane.f32.xlu0 %v8871
        %v8890 = vpop.xlane.xlu0 %8889
        %8891 = vmax.xlane.f32.xlu0 %v8872
        %v8892 = vpop.xlane.xlu0 %8891
        %8893 = vmax.xlane.f32.xlu0 %v8873
        %v8894 = vpop.xlane.xlu0 %8893
        %8895 = vmax.xlane.f32.xlu0 %v8874
        %v8896 = vpop.xlane.xlu0 %8895
        %8897 = vmax.xlane.f32.xlu0 %v8875
        %v8898 = vpop.xlane.xlu0 %8897
        %8899 = vmax.xlane.f32.xlu0 %v8876
        %v8900 = vpop.xlane.xlu0 %8899
        %8901 = vmax.xlane.f32.xlu0 %v8877
        %v8902 = vpop.xlane.xlu0 %8901
        %8903 = vmax.xlane.f32.xlu0 %v8878
        %v8904 = vpop.xlane.xlu0 %8903
        %8905 = vmax.xlane.f32.xlu0 %v8879
        %v8906 = vpop.xlane.xlu0 %8905
        %8907 = vmax.xlane.f32.xlu0 %v8880
        %v8908 = vpop.xlane.xlu0 %8907
        %8909 = vmax.xlane.f32.xlu0 %v8881
        %v8910 = vpop.xlane.xlu0 %8909
        %8911 = vmax.xlane.f32.xlu0 %v8882
        %v8912 = vpop.xlane.xlu0 %8911
        %8913 = vmax.xlane.f32.xlu0 %v8883
        %v8914 = vpop.xlane.xlu0 %8913
        %8915 = vmax.xlane.f32.xlu0 %v8884
        %v8916 = vpop.xlane.xlu0 %8915
        %v8917 = vsub.f32 %v8869, %v8886
        %v8918 = vsub.f32 %v8870, %v8888
        %v8919 = vsub.f32 %v8871, %v8890
        %v8920 = vsub.f32 %v8872, %v8892
        %v8921 = vsub.f32 %v8873, %v8894
        %v8922 = vsub.f32 %v8874, %v8896
        %v8923 = vsub.f32 %v8875, %v8898
        %v8924 = vsub.f32 %v8876, %v8900
        %v8925 = vsub.f32 %v8877, %v8902
        %v8926 = vsub.f32 %v8878, %v8904
        %v8927 = vsub.f32 %v8879, %v8906
        %v8928 = vsub.f32 %v8880, %v8908
        %v8929 = vsub.f32 %v8881, %v8910
        %v8930 = vsub.f32 %v8882, %v8912
        %v8931 = vsub.f32 %v8883, %v8914
        %v8932 = vsub.f32 %v8884, %v8916
        %v8933 = vmul.f32 %v8917, 1.442695
        %v8934 = vpow.pop %v8933
        %v8935 = vmul.f32 %v8918, 1.442695
        %v8936 = vpow.pop %v8935
        %v8937 = vmul.f32 %v8919, 1.442695
        %v8938 = vpow.pop %v8937
        %v8939 = vmul.f32 %v8920, 1.442695
        %v8940 = vpow.pop %v8939
        %v8941 = vmul.f32 %v8921, 1.442695
        %v8942 = vpow.pop %v8941
        %v8943 = vmul.f32 %v8922, 1.442695
        %v8944 = vpow.pop %v8943
        %v8945 = vmul.f32 %v8923, 1.442695
        %v8946 = vpow.pop %v8945
        %v8947 = vmul.f32 %v8924, 1.442695
        %v8948 = vpow.pop %v8947
        %v8949 = vmul.f32 %v8925, 1.442695
        %v8950 = vpow.pop %v8949
        %v8951 = vmul.f32 %v8926, 1.442695
        %v8952 = vpow.pop %v8951
        %v8953 = vmul.f32 %v8927, 1.442695
        %v8954 = vpow.pop %v8953
        %v8955 = vmul.f32 %v8928, 1.442695
        %v8956 = vpow.pop %v8955
        %v8957 = vmul.f32 %v8929, 1.442695
        %v8958 = vpow.pop %v8957
        %v8959 = vmul.f32 %v8930, 1.442695
        %v8960 = vpow.pop %v8959
        %v8961 = vmul.f32 %v8931, 1.442695
        %v8962 = vpow.pop %v8961
        %v8963 = vmul.f32 %v8932, 1.442695
        %v8964 = vpow.pop %v8963
        %8965 = vadd.xlane.f32.xlu0 %v8934
        %v8966 = vpop.xlane.xlu0 %8965
        %8967 = vadd.xlane.f32.xlu0 %v8936
        %v8968 = vpop.xlane.xlu0 %8967
        %8969 = vadd.xlane.f32.xlu0 %v8938
        %v8970 = vpop.xlane.xlu0 %8969
        %8971 = vadd.xlane.f32.xlu0 %v8940
        %v8972 = vpop.xlane.xlu0 %8971
        %8973 = vadd.xlane.f32.xlu0 %v8942
        %v8974 = vpop.xlane.xlu0 %8973
        %8975 = vadd.xlane.f32.xlu0 %v8944
        %v8976 = vpop.xlane.xlu0 %8975
        %8977 = vadd.xlane.f32.xlu0 %v8946
        %v8978 = vpop.xlane.xlu0 %8977
        %8979 = vadd.xlane.f32.xlu0 %v8948
        %v8980 = vpop.xlane.xlu0 %8979
        %8981 = vadd.xlane.f32.xlu0 %v8950
        %v8982 = vpop.xlane.xlu0 %8981
        %8983 = vadd.xlane.f32.xlu0 %v8952
        %v8984 = vpop.xlane.xlu0 %8983
        %8985 = vadd.xlane.f32.xlu0 %v8954
        %v8986 = vpop.xlane.xlu0 %8985
        %8987 = vadd.xlane.f32.xlu0 %v8956
        %v8988 = vpop.xlane.xlu0 %8987
        %8989 = vadd.xlane.f32.xlu0 %v8958
        %v8990 = vpop.xlane.xlu0 %8989
        %8991 = vadd.xlane.f32.xlu0 %v8960
        %v8992 = vpop.xlane.xlu0 %8991
        %8993 = vadd.xlane.f32.xlu0 %v8962
        %v8994 = vpop.xlane.xlu0 %8993
        %8995 = vadd.xlane.f32.xlu0 %v8964
        %v8996 = vpop.xlane.xlu0 %8995
        %v8997 = vrcp.pop %v8966
        %v8998 = vrcp.pop %v8968
        %v8999 = vrcp.pop %v8970
        %v9000 = vrcp.pop %v8972
        %v9001 = vrcp.pop %v8974
        %v9002 = vrcp.pop %v8976
        %v9003 = vrcp.pop %v8978
        %v9004 = vrcp.pop %v8980
        %v9005 = vrcp.pop %v8982
        %v9006 = vrcp.pop %v8984
        %v9007 = vrcp.pop %v8986
        %v9008 = vrcp.pop %v8988
        %v9009 = vrcp.pop %v8990
        %v9010 = vrcp.pop %v8992
        %v9011 = vrcp.pop %v8994
        %v9012 = vrcp.pop %v8996
        %v9013 = vmul.f32 %v8934, %v8997
        %v9014 = vmul.f32 %v8936, %v8998
        %v9015 = vmul.f32 %v8938, %v8999
        %v9016 = vmul.f32 %v8940, %v9000
        %v9017 = vmul.f32 %v8942, %v9001
        %v9018 = vmul.f32 %v8944, %v9002
        %v9019 = vmul.f32 %v8946, %v9003
        %v9020 = vmul.f32 %v8948, %v9004
        %v9021 = vmul.f32 %v8950, %v9005
        %v9022 = vmul.f32 %v8952, %v9006
        %v9023 = vmul.f32 %v8954, %v9007
        %v9024 = vmul.f32 %v8956, %v9008
        %v9025 = vmul.f32 %v8958, %v9009
        %v9026 = vmul.f32 %v8960, %v9010
        %v9027 = vmul.f32 %v8962, %v9011
        %v9028 = vmul.f32 %v8964, %v9012
        %v9029 = vpack.c.bf16 %v9014, %v9013
        %v9030 = vpack.c.bf16 %v9016, %v9015
        %v9031 = vpack.c.bf16 %v9018, %v9017
        %v9032 = vpack.c.bf16 %v9020, %v9019
        %v9033 = vpack.c.bf16 %v9022, %v9021
        %v9034 = vpack.c.bf16 %v9024, %v9023
        %v9035 = vpack.c.bf16 %v9026, %v9025
        %v9036 = vpack.c.bf16 %v9028, %v9027
        %9037 = vmatprep.subr.bf16.mxu0 0
        %9038 = vmatpush1.bf16.msra.mxu0 %v3745
        %9039 = vmatprep.subr.bf16.mxu0 0
        %9040 = vmatpush1.bf16.msra.mxu0 %v3736
        %9041 = vmatprep.subr.bf16.mxu0 0
        %9042 = vmatpush1.bf16.msra.mxu0 %v3727
        %9043 = vmatprep.subr.bf16.mxu0 0
        %9044 = vmatpush1.bf16.msra.mxu0 %v3718
        %9045 = vmatprep.subr.bf16.mxu0 0
        %9046 = vmatpush1.bf16.msra.mxu0 %v3709
        %9047 = vmatprep.subr.bf16.mxu0 0
        %9048 = vmatpush1.bf16.msra.mxu0 %v3700
        %9049 = vmatprep.subr.bf16.mxu0 0
        %9050 = vmatpush1.bf16.msra.mxu0 %v3691
        %9051 = vmatprep.subr.bf16.mxu0 0
        %9052 = vmatpush1.bf16.msra.mxu0 %v3682
        %9053 = vmatprep.subr.bf16.mxu0 0
        %9054 = vmatpush2.bf16.msra.mxu0 0
        %9055 = vmatprep.subr.bf16.mxu0 0
        %9056 = vmatpush2.bf16.msra.mxu0 0
        %9057 = vmatprep.subr.bf16.mxu0 0
        %9058 = vmatpush2.bf16.msra.mxu0 0
        %9059 = vmatprep.subr.bf16.mxu0 0
        %9060 = vmatpush2.bf16.msra.mxu0 0
        %9061 = vmatprep.subr.bf16.mxu0 0
        %9062 = vmatpush2.bf16.msra.mxu0 0
        %9063 = vmatprep.subr.bf16.mxu0 0
        %9064 = vmatpush2.bf16.msra.mxu0 0
        %9065 = vmatprep.subr.bf16.mxu0 0
        %9066 = vmatpush2.bf16.msra.mxu0 0
        %9067 = vmatprep.subr.bf16.mxu0 0
        %9068 = vmatpush2.bf16.msra.mxu0 0
        %9069 = vmatprep.mubr.bf16.mxu0 0
        %9070 = vmatmul.mubr.bf16.gmra.mxu0 %v9029
        %v9071 = vpop.f32.mrf.mxu0
        %v9072 = vadd.f32 0.0, %v9071
        %v9073 = vpop.f32.mrf.mxu0
        %v9074 = vpop.f32.mrf.mxu0
        %v9075 = vadd.f32 0.0, %v9074
        %v9076 = vpop.f32.mrf.mxu0
        %9077 = vmatprep.mubr.bf16.mxu0 0
        %9078 = vmatmul.mubr.bf16.gmra.mxu0 %v9030
        %v9079 = vpop.f32.mrf.mxu0
        %v9080 = vadd.f32 0.0, %v9079
        %v9081 = vpop.f32.mrf.mxu0
        %v9082 = vpop.f32.mrf.mxu0
        %v9083 = vadd.f32 0.0, %v9082
        %v9084 = vpop.f32.mrf.mxu0
        %9085 = vmatprep.mubr.bf16.mxu0 0
        %9086 = vmatmul.mubr.bf16.gmra.mxu0 %v9031
        %v9087 = vpop.f32.mrf.mxu0
        %v9088 = vadd.f32 0.0, %v9087
        %v9089 = vpop.f32.mrf.mxu0
        %v9090 = vpop.f32.mrf.mxu0
        %v9091 = vadd.f32 0.0, %v9090
        %v9092 = vpop.f32.mrf.mxu0
        %9093 = vmatprep.mubr.bf16.mxu0 0
        %9094 = vmatmul.mubr.bf16.gmra.mxu0 %v9032
        %v9095 = vpop.f32.mrf.mxu0
        %v9096 = vadd.f32 0.0, %v9095
        %v9097 = vpop.f32.mrf.mxu0
        %v9098 = vpop.f32.mrf.mxu0
        %v9099 = vadd.f32 0.0, %v9098
        %v9100 = vpop.f32.mrf.mxu0
        %9101 = vmatprep.mubr.bf16.mxu0 0
        %9102 = vmatmul.mubr.bf16.gmra.mxu0 %v9033
        %v9103 = vpop.f32.mrf.mxu0
        %v9104 = vadd.f32 0.0, %v9103
        %v9105 = vpop.f32.mrf.mxu0
        %v9106 = vpop.f32.mrf.mxu0
        %v9107 = vadd.f32 0.0, %v9106
        %v9108 = vpop.f32.mrf.mxu0
        %9109 = vmatprep.mubr.bf16.mxu0 0
        %9110 = vmatmul.mubr.bf16.gmra.mxu0 %v9034
        %v9111 = vpop.f32.mrf.mxu0
        %v9112 = vadd.f32 0.0, %v9111
        %v9113 = vpop.f32.mrf.mxu0
        %v9114 = vpop.f32.mrf.mxu0
        %v9115 = vadd.f32 0.0, %v9114
        %v9116 = vpop.f32.mrf.mxu0
        %9117 = vmatprep.mubr.bf16.mxu0 0
        %9118 = vmatmul.mubr.bf16.gmra.mxu0 %v9035
        %v9119 = vpop.f32.mrf.mxu0
        %v9120 = vadd.f32 0.0, %v9119
        %v9121 = vpop.f32.mrf.mxu0
        %v9122 = vpop.f32.mrf.mxu0
        %v9123 = vadd.f32 0.0, %v9122
        %v9124 = vpop.f32.mrf.mxu0
        %9125 = vmatprep.mubr.bf16.mxu0 0
        %9126 = vmatmul.mubr.bf16.gmra.mxu0 %v9036
        %v9127 = vpop.f32.mrf.mxu0
        %v9128 = vadd.f32 0.0, %v9127
        %v9129 = vpop.f32.mrf.mxu0
        %v9130 = vpop.f32.mrf.mxu0
        %v9131 = vadd.f32 0.0, %v9130
        %v9132 = vpop.f32.mrf.mxu0
        %9133 = vdwg.mxu0
        %v9134 = vpack.c.bf16 %v9075, %v9072
        %v9135 = vpack.c.bf16 %v9083, %v9080
        %v9136 = vpack.c.bf16 %v9091, %v9088
        %v9137 = vpack.c.bf16 %v9099, %v9096
        %v9138 = vpack.c.bf16 %v9107, %v9104
        %v9139 = vpack.c.bf16 %v9115, %v9112
        %v9140 = vpack.c.bf16 %v9123, %v9120
        %v9141 = vpack.c.bf16 %v9131, %v9128
        %9150 = vrot.lane.b32.xlu0 %v3676, 64
        %v9151 = vpop.permute.xlu0 %9150
        %9152 = vrot.lane.b32.xlu0 %v3685, 64
        %v9153 = vpop.permute.xlu0 %9152
        %9154 = vrot.lane.b32.xlu0 %v3694, 64
        %v9155 = vpop.permute.xlu0 %9154
        %9156 = vrot.lane.b32.xlu0 %v3703, 64
        %v9157 = vpop.permute.xlu0 %9156
        %9158 = vrot.lane.b32.xlu0 %v3712, 64
        %v9159 = vpop.permute.xlu0 %9158
        %9160 = vrot.lane.b32.xlu0 %v3721, 64
        %v9161 = vpop.permute.xlu0 %9160
        %9162 = vrot.lane.b32.xlu0 %v3730, 64
        %v9163 = vpop.permute.xlu0 %9162
        %9164 = vrot.lane.b32.xlu0 %v3739, 64
        %v9165 = vpop.permute.xlu0 %9164
        %9174 = vrot.lane.b32.xlu0 %v3679, 64
        %v9175 = vpop.permute.xlu0 %9174
        %9176 = vrot.lane.b32.xlu0 %v3688, 64
        %v9177 = vpop.permute.xlu0 %9176
        %9178 = vrot.lane.b32.xlu0 %v3697, 64
        %v9179 = vpop.permute.xlu0 %9178
        %9180 = vrot.lane.b32.xlu0 %v3706, 64
        %v9181 = vpop.permute.xlu0 %9180
        %9182 = vrot.lane.b32.xlu0 %v3715, 64
        %v9183 = vpop.permute.xlu0 %9182
        %9184 = vrot.lane.b32.xlu0 %v3724, 64
        %v9185 = vpop.permute.xlu0 %9184
        %9186 = vrot.lane.b32.xlu0 %v3733, 64
        %v9187 = vpop.permute.xlu0 %9186
        %9188 = vrot.lane.b32.xlu0 %v3742, 64
        %v9189 = vpop.permute.xlu0 %9188
        %v9191 = vsel %vm3879, %v9151, 0
        %v9194 = vsel %vm3879, %v9153, 0
        %v9197 = vsel %vm3879, %v9155, 0
        %v9200 = vsel %vm3879, %v9157, 0
        %v9203 = vsel %vm3879, %v9159, 0
        %v9206 = vsel %vm3879, %v9161, 0
        %v9209 = vsel %vm3879, %v9163, 0
        %v9212 = vsel %vm3879, %v9165, 0
        %v9215 = vsel %vm3879, %v9175, 0
        %v9218 = vsel %vm3879, %v9177, 0
        %v9221 = vsel %vm3879, %v9179, 0
        %v9224 = vsel %vm3879, %v9181, 0
        %v9227 = vsel %vm3879, %v9183, 0
        %v9230 = vsel %vm3879, %v9185, 0
        %v9233 = vsel %vm3879, %v9187, 0
        %v9236 = vsel %vm3879, %v9189, 0
        %9238 = vmatprep.subr.bf16.mxu0 0
        %9239 = vmatpush1.bf16.xpose.msra.mxu0 %v9236
        %9240 = vmatprep.subr.bf16.mxu0 0
        %9241 = vmatpush1.bf16.xpose.msra.mxu0 %v9233
        %9242 = vmatprep.subr.bf16.mxu0 0
        %9243 = vmatpush1.bf16.xpose.msra.mxu0 %v9230
        %9244 = vmatprep.subr.bf16.mxu0 0
        %9245 = vmatpush1.bf16.xpose.msra.mxu0 %v9227
        %9246 = vmatprep.subr.bf16.mxu0 0
        %9247 = vmatpush1.bf16.xpose.msra.mxu0 %v9224
        %9248 = vmatprep.subr.bf16.mxu0 0
        %9249 = vmatpush1.bf16.xpose.msra.mxu0 %v9221
        %9250 = vmatprep.subr.bf16.mxu0 0
        %9251 = vmatpush1.bf16.xpose.msra.mxu0 %v9218
        %9252 = vmatprep.subr.bf16.mxu0 0
        %9253 = vmatpush1.bf16.xpose.msra.mxu0 %v9215
        %9254 = vmatprep.subr.bf16.mxu0 0
        %9255 = vmatpush2.bf16.xpose.msra.mxu0 0
        %9256 = vmatprep.subr.bf16.mxu0 0
        %9257 = vmatpush2.bf16.xpose.msra.mxu0 0
        %9258 = vmatprep.subr.bf16.mxu0 0
        %9259 = vmatpush2.bf16.xpose.msra.mxu0 0
        %9260 = vmatprep.subr.bf16.mxu0 0
        %9261 = vmatpush2.bf16.xpose.msra.mxu0 0
        %9262 = vmatprep.subr.bf16.mxu0 0
        %9263 = vmatpush2.bf16.xpose.msra.mxu0 0
        %9264 = vmatprep.subr.bf16.mxu0 0
        %9265 = vmatpush2.bf16.xpose.msra.mxu0 0
        %9266 = vmatprep.subr.bf16.mxu0 0
        %9267 = vmatpush2.bf16.xpose.msra.mxu0 0
        %9268 = vmatprep.subr.bf16.mxu0 0
        %9269 = vmatpush2.bf16.xpose.msra.mxu0 0
        %9270 = vmatprep.mubr.bf16.mxu0 0
        %9271 = vmatmul.mubr.bf16.gmra.mxu0 %v9191
        %v9272 = vpop.f32.mrf.mxu0
        %v9273 = vadd.f32 0.0, %v9272
        %v9274 = vpop.f32.mrf.mxu0
        %v9275 = vpop.f32.mrf.mxu0
        %v9276 = vadd.f32 0.0, %v9275
        %v9277 = vpop.f32.mrf.mxu0
        %9278 = vmatprep.mubr.bf16.mxu0 0
        %9279 = vmatmul.mubr.bf16.gmra.mxu0 %v9194
        %v9280 = vpop.f32.mrf.mxu0
        %v9281 = vadd.f32 0.0, %v9280
        %v9282 = vpop.f32.mrf.mxu0
        %v9283 = vpop.f32.mrf.mxu0
        %v9284 = vadd.f32 0.0, %v9283
        %v9285 = vpop.f32.mrf.mxu0
        %9286 = vmatprep.mubr.bf16.mxu0 0
        %9287 = vmatmul.mubr.bf16.gmra.mxu0 %v9197
        %v9288 = vpop.f32.mrf.mxu0
        %v9289 = vadd.f32 0.0, %v9288
        %v9290 = vpop.f32.mrf.mxu0
        %v9291 = vpop.f32.mrf.mxu0
        %v9292 = vadd.f32 0.0, %v9291
        %v9293 = vpop.f32.mrf.mxu0
        %9294 = vmatprep.mubr.bf16.mxu0 0
        %9295 = vmatmul.mubr.bf16.gmra.mxu0 %v9200
        %v9296 = vpop.f32.mrf.mxu0
        %v9297 = vadd.f32 0.0, %v9296
        %v9298 = vpop.f32.mrf.mxu0
        %v9299 = vpop.f32.mrf.mxu0
        %v9300 = vadd.f32 0.0, %v9299
        %v9301 = vpop.f32.mrf.mxu0
        %9302 = vmatprep.mubr.bf16.mxu0 0
        %9303 = vmatmul.mubr.bf16.gmra.mxu0 %v9203
        %v9304 = vpop.f32.mrf.mxu0
        %v9305 = vadd.f32 0.0, %v9304
        %v9306 = vpop.f32.mrf.mxu0
        %v9307 = vpop.f32.mrf.mxu0
        %v9308 = vadd.f32 0.0, %v9307
        %v9309 = vpop.f32.mrf.mxu0
        %9310 = vmatprep.mubr.bf16.mxu0 0
        %9311 = vmatmul.mubr.bf16.gmra.mxu0 %v9206
        %v9312 = vpop.f32.mrf.mxu0
        %v9313 = vadd.f32 0.0, %v9312
        %v9314 = vpop.f32.mrf.mxu0
        %v9315 = vpop.f32.mrf.mxu0
        %v9316 = vadd.f32 0.0, %v9315
        %v9317 = vpop.f32.mrf.mxu0
        %9318 = vmatprep.mubr.bf16.mxu0 0
        %9319 = vmatmul.mubr.bf16.gmra.mxu0 %v9209
        %v9320 = vpop.f32.mrf.mxu0
        %v9321 = vadd.f32 0.0, %v9320
        %v9322 = vpop.f32.mrf.mxu0
        %v9323 = vpop.f32.mrf.mxu0
        %v9324 = vadd.f32 0.0, %v9323
        %v9325 = vpop.f32.mrf.mxu0
        %9326 = vmatprep.mubr.bf16.mxu0 0
        %9327 = vmatmul.mubr.bf16.gmra.mxu0 %v9212
        %v9328 = vpop.f32.mrf.mxu0
        %v9329 = vadd.f32 0.0, %v9328
        %v9330 = vpop.f32.mrf.mxu0
        %v9331 = vpop.f32.mrf.mxu0
        %v9332 = vadd.f32 0.0, %v9331
        %v9333 = vpop.f32.mrf.mxu0
        %9334 = vdwg.mxu0
        %v9335 = vmul.f32 %v9273, 0.05103104
        %v9336 = vmul.f32 %v9276, 0.05103104
        %v9337 = vmul.f32 %v9281, 0.05103104
        %v9338 = vmul.f32 %v9284, 0.05103104
        %v9339 = vmul.f32 %v9289, 0.05103104
        %v9340 = vmul.f32 %v9292, 0.05103104
        %v9341 = vmul.f32 %v9297, 0.05103104
        %v9342 = vmul.f32 %v9300, 0.05103104
        %v9343 = vmul.f32 %v9305, 0.05103104
        %v9344 = vmul.f32 %v9308, 0.05103104
        %v9345 = vmul.f32 %v9313, 0.05103104
        %v9346 = vmul.f32 %v9316, 0.05103104
        %v9347 = vmul.f32 %v9321, 0.05103104
        %v9348 = vmul.f32 %v9324, 0.05103104
        %v9349 = vmul.f32 %v9329, 0.05103104
        %v9350 = vmul.f32 %v9332, 0.05103104
        %v9351 = vsel %vm3863, %v9335, -1e+30
        %v9352 = vsel %vm3864, %v9336, -1e+30
        %v9353 = vsel %vm3865, %v9337, -1e+30
        %v9354 = vsel %vm3866, %v9338, -1e+30
        %v9355 = vsel %vm3867, %v9339, -1e+30
        %v9356 = vsel %vm3868, %v9340, -1e+30
        %v9357 = vsel %vm3869, %v9341, -1e+30
        %v9358 = vsel %vm3870, %v9342, -1e+30
        %v9359 = vsel %vm3871, %v9343, -1e+30
        %v9360 = vsel %vm3872, %v9344, -1e+30
        %v9361 = vsel %vm3873, %v9345, -1e+30
        %v9362 = vsel %vm3874, %v9346, -1e+30
        %v9363 = vsel %vm3875, %v9347, -1e+30
        %v9364 = vsel %vm3876, %v9348, -1e+30
        %v9365 = vsel %vm3877, %v9349, -1e+30
        %v9366 = vsel %vm3878, %v9350, -1e+30
        %9367 = vmax.xlane.f32.xlu0 %v9351
        %v9368 = vpop.xlane.xlu0 %9367
        %9369 = vmax.xlane.f32.xlu0 %v9352
        %v9370 = vpop.xlane.xlu0 %9369
        %9371 = vmax.xlane.f32.xlu0 %v9353
        %v9372 = vpop.xlane.xlu0 %9371
        %9373 = vmax.xlane.f32.xlu0 %v9354
        %v9374 = vpop.xlane.xlu0 %9373
        %9375 = vmax.xlane.f32.xlu0 %v9355
        %v9376 = vpop.xlane.xlu0 %9375
        %9377 = vmax.xlane.f32.xlu0 %v9356
        %v9378 = vpop.xlane.xlu0 %9377
        %9379 = vmax.xlane.f32.xlu0 %v9357
        %v9380 = vpop.xlane.xlu0 %9379
        %9381 = vmax.xlane.f32.xlu0 %v9358
        %v9382 = vpop.xlane.xlu0 %9381
        %9383 = vmax.xlane.f32.xlu0 %v9359
        %v9384 = vpop.xlane.xlu0 %9383
        %9385 = vmax.xlane.f32.xlu0 %v9360
        %v9386 = vpop.xlane.xlu0 %9385
        %9387 = vmax.xlane.f32.xlu0 %v9361
        %v9388 = vpop.xlane.xlu0 %9387
        %9389 = vmax.xlane.f32.xlu0 %v9362
        %v9390 = vpop.xlane.xlu0 %9389
        %9391 = vmax.xlane.f32.xlu0 %v9363
        %v9392 = vpop.xlane.xlu0 %9391
        %9393 = vmax.xlane.f32.xlu0 %v9364
        %v9394 = vpop.xlane.xlu0 %9393
        %9395 = vmax.xlane.f32.xlu0 %v9365
        %v9396 = vpop.xlane.xlu0 %9395
        %9397 = vmax.xlane.f32.xlu0 %v9366
        %v9398 = vpop.xlane.xlu0 %9397
        %v9399 = vsub.f32 %v9351, %v9368
        %v9400 = vsub.f32 %v9352, %v9370
        %v9401 = vsub.f32 %v9353, %v9372
        %v9402 = vsub.f32 %v9354, %v9374
        %v9403 = vsub.f32 %v9355, %v9376
        %v9404 = vsub.f32 %v9356, %v9378
        %v9405 = vsub.f32 %v9357, %v9380
        %v9406 = vsub.f32 %v9358, %v9382
        %v9407 = vsub.f32 %v9359, %v9384
        %v9408 = vsub.f32 %v9360, %v9386
        %v9409 = vsub.f32 %v9361, %v9388
        %v9410 = vsub.f32 %v9362, %v9390
        %v9411 = vsub.f32 %v9363, %v9392
        %v9412 = vsub.f32 %v9364, %v9394
        %v9413 = vsub.f32 %v9365, %v9396
        %v9414 = vsub.f32 %v9366, %v9398
        %v9415 = vmul.f32 %v9399, 1.442695
        %v9416 = vpow.pop %v9415
        %v9417 = vmul.f32 %v9400, 1.442695
        %v9418 = vpow.pop %v9417
        %v9419 = vmul.f32 %v9401, 1.442695
        %v9420 = vpow.pop %v9419
        %v9421 = vmul.f32 %v9402, 1.442695
        %v9422 = vpow.pop %v9421
        %v9423 = vmul.f32 %v9403, 1.442695
        %v9424 = vpow.pop %v9423
        %v9425 = vmul.f32 %v9404, 1.442695
        %v9426 = vpow.pop %v9425
        %v9427 = vmul.f32 %v9405, 1.442695
        %v9428 = vpow.pop %v9427
        %v9429 = vmul.f32 %v9406, 1.442695
        %v9430 = vpow.pop %v9429
        %v9431 = vmul.f32 %v9407, 1.442695
        %v9432 = vpow.pop %v9431
        %v9433 = vmul.f32 %v9408, 1.442695
        %v9434 = vpow.pop %v9433
        %v9435 = vmul.f32 %v9409, 1.442695
        %v9436 = vpow.pop %v9435
        %v9437 = vmul.f32 %v9410, 1.442695
        %v9438 = vpow.pop %v9437
        %v9439 = vmul.f32 %v9411, 1.442695
        %v9440 = vpow.pop %v9439
        %v9441 = vmul.f32 %v9412, 1.442695
        %v9442 = vpow.pop %v9441
        %v9443 = vmul.f32 %v9413, 1.442695
        %v9444 = vpow.pop %v9443
        %v9445 = vmul.f32 %v9414, 1.442695
        %v9446 = vpow.pop %v9445
        %9447 = vadd.xlane.f32.xlu0 %v9416
        %v9448 = vpop.xlane.xlu0 %9447
        %9449 = vadd.xlane.f32.xlu0 %v9418
        %v9450 = vpop.xlane.xlu0 %9449
        %9451 = vadd.xlane.f32.xlu0 %v9420
        %v9452 = vpop.xlane.xlu0 %9451
        %9453 = vadd.xlane.f32.xlu0 %v9422
        %v9454 = vpop.xlane.xlu0 %9453
        %9455 = vadd.xlane.f32.xlu0 %v9424
        %v9456 = vpop.xlane.xlu0 %9455
        %9457 = vadd.xlane.f32.xlu0 %v9426
        %v9458 = vpop.xlane.xlu0 %9457
        %9459 = vadd.xlane.f32.xlu0 %v9428
        %v9460 = vpop.xlane.xlu0 %9459
        %9461 = vadd.xlane.f32.xlu0 %v9430
        %v9462 = vpop.xlane.xlu0 %9461
        %9463 = vadd.xlane.f32.xlu0 %v9432
        %v9464 = vpop.xlane.xlu0 %9463
        %9465 = vadd.xlane.f32.xlu0 %v9434
        %v9466 = vpop.xlane.xlu0 %9465
        %9467 = vadd.xlane.f32.xlu0 %v9436
        %v9468 = vpop.xlane.xlu0 %9467
        %9469 = vadd.xlane.f32.xlu0 %v9438
        %v9470 = vpop.xlane.xlu0 %9469
        %9471 = vadd.xlane.f32.xlu0 %v9440
        %v9472 = vpop.xlane.xlu0 %9471
        %9473 = vadd.xlane.f32.xlu0 %v9442
        %v9474 = vpop.xlane.xlu0 %9473
        %9475 = vadd.xlane.f32.xlu0 %v9444
        %v9476 = vpop.xlane.xlu0 %9475
        %9477 = vadd.xlane.f32.xlu0 %v9446
        %v9478 = vpop.xlane.xlu0 %9477
        %v9479 = vrcp.pop %v9448
        %v9480 = vrcp.pop %v9450
        %v9481 = vrcp.pop %v9452
        %v9482 = vrcp.pop %v9454
        %v9483 = vrcp.pop %v9456
        %v9484 = vrcp.pop %v9458
        %v9485 = vrcp.pop %v9460
        %v9486 = vrcp.pop %v9462
        %v9487 = vrcp.pop %v9464
        %v9488 = vrcp.pop %v9466
        %v9489 = vrcp.pop %v9468
        %v9490 = vrcp.pop %v9470
        %v9491 = vrcp.pop %v9472
        %v9492 = vrcp.pop %v9474
        %v9493 = vrcp.pop %v9476
        %v9494 = vrcp.pop %v9478
        %v9495 = vmul.f32 %v9416, %v9479
        %v9496 = vmul.f32 %v9418, %v9480
        %v9497 = vmul.f32 %v9420, %v9481
        %v9498 = vmul.f32 %v9422, %v9482
        %v9499 = vmul.f32 %v9424, %v9483
        %v9500 = vmul.f32 %v9426, %v9484
        %v9501 = vmul.f32 %v9428, %v9485
        %v9502 = vmul.f32 %v9430, %v9486
        %v9503 = vmul.f32 %v9432, %v9487
        %v9504 = vmul.f32 %v9434, %v9488
        %v9505 = vmul.f32 %v9436, %v9489
        %v9506 = vmul.f32 %v9438, %v9490
        %v9507 = vmul.f32 %v9440, %v9491
        %v9508 = vmul.f32 %v9442, %v9492
        %v9509 = vmul.f32 %v9444, %v9493
        %v9510 = vmul.f32 %v9446, %v9494
        %v9511 = vpack.c.bf16 %v9496, %v9495
        %v9512 = vpack.c.bf16 %v9498, %v9497
        %v9513 = vpack.c.bf16 %v9500, %v9499
        %v9514 = vpack.c.bf16 %v9502, %v9501
        %v9515 = vpack.c.bf16 %v9504, %v9503
        %v9516 = vpack.c.bf16 %v9506, %v9505
        %v9517 = vpack.c.bf16 %v9508, %v9507
        %v9518 = vpack.c.bf16 %v9510, %v9509
        %9527 = vrot.lane.b32.xlu0 %v3682, 64
        %v9528 = vpop.permute.xlu0 %9527
        %9529 = vrot.lane.b32.xlu0 %v3691, 64
        %v9530 = vpop.permute.xlu0 %9529
        %9531 = vrot.lane.b32.xlu0 %v3700, 64
        %v9532 = vpop.permute.xlu0 %9531
        %9533 = vrot.lane.b32.xlu0 %v3709, 64
        %v9534 = vpop.permute.xlu0 %9533
        %9535 = vrot.lane.b32.xlu0 %v3718, 64
        %v9536 = vpop.permute.xlu0 %9535
        %9537 = vrot.lane.b32.xlu0 %v3727, 64
        %v9538 = vpop.permute.xlu0 %9537
        %9539 = vrot.lane.b32.xlu0 %v3736, 64
        %v9540 = vpop.permute.xlu0 %9539
        %9541 = vrot.lane.b32.xlu0 %v3745, 64
        %v9542 = vpop.permute.xlu0 %9541
        %9551 = vmatprep.subr.bf16.mxu0 0
        %9552 = vmatpush1.bf16.msra.mxu0 %v9542
        %9553 = vmatprep.subr.bf16.mxu0 0
        %9554 = vmatpush1.bf16.msra.mxu0 %v9540
        %9555 = vmatprep.subr.bf16.mxu0 0
        %9556 = vmatpush1.bf16.msra.mxu0 %v9538
        %9557 = vmatprep.subr.bf16.mxu0 0
        %9558 = vmatpush1.bf16.msra.mxu0 %v9536
        %9559 = vmatprep.subr.bf16.mxu0 0
        %9560 = vmatpush1.bf16.msra.mxu0 %v9534
        %9561 = vmatprep.subr.bf16.mxu0 0
        %9562 = vmatpush1.bf16.msra.mxu0 %v9532
        %9563 = vmatprep.subr.bf16.mxu0 0
        %9564 = vmatpush1.bf16.msra.mxu0 %v9530
        %9565 = vmatprep.subr.bf16.mxu0 0
        %9566 = vmatpush1.bf16.msra.mxu0 %v9528
        %9567 = vmatprep.subr.bf16.mxu0 0
        %9568 = vmatpush2.bf16.msra.mxu0 0
        %9569 = vmatprep.subr.bf16.mxu0 0
        %9570 = vmatpush2.bf16.msra.mxu0 0
        %9571 = vmatprep.subr.bf16.mxu0 0
        %9572 = vmatpush2.bf16.msra.mxu0 0
        %9573 = vmatprep.subr.bf16.mxu0 0
        %9574 = vmatpush2.bf16.msra.mxu0 0
        %9575 = vmatprep.subr.bf16.mxu0 0
        %9576 = vmatpush2.bf16.msra.mxu0 0
        %9577 = vmatprep.subr.bf16.mxu0 0
        %9578 = vmatpush2.bf16.msra.mxu0 0
        %9579 = vmatprep.subr.bf16.mxu0 0
        %9580 = vmatpush2.bf16.msra.mxu0 0
        %9581 = vmatprep.subr.bf16.mxu0 0
        %9582 = vmatpush2.bf16.msra.mxu0 0
        %9583 = vmatprep.mubr.bf16.mxu0 0
        %9584 = vmatmul.mubr.bf16.gmra.mxu0 %v9511
        %v9585 = vpop.f32.mrf.mxu0
        %v9586 = vadd.f32 0.0, %v9585
        %v9587 = vpop.f32.mrf.mxu0
        %v9588 = vpop.f32.mrf.mxu0
        %v9589 = vadd.f32 0.0, %v9588
        %v9590 = vpop.f32.mrf.mxu0
        %9591 = vmatprep.mubr.bf16.mxu0 0
        %9592 = vmatmul.mubr.bf16.gmra.mxu0 %v9512
        %v9593 = vpop.f32.mrf.mxu0
        %v9594 = vadd.f32 0.0, %v9593
        %v9595 = vpop.f32.mrf.mxu0
        %v9596 = vpop.f32.mrf.mxu0
        %v9597 = vadd.f32 0.0, %v9596
        %v9598 = vpop.f32.mrf.mxu0
        %9599 = vmatprep.mubr.bf16.mxu0 0
        %9600 = vmatmul.mubr.bf16.gmra.mxu0 %v9513
        %v9601 = vpop.f32.mrf.mxu0
        %v9602 = vadd.f32 0.0, %v9601
        %v9603 = vpop.f32.mrf.mxu0
        %v9604 = vpop.f32.mrf.mxu0
        %v9605 = vadd.f32 0.0, %v9604
        %v9606 = vpop.f32.mrf.mxu0
        %9607 = vmatprep.mubr.bf16.mxu0 0
        %9608 = vmatmul.mubr.bf16.gmra.mxu0 %v9514
        %v9609 = vpop.f32.mrf.mxu0
        %v9610 = vadd.f32 0.0, %v9609
        %v9611 = vpop.f32.mrf.mxu0
        %v9612 = vpop.f32.mrf.mxu0
        %v9613 = vadd.f32 0.0, %v9612
        %v9614 = vpop.f32.mrf.mxu0
        %9615 = vmatprep.mubr.bf16.mxu0 0
        %9616 = vmatmul.mubr.bf16.gmra.mxu0 %v9515
        %v9617 = vpop.f32.mrf.mxu0
        %v9618 = vadd.f32 0.0, %v9617
        %v9619 = vpop.f32.mrf.mxu0
        %v9620 = vpop.f32.mrf.mxu0
        %v9621 = vadd.f32 0.0, %v9620
        %v9622 = vpop.f32.mrf.mxu0
        %9623 = vmatprep.mubr.bf16.mxu0 0
        %9624 = vmatmul.mubr.bf16.gmra.mxu0 %v9516
        %v9625 = vpop.f32.mrf.mxu0
        %v9626 = vadd.f32 0.0, %v9625
        %v9627 = vpop.f32.mrf.mxu0
        %v9628 = vpop.f32.mrf.mxu0
        %v9629 = vadd.f32 0.0, %v9628
        %v9630 = vpop.f32.mrf.mxu0
        %9631 = vmatprep.mubr.bf16.mxu0 0
        %9632 = vmatmul.mubr.bf16.gmra.mxu0 %v9517
        %v9633 = vpop.f32.mrf.mxu0
        %v9634 = vadd.f32 0.0, %v9633
        %v9635 = vpop.f32.mrf.mxu0
        %v9636 = vpop.f32.mrf.mxu0
        %v9637 = vadd.f32 0.0, %v9636
        %v9638 = vpop.f32.mrf.mxu0
        %9639 = vmatprep.mubr.bf16.mxu0 0
        %9640 = vmatmul.mubr.bf16.gmra.mxu0 %v9518
        %v9641 = vpop.f32.mrf.mxu0
        %v9642 = vadd.f32 0.0, %v9641
        %v9643 = vpop.f32.mrf.mxu0
        %v9644 = vpop.f32.mrf.mxu0
        %v9645 = vadd.f32 0.0, %v9644
        %v9646 = vpop.f32.mrf.mxu0
        %9647 = vdwg.mxu0
        %v9648 = vpack.c.bf16 %v9589, %v9586
        %v9649 = vpack.c.bf16 %v9597, %v9594
        %v9650 = vpack.c.bf16 %v9605, %v9602
        %v9651 = vpack.c.bf16 %v9613, %v9610
        %v9652 = vpack.c.bf16 %v9621, %v9618
        %v9653 = vpack.c.bf16 %v9629, %v9626
        %v9654 = vpack.c.bf16 %v9637, %v9634
        %v9655 = vpack.c.bf16 %v9645, %v9642
        %v9657 = vsel %vm3879, %v3677, 0
        %v9660 = vsel %vm3879, %v3686, 0
        %v9663 = vsel %vm3879, %v3695, 0
        %v9666 = vsel %vm3879, %v3704, 0
        %v9669 = vsel %vm3879, %v3713, 0
        %v9672 = vsel %vm3879, %v3722, 0
        %v9675 = vsel %vm3879, %v3731, 0
        %v9678 = vsel %vm3879, %v3740, 0
        %v9681 = vsel %vm3879, %v3680, 0
        %v9684 = vsel %vm3879, %v3689, 0
        %v9687 = vsel %vm3879, %v3698, 0
        %v9690 = vsel %vm3879, %v3707, 0
        %v9693 = vsel %vm3879, %v3716, 0
        %v9696 = vsel %vm3879, %v3725, 0
        %v9699 = vsel %vm3879, %v3734, 0
        %v9702 = vsel %vm3879, %v3743, 0
        %9704 = vmatprep.subr.bf16.mxu0 0
        %9705 = vmatpush1.bf16.xpose.msra.mxu0 %v9702
        %9706 = vmatprep.subr.bf16.mxu0 0
        %9707 = vmatpush1.bf16.xpose.msra.mxu0 %v9699
        %9708 = vmatprep.subr.bf16.mxu0 0
        %9709 = vmatpush1.bf16.xpose.msra.mxu0 %v9696
        %9710 = vmatprep.subr.bf16.mxu0 0
        %9711 = vmatpush1.bf16.xpose.msra.mxu0 %v9693
        %9712 = vmatprep.subr.bf16.mxu0 0
        %9713 = vmatpush1.bf16.xpose.msra.mxu0 %v9690
        %9714 = vmatprep.subr.bf16.mxu0 0
        %9715 = vmatpush1.bf16.xpose.msra.mxu0 %v9687
        %9716 = vmatprep.subr.bf16.mxu0 0
        %9717 = vmatpush1.bf16.xpose.msra.mxu0 %v9684
        %9718 = vmatprep.subr.bf16.mxu0 0
        %9719 = vmatpush1.bf16.xpose.msra.mxu0 %v9681
        %9720 = vmatprep.subr.bf16.mxu0 0
        %9721 = vmatpush2.bf16.xpose.msra.mxu0 0
        %9722 = vmatprep.subr.bf16.mxu0 0
        %9723 = vmatpush2.bf16.xpose.msra.mxu0 0
        %9724 = vmatprep.subr.bf16.mxu0 0
        %9725 = vmatpush2.bf16.xpose.msra.mxu0 0
        %9726 = vmatprep.subr.bf16.mxu0 0
        %9727 = vmatpush2.bf16.xpose.msra.mxu0 0
        %9728 = vmatprep.subr.bf16.mxu0 0
        %9729 = vmatpush2.bf16.xpose.msra.mxu0 0
        %9730 = vmatprep.subr.bf16.mxu0 0
        %9731 = vmatpush2.bf16.xpose.msra.mxu0 0
        %9732 = vmatprep.subr.bf16.mxu0 0
        %9733 = vmatpush2.bf16.xpose.msra.mxu0 0
        %9734 = vmatprep.subr.bf16.mxu0 0
        %9735 = vmatpush2.bf16.xpose.msra.mxu0 0
        %9736 = vmatprep.mubr.bf16.mxu0 0
        %9737 = vmatmul.mubr.bf16.gmra.mxu0 %v9657
        %v9738 = vpop.f32.mrf.mxu0
        %v9739 = vadd.f32 0.0, %v9738
        %v9740 = vpop.f32.mrf.mxu0
        %v9741 = vpop.f32.mrf.mxu0
        %v9742 = vadd.f32 0.0, %v9741
        %v9743 = vpop.f32.mrf.mxu0
        %9744 = vmatprep.mubr.bf16.mxu0 0
        %9745 = vmatmul.mubr.bf16.gmra.mxu0 %v9660
        %v9746 = vpop.f32.mrf.mxu0
        %v9747 = vadd.f32 0.0, %v9746
        %v9748 = vpop.f32.mrf.mxu0
        %v9749 = vpop.f32.mrf.mxu0
        %v9750 = vadd.f32 0.0, %v9749
        %v9751 = vpop.f32.mrf.mxu0
        %9752 = vmatprep.mubr.bf16.mxu0 0
        %9753 = vmatmul.mubr.bf16.gmra.mxu0 %v9663
        %v9754 = vpop.f32.mrf.mxu0
        %v9755 = vadd.f32 0.0, %v9754
        %v9756 = vpop.f32.mrf.mxu0
        %v9757 = vpop.f32.mrf.mxu0
        %v9758 = vadd.f32 0.0, %v9757
        %v9759 = vpop.f32.mrf.mxu0
        %9760 = vmatprep.mubr.bf16.mxu0 0
        %9761 = vmatmul.mubr.bf16.gmra.mxu0 %v9666
        %v9762 = vpop.f32.mrf.mxu0
        %v9763 = vadd.f32 0.0, %v9762
        %v9764 = vpop.f32.mrf.mxu0
        %v9765 = vpop.f32.mrf.mxu0
        %v9766 = vadd.f32 0.0, %v9765
        %v9767 = vpop.f32.mrf.mxu0
        %9768 = vmatprep.mubr.bf16.mxu0 0
        %9769 = vmatmul.mubr.bf16.gmra.mxu0 %v9669
        %v9770 = vpop.f32.mrf.mxu0
        %v9771 = vadd.f32 0.0, %v9770
        %v9772 = vpop.f32.mrf.mxu0
        %v9773 = vpop.f32.mrf.mxu0
        %v9774 = vadd.f32 0.0, %v9773
        %v9775 = vpop.f32.mrf.mxu0
        %9776 = vmatprep.mubr.bf16.mxu0 0
        %9777 = vmatmul.mubr.bf16.gmra.mxu0 %v9672
        %v9778 = vpop.f32.mrf.mxu0
        %v9779 = vadd.f32 0.0, %v9778
        %v9780 = vpop.f32.mrf.mxu0
        %v9781 = vpop.f32.mrf.mxu0
        %v9782 = vadd.f32 0.0, %v9781
        %v9783 = vpop.f32.mrf.mxu0
        %9784 = vmatprep.mubr.bf16.mxu0 0
        %9785 = vmatmul.mubr.bf16.gmra.mxu0 %v9675
        %v9786 = vpop.f32.mrf.mxu0
        %v9787 = vadd.f32 0.0, %v9786
        %v9788 = vpop.f32.mrf.mxu0
        %v9789 = vpop.f32.mrf.mxu0
        %v9790 = vadd.f32 0.0, %v9789
        %v9791 = vpop.f32.mrf.mxu0
        %9792 = vmatprep.mubr.bf16.mxu0 0
        %9793 = vmatmul.mubr.bf16.gmra.mxu0 %v9678
        %v9794 = vpop.f32.mrf.mxu0
        %v9795 = vadd.f32 0.0, %v9794
        %v9796 = vpop.f32.mrf.mxu0
        %v9797 = vpop.f32.mrf.mxu0
        %v9798 = vadd.f32 0.0, %v9797
        %v9799 = vpop.f32.mrf.mxu0
        %9800 = vdwg.mxu0
        %v9801 = vmul.f32 %v9739, 0.05103104
        %v9802 = vmul.f32 %v9742, 0.05103104
        %v9803 = vmul.f32 %v9747, 0.05103104
        %v9804 = vmul.f32 %v9750, 0.05103104
        %v9805 = vmul.f32 %v9755, 0.05103104
        %v9806 = vmul.f32 %v9758, 0.05103104
        %v9807 = vmul.f32 %v9763, 0.05103104
        %v9808 = vmul.f32 %v9766, 0.05103104
        %v9809 = vmul.f32 %v9771, 0.05103104
        %v9810 = vmul.f32 %v9774, 0.05103104
        %v9811 = vmul.f32 %v9779, 0.05103104
        %v9812 = vmul.f32 %v9782, 0.05103104
        %v9813 = vmul.f32 %v9787, 0.05103104
        %v9814 = vmul.f32 %v9790, 0.05103104
        %v9815 = vmul.f32 %v9795, 0.05103104
        %v9816 = vmul.f32 %v9798, 0.05103104
        %v9817 = vsel %vm3863, %v9801, -1e+30
        %v9818 = vsel %vm3864, %v9802, -1e+30
        %v9819 = vsel %vm3865, %v9803, -1e+30
        %v9820 = vsel %vm3866, %v9804, -1e+30
        %v9821 = vsel %vm3867, %v9805, -1e+30
        %v9822 = vsel %vm3868, %v9806, -1e+30
        %v9823 = vsel %vm3869, %v9807, -1e+30
        %v9824 = vsel %vm3870, %v9808, -1e+30
        %v9825 = vsel %vm3871, %v9809, -1e+30
        %v9826 = vsel %vm3872, %v9810, -1e+30
        %v9827 = vsel %vm3873, %v9811, -1e+30
        %v9828 = vsel %vm3874, %v9812, -1e+30
        %v9829 = vsel %vm3875, %v9813, -1e+30
        %v9830 = vsel %vm3876, %v9814, -1e+30
        %v9831 = vsel %vm3877, %v9815, -1e+30
        %v9832 = vsel %vm3878, %v9816, -1e+30
        %9833 = vmax.xlane.f32.xlu0 %v9817
        %v9834 = vpop.xlane.xlu0 %9833
        %9835 = vmax.xlane.f32.xlu0 %v9818
        %v9836 = vpop.xlane.xlu0 %9835
        %9837 = vmax.xlane.f32.xlu0 %v9819
        %v9838 = vpop.xlane.xlu0 %9837
        %9839 = vmax.xlane.f32.xlu0 %v9820
        %v9840 = vpop.xlane.xlu0 %9839
        %9841 = vmax.xlane.f32.xlu0 %v9821
        %v9842 = vpop.xlane.xlu0 %9841
        %9843 = vmax.xlane.f32.xlu0 %v9822
        %v9844 = vpop.xlane.xlu0 %9843
        %9845 = vmax.xlane.f32.xlu0 %v9823
        %v9846 = vpop.xlane.xlu0 %9845
        %9847 = vmax.xlane.f32.xlu0 %v9824
        %v9848 = vpop.xlane.xlu0 %9847
        %9849 = vmax.xlane.f32.xlu0 %v9825
        %v9850 = vpop.xlane.xlu0 %9849
        %9851 = vmax.xlane.f32.xlu0 %v9826
        %v9852 = vpop.xlane.xlu0 %9851
        %9853 = vmax.xlane.f32.xlu0 %v9827
        %v9854 = vpop.xlane.xlu0 %9853
        %9855 = vmax.xlane.f32.xlu0 %v9828
        %v9856 = vpop.xlane.xlu0 %9855
        %9857 = vmax.xlane.f32.xlu0 %v9829
        %v9858 = vpop.xlane.xlu0 %9857
        %9859 = vmax.xlane.f32.xlu0 %v9830
        %v9860 = vpop.xlane.xlu0 %9859
        %9861 = vmax.xlane.f32.xlu0 %v9831
        %v9862 = vpop.xlane.xlu0 %9861
        %9863 = vmax.xlane.f32.xlu0 %v9832
        %v9864 = vpop.xlane.xlu0 %9863
        %v9865 = vsub.f32 %v9817, %v9834
        %v9866 = vsub.f32 %v9818, %v9836
        %v9867 = vsub.f32 %v9819, %v9838
        %v9868 = vsub.f32 %v9820, %v9840
        %v9869 = vsub.f32 %v9821, %v9842
        %v9870 = vsub.f32 %v9822, %v9844
        %v9871 = vsub.f32 %v9823, %v9846
        %v9872 = vsub.f32 %v9824, %v9848
        %v9873 = vsub.f32 %v9825, %v9850
        %v9874 = vsub.f32 %v9826, %v9852
        %v9875 = vsub.f32 %v9827, %v9854
        %v9876 = vsub.f32 %v9828, %v9856
        %v9877 = vsub.f32 %v9829, %v9858
        %v9878 = vsub.f32 %v9830, %v9860
        %v9879 = vsub.f32 %v9831, %v9862
        %v9880 = vsub.f32 %v9832, %v9864
        %v9881 = vmul.f32 %v9865, 1.442695
        %v9882 = vpow.pop %v9881
        %v9883 = vmul.f32 %v9866, 1.442695
        %v9884 = vpow.pop %v9883
        %v9885 = vmul.f32 %v9867, 1.442695
        %v9886 = vpow.pop %v9885
        %v9887 = vmul.f32 %v9868, 1.442695
        %v9888 = vpow.pop %v9887
        %v9889 = vmul.f32 %v9869, 1.442695
        %v9890 = vpow.pop %v9889
        %v9891 = vmul.f32 %v9870, 1.442695
        %v9892 = vpow.pop %v9891
        %v9893 = vmul.f32 %v9871, 1.442695
        %v9894 = vpow.pop %v9893
        %v9895 = vmul.f32 %v9872, 1.442695
        %v9896 = vpow.pop %v9895
        %v9897 = vmul.f32 %v9873, 1.442695
        %v9898 = vpow.pop %v9897
        %v9899 = vmul.f32 %v9874, 1.442695
        %v9900 = vpow.pop %v9899
        %v9901 = vmul.f32 %v9875, 1.442695
        %v9902 = vpow.pop %v9901
        %v9903 = vmul.f32 %v9876, 1.442695
        %v9904 = vpow.pop %v9903
        %v9905 = vmul.f32 %v9877, 1.442695
        %v9906 = vpow.pop %v9905
        %v9907 = vmul.f32 %v9878, 1.442695
        %v9908 = vpow.pop %v9907
        %v9909 = vmul.f32 %v9879, 1.442695
        %v9910 = vpow.pop %v9909
        %v9911 = vmul.f32 %v9880, 1.442695
        %v9912 = vpow.pop %v9911
        %9913 = vadd.xlane.f32.xlu0 %v9882
        %v9914 = vpop.xlane.xlu0 %9913
        %9915 = vadd.xlane.f32.xlu0 %v9884
        %v9916 = vpop.xlane.xlu0 %9915
        %9917 = vadd.xlane.f32.xlu0 %v9886
        %v9918 = vpop.xlane.xlu0 %9917
        %9919 = vadd.xlane.f32.xlu0 %v9888
        %v9920 = vpop.xlane.xlu0 %9919
        %9921 = vadd.xlane.f32.xlu0 %v9890
        %v9922 = vpop.xlane.xlu0 %9921
        %9923 = vadd.xlane.f32.xlu0 %v9892
        %v9924 = vpop.xlane.xlu0 %9923
        %9925 = vadd.xlane.f32.xlu0 %v9894
        %v9926 = vpop.xlane.xlu0 %9925
        %9927 = vadd.xlane.f32.xlu0 %v9896
        %v9928 = vpop.xlane.xlu0 %9927
        %9929 = vadd.xlane.f32.xlu0 %v9898
        %v9930 = vpop.xlane.xlu0 %9929
        %9931 = vadd.xlane.f32.xlu0 %v9900
        %v9932 = vpop.xlane.xlu0 %9931
        %9933 = vadd.xlane.f32.xlu0 %v9902
        %v9934 = vpop.xlane.xlu0 %9933
        %9935 = vadd.xlane.f32.xlu0 %v9904
        %v9936 = vpop.xlane.xlu0 %9935
        %9937 = vadd.xlane.f32.xlu0 %v9906
        %v9938 = vpop.xlane.xlu0 %9937
        %9939 = vadd.xlane.f32.xlu0 %v9908
        %v9940 = vpop.xlane.xlu0 %9939
        %9941 = vadd.xlane.f32.xlu0 %v9910
        %v9942 = vpop.xlane.xlu0 %9941
        %9943 = vadd.xlane.f32.xlu0 %v9912
        %v9944 = vpop.xlane.xlu0 %9943
        %v9945 = vrcp.pop %v9914
        %v9946 = vrcp.pop %v9916
        %v9947 = vrcp.pop %v9918
        %v9948 = vrcp.pop %v9920
        %v9949 = vrcp.pop %v9922
        %v9950 = vrcp.pop %v9924
        %v9951 = vrcp.pop %v9926
        %v9952 = vrcp.pop %v9928
        %v9953 = vrcp.pop %v9930
        %v9954 = vrcp.pop %v9932
        %v9955 = vrcp.pop %v9934
        %v9956 = vrcp.pop %v9936
        %v9957 = vrcp.pop %v9938
        %v9958 = vrcp.pop %v9940
        %v9959 = vrcp.pop %v9942
        %v9960 = vrcp.pop %v9944
        %v9961 = vmul.f32 %v9882, %v9945
        %v9962 = vmul.f32 %v9884, %v9946
        %v9963 = vmul.f32 %v9886, %v9947
        %v9964 = vmul.f32 %v9888, %v9948
        %v9965 = vmul.f32 %v9890, %v9949
        %v9966 = vmul.f32 %v9892, %v9950
        %v9967 = vmul.f32 %v9894, %v9951
        %v9968 = vmul.f32 %v9896, %v9952
        %v9969 = vmul.f32 %v9898, %v9953
        %v9970 = vmul.f32 %v9900, %v9954
        %v9971 = vmul.f32 %v9902, %v9955
        %v9972 = vmul.f32 %v9904, %v9956
        %v9973 = vmul.f32 %v9906, %v9957
        %v9974 = vmul.f32 %v9908, %v9958
        %v9975 = vmul.f32 %v9910, %v9959
        %v9976 = vmul.f32 %v9912, %v9960
        %v9977 = vpack.c.bf16 %v9962, %v9961
        %v9978 = vpack.c.bf16 %v9964, %v9963
        %v9979 = vpack.c.bf16 %v9966, %v9965
        %v9980 = vpack.c.bf16 %v9968, %v9967
        %v9981 = vpack.c.bf16 %v9970, %v9969
        %v9982 = vpack.c.bf16 %v9972, %v9971
        %v9983 = vpack.c.bf16 %v9974, %v9973
        %v9984 = vpack.c.bf16 %v9976, %v9975
        %9985 = vmatprep.subr.bf16.mxu0 0
        %9986 = vmatpush1.bf16.msra.mxu0 %v3746
        %9987 = vmatprep.subr.bf16.mxu0 0
        %9988 = vmatpush1.bf16.msra.mxu0 %v3737
        %9989 = vmatprep.subr.bf16.mxu0 0
        %9990 = vmatpush1.bf16.msra.mxu0 %v3728
        %9991 = vmatprep.subr.bf16.mxu0 0
        %9992 = vmatpush1.bf16.msra.mxu0 %v3719
        %9993 = vmatprep.subr.bf16.mxu0 0
        %9994 = vmatpush1.bf16.msra.mxu0 %v3710
        %9995 = vmatprep.subr.bf16.mxu0 0
        %9996 = vmatpush1.bf16.msra.mxu0 %v3701
        %9997 = vmatprep.subr.bf16.mxu0 0
        %9998 = vmatpush1.bf16.msra.mxu0 %v3692
        %9999 = vmatprep.subr.bf16.mxu0 0
        %10000 = vmatpush1.bf16.msra.mxu0 %v3683
        %10001 = vmatprep.subr.bf16.mxu0 0
        %10002 = vmatpush2.bf16.msra.mxu0 0
        %10003 = vmatprep.subr.bf16.mxu0 0
        %10004 = vmatpush2.bf16.msra.mxu0 0
        %10005 = vmatprep.subr.bf16.mxu0 0
        %10006 = vmatpush2.bf16.msra.mxu0 0
        %10007 = vmatprep.subr.bf16.mxu0 0
        %10008 = vmatpush2.bf16.msra.mxu0 0
        %10009 = vmatprep.subr.bf16.mxu0 0
        %10010 = vmatpush2.bf16.msra.mxu0 0
        %10011 = vmatprep.subr.bf16.mxu0 0
        %10012 = vmatpush2.bf16.msra.mxu0 0
        %10013 = vmatprep.subr.bf16.mxu0 0
        %10014 = vmatpush2.bf16.msra.mxu0 0
        %10015 = vmatprep.subr.bf16.mxu0 0
        %10016 = vmatpush2.bf16.msra.mxu0 0
        %10017 = vmatprep.mubr.bf16.mxu0 0
        %10018 = vmatmul.mubr.bf16.gmra.mxu0 %v9977
        %v10019 = vpop.f32.mrf.mxu0
        %v10020 = vadd.f32 0.0, %v10019
        %v10021 = vpop.f32.mrf.mxu0
        %v10022 = vpop.f32.mrf.mxu0
        %v10023 = vadd.f32 0.0, %v10022
        %v10024 = vpop.f32.mrf.mxu0
        %10025 = vmatprep.mubr.bf16.mxu0 0
        %10026 = vmatmul.mubr.bf16.gmra.mxu0 %v9978
        %v10027 = vpop.f32.mrf.mxu0
        %v10028 = vadd.f32 0.0, %v10027
        %v10029 = vpop.f32.mrf.mxu0
        %v10030 = vpop.f32.mrf.mxu0
        %v10031 = vadd.f32 0.0, %v10030
        %v10032 = vpop.f32.mrf.mxu0
        %10033 = vmatprep.mubr.bf16.mxu0 0
        %10034 = vmatmul.mubr.bf16.gmra.mxu0 %v9979
        %v10035 = vpop.f32.mrf.mxu0
        %v10036 = vadd.f32 0.0, %v10035
        %v10037 = vpop.f32.mrf.mxu0
        %v10038 = vpop.f32.mrf.mxu0
        %v10039 = vadd.f32 0.0, %v10038
        %v10040 = vpop.f32.mrf.mxu0
        %10041 = vmatprep.mubr.bf16.mxu0 0
        %10042 = vmatmul.mubr.bf16.gmra.mxu0 %v9980
        %v10043 = vpop.f32.mrf.mxu0
        %v10044 = vadd.f32 0.0, %v10043
        %v10045 = vpop.f32.mrf.mxu0
        %v10046 = vpop.f32.mrf.mxu0
        %v10047 = vadd.f32 0.0, %v10046
        %v10048 = vpop.f32.mrf.mxu0
        %10049 = vmatprep.mubr.bf16.mxu0 0
        %10050 = vmatmul.mubr.bf16.gmra.mxu0 %v9981
        %v10051 = vpop.f32.mrf.mxu0
        %v10052 = vadd.f32 0.0, %v10051
        %v10053 = vpop.f32.mrf.mxu0
        %v10054 = vpop.f32.mrf.mxu0
        %v10055 = vadd.f32 0.0, %v10054
        %v10056 = vpop.f32.mrf.mxu0
        %10057 = vmatprep.mubr.bf16.mxu0 0
        %10058 = vmatmul.mubr.bf16.gmra.mxu0 %v9982
        %v10059 = vpop.f32.mrf.mxu0
        %v10060 = vadd.f32 0.0, %v10059
        %v10061 = vpop.f32.mrf.mxu0
        %v10062 = vpop.f32.mrf.mxu0
        %v10063 = vadd.f32 0.0, %v10062
        %v10064 = vpop.f32.mrf.mxu0
        %10065 = vmatprep.mubr.bf16.mxu0 0
        %10066 = vmatmul.mubr.bf16.gmra.mxu0 %v9983
        %v10067 = vpop.f32.mrf.mxu0
        %v10068 = vadd.f32 0.0, %v10067
        %v10069 = vpop.f32.mrf.mxu0
        %v10070 = vpop.f32.mrf.mxu0
        %v10071 = vadd.f32 0.0, %v10070
        %v10072 = vpop.f32.mrf.mxu0
        %10073 = vmatprep.mubr.bf16.mxu0 0
        %10074 = vmatmul.mubr.bf16.gmra.mxu0 %v9984
        %v10075 = vpop.f32.mrf.mxu0
        %v10076 = vadd.f32 0.0, %v10075
        %v10077 = vpop.f32.mrf.mxu0
        %v10078 = vpop.f32.mrf.mxu0
        %v10079 = vadd.f32 0.0, %v10078
        %v10080 = vpop.f32.mrf.mxu0
        %10081 = vdwg.mxu0
        %v10082 = vpack.c.bf16 %v10023, %v10020
        %v10083 = vpack.c.bf16 %v10031, %v10028
        %v10084 = vpack.c.bf16 %v10039, %v10036
        %v10085 = vpack.c.bf16 %v10047, %v10044
        %v10086 = vpack.c.bf16 %v10055, %v10052
        %v10087 = vpack.c.bf16 %v10063, %v10060
        %v10088 = vpack.c.bf16 %v10071, %v10068
        %v10089 = vpack.c.bf16 %v10079, %v10076
        %10098 = vrot.lane.b32.xlu0 %v3677, 64
        %v10099 = vpop.permute.xlu0 %10098
        %10100 = vrot.lane.b32.xlu0 %v3686, 64
        %v10101 = vpop.permute.xlu0 %10100
        %10102 = vrot.lane.b32.xlu0 %v3695, 64
        %v10103 = vpop.permute.xlu0 %10102
        %10104 = vrot.lane.b32.xlu0 %v3704, 64
        %v10105 = vpop.permute.xlu0 %10104
        %10106 = vrot.lane.b32.xlu0 %v3713, 64
        %v10107 = vpop.permute.xlu0 %10106
        %10108 = vrot.lane.b32.xlu0 %v3722, 64
        %v10109 = vpop.permute.xlu0 %10108
        %10110 = vrot.lane.b32.xlu0 %v3731, 64
        %v10111 = vpop.permute.xlu0 %10110
        %10112 = vrot.lane.b32.xlu0 %v3740, 64
        %v10113 = vpop.permute.xlu0 %10112
        %10122 = vrot.lane.b32.xlu0 %v3680, 64
        %v10123 = vpop.permute.xlu0 %10122
        %10124 = vrot.lane.b32.xlu0 %v3689, 64
        %v10125 = vpop.permute.xlu0 %10124
        %10126 = vrot.lane.b32.xlu0 %v3698, 64
        %v10127 = vpop.permute.xlu0 %10126
        %10128 = vrot.lane.b32.xlu0 %v3707, 64
        %v10129 = vpop.permute.xlu0 %10128
        %10130 = vrot.lane.b32.xlu0 %v3716, 64
        %v10131 = vpop.permute.xlu0 %10130
        %10132 = vrot.lane.b32.xlu0 %v3725, 64
        %v10133 = vpop.permute.xlu0 %10132
        %10134 = vrot.lane.b32.xlu0 %v3734, 64
        %v10135 = vpop.permute.xlu0 %10134
        %10136 = vrot.lane.b32.xlu0 %v3743, 64
        %v10137 = vpop.permute.xlu0 %10136
        %v10139 = vsel %vm3879, %v10099, 0
        %v10142 = vsel %vm3879, %v10101, 0
        %v10145 = vsel %vm3879, %v10103, 0
        %v10148 = vsel %vm3879, %v10105, 0
        %v10151 = vsel %vm3879, %v10107, 0
        %v10154 = vsel %vm3879, %v10109, 0
        %v10157 = vsel %vm3879, %v10111, 0
        %v10160 = vsel %vm3879, %v10113, 0
        %v10163 = vsel %vm3879, %v10123, 0
        %v10166 = vsel %vm3879, %v10125, 0
        %v10169 = vsel %vm3879, %v10127, 0
        %v10172 = vsel %vm3879, %v10129, 0
        %v10175 = vsel %vm3879, %v10131, 0
        %v10178 = vsel %vm3879, %v10133, 0
        %v10181 = vsel %vm3879, %v10135, 0
        %v10184 = vsel %vm3879, %v10137, 0
        %10186 = vmatprep.subr.bf16.mxu0 0
        %10187 = vmatpush1.bf16.xpose.msra.mxu0 %v10184
        %10188 = vmatprep.subr.bf16.mxu0 0
        %10189 = vmatpush1.bf16.xpose.msra.mxu0 %v10181
        %10190 = vmatprep.subr.bf16.mxu0 0
        %10191 = vmatpush1.bf16.xpose.msra.mxu0 %v10178
        %10192 = vmatprep.subr.bf16.mxu0 0
        %10193 = vmatpush1.bf16.xpose.msra.mxu0 %v10175
        %10194 = vmatprep.subr.bf16.mxu0 0
        %10195 = vmatpush1.bf16.xpose.msra.mxu0 %v10172
        %10196 = vmatprep.subr.bf16.mxu0 0
        %10197 = vmatpush1.bf16.xpose.msra.mxu0 %v10169
        %10198 = vmatprep.subr.bf16.mxu0 0
        %10199 = vmatpush1.bf16.xpose.msra.mxu0 %v10166
        %10200 = vmatprep.subr.bf16.mxu0 0
        %10201 = vmatpush1.bf16.xpose.msra.mxu0 %v10163
        %10202 = vmatprep.subr.bf16.mxu0 0
        %10203 = vmatpush2.bf16.xpose.msra.mxu0 0
        %10204 = vmatprep.subr.bf16.mxu0 0
        %10205 = vmatpush2.bf16.xpose.msra.mxu0 0
        %10206 = vmatprep.subr.bf16.mxu0 0
        %10207 = vmatpush2.bf16.xpose.msra.mxu0 0
        %10208 = vmatprep.subr.bf16.mxu0 0
        %10209 = vmatpush2.bf16.xpose.msra.mxu0 0
        %10210 = vmatprep.subr.bf16.mxu0 0
        %10211 = vmatpush2.bf16.xpose.msra.mxu0 0
        %10212 = vmatprep.subr.bf16.mxu0 0
        %10213 = vmatpush2.bf16.xpose.msra.mxu0 0
        %10214 = vmatprep.subr.bf16.mxu0 0
        %10215 = vmatpush2.bf16.xpose.msra.mxu0 0
        %10216 = vmatprep.subr.bf16.mxu0 0
        %10217 = vmatpush2.bf16.xpose.msra.mxu0 0
        %10218 = vmatprep.mubr.bf16.mxu0 0
        %10219 = vmatmul.mubr.bf16.gmra.mxu0 %v10139
        %v10220 = vpop.f32.mrf.mxu0
        %v10221 = vadd.f32 0.0, %v10220
        %v10222 = vpop.f32.mrf.mxu0
        %v10223 = vpop.f32.mrf.mxu0
        %v10224 = vadd.f32 0.0, %v10223
        %v10225 = vpop.f32.mrf.mxu0
        %10226 = vmatprep.mubr.bf16.mxu0 0
        %10227 = vmatmul.mubr.bf16.gmra.mxu0 %v10142
        %v10228 = vpop.f32.mrf.mxu0
        %v10229 = vadd.f32 0.0, %v10228
        %v10230 = vpop.f32.mrf.mxu0
        %v10231 = vpop.f32.mrf.mxu0
        %v10232 = vadd.f32 0.0, %v10231
        %v10233 = vpop.f32.mrf.mxu0
        %10234 = vmatprep.mubr.bf16.mxu0 0
        %10235 = vmatmul.mubr.bf16.gmra.mxu0 %v10145
        %v10236 = vpop.f32.mrf.mxu0
        %v10237 = vadd.f32 0.0, %v10236
        %v10238 = vpop.f32.mrf.mxu0
        %v10239 = vpop.f32.mrf.mxu0
        %v10240 = vadd.f32 0.0, %v10239
        %v10241 = vpop.f32.mrf.mxu0
        %10242 = vmatprep.mubr.bf16.mxu0 0
        %10243 = vmatmul.mubr.bf16.gmra.mxu0 %v10148
        %v10244 = vpop.f32.mrf.mxu0
        %v10245 = vadd.f32 0.0, %v10244
        %v10246 = vpop.f32.mrf.mxu0
        %v10247 = vpop.f32.mrf.mxu0
        %v10248 = vadd.f32 0.0, %v10247
        %v10249 = vpop.f32.mrf.mxu0
        %10250 = vmatprep.mubr.bf16.mxu0 0
        %10251 = vmatmul.mubr.bf16.gmra.mxu0 %v10151
        %v10252 = vpop.f32.mrf.mxu0
        %v10253 = vadd.f32 0.0, %v10252
        %v10254 = vpop.f32.mrf.mxu0
        %v10255 = vpop.f32.mrf.mxu0
        %v10256 = vadd.f32 0.0, %v10255
        %v10257 = vpop.f32.mrf.mxu0
        %10258 = vmatprep.mubr.bf16.mxu0 0
        %10259 = vmatmul.mubr.bf16.gmra.mxu0 %v10154
        %v10260 = vpop.f32.mrf.mxu0
        %v10261 = vadd.f32 0.0, %v10260
        %v10262 = vpop.f32.mrf.mxu0
        %v10263 = vpop.f32.mrf.mxu0
        %v10264 = vadd.f32 0.0, %v10263
        %v10265 = vpop.f32.mrf.mxu0
        %10266 = vmatprep.mubr.bf16.mxu0 0
        %10267 = vmatmul.mubr.bf16.gmra.mxu0 %v10157
        %v10268 = vpop.f32.mrf.mxu0
        %v10269 = vadd.f32 0.0, %v10268
        %v10270 = vpop.f32.mrf.mxu0
        %v10271 = vpop.f32.mrf.mxu0
        %v10272 = vadd.f32 0.0, %v10271
        %v10273 = vpop.f32.mrf.mxu0
        %10274 = vmatprep.mubr.bf16.mxu0 0
        %10275 = vmatmul.mubr.bf16.gmra.mxu0 %v10160
        %v10276 = vpop.f32.mrf.mxu0
        %v10277 = vadd.f32 0.0, %v10276
        %v10278 = vpop.f32.mrf.mxu0
        %v10279 = vpop.f32.mrf.mxu0
        %v10280 = vadd.f32 0.0, %v10279
        %v10281 = vpop.f32.mrf.mxu0
        %10282 = vdwg.mxu0
        %v10283 = vmul.f32 %v10221, 0.05103104
        %v10284 = vmul.f32 %v10224, 0.05103104
        %v10285 = vmul.f32 %v10229, 0.05103104
        %v10286 = vmul.f32 %v10232, 0.05103104
        %v10287 = vmul.f32 %v10237, 0.05103104
        %v10288 = vmul.f32 %v10240, 0.05103104
        %v10289 = vmul.f32 %v10245, 0.05103104
        %v10290 = vmul.f32 %v10248, 0.05103104
        %v10291 = vmul.f32 %v10253, 0.05103104
        %v10292 = vmul.f32 %v10256, 0.05103104
        %v10293 = vmul.f32 %v10261, 0.05103104
        %v10294 = vmul.f32 %v10264, 0.05103104
        %v10295 = vmul.f32 %v10269, 0.05103104
        %v10296 = vmul.f32 %v10272, 0.05103104
        %v10297 = vmul.f32 %v10277, 0.05103104
        %v10298 = vmul.f32 %v10280, 0.05103104
        %v10299 = vsel %vm3863, %v10283, -1e+30
        %v10300 = vsel %vm3864, %v10284, -1e+30
        %v10301 = vsel %vm3865, %v10285, -1e+30
        %v10302 = vsel %vm3866, %v10286, -1e+30
        %v10303 = vsel %vm3867, %v10287, -1e+30
        %v10304 = vsel %vm3868, %v10288, -1e+30
        %v10305 = vsel %vm3869, %v10289, -1e+30
        %v10306 = vsel %vm3870, %v10290, -1e+30
        %v10307 = vsel %vm3871, %v10291, -1e+30
        %v10308 = vsel %vm3872, %v10292, -1e+30
        %v10309 = vsel %vm3873, %v10293, -1e+30
        %v10310 = vsel %vm3874, %v10294, -1e+30
        %v10311 = vsel %vm3875, %v10295, -1e+30
        %v10312 = vsel %vm3876, %v10296, -1e+30
        %v10313 = vsel %vm3877, %v10297, -1e+30
        %v10314 = vsel %vm3878, %v10298, -1e+30
        %10315 = vmax.xlane.f32.xlu0 %v10299
        %v10316 = vpop.xlane.xlu0 %10315
        %10317 = vmax.xlane.f32.xlu0 %v10300
        %v10318 = vpop.xlane.xlu0 %10317
        %10319 = vmax.xlane.f32.xlu0 %v10301
        %v10320 = vpop.xlane.xlu0 %10319
        %10321 = vmax.xlane.f32.xlu0 %v10302
        %v10322 = vpop.xlane.xlu0 %10321
        %10323 = vmax.xlane.f32.xlu0 %v10303
        %v10324 = vpop.xlane.xlu0 %10323
        %10325 = vmax.xlane.f32.xlu0 %v10304
        %v10326 = vpop.xlane.xlu0 %10325
        %10327 = vmax.xlane.f32.xlu0 %v10305
        %v10328 = vpop.xlane.xlu0 %10327
        %10329 = vmax.xlane.f32.xlu0 %v10306
        %v10330 = vpop.xlane.xlu0 %10329
        %10331 = vmax.xlane.f32.xlu0 %v10307
        %v10332 = vpop.xlane.xlu0 %10331
        %10333 = vmax.xlane.f32.xlu0 %v10308
        %v10334 = vpop.xlane.xlu0 %10333
        %10335 = vmax.xlane.f32.xlu0 %v10309
        %v10336 = vpop.xlane.xlu0 %10335
        %10337 = vmax.xlane.f32.xlu0 %v10310
        %v10338 = vpop.xlane.xlu0 %10337
        %10339 = vmax.xlane.f32.xlu0 %v10311
        %v10340 = vpop.xlane.xlu0 %10339
        %10341 = vmax.xlane.f32.xlu0 %v10312
        %v10342 = vpop.xlane.xlu0 %10341
        %10343 = vmax.xlane.f32.xlu0 %v10313
        %v10344 = vpop.xlane.xlu0 %10343
        %10345 = vmax.xlane.f32.xlu0 %v10314
        %v10346 = vpop.xlane.xlu0 %10345
        %v10347 = vsub.f32 %v10299, %v10316
        %v10348 = vsub.f32 %v10300, %v10318
        %v10349 = vsub.f32 %v10301, %v10320
        %v10350 = vsub.f32 %v10302, %v10322
        %v10351 = vsub.f32 %v10303, %v10324
        %v10352 = vsub.f32 %v10304, %v10326
        %v10353 = vsub.f32 %v10305, %v10328
        %v10354 = vsub.f32 %v10306, %v10330
        %v10355 = vsub.f32 %v10307, %v10332
        %v10356 = vsub.f32 %v10308, %v10334
        %v10357 = vsub.f32 %v10309, %v10336
        %v10358 = vsub.f32 %v10310, %v10338
        %v10359 = vsub.f32 %v10311, %v10340
        %v10360 = vsub.f32 %v10312, %v10342
        %v10361 = vsub.f32 %v10313, %v10344
        %v10362 = vsub.f32 %v10314, %v10346
        %v10363 = vmul.f32 %v10347, 1.442695
        %v10364 = vpow.pop %v10363
        %v10365 = vmul.f32 %v10348, 1.442695
        %v10366 = vpow.pop %v10365
        %v10367 = vmul.f32 %v10349, 1.442695
        %v10368 = vpow.pop %v10367
        %v10369 = vmul.f32 %v10350, 1.442695
        %v10370 = vpow.pop %v10369
        %v10371 = vmul.f32 %v10351, 1.442695
        %v10372 = vpow.pop %v10371
        %v10373 = vmul.f32 %v10352, 1.442695
        %v10374 = vpow.pop %v10373
        %v10375 = vmul.f32 %v10353, 1.442695
        %v10376 = vpow.pop %v10375
        %v10377 = vmul.f32 %v10354, 1.442695
        %v10378 = vpow.pop %v10377
        %v10379 = vmul.f32 %v10355, 1.442695
        %v10380 = vpow.pop %v10379
        %v10381 = vmul.f32 %v10356, 1.442695
        %v10382 = vpow.pop %v10381
        %v10383 = vmul.f32 %v10357, 1.442695
        %v10384 = vpow.pop %v10383
        %v10385 = vmul.f32 %v10358, 1.442695
        %v10386 = vpow.pop %v10385
        %v10387 = vmul.f32 %v10359, 1.442695
        %v10388 = vpow.pop %v10387
        %v10389 = vmul.f32 %v10360, 1.442695
        %v10390 = vpow.pop %v10389
        %v10391 = vmul.f32 %v10361, 1.442695
        %v10392 = vpow.pop %v10391
        %v10393 = vmul.f32 %v10362, 1.442695
        %v10394 = vpow.pop %v10393
        %10395 = vadd.xlane.f32.xlu0 %v10364
        %v10396 = vpop.xlane.xlu0 %10395
        %10397 = vadd.xlane.f32.xlu0 %v10366
        %v10398 = vpop.xlane.xlu0 %10397
        %10399 = vadd.xlane.f32.xlu0 %v10368
        %v10400 = vpop.xlane.xlu0 %10399
        %10401 = vadd.xlane.f32.xlu0 %v10370
        %v10402 = vpop.xlane.xlu0 %10401
        %10403 = vadd.xlane.f32.xlu0 %v10372
        %v10404 = vpop.xlane.xlu0 %10403
        %10405 = vadd.xlane.f32.xlu0 %v10374
        %v10406 = vpop.xlane.xlu0 %10405
        %10407 = vadd.xlane.f32.xlu0 %v10376
        %v10408 = vpop.xlane.xlu0 %10407
        %10409 = vadd.xlane.f32.xlu0 %v10378
        %v10410 = vpop.xlane.xlu0 %10409
        %10411 = vadd.xlane.f32.xlu0 %v10380
        %v10412 = vpop.xlane.xlu0 %10411
        %10413 = vadd.xlane.f32.xlu0 %v10382
        %v10414 = vpop.xlane.xlu0 %10413
        %10415 = vadd.xlane.f32.xlu0 %v10384
        %v10416 = vpop.xlane.xlu0 %10415
        %10417 = vadd.xlane.f32.xlu0 %v10386
        %v10418 = vpop.xlane.xlu0 %10417
        %10419 = vadd.xlane.f32.xlu0 %v10388
        %v10420 = vpop.xlane.xlu0 %10419
        %10421 = vadd.xlane.f32.xlu0 %v10390
        %v10422 = vpop.xlane.xlu0 %10421
        %10423 = vadd.xlane.f32.xlu0 %v10392
        %v10424 = vpop.xlane.xlu0 %10423
        %10425 = vadd.xlane.f32.xlu0 %v10394
        %v10426 = vpop.xlane.xlu0 %10425
        %v10427 = vrcp.pop %v10396
        %v10428 = vrcp.pop %v10398
        %v10429 = vrcp.pop %v10400
        %v10430 = vrcp.pop %v10402
        %v10431 = vrcp.pop %v10404
        %v10432 = vrcp.pop %v10406
        %v10433 = vrcp.pop %v10408
        %v10434 = vrcp.pop %v10410
        %v10435 = vrcp.pop %v10412
        %v10436 = vrcp.pop %v10414
        %v10437 = vrcp.pop %v10416
        %v10438 = vrcp.pop %v10418
        %v10439 = vrcp.pop %v10420
        %v10440 = vrcp.pop %v10422
        %v10441 = vrcp.pop %v10424
        %v10442 = vrcp.pop %v10426
        %v10443 = vmul.f32 %v10364, %v10427
        %v10444 = vmul.f32 %v10366, %v10428
        %v10445 = vmul.f32 %v10368, %v10429
        %v10446 = vmul.f32 %v10370, %v10430
        %v10447 = vmul.f32 %v10372, %v10431
        %v10448 = vmul.f32 %v10374, %v10432
        %v10449 = vmul.f32 %v10376, %v10433
        %v10450 = vmul.f32 %v10378, %v10434
        %v10451 = vmul.f32 %v10380, %v10435
        %v10452 = vmul.f32 %v10382, %v10436
        %v10453 = vmul.f32 %v10384, %v10437
        %v10454 = vmul.f32 %v10386, %v10438
        %v10455 = vmul.f32 %v10388, %v10439
        %v10456 = vmul.f32 %v10390, %v10440
        %v10457 = vmul.f32 %v10392, %v10441
        %v10458 = vmul.f32 %v10394, %v10442
        %v10459 = vpack.c.bf16 %v10444, %v10443
        %v10460 = vpack.c.bf16 %v10446, %v10445
        %v10461 = vpack.c.bf16 %v10448, %v10447
        %v10462 = vpack.c.bf16 %v10450, %v10449
        %v10463 = vpack.c.bf16 %v10452, %v10451
        %v10464 = vpack.c.bf16 %v10454, %v10453
        %v10465 = vpack.c.bf16 %v10456, %v10455
        %v10466 = vpack.c.bf16 %v10458, %v10457
        %10475 = vrot.lane.b32.xlu0 %v3683, 64
        %v10476 = vpop.permute.xlu0 %10475
        %10477 = vrot.lane.b32.xlu0 %v3692, 64
        %v10478 = vpop.permute.xlu0 %10477
        %10479 = vrot.lane.b32.xlu0 %v3701, 64
        %v10480 = vpop.permute.xlu0 %10479
        %10481 = vrot.lane.b32.xlu0 %v3710, 64
        %v10482 = vpop.permute.xlu0 %10481
        %10483 = vrot.lane.b32.xlu0 %v3719, 64
        %v10484 = vpop.permute.xlu0 %10483
        %10485 = vrot.lane.b32.xlu0 %v3728, 64
        %v10486 = vpop.permute.xlu0 %10485
        %10487 = vrot.lane.b32.xlu0 %v3737, 64
        %v10488 = vpop.permute.xlu0 %10487
        %10489 = vrot.lane.b32.xlu0 %v3746, 64
        %v10490 = vpop.permute.xlu0 %10489
        %10499 = vmatprep.subr.bf16.mxu0 0
        %10500 = vmatpush1.bf16.msra.mxu0 %v10490
        %10501 = vmatprep.subr.bf16.mxu0 0
        %10502 = vmatpush1.bf16.msra.mxu0 %v10488
        %10503 = vmatprep.subr.bf16.mxu0 0
        %10504 = vmatpush1.bf16.msra.mxu0 %v10486
        %10505 = vmatprep.subr.bf16.mxu0 0
        %10506 = vmatpush1.bf16.msra.mxu0 %v10484
        %10507 = vmatprep.subr.bf16.mxu0 0
        %10508 = vmatpush1.bf16.msra.mxu0 %v10482
        %10509 = vmatprep.subr.bf16.mxu0 0
        %10510 = vmatpush1.bf16.msra.mxu0 %v10480
        %10511 = vmatprep.subr.bf16.mxu0 0
        %10512 = vmatpush1.bf16.msra.mxu0 %v10478
        %10513 = vmatprep.subr.bf16.mxu0 0
        %10514 = vmatpush1.bf16.msra.mxu0 %v10476
        %10515 = vmatprep.subr.bf16.mxu0 0
        %10516 = vmatpush2.bf16.msra.mxu0 0
        %10517 = vmatprep.subr.bf16.mxu0 0
        %10518 = vmatpush2.bf16.msra.mxu0 0
        %10519 = vmatprep.subr.bf16.mxu0 0
        %10520 = vmatpush2.bf16.msra.mxu0 0
        %10521 = vmatprep.subr.bf16.mxu0 0
        %10522 = vmatpush2.bf16.msra.mxu0 0
        %10523 = vmatprep.subr.bf16.mxu0 0
        %10524 = vmatpush2.bf16.msra.mxu0 0
        %10525 = vmatprep.subr.bf16.mxu0 0
        %10526 = vmatpush2.bf16.msra.mxu0 0
        %10527 = vmatprep.subr.bf16.mxu0 0
        %10528 = vmatpush2.bf16.msra.mxu0 0
        %10529 = vmatprep.subr.bf16.mxu0 0
        %10530 = vmatpush2.bf16.msra.mxu0 0
        %10531 = vmatprep.mubr.bf16.mxu0 0
        %10532 = vmatmul.mubr.bf16.gmra.mxu0 %v10459
        %v10533 = vpop.f32.mrf.mxu0
        %v10534 = vadd.f32 0.0, %v10533
        %v10535 = vpop.f32.mrf.mxu0
        %v10536 = vpop.f32.mrf.mxu0
        %v10537 = vadd.f32 0.0, %v10536
        %v10538 = vpop.f32.mrf.mxu0
        %10539 = vmatprep.mubr.bf16.mxu0 0
        %10540 = vmatmul.mubr.bf16.gmra.mxu0 %v10460
        %v10541 = vpop.f32.mrf.mxu0
        %v10542 = vadd.f32 0.0, %v10541
        %v10543 = vpop.f32.mrf.mxu0
        %v10544 = vpop.f32.mrf.mxu0
        %v10545 = vadd.f32 0.0, %v10544
        %v10546 = vpop.f32.mrf.mxu0
        %10547 = vmatprep.mubr.bf16.mxu0 0
        %10548 = vmatmul.mubr.bf16.gmra.mxu0 %v10461
        %v10549 = vpop.f32.mrf.mxu0
        %v10550 = vadd.f32 0.0, %v10549
        %v10551 = vpop.f32.mrf.mxu0
        %v10552 = vpop.f32.mrf.mxu0
        %v10553 = vadd.f32 0.0, %v10552
        %v10554 = vpop.f32.mrf.mxu0
        %10555 = vmatprep.mubr.bf16.mxu0 0
        %10556 = vmatmul.mubr.bf16.gmra.mxu0 %v10462
        %v10557 = vpop.f32.mrf.mxu0
        %v10558 = vadd.f32 0.0, %v10557
        %v10559 = vpop.f32.mrf.mxu0
        %v10560 = vpop.f32.mrf.mxu0
        %v10561 = vadd.f32 0.0, %v10560
        %v10562 = vpop.f32.mrf.mxu0
        %10563 = vmatprep.mubr.bf16.mxu0 0
        %10564 = vmatmul.mubr.bf16.gmra.mxu0 %v10463
        %v10565 = vpop.f32.mrf.mxu0
        %v10566 = vadd.f32 0.0, %v10565
        %v10567 = vpop.f32.mrf.mxu0
        %v10568 = vpop.f32.mrf.mxu0
        %v10569 = vadd.f32 0.0, %v10568
        %v10570 = vpop.f32.mrf.mxu0
        %10571 = vmatprep.mubr.bf16.mxu0 0
        %10572 = vmatmul.mubr.bf16.gmra.mxu0 %v10464
        %v10573 = vpop.f32.mrf.mxu0
        %v10574 = vadd.f32 0.0, %v10573
        %v10575 = vpop.f32.mrf.mxu0
        %v10576 = vpop.f32.mrf.mxu0
        %v10577 = vadd.f32 0.0, %v10576
        %v10578 = vpop.f32.mrf.mxu0
        %10579 = vmatprep.mubr.bf16.mxu0 0
        %10580 = vmatmul.mubr.bf16.gmra.mxu0 %v10465
        %v10581 = vpop.f32.mrf.mxu0
        %v10582 = vadd.f32 0.0, %v10581
        %v10583 = vpop.f32.mrf.mxu0
        %v10584 = vpop.f32.mrf.mxu0
        %v10585 = vadd.f32 0.0, %v10584
        %v10586 = vpop.f32.mrf.mxu0
        %10587 = vmatprep.mubr.bf16.mxu0 0
        %10588 = vmatmul.mubr.bf16.gmra.mxu0 %v10466
        %v10589 = vpop.f32.mrf.mxu0
        %v10590 = vadd.f32 0.0, %v10589
        %v10591 = vpop.f32.mrf.mxu0
        %v10592 = vpop.f32.mrf.mxu0
        %v10593 = vadd.f32 0.0, %v10592
        %v10594 = vpop.f32.mrf.mxu0
        %10595 = vdwg.mxu0
        %v10596 = vpack.c.bf16 %v10537, %v10534
        %v10597 = vpack.c.bf16 %v10545, %v10542
        %v10598 = vpack.c.bf16 %v10553, %v10550
        %v10599 = vpack.c.bf16 %v10561, %v10558
        %v10600 = vpack.c.bf16 %v10569, %v10566
        %v10601 = vpack.c.bf16 %v10577, %v10574
        %v10602 = vpack.c.bf16 %v10585, %v10582
        %v10603 = vpack.c.bf16 %v10593, %v10590
        %10612 = vrot.lane.b32.xlu0 %v8700, 64
        %v10613 = vpop.permute.xlu0 %10612
        %10614 = vrot.lane.b32.xlu0 %v8701, 64
        %v10615 = vpop.permute.xlu0 %10614
        %10616 = vrot.lane.b32.xlu0 %v8702, 64
        %v10617 = vpop.permute.xlu0 %10616
        %10618 = vrot.lane.b32.xlu0 %v8703, 64
        %v10619 = vpop.permute.xlu0 %10618
        %10620 = vrot.lane.b32.xlu0 %v8704, 64
        %v10621 = vpop.permute.xlu0 %10620
        %10622 = vrot.lane.b32.xlu0 %v8705, 64
        %v10623 = vpop.permute.xlu0 %10622
        %10624 = vrot.lane.b32.xlu0 %v8706, 64
        %v10625 = vpop.permute.xlu0 %10624
        %10626 = vrot.lane.b32.xlu0 %v8707, 64
        %v10627 = vpop.permute.xlu0 %10626
        %10636 = vrot.lane.b32.xlu0 %v9648, 64
        %v10637 = vpop.permute.xlu0 %10636
        %10638 = vrot.lane.b32.xlu0 %v9649, 64
        %v10639 = vpop.permute.xlu0 %10638
        %10640 = vrot.lane.b32.xlu0 %v9650, 64
        %v10641 = vpop.permute.xlu0 %10640
        %10642 = vrot.lane.b32.xlu0 %v9651, 64
        %v10643 = vpop.permute.xlu0 %10642
        %10644 = vrot.lane.b32.xlu0 %v9652, 64
        %v10645 = vpop.permute.xlu0 %10644
        %10646 = vrot.lane.b32.xlu0 %v9653, 64
        %v10647 = vpop.permute.xlu0 %10646
        %10648 = vrot.lane.b32.xlu0 %v9654, 64
        %v10649 = vpop.permute.xlu0 %10648
        %10650 = vrot.lane.b32.xlu0 %v9655, 64
        %v10651 = vpop.permute.xlu0 %10650
        %10660 = vrot.lane.b32.xlu0 %v10596, 64
        %v10661 = vpop.permute.xlu0 %10660
        %10662 = vrot.lane.b32.xlu0 %v10597, 64
        %v10663 = vpop.permute.xlu0 %10662
        %10664 = vrot.lane.b32.xlu0 %v10598, 64
        %v10665 = vpop.permute.xlu0 %10664
        %10666 = vrot.lane.b32.xlu0 %v10599, 64
        %v10667 = vpop.permute.xlu0 %10666
        %10668 = vrot.lane.b32.xlu0 %v10600, 64
        %v10669 = vpop.permute.xlu0 %10668
        %10670 = vrot.lane.b32.xlu0 %v10601, 64
        %v10671 = vpop.permute.xlu0 %10670
        %10672 = vrot.lane.b32.xlu0 %v10602, 64
        %v10673 = vpop.permute.xlu0 %10672
        %10674 = vrot.lane.b32.xlu0 %v10603, 64
        %v10675 = vpop.permute.xlu0 %10674
        %v10678 = vsel %vm3879, %v8186, %v10613
        %v10682 = vsel %vm3879, %v8187, %v10615
        %v10686 = vsel %vm3879, %v8188, %v10617
        %v10690 = vsel %vm3879, %v8189, %v10619
        %v10694 = vsel %vm3879, %v8190, %v10621
        %v10698 = vsel %vm3879, %v8191, %v10623
        %v10702 = vsel %vm3879, %v8192, %v10625
        %v10706 = vsel %vm3879, %v8193, %v10627
        %v10710 = vsel %vm3879, %v9134, %v10637
        %v10714 = vsel %vm3879, %v9135, %v10639
        %v10718 = vsel %vm3879, %v9136, %v10641
        %v10722 = vsel %vm3879, %v9137, %v10643
        %v10726 = vsel %vm3879, %v9138, %v10645
        %v10730 = vsel %vm3879, %v9139, %v10647
        %v10734 = vsel %vm3879, %v9140, %v10649
        %v10738 = vsel %vm3879, %v9141, %v10651
        %v10742 = vsel %vm3879, %v10082, %v10661
        %v10746 = vsel %vm3879, %v10083, %v10663
        %v10750 = vsel %vm3879, %v10084, %v10665
        %v10754 = vsel %vm3879, %v10085, %v10667
        %v10758 = vsel %vm3879, %v10086, %v10669
        %v10762 = vsel %vm3879, %v10087, %v10671
        %v10766 = vsel %vm3879, %v10088, %v10673
        %v10770 = vsel %vm3879, %v10089, %v10675
        %10772 = vmatprep.subr.bf16.mxu0 %v7170
        %10773 = vmatpush1.bf16.msra.mxu0 %v7169
        %10774 = vmatprep.subr.bf16.mxu0 %v7167
        %10775 = vmatpush1.bf16.msra.mxu0 %v7166
        %10776 = vmatprep.subr.bf16.mxu0 %v7164
        %10777 = vmatpush1.bf16.msra.mxu0 %v7163
        %10778 = vmatprep.subr.bf16.mxu0 %v7161
        %10779 = vmatpush1.bf16.msra.mxu0 %v7160
        %10780 = vmatprep.subr.bf16.mxu0 %v7158
        %10781 = vmatpush1.bf16.msra.mxu0 %v7157
        %10782 = vmatprep.subr.bf16.mxu0 %v7155
        %10783 = vmatpush1.bf16.msra.mxu0 %v7154
        %10784 = vmatprep.subr.bf16.mxu0 %v7152
        %10785 = vmatpush1.bf16.msra.mxu0 %v7151
        %10786 = vmatprep.subr.bf16.mxu0 %v7149
        %10787 = vmatpush1.bf16.msra.mxu0 %v7148
        %10788 = vmatprep.subr.bf16.mxu0 %v7194
        %10789 = vmatpush2.bf16.msra.mxu0 %v7193
        %10790 = vmatprep.subr.bf16.mxu0 %v7191
        %10791 = vmatpush2.bf16.msra.mxu0 %v7190
        %10792 = vmatprep.subr.bf16.mxu0 %v7188
        %10793 = vmatpush2.bf16.msra.mxu0 %v7187
        %10794 = vmatprep.subr.bf16.mxu0 %v7185
        %10795 = vmatpush2.bf16.msra.mxu0 %v7184
        %10796 = vmatprep.subr.bf16.mxu0 %v7182
        %10797 = vmatpush2.bf16.msra.mxu0 %v7181
        %10798 = vmatprep.subr.bf16.mxu0 %v7179
        %10799 = vmatpush2.bf16.msra.mxu0 %v7178
        %10800 = vmatprep.subr.bf16.mxu0 %v7176
        %10801 = vmatpush2.bf16.msra.mxu0 %v7175
        %10802 = vmatprep.subr.bf16.mxu0 %v7173
        %10803 = vmatpush2.bf16.msra.mxu0 %v7172
        %10804 = vmatprep.mubr.bf16.mxu0 %v10710
        %10805 = vmatmul.mubr.bf16.gmra.mxu0 %v10678
        %v10806 = vpop.f32.mrf.mxu0
        %v10807 = vadd.f32 %v6896, %v10806
        %v10808 = vpop.f32.mrf.mxu0
        %v10809 = vadd.f32 %v6900, %v10808
        %v10810 = vpop.f32.mrf.mxu0
        %v10811 = vadd.f32 %v6896, %v10810
        %v10812 = vpop.f32.mrf.mxu0
        %v10813 = vadd.f32 %v6900, %v10812
        %10814 = vmatprep.mubr.bf16.mxu0 %v10714
        %10815 = vmatmul.mubr.bf16.gmra.mxu0 %v10682
        %v10816 = vpop.f32.mrf.mxu0
        %v10817 = vadd.f32 %v6896, %v10816
        %v10818 = vpop.f32.mrf.mxu0
        %v10819 = vadd.f32 %v6900, %v10818
        %v10820 = vpop.f32.mrf.mxu0
        %v10821 = vadd.f32 %v6896, %v10820
        %v10822 = vpop.f32.mrf.mxu0
        %v10823 = vadd.f32 %v6900, %v10822
        %10824 = vmatprep.mubr.bf16.mxu0 %v10718
        %10825 = vmatmul.mubr.bf16.gmra.mxu0 %v10686
        %v10826 = vpop.f32.mrf.mxu0
        %v10827 = vadd.f32 %v6896, %v10826
        %v10828 = vpop.f32.mrf.mxu0
        %v10829 = vadd.f32 %v6900, %v10828
        %v10830 = vpop.f32.mrf.mxu0
        %v10831 = vadd.f32 %v6896, %v10830
        %v10832 = vpop.f32.mrf.mxu0
        %v10833 = vadd.f32 %v6900, %v10832
        %10834 = vmatprep.mubr.bf16.mxu0 %v10722
        %10835 = vmatmul.mubr.bf16.gmra.mxu0 %v10690
        %v10836 = vpop.f32.mrf.mxu0
        %v10837 = vadd.f32 %v6896, %v10836
        %v10838 = vpop.f32.mrf.mxu0
        %v10839 = vadd.f32 %v6900, %v10838
        %v10840 = vpop.f32.mrf.mxu0
        %v10841 = vadd.f32 %v6896, %v10840
        %v10842 = vpop.f32.mrf.mxu0
        %v10843 = vadd.f32 %v6900, %v10842
        %10844 = vmatprep.mubr.bf16.mxu0 %v10726
        %10845 = vmatmul.mubr.bf16.gmra.mxu0 %v10694
        %v10846 = vpop.f32.mrf.mxu0
        %v10847 = vadd.f32 %v6896, %v10846
        %v10848 = vpop.f32.mrf.mxu0
        %v10849 = vadd.f32 %v6900, %v10848
        %v10850 = vpop.f32.mrf.mxu0
        %v10851 = vadd.f32 %v6896, %v10850
        %v10852 = vpop.f32.mrf.mxu0
        %v10853 = vadd.f32 %v6900, %v10852
        %10854 = vmatprep.mubr.bf16.mxu0 %v10730
        %10855 = vmatmul.mubr.bf16.gmra.mxu0 %v10698
        %v10856 = vpop.f32.mrf.mxu0
        %v10857 = vadd.f32 %v6896, %v10856
        %v10858 = vpop.f32.mrf.mxu0
        %v10859 = vadd.f32 %v6900, %v10858
        %v10860 = vpop.f32.mrf.mxu0
        %v10861 = vadd.f32 %v6896, %v10860
        %v10862 = vpop.f32.mrf.mxu0
        %v10863 = vadd.f32 %v6900, %v10862
        %10864 = vmatprep.mubr.bf16.mxu0 %v10734
        %10865 = vmatmul.mubr.bf16.gmra.mxu0 %v10702
        %v10866 = vpop.f32.mrf.mxu0
        %v10867 = vadd.f32 %v6896, %v10866
        %v10868 = vpop.f32.mrf.mxu0
        %v10869 = vadd.f32 %v6900, %v10868
        %v10870 = vpop.f32.mrf.mxu0
        %v10871 = vadd.f32 %v6896, %v10870
        %v10872 = vpop.f32.mrf.mxu0
        %v10873 = vadd.f32 %v6900, %v10872
        %10874 = vmatprep.mubr.bf16.mxu0 %v10738
        %10875 = vmatmul.mubr.bf16.gmra.mxu0 %v10706
        %v10876 = vpop.f32.mrf.mxu0
        %v10877 = vadd.f32 %v6896, %v10876
        %v10878 = vpop.f32.mrf.mxu0
        %v10879 = vadd.f32 %v6900, %v10878
        %v10880 = vpop.f32.mrf.mxu0
        %v10881 = vadd.f32 %v6896, %v10880
        %v10882 = vpop.f32.mrf.mxu0
        %v10883 = vadd.f32 %v6900, %v10882
        %10884 = vdwg.mxu0
        %10885 = vmatprep.subr.bf16.mxu0 %v7218
        %10886 = vmatpush1.bf16.msra.mxu0 %v7217
        %10887 = vmatprep.subr.bf16.mxu0 %v7215
        %10888 = vmatpush1.bf16.msra.mxu0 %v7214
        %10889 = vmatprep.subr.bf16.mxu0 %v7212
        %10890 = vmatpush1.bf16.msra.mxu0 %v7211
        %10891 = vmatprep.subr.bf16.mxu0 %v7209
        %10892 = vmatpush1.bf16.msra.mxu0 %v7208
        %10893 = vmatprep.subr.bf16.mxu0 %v7206
        %10894 = vmatpush1.bf16.msra.mxu0 %v7205
        %10895 = vmatprep.subr.bf16.mxu0 %v7203
        %10896 = vmatpush1.bf16.msra.mxu0 %v7202
        %10897 = vmatprep.subr.bf16.mxu0 %v7200
        %10898 = vmatpush1.bf16.msra.mxu0 %v7199
        %10899 = vmatprep.subr.bf16.mxu0 %v7197
        %10900 = vmatpush1.bf16.msra.mxu0 %v7196
        %10901 = vmatprep.subr.bf16.mxu0 0
        %10902 = vmatpush2.bf16.msra.mxu0 0
        %10903 = vmatprep.subr.bf16.mxu0 0
        %10904 = vmatpush2.bf16.msra.mxu0 0
        %10905 = vmatprep.subr.bf16.mxu0 0
        %10906 = vmatpush2.bf16.msra.mxu0 0
        %10907 = vmatprep.subr.bf16.mxu0 0
        %10908 = vmatpush2.bf16.msra.mxu0 0
        %10909 = vmatprep.subr.bf16.mxu0 0
        %10910 = vmatpush2.bf16.msra.mxu0 0
        %10911 = vmatprep.subr.bf16.mxu0 0
        %10912 = vmatpush2.bf16.msra.mxu0 0
        %10913 = vmatprep.subr.bf16.mxu0 0
        %10914 = vmatpush2.bf16.msra.mxu0 0
        %10915 = vmatprep.subr.bf16.mxu0 0
        %10916 = vmatpush2.bf16.msra.mxu0 0
        %10917 = vmatprep.mubr.bf16.mxu0 0
        %10918 = vmatmul.mubr.bf16.gmra.mxu0 %v10742
        %v10919 = vpop.f32.mrf.mxu0
        %v10920 = vadd.f32 %v10807, %v10919
        %v10921 = vpop.f32.mrf.mxu0
        %v10922 = vadd.f32 %v10809, %v10921
        %v10923 = vpop.f32.mrf.mxu0
        %v10924 = vadd.f32 %v10811, %v10923
        %v10925 = vpop.f32.mrf.mxu0
        %v10926 = vadd.f32 %v10813, %v10925
        %10927 = vmatprep.mubr.bf16.mxu0 0
        %10928 = vmatmul.mubr.bf16.gmra.mxu0 %v10746
        %v10929 = vpop.f32.mrf.mxu0
        %v10930 = vadd.f32 %v10817, %v10929
        %v10931 = vpop.f32.mrf.mxu0
        %v10932 = vadd.f32 %v10819, %v10931
        %v10933 = vpop.f32.mrf.mxu0
        %v10934 = vadd.f32 %v10821, %v10933
        %v10935 = vpop.f32.mrf.mxu0
        %v10936 = vadd.f32 %v10823, %v10935
        %10937 = vmatprep.mubr.bf16.mxu0 0
        %10938 = vmatmul.mubr.bf16.gmra.mxu0 %v10750
        %v10939 = vpop.f32.mrf.mxu0
        %v10940 = vadd.f32 %v10827, %v10939
        %v10941 = vpop.f32.mrf.mxu0
        %v10942 = vadd.f32 %v10829, %v10941
        %v10943 = vpop.f32.mrf.mxu0
        %v10944 = vadd.f32 %v10831, %v10943
        %v10945 = vpop.f32.mrf.mxu0
        %v10946 = vadd.f32 %v10833, %v10945
        %10947 = vmatprep.mubr.bf16.mxu0 0
        %10948 = vmatmul.mubr.bf16.gmra.mxu0 %v10754
        %v10949 = vpop.f32.mrf.mxu0
        %v10950 = vadd.f32 %v10837, %v10949
        %v10951 = vpop.f32.mrf.mxu0
        %v10952 = vadd.f32 %v10839, %v10951
        %v10953 = vpop.f32.mrf.mxu0
        %v10954 = vadd.f32 %v10841, %v10953
        %v10955 = vpop.f32.mrf.mxu0
        %v10956 = vadd.f32 %v10843, %v10955
        %10957 = vmatprep.mubr.bf16.mxu0 0
        %10958 = vmatmul.mubr.bf16.gmra.mxu0 %v10758
        %v10959 = vpop.f32.mrf.mxu0
        %v10960 = vadd.f32 %v10847, %v10959
        %v10961 = vpop.f32.mrf.mxu0
        %v10962 = vadd.f32 %v10849, %v10961
        %v10963 = vpop.f32.mrf.mxu0
        %v10964 = vadd.f32 %v10851, %v10963
        %v10965 = vpop.f32.mrf.mxu0
        %v10966 = vadd.f32 %v10853, %v10965
        %10967 = vmatprep.mubr.bf16.mxu0 0
        %10968 = vmatmul.mubr.bf16.gmra.mxu0 %v10762
        %v10969 = vpop.f32.mrf.mxu0
        %v10970 = vadd.f32 %v10857, %v10969
        %v10971 = vpop.f32.mrf.mxu0
        %v10972 = vadd.f32 %v10859, %v10971
        %v10973 = vpop.f32.mrf.mxu0
        %v10974 = vadd.f32 %v10861, %v10973
        %v10975 = vpop.f32.mrf.mxu0
        %v10976 = vadd.f32 %v10863, %v10975
        %10977 = vmatprep.mubr.bf16.mxu0 0
        %10978 = vmatmul.mubr.bf16.gmra.mxu0 %v10766
        %v10979 = vpop.f32.mrf.mxu0
        %v10980 = vadd.f32 %v10867, %v10979
        %v10981 = vpop.f32.mrf.mxu0
        %v10982 = vadd.f32 %v10869, %v10981
        %v10983 = vpop.f32.mrf.mxu0
        %v10984 = vadd.f32 %v10871, %v10983
        %v10985 = vpop.f32.mrf.mxu0
        %v10986 = vadd.f32 %v10873, %v10985
        %10987 = vmatprep.mubr.bf16.mxu0 0
        %10988 = vmatmul.mubr.bf16.gmra.mxu0 %v10770
        %v10989 = vpop.f32.mrf.mxu0
        %v10990 = vadd.f32 %v10877, %v10989
        %v10991 = vpop.f32.mrf.mxu0
        %v10992 = vadd.f32 %v10879, %v10991
        %v10993 = vpop.f32.mrf.mxu0
        %v10994 = vadd.f32 %v10881, %v10993
        %v10995 = vpop.f32.mrf.mxu0
        %v10996 = vadd.f32 %v10883, %v10995
        %10997 = vdwg.mxu0
        %10998 = vmatprep.subr.bf16.mxu0 0
        %10999 = vmatpush1.bf16.msra.mxu0 %v7171
        %11000 = vmatprep.subr.bf16.mxu0 0
        %11001 = vmatpush1.bf16.msra.mxu0 %v7168
        %11002 = vmatprep.subr.bf16.mxu0 0
        %11003 = vmatpush1.bf16.msra.mxu0 %v7165
        %11004 = vmatprep.subr.bf16.mxu0 0
        %11005 = vmatpush1.bf16.msra.mxu0 %v7162
        %11006 = vmatprep.subr.bf16.mxu0 0
        %11007 = vmatpush1.bf16.msra.mxu0 %v7159
        %11008 = vmatprep.subr.bf16.mxu0 0
        %11009 = vmatpush1.bf16.msra.mxu0 %v7156
        %11010 = vmatprep.subr.bf16.mxu0 0
        %11011 = vmatpush1.bf16.msra.mxu0 %v7153
        %11012 = vmatprep.subr.bf16.mxu0 0
        %11013 = vmatpush1.bf16.msra.mxu0 %v7150
        %11014 = vmatprep.subr.bf16.mxu0 0
        %11015 = vmatpush2.bf16.msra.mxu0 %v7195
        %11016 = vmatprep.subr.bf16.mxu0 0
        %11017 = vmatpush2.bf16.msra.mxu0 %v7192
        %11018 = vmatprep.subr.bf16.mxu0 0
        %11019 = vmatpush2.bf16.msra.mxu0 %v7189
        %11020 = vmatprep.subr.bf16.mxu0 0
        %11021 = vmatpush2.bf16.msra.mxu0 %v7186
        %11022 = vmatprep.subr.bf16.mxu0 0
        %11023 = vmatpush2.bf16.msra.mxu0 %v7183
        %11024 = vmatprep.subr.bf16.mxu0 0
        %11025 = vmatpush2.bf16.msra.mxu0 %v7180
        %11026 = vmatprep.subr.bf16.mxu0 0
        %11027 = vmatpush2.bf16.msra.mxu0 %v7177
        %11028 = vmatprep.subr.bf16.mxu0 0
        %11029 = vmatpush2.bf16.msra.mxu0 %v7174
        %11030 = vmatprep.mubr.bf16.mxu0 %v10710
        %11031 = vmatmul.mubr.bf16.gmra.mxu0 %v10678
        %v11032 = vpop.f32.mrf.mxu0
        %v11033 = vadd.f32 %v6904, %v11032
        %v11034 = vpop.f32.mrf.mxu0
        %v11035 = vpop.f32.mrf.mxu0
        %v11036 = vadd.f32 %v6904, %v11035
        %v11037 = vpop.f32.mrf.mxu0
        %11038 = vmatprep.mubr.bf16.mxu0 %v10714
        %11039 = vmatmul.mubr.bf16.gmra.mxu0 %v10682
        %v11040 = vpop.f32.mrf.mxu0
        %v11041 = vadd.f32 %v6904, %v11040
        %v11042 = vpop.f32.mrf.mxu0
        %v11043 = vpop.f32.mrf.mxu0
        %v11044 = vadd.f32 %v6904, %v11043
        %v11045 = vpop.f32.mrf.mxu0
        %11046 = vmatprep.mubr.bf16.mxu0 %v10718
        %11047 = vmatmul.mubr.bf16.gmra.mxu0 %v10686
        %v11048 = vpop.f32.mrf.mxu0
        %v11049 = vadd.f32 %v6904, %v11048
        %v11050 = vpop.f32.mrf.mxu0
        %v11051 = vpop.f32.mrf.mxu0
        %v11052 = vadd.f32 %v6904, %v11051
        %v11053 = vpop.f32.mrf.mxu0
        %11054 = vmatprep.mubr.bf16.mxu0 %v10722
        %11055 = vmatmul.mubr.bf16.gmra.mxu0 %v10690
        %v11056 = vpop.f32.mrf.mxu0
        %v11057 = vadd.f32 %v6904, %v11056
        %v11058 = vpop.f32.mrf.mxu0
        %v11059 = vpop.f32.mrf.mxu0
        %v11060 = vadd.f32 %v6904, %v11059
        %v11061 = vpop.f32.mrf.mxu0
        %11062 = vmatprep.mubr.bf16.mxu0 %v10726
        %11063 = vmatmul.mubr.bf16.gmra.mxu0 %v10694
        %v11064 = vpop.f32.mrf.mxu0
        %v11065 = vadd.f32 %v6904, %v11064
        %v11066 = vpop.f32.mrf.mxu0
        %v11067 = vpop.f32.mrf.mxu0
        %v11068 = vadd.f32 %v6904, %v11067
        %v11069 = vpop.f32.mrf.mxu0
        %11070 = vmatprep.mubr.bf16.mxu0 %v10730
        %11071 = vmatmul.mubr.bf16.gmra.mxu0 %v10698
        %v11072 = vpop.f32.mrf.mxu0
        %v11073 = vadd.f32 %v6904, %v11072
        %v11074 = vpop.f32.mrf.mxu0
        %v11075 = vpop.f32.mrf.mxu0
        %v11076 = vadd.f32 %v6904, %v11075
        %v11077 = vpop.f32.mrf.mxu0
        %11078 = vmatprep.mubr.bf16.mxu0 %v10734
        %11079 = vmatmul.mubr.bf16.gmra.mxu0 %v10702
        %v11080 = vpop.f32.mrf.mxu0
        %v11081 = vadd.f32 %v6904, %v11080
        %v11082 = vpop.f32.mrf.mxu0
        %v11083 = vpop.f32.mrf.mxu0
        %v11084 = vadd.f32 %v6904, %v11083
        %v11085 = vpop.f32.mrf.mxu0
        %11086 = vmatprep.mubr.bf16.mxu0 %v10738
        %11087 = vmatmul.mubr.bf16.gmra.mxu0 %v10706
        %v11088 = vpop.f32.mrf.mxu0
        %v11089 = vadd.f32 %v6904, %v11088
        %v11090 = vpop.f32.mrf.mxu0
        %v11091 = vpop.f32.mrf.mxu0
        %v11092 = vadd.f32 %v6904, %v11091
        %v11093 = vpop.f32.mrf.mxu0
        %11094 = vdwg.mxu0
        %11095 = vmatprep.subr.bf16.mxu0 0
        %11096 = vmatpush1.bf16.msra.mxu0 %v7219
        %11097 = vmatprep.subr.bf16.mxu0 0
        %11098 = vmatpush1.bf16.msra.mxu0 %v7216
        %11099 = vmatprep.subr.bf16.mxu0 0
        %11100 = vmatpush1.bf16.msra.mxu0 %v7213
        %11101 = vmatprep.subr.bf16.mxu0 0
        %11102 = vmatpush1.bf16.msra.mxu0 %v7210
        %11103 = vmatprep.subr.bf16.mxu0 0
        %11104 = vmatpush1.bf16.msra.mxu0 %v7207
        %11105 = vmatprep.subr.bf16.mxu0 0
        %11106 = vmatpush1.bf16.msra.mxu0 %v7204
        %11107 = vmatprep.subr.bf16.mxu0 0
        %11108 = vmatpush1.bf16.msra.mxu0 %v7201
        %11109 = vmatprep.subr.bf16.mxu0 0
        %11110 = vmatpush1.bf16.msra.mxu0 %v7198
        %11111 = vmatprep.subr.bf16.mxu0 0
        %11112 = vmatpush2.bf16.msra.mxu0 0
        %11113 = vmatprep.subr.bf16.mxu0 0
        %11114 = vmatpush2.bf16.msra.mxu0 0
        %11115 = vmatprep.subr.bf16.mxu0 0
        %11116 = vmatpush2.bf16.msra.mxu0 0
        %11117 = vmatprep.subr.bf16.mxu0 0
        %11118 = vmatpush2.bf16.msra.mxu0 0
        %11119 = vmatprep.subr.bf16.mxu0 0
        %11120 = vmatpush2.bf16.msra.mxu0 0
        %11121 = vmatprep.subr.bf16.mxu0 0
        %11122 = vmatpush2.bf16.msra.mxu0 0
        %11123 = vmatprep.subr.bf16.mxu0 0
        %11124 = vmatpush2.bf16.msra.mxu0 0
        %11125 = vmatprep.subr.bf16.mxu0 0
        %11126 = vmatpush2.bf16.msra.mxu0 0
        %11127 = vmatprep.mubr.bf16.mxu0 0
        %11128 = vmatmul.mubr.bf16.gmra.mxu0 %v10742
        %v11129 = vpop.f32.mrf.mxu0
        %v11130 = vadd.f32 %v11033, %v11129
        %v11131 = vpop.f32.mrf.mxu0
        %v11132 = vpop.f32.mrf.mxu0
        %v11133 = vadd.f32 %v11036, %v11132
        %v11134 = vpop.f32.mrf.mxu0
        %11135 = vmatprep.mubr.bf16.mxu0 0
        %11136 = vmatmul.mubr.bf16.gmra.mxu0 %v10746
        %v11137 = vpop.f32.mrf.mxu0
        %v11138 = vadd.f32 %v11041, %v11137
        %v11139 = vpop.f32.mrf.mxu0
        %v11140 = vpop.f32.mrf.mxu0
        %v11141 = vadd.f32 %v11044, %v11140
        %v11142 = vpop.f32.mrf.mxu0
        %11143 = vmatprep.mubr.bf16.mxu0 0
        %11144 = vmatmul.mubr.bf16.gmra.mxu0 %v10750
        %v11145 = vpop.f32.mrf.mxu0
        %v11146 = vadd.f32 %v11049, %v11145
        %v11147 = vpop.f32.mrf.mxu0
        %v11148 = vpop.f32.mrf.mxu0
        %v11149 = vadd.f32 %v11052, %v11148
        %v11150 = vpop.f32.mrf.mxu0
        %11151 = vmatprep.mubr.bf16.mxu0 0
        %11152 = vmatmul.mubr.bf16.gmra.mxu0 %v10754
        %v11153 = vpop.f32.mrf.mxu0
        %v11154 = vadd.f32 %v11057, %v11153
        %v11155 = vpop.f32.mrf.mxu0
        %v11156 = vpop.f32.mrf.mxu0
        %v11157 = vadd.f32 %v11060, %v11156
        %v11158 = vpop.f32.mrf.mxu0
        %11159 = vmatprep.mubr.bf16.mxu0 0
        %11160 = vmatmul.mubr.bf16.gmra.mxu0 %v10758
        %v11161 = vpop.f32.mrf.mxu0
        %v11162 = vadd.f32 %v11065, %v11161
        %v11163 = vpop.f32.mrf.mxu0
        %v11164 = vpop.f32.mrf.mxu0
        %v11165 = vadd.f32 %v11068, %v11164
        %v11166 = vpop.f32.mrf.mxu0
        %11167 = vmatprep.mubr.bf16.mxu0 0
        %11168 = vmatmul.mubr.bf16.gmra.mxu0 %v10762
        %v11169 = vpop.f32.mrf.mxu0
        %v11170 = vadd.f32 %v11073, %v11169
        %v11171 = vpop.f32.mrf.mxu0
        %v11172 = vpop.f32.mrf.mxu0
        %v11173 = vadd.f32 %v11076, %v11172
        %v11174 = vpop.f32.mrf.mxu0
        %11175 = vmatprep.mubr.bf16.mxu0 0
        %11176 = vmatmul.mubr.bf16.gmra.mxu0 %v10766
        %v11177 = vpop.f32.mrf.mxu0
        %v11178 = vadd.f32 %v11081, %v11177
        %v11179 = vpop.f32.mrf.mxu0
        %v11180 = vpop.f32.mrf.mxu0
        %v11181 = vadd.f32 %v11084, %v11180
        %v11182 = vpop.f32.mrf.mxu0
        %11183 = vmatprep.mubr.bf16.mxu0 0
        %11184 = vmatmul.mubr.bf16.gmra.mxu0 %v10770
        %v11185 = vpop.f32.mrf.mxu0
        %v11186 = vadd.f32 %v11089, %v11185
        %v11187 = vpop.f32.mrf.mxu0
        %v11188 = vpop.f32.mrf.mxu0
        %v11189 = vadd.f32 %v11092, %v11188
        %v11190 = vpop.f32.mrf.mxu0
        %11191 = vdwg.mxu0
        %s11192 = scalar_lea.vmem %s245, 384 [#allocation8]
        %11193 = vst [vmem:[%s11192] sm:$0xff] %v10920
        %11194 = vst [vmem:[%s11192 + $0x8] sm:$0xff] %v10922
        %11195 = vst [vmem:[%s11192 + $0x10] sm:$0xff] %v11130
        %11196 = vst [vmem:[%s11192 + $0x18] sm:$0xff] %v10924
        %11197 = vst [vmem:[%s11192 + $0x20] sm:$0xff] %v10926
        %11198 = vst [vmem:[%s11192 + $0x28] sm:$0xff] %v11133
        %11199 = vst [vmem:[%s11192 + $0x30] sm:$0xff] %v10930
        %11200 = vst [vmem:[%s11192 + $0x38] sm:$0xff] %v10932
        %11201 = vst [vmem:[%s11192 + $0x40] sm:$0xff] %v11138
        %11202 = vst [vmem:[%s11192 + $0x48] sm:$0xff] %v10934
        %11203 = vst [vmem:[%s11192 + $0x50] sm:$0xff] %v10936
        %11204 = vst [vmem:[%s11192 + $0x58] sm:$0xff] %v11141
        %11205 = vst [vmem:[%s11192 + $0x60] sm:$0xff] %v10940
        %11206 = vst [vmem:[%s11192 + $0x68] sm:$0xff] %v10942
        %11207 = vst [vmem:[%s11192 + $0x70] sm:$0xff] %v11146
        %11208 = vst [vmem:[%s11192 + $0x78] sm:$0xff] %v10944
        %11209 = vst [vmem:[%s11192 + $0x80] sm:$0xff] %v10946
        %11210 = vst [vmem:[%s11192 + $0x88] sm:$0xff] %v11149
        %11211 = vst [vmem:[%s11192 + $0x90] sm:$0xff] %v10950
        %11212 = vst [vmem:[%s11192 + $0x98] sm:$0xff] %v10952
        %11213 = vst [vmem:[%s11192 + $0xa0] sm:$0xff] %v11154
        %11214 = vst [vmem:[%s11192 + $0xa8] sm:$0xff] %v10954
        %11215 = vst [vmem:[%s11192 + $0xb0] sm:$0xff] %v10956
        %11216 = vst [vmem:[%s11192 + $0xb8] sm:$0xff] %v11157
        %11217 = vst [vmem:[%s11192 + $0xc0] sm:$0xff] %v10960
        %11218 = vst [vmem:[%s11192 + $0xc8] sm:$0xff] %v10962
        %11219 = vst [vmem:[%s11192 + $0xd0] sm:$0xff] %v11162
        %11220 = vst [vmem:[%s11192 + $0xd8] sm:$0xff] %v10964
        %11221 = vst [vmem:[%s11192 + $0xe0] sm:$0xff] %v10966
        %11222 = vst [vmem:[%s11192 + $0xe8] sm:$0xff] %v11165
        %11223 = vst [vmem:[%s11192 + $0xf0] sm:$0xff] %v10970
        %11224 = vst [vmem:[%s11192 + $0xf8] sm:$0xff] %v10972
        %11225 = vst [vmem:[%s11192 + $0x100] sm:$0xff] %v11170
        %11226 = vst [vmem:[%s11192 + $0x108] sm:$0xff] %v10974
        %11227 = vst [vmem:[%s11192 + $0x110] sm:$0xff] %v10976
        %11228 = vst [vmem:[%s11192 + $0x118] sm:$0xff] %v11173
        %11229 = vst [vmem:[%s11192 + $0x120] sm:$0xff] %v10980
        %11230 = vst [vmem:[%s11192 + $0x128] sm:$0xff] %v10982
        %11231 = vst [vmem:[%s11192 + $0x130] sm:$0xff] %v11178
        %11232 = vst [vmem:[%s11192 + $0x138] sm:$0xff] %v10984
        %11233 = vst [vmem:[%s11192 + $0x140] sm:$0xff] %v10986
        %11234 = vst [vmem:[%s11192 + $0x148] sm:$0xff] %v11181
        %11235 = vst [vmem:[%s11192 + $0x150] sm:$0xff] %v10990
        %11236 = vst [vmem:[%s11192 + $0x158] sm:$0xff] %v10992
        %11237 = vst [vmem:[%s11192 + $0x160] sm:$0xff] %v11186
        %11238 = vst [vmem:[%s11192 + $0x168] sm:$0xff] %v10994
        %11239 = vst [vmem:[%s11192 + $0x170] sm:$0xff] %v10996
        %11240 = vst [vmem:[%s11192 + $0x178] sm:$0xff] %v11189
        %s11241 = sand.u32 %s119, 1
        %s11242 = scalar_lea.sflag [#allocation4], %s11241
        %s11243 = sand.u32 %s119, 1
        %s11244 = smul.addr %s11243, 768
        %s11245 = scalar_lea.vmem [#allocation8], %s11244
        // Predicated region
        $region49: #{tpu_custom_call.1} parent=35 // pred_check
          %p11246 = pneg %p129
        $region50: #{tpu_custom_call.1} parent=35 // pred_check_branch
          %11248 = sbr.rel (%p11246) target = $region52
        $region51: #{tpu_custom_call.1} parent=35 // pred_region
          %s11249 = smul.u32 2, %s22
          %s11251 = ssub.s32 12288, 12288
          %11252 = vsyncadd %s11242, %s11251
          %s11253 = smul.addr %s11249, 48
          %s11254 = smul.addr %s11253, 128
          %s11255 = scalar_lea.hbm %s4, %s11254
          %s11256 = sshll.u32 %s11245, 4
          %s11257 = int_to_ptr.vmem [resolvable:$true] %s11256
          %11262 = dma.vmem_to_hbm [thread:$0]  %s11257, 12288, %s11255, %s11242, 384, 384, 24
        $region52: #{tpu_custom_call.1} parent=35 // pred_fallthru
          _
      $region36: #{tpu_custom_call.1} parent=5 // pred_fallthru
        _
      %p11263 = scmp.le.s32.totalorder 2, %s17
      // Predicated region
      $region53: #{tpu_custom_call.1} parent=5 // pred_check
        %p11264 = pneg %p11263
      $region54: #{tpu_custom_call.1} parent=5 // pred_check_branch
        %11266 = sbr.rel (%p11264) target = $region56
      $region55: #{tpu_custom_call.1} parent=5 // pred_region
        %s11267 = ssub.s32 %s17, 2
        // Predicated region
        $region57: #{tpu_custom_call.1} parent=55 // pred_check
          %p11268 = pneg %p135
        $region58: #{tpu_custom_call.1} parent=55 // pred_check_branch
          %11270 = sbr.rel (%p11268) target = $region60
        $region59: #{tpu_custom_call.1} parent=55 // pred_region
          %s11271 = sand.u32 %s120, 1
          %s11272 = scalar_lea.sflag [#allocation4], %s11271
          %s11273 = sand.u32 %s120, 1
          %s11274 = smul.addr %s11273, 768
          %s11275 = scalar_lea.vmem [#allocation8], %s11274
          %11276 = dma.done %s11272, 12288
        $region60: #{tpu_custom_call.1} parent=55 // pred_fallthru
          _
      $region56: #{tpu_custom_call.1} parent=5 // pred_fallthru
        _
    $region6: #{tpu_custom_call.1} parent=1 // loop_footer
      %s21 = sadd.s32 1, %s17
    $region7: #{tpu_custom_call.1} parent=1 // loop_footer_branch
      %16 = sbr.rel target = $region3
    $region8: #{tpu_custom_call.1} parent=1 // loop_exit
      _
    %11277 = vsyncpa [#allocation3], 1
    %s11278 = scalar_lea.sflag [#allocation3], 1
    %11279 = vsyncpa %s11278, 1
    %11280 = vsyncpa [#allocation6], 1
    %11281 = vsyncpa [#allocation4], 1
    %s11282 = scalar_lea.sflag [#allocation4], 1
    %11283 = vsyncpa %s11282, 1

</llo_original>
